<compile_context>
chip_gen: v6e
topology: v6e:2x2x1
jax: 0.10.0
libtpu: 0.0.40
codegen_flags: <defaults>
</compile_context>

<pallas_src>
import functools

import jax
import jax.numpy as jnp
from jax.experimental import pallas as pl
from jax.experimental.pallas import tpu as pltpu


# Pooled-output geometry (fixed by the 32x32 cifar_Net spec).
G1, GP1 = 14 * 14, 200    # conv1: 196 pooled positions, padded to 200 (mult of 8)
G2, GP2 = 5 * 5, 32       # conv2: 25 pooled positions, padded to 32


# ---------------------------------------------------------------------------
# Kernel 1: fused conv (as one patch matmul) + bias + ReLU + 2x2 max-pool.
# ---------------------------------------------------------------------------

def _conv_mm_pool_kernel(p_ref, w_ref, b_ref, o_ref, *, NB, G_pad):
    """One grid step = NB images.

    p_ref : (NB*4*G_pad, Kp) bf16  im2col patches; per image the rows are the
                                   4 pooling quadrants (r,c), each G_pad rows
                                   in (ph, pw) order (zero-padded rows/lanes).
    w_ref : (Kp, N)          bf16  folded (kh,kw,cin) x padded-Cout weights.
    b_ref : (1, N)           f32   lane-padded bias.
    o_ref : (NB*G_pad, N)    bf16  pooled activations, (ph, pw) row order.
    """
    acc = jnp.dot(p_ref[...], w_ref[...], preferred_element_type=jnp.float32)
    acc = jnp.maximum(acc + b_ref[...], 0.0)          # bias + ReLU in f32
    # 2x2 max-pool == elementwise max over the 4 quadrant row-groups
    # (all slice offsets are multiples of 8 -> aligned, in-vreg, no scratch).
    for img in range(NB):
        base = img * 4 * G_pad
        q = acc[base:base + G_pad, :]
        for c in range(1, 4):
            q = jnp.maximum(q, acc[base + c * G_pad:base + (c + 1) * G_pad, :])
        o_ref[img * G_pad:(img + 1) * G_pad, :] = q.astype(o_ref.dtype)


def conv_mm_pool(patches, w, b, *, NB, G_pad):
    """patches: (B*4*G_pad, Kp) bf16, w: (Kp, N) bf16, b: (1, N) f32.
    Returns pooled activations (B*G_pad, N) bf16."""
    M_total, Kp = patches.shape
    N = w.shape[1]
    B = M_total // (4 * G_pad)
    assert B % NB == 0
    rows_in, rows_out = NB * 4 * G_pad, NB * G_pad
    flops = 2 * M_total * Kp * N
    bytes_accessed = patches.size * 2 + w.size * 2 + b.size * 4 + B * G_pad * N * 2
    kernel = functools.partial(_conv_mm_pool_kernel, NB=NB, G_pad=G_pad)
    return pl.pallas_call(
        kernel,
        out_shape=jax.ShapeDtypeStruct((B * G_pad, N), jnp.bfloat16),
        grid=(B // NB,),
        in_specs=[
            pl.BlockSpec((rows_in, Kp), lambda i: (i, 0)),
            pl.BlockSpec((Kp, N), lambda i: (0, 0)),
            pl.BlockSpec((1, N), lambda i: (0, 0)),
        ],
        out_specs=pl.BlockSpec((rows_out, N), lambda i: (i, 0)),
        compiler_params=pltpu.CompilerParams(dimension_semantics=("parallel",)),
        cost_estimate=pl.CostEstimate(flops=flops, transcendentals=0,
                                      bytes_accessed=bytes_accessed),
    )(patches, w, b)


# ---------------------------------------------------------------------------
# Kernel 2: fused FC stack fc1+ReLU -> fc2+ReLU -> fc3 (bounded batch tile).
# ---------------------------------------------------------------------------

def _fc_stack_kernel(x_ref, w1_ref, b1_ref, w2_ref, b2_ref, w3_ref, b3_ref,
                     o_ref):
    f32 = jnp.float32
    h1 = jnp.maximum(
        jnp.dot(x_ref[...], w1_ref[...], preferred_element_type=f32)
        + b1_ref[...], 0.0).astype(jnp.bfloat16)                 # (TB, 128)
    h2 = jnp.maximum(
        jnp.dot(h1, w2_ref[...], preferred_element_type=f32)
        + b2_ref[...], 0.0).astype(jnp.bfloat16)                 # (TB, 128)
    o_ref[...] = (jnp.dot(h2, w3_ref[...], preferred_element_type=f32)
                  + b3_ref[...])                                 # (TB, 10) f32


def fc_stack(xf, w1, b1, w2, b2, w3, b3, *, tb=128):
    B, K = xf.shape
    N_out = w3.shape[1]
    TB = min(tb, B)                         # bounded tile (v7x 64 MiB VMEM safe)
    Bp = ((B + TB - 1) // TB) * TB
    if Bp != B:
        xf = jnp.pad(xf, ((0, Bp - B), (0, 0)))
    flops = 2 * Bp * (K * w1.shape[1] + w1.shape[1] * w2.shape[1]
                      + w2.shape[1] * N_out)
    bytes_accessed = (xf.size * 2 + w1.size * 2 + w2.size * 2 + w3.size * 2
                      + Bp * N_out * 4)
    out = pl.pallas_call(
        _fc_stack_kernel,
        out_shape=jax.ShapeDtypeStruct((Bp, N_out), jnp.float32),
        grid=(Bp // TB,),
        in_specs=[
            pl.BlockSpec((TB, K), lambda i: (i, 0)),
            pl.BlockSpec(w1.shape, lambda i: (0, 0)),
            pl.BlockSpec(b1.shape, lambda i: (0, 0)),
            pl.BlockSpec(w2.shape, lambda i: (0, 0)),
            pl.BlockSpec(b2.shape, lambda i: (0, 0)),
            pl.BlockSpec(w3.shape, lambda i: (0, 0)),
            pl.BlockSpec(b3.shape, lambda i: (0, 0)),
        ],
        out_specs=pl.BlockSpec((TB, N_out), lambda i: (i, 0)),
        compiler_params=pltpu.CompilerParams(
            dimension_semantics=("parallel",),
            vmem_limit_bytes=32 * 1024 * 1024),
        cost_estimate=pl.CostEstimate(flops=flops, transcendentals=0,
                                      bytes_accessed=bytes_accessed),
    )(xf, w1, b1, w2, b2, w3, b3)
    return out[:B]


# ---------------------------------------------------------------------------
# Wrapper-side patch construction (tiny tensors; pure XLA slicing/concat).
# ---------------------------------------------------------------------------

def _im2col_quadrants(x_nhwc, KH, KW, Kp, G_pad):
    """VALID KHxKW patches with all taps folded into the K (lane) dim, rows
    reordered into the 4 pooling quadrants so the 2x2 max-pool becomes three
    aligned maxima inside the kernel.

    Returns (B*4*G_pad, Kp) bf16.  Row layout: [b, quadrant=r*2+c, ph*PW+pw];
    column layout: [(kh*KW + kw)*Cin + cin], zero-padded to Kp."""
    B, H, W, C = x_nhwc.shape
    OH, OW = H - KH + 1, W - KW + 1
    PH, PW = OH // 2, OW // 2
    G = PH * PW
    taps = [x_nhwc[:, i:i + OH, j:j + OW, :] for i in range(KH) for j in range(KW)]
    pat = jnp.concatenate(taps, axis=-1)                 # (B, OH, OW, KH*KW*C)
    pat = pat.reshape(B, PH, 2, PW, 2, KH * KW * C)      # oh=2*ph+r, ow=2*pw+c
    pat = pat.transpose(0, 2, 4, 1, 3, 5)                # (B, r, c, PH, PW, K)
    pat = pat.reshape(B, 4, G, KH * KW * C)
    pat = jnp.pad(pat, ((0, 0), (0, 0), (0, G_pad - G), (0, Kp - KH * KW * C)))
    return pat.reshape(B * 4 * G_pad, Kp).astype(jnp.bfloat16)


# ---------------------------------------------------------------------------
# One-time parameter preparation (hoisted out of the forward pass).
# ---------------------------------------------------------------------------

def prepare_params(p):
    bf16, f32 = jnp.bfloat16, jnp.float32

    def conv_prep(w_oihw, b, k_pad, n_pad):
        Cout, Cin, KH, KW = w_oihw.shape
        w = jnp.transpose(w_oihw, (2, 3, 1, 0)).reshape(KH * KW * Cin, Cout)
        w = jnp.pad(w, ((0, k_pad - KH * KW * Cin), (0, n_pad - Cout)))
        bp = jnp.pad(b, (0, n_pad - Cout)).reshape(1, n_pad)
        return w.astype(bf16), bp.astype(f32)

    c1_w, c1_b = conv_prep(p["conv1_w"], p["conv1_b"], 128, 128)   # K 75->128
    c2_w, c2_b = conv_prep(p["conv2_w"], p["conv2_b"], 512, 256)   # K 500->512

    # fc1: torch flatten order (c, h, w) -> kernel order (m=h*5+w, c_pad); junk
    # activation rows/lanes get zero weight rows so they contribute exactly 0.
    w1 = p["fc1_w"].reshape(200, 25, 120).transpose(1, 0, 2)       # (25,200,120)
    w1 = jnp.pad(w1, ((0, GP2 - 25), (0, 256 - 200), (0, 128 - 120)))
    w1 = w1.reshape(GP2 * 256, 128).astype(bf16)                   # (8192, 128)
    b1 = jnp.pad(p["fc1_b"], (0, 128 - 120)).reshape(1, 128).astype(f32)
    w2 = jnp.pad(p["fc2_w"], ((0, 128 - 120), (0, 128 - 84))).astype(bf16)
    b2 = jnp.pad(p["fc2_b"], (0, 128 - 84)).reshape(1, 128).astype(f32)
    w3 = jnp.pad(p["fc3_w"], ((0, 128 - 84), (0, 0))).astype(bf16)  # (128, 10)
    b3 = p["fc3_b"].reshape(1, 10).astype(f32)

    return dict(c1_w=c1_w, c1_b=c1_b, c2_w=c2_w, c2_b=c2_b,
                fc1_w=w1, fc1_b=b1, fc2_w=w2, fc2_b=b2, fc3_w=w3, fc3_b=b3)


def _pick_batch_block(B, cap=8):
    """Largest divisor of B (<= cap) that still leaves >= 2 grid steps, so both
    v7x TensorCores get work; fall back to the largest divisor for tiny B."""
    divisors = [d for d in range(1, min(cap, B) + 1) if B % d == 0]
    two_step = [d for d in divisors if B // d >= 2]
    return max(two_step) if two_step else max(divisors)


# ---------------------------------------------------------------------------
# Full forward pass (3 pallas_calls total).
# ---------------------------------------------------------------------------

@jax.jit
def cifar_net_forward(prep, x_nchw):
    B = x_nchw.shape[0]
    nb = _pick_batch_block(B)
    x = jnp.transpose(x_nchw, (0, 2, 3, 1)).astype(jnp.bfloat16)        # NHWC bf16

    # conv1 + ReLU + pool:  (B*800,128) @ (128,128) -> (B*200,128)
    p1 = _im2col_quadrants(x, 5, 5, 128, GP1)
    y1 = conv_mm_pool(p1, prep["c1_w"], prep["c1_b"], NB=nb, G_pad=GP1)
    x1 = y1.reshape(B, GP1, 128)[:, :G1, :20].reshape(B, 14, 14, 20)

    # conv2 + ReLU + pool:  (B*128,512) @ (512,256) -> (B*32,256)
    p2 = _im2col_quadrants(x1, 5, 5, 512, GP2)
    y2 = conv_mm_pool(p2, prep["c2_w"], prep["c2_b"], NB=nb, G_pad=GP2)

    # fc1+ReLU -> fc2+ReLU -> fc3 (junk rows/lanes killed by zero weight rows)
    xf = y2.reshape(B, GP2 * 256)                                        # (B, 8192)
    return fc_stack(xf, prep["fc1_w"], prep["fc1_b"], prep["fc2_w"],
                    prep["fc2_b"], prep["fc3_w"], prep["fc3_b"])         # (B, 10)


# ---------------------------------------------------------------------------
# Deterministic synthetic parameters (PyTorch default-init style bounds).
# ---------------------------------------------------------------------------

def init_params(key):
    def u(k, shape, fan_in):
        bound = 1.0 / float(fan_in) ** 0.5
        return jax.random.uniform(k, shape, jnp.float32, -bound, bound)

    ks = jax.random.split(key, 10)
    p = {}
    p["conv1_w"] = u(ks[0], (20, 3, 5, 5), 3 * 25)          # OIHW
    p["conv1_b"] = u(ks[1], (20,), 3 * 25)
    p["conv2_w"] = u(ks[2], (200, 20, 5, 5), 20 * 25)       # OIHW
    p["conv2_b"] = u(ks[3], (200,), 20 * 25)
    p["fc1_w"] = u(ks[4], (200 * 5 * 5, 120), 200 * 5 * 5)  # stored (in, out)
    p["fc1_b"] = u(ks[5], (120,), 200 * 5 * 5)
    p["fc2_w"] = u(ks[6], (120, 84), 120)
    p["fc2_b"] = u(ks[7], (84,), 120)
    p["fc3_w"] = u(ks[8], (84, 10), 84)
    p["fc3_b"] = u(ks[9], (10,), 84)
    return p


# ---------------------------------------------------------------------------
# Pure-JAX reference with matching numerics (bf16 matmul inputs, f32 accum,
# intermediates rounded to bf16 at the same points the kernels store them).
# ---------------------------------------------------------------------------

def reference_forward(params, x_nchw):
    bf16, f32 = jnp.bfloat16, jnp.float32

    def conv(x, w, b):
        y = jax.lax.conv_general_dilated(
            x.astype(bf16), w.astype(bf16), window_strides=(1, 1),
            padding="VALID", dimension_numbers=("NCHW", "OIHW", "NCHW"),
            preferred_element_type=f32)
        return jax.nn.relu(y + b[None, :, None, None])

    def pool(x):
        return jax.lax.reduce_window(x, -jnp.inf, jax.lax.max,
                                     (1, 1, 2, 2), (1, 1, 2, 2), "VALID")

    x = pool(conv(x_nchw, params["conv1_w"], params["conv1_b"])).astype(bf16)
    x = pool(conv(x, params["conv2_w"], params["conv2_b"])).astype(bf16)
    x = x.reshape(x.shape[0], -1)                       # (B,5000), (c,h,w) order
    h1 = jax.nn.relu(jnp.dot(x, params["fc1_w"].astype(bf16),
                             preferred_element_type=f32)
                     + params["fc1_b"]).astype(bf16)
    h2 = jax.nn.relu(jnp.dot(h1, params["fc2_w"].astype(bf16),
                             preferred_element_type=f32)
                     + params["fc2_b"]).astype(bf16)
    return (jnp.dot(h2, params["fc3_w"].astype(bf16),
                    preferred_element_type=f32) + params["fc3_b"])


if __name__ == "__main__":
    key = jax.random.PRNGKey(0)
    pkey, xkey = jax.random.split(key)
    params = init_params(pkey)
    prep = prepare_params(params)

    # cifar_Net's fc1 (200*5*5) requires 32x32 spatial input; keep batch small.
    x = jax.random.normal(xkey, (2, 3, 32, 32), jnp.float32)

    out = jax.block_until_ready(cifar_net_forward(prep, x))
    ref = jax.block_until_ready(reference_forward(params, x))

    assert out.shape == (2, 10), out.shape
    err = float(jnp.max(jnp.abs(out - ref)))
    assert jnp.allclose(out, ref, rtol=3e-2, atol=3e-2), f"max abs err {err}"
    print("KERNEL_OK")
</pallas_src>

<mosaic_0001>
module attributes {stable_mosaic.version = 11 : i64} {
  func.func @_conv_mm_pool_kernel(%arg0: i32, %arg1: memref<800x128xbf16, #tpu.memory_space<vmem>>, %arg2: memref<128x128xbf16, #tpu.memory_space<vmem>>, %arg3: memref<1x128xf32, #tpu.memory_space<vmem>>, %arg4: memref<200x128xbf16, #tpu.memory_space<vmem>>) attributes {dimension_semantics = [#tpu.dimension_semantics<parallel>], iteration_bounds = array<i64: 2>, scalar_prefetch = 0 : i64, scratch_operands = 0 : i64, tpu.core_type = #tpu.core_type<tc>, window_params = [{transform_indices = @transform_0, window_bounds = array<i64: 800, 128>}, {pipeline_mode = #tpu.pipeline_mode<synchronous>, transform_indices = @transform_1, window_bounds = array<i64: 128, 128>}, {pipeline_mode = #tpu.pipeline_mode<synchronous>, transform_indices = @transform_2, window_bounds = array<i64: 1, 128>}, {transform_indices = @transform_3, window_bounds = array<i64: 200, 128>}]} {
    %c0 = arith.constant 0 : index
    %c0_0 = arith.constant 0 : index
    %0 = vector.load %arg1[%c0, %c0_0] : memref<800x128xbf16, #tpu.memory_space<vmem>>, vector<800x128xbf16>
    %c0_1 = arith.constant 0 : index
    %c0_2 = arith.constant 0 : index
    %1 = vector.load %arg2[%c0_1, %c0_2] : memref<128x128xbf16, #tpu.memory_space<vmem>>, vector<128x128xbf16>
    %cst = arith.constant dense<0.000000e+00> : vector<800x128xf32>
    %2 = tpu.matmul %0, %1, %cst {dimension_numbers = #tpu.dot_dimension_numbers<[1], [0], [0], [1], [0, 0, 1, 1], [], []>} : vector<800x128xbf16>, vector<128x128xbf16>, vector<800x128xf32> -> vector<800x128xf32>
    %c0_3 = arith.constant 0 : index
    %c0_4 = arith.constant 0 : index
    %3 = vector.load %arg3[%c0_3, %c0_4] : memref<1x128xf32, #tpu.memory_space<vmem>>, vector<1x128xf32>
    %4 = vector.broadcast %3 : vector<1x128xf32> to vector<800x128xf32>
    %5 = arith.addf %2, %4 : vector<800x128xf32>
    %cst_5 = arith.constant 0.000000e+00 : f32
    %6 = vector.broadcast %cst_5 : f32 to vector<800x128xf32>
    %7 = arith.maximumf %5, %6 : vector<800x128xf32>
    %8 = vector.extract_strided_slice %7 {offsets = [0, 0], sizes = [200, 128], strides = [1, 1]} : vector<800x128xf32> to vector<200x128xf32>
    %9 = vector.extract_strided_slice %7 {offsets = [200, 0], sizes = [200, 128], strides = [1, 1]} : vector<800x128xf32> to vector<200x128xf32>
    %10 = arith.maximumf %8, %9 : vector<200x128xf32>
    %11 = vector.extract_strided_slice %7 {offsets = [400, 0], sizes = [200, 128], strides = [1, 1]} : vector<800x128xf32> to vector<200x128xf32>
    %12 = arith.maximumf %10, %11 : vector<200x128xf32>
    %13 = vector.extract_strided_slice %7 {offsets = [600, 0], sizes = [200, 128], strides = [1, 1]} : vector<800x128xf32> to vector<200x128xf32>
    %14 = arith.maximumf %12, %13 : vector<200x128xf32>
    %15 = arith.truncf %14 : vector<200x128xf32> to vector<200x128xbf16>
    %c0_6 = arith.constant 0 : index
    %c0_7 = arith.constant 0 : index
    %16 = vector.load %arg4[%c0_6, %c0_7] : memref<200x128xbf16, #tpu.memory_space<vmem>>, vector<200x128xbf16>
    tpu.vector_store %arg4[%c0_6, %c0_7], %15 {strides = array<i32>} : memref<200x128xbf16, #tpu.memory_space<vmem>>, vector<200x128xbf16>,
    return
  }
  func.func @transform_0(%arg0: i32) -> (i32, i32) {
    %c0_i32 = arith.constant 0 : i32
    %c0_i32_0 = arith.constant 0 : i32
    return %arg0, %c0_i32 : i32, i32
  }
  func.func @transform_1(%arg0: i32) -> (i32, i32) {
    %c0_i32 = arith.constant 0 : i32
    %c0_i32_0 = arith.constant 0 : i32
    %c0_i32_1 = arith.constant 0 : i32
    return %c0_i32, %c0_i32_0 : i32, i32
  }
  func.func @transform_2(%arg0: i32) -> (i32, i32) {
    %c0_i32 = arith.constant 0 : i32
    %c0_i32_0 = arith.constant 0 : i32
    %c0_i32_1 = arith.constant 0 : i32
    return %c0_i32, %c0_i32_0 : i32, i32
  }
  func.func @transform_3(%arg0: i32) -> (i32, i32) {
    %c0_i32 = arith.constant 0 : i32
    %c0_i32_0 = arith.constant 0 : i32
    return %arg0, %c0_i32 : i32, i32
  }
}

module attributes {stable_mosaic.version = 11 : i64} {
  func.func @_conv_mm_pool_kernel(%arg0: i32, %arg1: memref<128x512xbf16, #tpu.memory_space<vmem>>, %arg2: memref<512x256xbf16, #tpu.memory_space<vmem>>, %arg3: memref<1x256xf32, #tpu.memory_space<vmem>>, %arg4: memref<32x256xbf16, #tpu.memory_space<vmem>>) attributes {dimension_semantics = [#tpu.dimension_semantics<parallel>], iteration_bounds = array<i64: 2>, scalar_prefetch = 0 : i64, scratch_operands = 0 : i64, tpu.core_type = #tpu.core_type<tc>, window_params = [{transform_indices = @transform_0, window_bounds = array<i64: 128, 512>}, {pipeline_mode = #tpu.pipeline_mode<synchronous>, transform_indices = @transform_1, window_bounds = array<i64: 512, 256>}, {pipeline_mode = #tpu.pipeline_mode<synchronous>, transform_indices = @transform_2, window_bounds = array<i64: 1, 256>}, {transform_indices = @transform_3, window_bounds = array<i64: 32, 256>}]} {
    %c0 = arith.constant 0 : index
    %c0_0 = arith.constant 0 : index
    %0 = vector.load %arg1[%c0, %c0_0] : memref<128x512xbf16, #tpu.memory_space<vmem>>, vector<128x512xbf16>
    %c0_1 = arith.constant 0 : index
    %c0_2 = arith.constant 0 : index
    %1 = vector.load %arg2[%c0_1, %c0_2] : memref<512x256xbf16, #tpu.memory_space<vmem>>, vector<512x256xbf16>
    %cst = arith.constant dense<0.000000e+00> : vector<128x256xf32>
    %2 = tpu.matmul %0, %1, %cst {dimension_numbers = #tpu.dot_dimension_numbers<[1], [0], [0], [1], [0, 0, 1, 1], [], []>} : vector<128x512xbf16>, vector<512x256xbf16>, vector<128x256xf32> -> vector<128x256xf32>
    %c0_3 = arith.constant 0 : index
    %c0_4 = arith.constant 0 : index
    %3 = vector.load %arg3[%c0_3, %c0_4] : memref<1x256xf32, #tpu.memory_space<vmem>>, vector<1x256xf32>
    %4 = vector.broadcast %3 : vector<1x256xf32> to vector<128x256xf32>
    %5 = arith.addf %2, %4 : vector<128x256xf32>
    %cst_5 = arith.constant 0.000000e+00 : f32
    %6 = vector.broadcast %cst_5 : f32 to vector<128x256xf32>
    %7 = arith.maximumf %5, %6 : vector<128x256xf32>
    %8 = vector.extract_strided_slice %7 {offsets = [0, 0], sizes = [32, 256], strides = [1, 1]} : vector<128x256xf32> to vector<32x256xf32>
    %9 = vector.extract_strided_slice %7 {offsets = [32, 0], sizes = [32, 256], strides = [1, 1]} : vector<128x256xf32> to vector<32x256xf32>
    %10 = arith.maximumf %8, %9 : vector<32x256xf32>
    %11 = vector.extract_strided_slice %7 {offsets = [64, 0], sizes = [32, 256], strides = [1, 1]} : vector<128x256xf32> to vector<32x256xf32>
    %12 = arith.maximumf %10, %11 : vector<32x256xf32>
    %13 = vector.extract_strided_slice %7 {offsets = [96, 0], sizes = [32, 256], strides = [1, 1]} : vector<128x256xf32> to vector<32x256xf32>
    %14 = arith.maximumf %12, %13 : vector<32x256xf32>
    %15 = arith.truncf %14 : vector<32x256xf32> to vector<32x256xbf16>
    %c0_6 = arith.constant 0 : index
    %c0_7 = arith.constant 0 : index
    %16 = vector.load %arg4[%c0_6, %c0_7] : memref<32x256xbf16, #tpu.memory_space<vmem>>, vector<32x256xbf16>
    tpu.vector_store %arg4[%c0_6, %c0_7], %15 {strides = array<i32>} : memref<32x256xbf16, #tpu.memory_space<vmem>>, vector<32x256xbf16>,
    return
  }
  func.func @transform_0(%arg0: i32) -> (i32, i32) {
    %c0_i32 = arith.constant 0 : i32
    %c0_i32_0 = arith.constant 0 : i32
    return %arg0, %c0_i32 : i32, i32
  }
  func.func @transform_1(%arg0: i32) -> (i32, i32) {
    %c0_i32 = arith.constant 0 : i32
    %c0_i32_0 = arith.constant 0 : i32
    %c0_i32_1 = arith.constant 0 : i32
    return %c0_i32, %c0_i32_0 : i32, i32
  }
  func.func @transform_2(%arg0: i32) -> (i32, i32) {
    %c0_i32 = arith.constant 0 : i32
    %c0_i32_0 = arith.constant 0 : i32
    %c0_i32_1 = arith.constant 0 : i32
    return %c0_i32, %c0_i32_0 : i32, i32
  }
  func.func @transform_3(%arg0: i32) -> (i32, i32) {
    %c0_i32 = arith.constant 0 : i32
    %c0_i32_0 = arith.constant 0 : i32
    return %arg0, %c0_i32 : i32, i32
  }
}

module attributes {stable_mosaic.version = 11 : i64} {
  func.func @_fc_stack_kernel(%arg0: i32, %arg1: memref<2x8192xbf16, #tpu.memory_space<vmem>>, %arg2: memref<8192x128xbf16, #tpu.memory_space<vmem>>, %arg3: memref<1x128xf32, #tpu.memory_space<vmem>>, %arg4: memref<128x128xbf16, #tpu.memory_space<vmem>>, %arg5: memref<1x128xf32, #tpu.memory_space<vmem>>, %arg6: memref<128x10xbf16, #tpu.memory_space<vmem>>, %arg7: memref<1x10xf32, #tpu.memory_space<vmem>>, %arg8: memref<2x10xf32, #tpu.memory_space<vmem>>) attributes {dimension_semantics = [#tpu.dimension_semantics<parallel>], iteration_bounds = array<i64: 1>, scalar_prefetch = 0 : i64, scratch_operands = 0 : i64, tpu.core_type = #tpu.core_type<tc>, window_params = [{transform_indices = @transform_0, window_bounds = array<i64: 2, 8192>}, {pipeline_mode = #tpu.pipeline_mode<synchronous>, transform_indices = @transform_1, window_bounds = array<i64: 8192, 128>}, {pipeline_mode = #tpu.pipeline_mode<synchronous>, transform_indices = @transform_2, window_bounds = array<i64: 1, 128>}, {pipeline_mode = #tpu.pipeline_mode<synchronous>, transform_indices = @transform_3, window_bounds = array<i64: 128, 128>}, {pipeline_mode = #tpu.pipeline_mode<synchronous>, transform_indices = @transform_4, window_bounds = array<i64: 1, 128>}, {pipeline_mode = #tpu.pipeline_mode<synchronous>, transform_indices = @transform_5, window_bounds = array<i64: 128, 10>}, {pipeline_mode = #tpu.pipeline_mode<synchronous>, transform_indices = @transform_6, window_bounds = array<i64: 1, 10>}, {transform_indices = @transform_7, window_bounds = array<i64: 2, 10>}]} {
    %c0 = arith.constant 0 : index
    %c0_0 = arith.constant 0 : index
    %0 = vector.load %arg1[%c0, %c0_0] : memref<2x8192xbf16, #tpu.memory_space<vmem>>, vector<2x8192xbf16>
    %c0_1 = arith.constant 0 : index
    %c0_2 = arith.constant 0 : index
    %1 = vector.load %arg2[%c0_1, %c0_2] : memref<8192x128xbf16, #tpu.memory_space<vmem>>, vector<8192x128xbf16>
    %cst = arith.constant dense<0.000000e+00> : vector<2x128xf32>
    %2 = tpu.matmul %0, %1, %cst {dimension_numbers = #tpu.dot_dimension_numbers<[1], [0], [0], [1], [0, 0, 1, 1], [], []>} : vector<2x8192xbf16>, vector<8192x128xbf16>, vector<2x128xf32> -> vector<2x128xf32>
    %c0_3 = arith.constant 0 : index
    %c0_4 = arith.constant 0 : index
    %3 = vector.load %arg3[%c0_3, %c0_4] : memref<1x128xf32, #tpu.memory_space<vmem>>, vector<1x128xf32>
    %4 = vector.broadcast %3 : vector<1x128xf32> to vector<2x128xf32>
    %5 = arith.addf %2, %4 : vector<2x128xf32>
    %cst_5 = arith.constant 0.000000e+00 : f32
    %6 = vector.broadcast %cst_5 : f32 to vector<2x128xf32>
    %7 = arith.maximumf %5, %6 : vector<2x128xf32>
    %8 = arith.truncf %7 : vector<2x128xf32> to vector<2x128xbf16>
    %c0_6 = arith.constant 0 : index
    %c0_7 = arith.constant 0 : index
    %9 = vector.load %arg4[%c0_6, %c0_7] : memref<128x128xbf16, #tpu.memory_space<vmem>>, vector<128x128xbf16>
    %cst_8 = arith.constant dense<0.000000e+00> : vector<2x128xf32>
    %10 = tpu.matmul %8, %9, %cst_8 {dimension_numbers = #tpu.dot_dimension_numbers<[1], [0], [0], [1], [0, 0, 1, 1], [], []>} : vector<2x128xbf16>, vector<128x128xbf16>, vector<2x128xf32> -> vector<2x128xf32>
    %c0_9 = arith.constant 0 : index
    %c0_10 = arith.constant 0 : index
    %11 = vector.load %arg5[%c0_9, %c0_10] : memref<1x128xf32, #tpu.memory_space<vmem>>, vector<1x128xf32>
    %12 = vector.broadcast %11 : vector<1x128xf32> to vector<2x128xf32>
    %13 = arith.addf %10, %12 : vector<2x128xf32>
    %cst_11 = arith.constant 0.000000e+00 : f32
    %14 = vector.broadcast %cst_11 : f32 to vector<2x128xf32>
    %15 = arith.maximumf %13, %14 : vector<2x128xf32>
    %16 = arith.truncf %15 : vector<2x128xf32> to vector<2x128xbf16>
    %c0_12 = arith.constant 0 : index
    %c0_13 = arith.constant 0 : index
    %17 = vector.load %arg6[%c0_12, %c0_13] : memref<128x10xbf16, #tpu.memory_space<vmem>>, vector<128x10xbf16>
    %cst_14 = arith.constant dense<0.000000e+00> : vector<2x10xf32>
    %18 = tpu.matmul %16, %17, %cst_14 {dimension_numbers = #tpu.dot_dimension_numbers<[1], [0], [0], [1], [0, 0, 1, 1], [], []>} : vector<2x128xbf16>, vector<128x10xbf16>, vector<2x10xf32> -> vector<2x10xf32>
    %c0_15 = arith.constant 0 : index
    %c0_16 = arith.constant 0 : index
    %19 = vector.load %arg7[%c0_15, %c0_16] : memref<1x10xf32, #tpu.memory_space<vmem>>, vector<1x10xf32>
    %20 = vector.broadcast %19 : vector<1x10xf32> to vector<2x10xf32>
    %21 = arith.addf %18, %20 : vector<2x10xf32>
    %c0_17 = arith.constant 0 : index
    %c0_18 = arith.constant 0 : index
    %22 = vector.load %arg8[%c0_17, %c0_18] : memref<2x10xf32, #tpu.memory_space<vmem>>, vector<2x10xf32>
    tpu.vector_store %arg8[%c0_17, %c0_18], %21 {strides = array<i32>} : memref<2x10xf32, #tpu.memory_space<vmem>>, vector<2x10xf32>,
    return
  }
  func.func @transform_0(%arg0: i32) -> (i32, i32) {
    %c0_i32 = arith.constant 0 : i32
    %c0_i32_0 = arith.constant 0 : i32
    return %arg0, %c0_i32 : i32, i32
  }
  func.func @transform_1(%arg0: i32) -> (i32, i32) {
    %c0_i32 = arith.constant 0 : i32
    %c0_i32_0 = arith.constant 0 : i32
    %c0_i32_1 = arith.constant 0 : i32
    return %c0_i32, %c0_i32_0 : i32, i32
  }
  func.func @transform_2(%arg0: i32) -> (i32, i32) {
    %c0_i32 = arith.constant 0 : i32
    %c0_i32_0 = arith.constant 0 : i32
    %c0_i32_1 = arith.constant 0 : i32
    return %c0_i32, %c0_i32_0 : i32, i32
  }
  func.func @transform_3(%arg0: i32) -> (i32, i32) {
    %c0_i32 = arith.constant 0 : i32
    %c0_i32_0 = arith.constant 0 : i32
    %c0_i32_1 = arith.constant 0 : i32
    return %c0_i32, %c0_i32_0 : i32, i32
  }
  func.func @transform_4(%arg0: i32) -> (i32, i32) {
    %c0_i32 = arith.constant 0 : i32
    %c0_i32_0 = arith.constant 0 : i32
    %c0_i32_1 = arith.constant 0 : i32
    return %c0_i32, %c0_i32_0 : i32, i32
  }
  func.func @transform_5(%arg0: i32) -> (i32, i32) {
    %c0_i32 = arith.constant 0 : i32
    %c0_i32_0 = arith.constant 0 : i32
    %c0_i32_1 = arith.constant 0 : i32
    return %c0_i32, %c0_i32_0 : i32, i32
  }
  func.func @transform_6(%arg0: i32) -> (i32, i32) {
    %c0_i32 = arith.constant 0 : i32
    %c0_i32_0 = arith.constant 0 : i32
    %c0_i32_1 = arith.constant 0 : i32
    return %c0_i32, %c0_i32_0 : i32, i32
  }
  func.func @transform_7(%arg0: i32) -> (i32, i32) {
    %c0_i32 = arith.constant 0 : i32
    %c0_i32_0 = arith.constant 0 : i32
    return %arg0, %c0_i32 : i32, i32
  }
}

</mosaic_0001>

<llo_original>
// kernel: cifar_net_forward.3
$region0: #{cifar_net_forward.3}
  #allocation0 [shape = 'u32[]', space=smem, size = 0x4, offset = 0x4, fixed_abs, tag = 'smem constant byte address 0x4 - core index']
  #allocation1 [shape = 'u32[144,128]{1,0:T(1,128)}', space=vmem, size = 0x12000, scoped, tag = 'internal scratch']
  %s0 = inlined_call_operand.vmem [shape: bf16[1600,128], index: 0, kind: input, shape index: {}]
  %s1 = inlined_call_operand.vmem [shape: bf16[128,128], index: 1, kind: input, shape index: {}]
  %s2 = inlined_call_operand.vmem [shape: f32[1,128], index: 2, kind: input, shape index: {}]
  %s3 = inlined_call_operand.vmem [shape: bf16[400,128], index: 3, kind: output, shape index: {}]
  %s4 = sld [smem:[#allocation0]]
  $region45: #{cifar_net_forward.3} parent=0
    _
  %s6 = ssub.s32 1, %s4
  %s7 = scalar_select 0, %s6, %s4
  loop: start=0, step=1, limit=4
  $region2: #{cifar_net_forward.3} parent=0 // loop_pre_header
    _
  $region3: #{cifar_net_forward.3} parent=0 // loop_header
    %s9 = sphi 0, %s13
    %p10 = scmp.ge.s32.totalorder %s9, 4
    %s19 = sphi 0, %s21
    %s22 = sphi 0, %s19
    %s23 = sphi 0, %s22
    %s39 = sphi 0, %s23
    %s43 = sphi 0, %s43
    %s45 = sphi 0, %s43
    %s46 = sphi 0, %s45
    %s60 = sphi 0, %s46
    %s64 = sphi 0, %s64
    %s66 = sphi 0, %s64
    %s67 = sphi 0, %s66
    %s81 = sphi 0, %s67
    %s87 = sphi 0, %s89
    %s90 = sphi 0, %s87
    %s91 = sphi 0, %s90
    %s107 = sphi 0, %s91
  $region4: #{cifar_net_forward.3} parent=0 // loop_header_branch
    %12 = sbr.rel (%p10) target = $region8
  $region5: #{cifar_net_forward.3} parent=0 // loop_body
    %s14 = ssub.s32 %s9, 1
    %s15 = ssub.s32 %s9, 2
    %s16 = sadd.s32 %s9, 1
    %s17 = ssub.s32 %s9, %s16
    %p18 = scmp.eq.s32.totalorder %s17, 0
    %s20 = sadd.s32 %s19, 1
    %s21 = scalar_select %p18, %s19, %s20
    %p24 = pneg %p18
    %p25 = scmp.eq.s32.totalorder %s9, 1
    %p26 = por %p24, %p25
    %p27 = scmp.ne.s32.totalorder %s19, %s22
    %p28 = scmp.eq.s32.totalorder %s9, 0
    %p29 = por %p27, %p28
    %p30 = scmp.ne.s32.totalorder %s19, %s22
    %p31 = scmp.eq.s32.totalorder %s14, 1
    %p32 = por %p30, %p31
    %p33 = scmp.ne.s32.totalorder %s22, %s23
    %p34 = scmp.eq.s32.totalorder %s14, 0
    %p35 = por %p33, %p34
    %p36 = scmp.ne.s32.totalorder %s22, %s23
    %p37 = scmp.eq.s32.totalorder %s15, 1
    %p38 = por %p36, %p37
    %p40 = scmp.ne.s32.totalorder %s23, %s39
    %p41 = scmp.eq.s32.totalorder %s15, 0
    %p42 = por %p40, %p41
    %s44 = sadd.s32 %s43, 1
    %p47 = scmp.eq.s32.totalorder %s9, 1
    %p48 = scmp.ne.s32.totalorder %s43, %s45
    %p49 = scmp.eq.s32.totalorder %s9, 0
    %p50 = por %p48, %p49
    %p51 = scmp.ne.s32.totalorder %s43, %s45
    %p52 = scmp.eq.s32.totalorder %s14, 1
    %p53 = por %p51, %p52
    %p54 = scmp.ne.s32.totalorder %s45, %s46
    %p55 = scmp.eq.s32.totalorder %s14, 0
    %p56 = por %p54, %p55
    %p57 = scmp.ne.s32.totalorder %s45, %s46
    %p58 = scmp.eq.s32.totalorder %s15, 1
    %p59 = por %p57, %p58
    %p61 = scmp.ne.s32.totalorder %s46, %s60
    %p62 = scmp.eq.s32.totalorder %s15, 0
    %p63 = por %p61, %p62
    %s65 = sadd.s32 %s64, 1
    %p68 = scmp.eq.s32.totalorder %s9, 1
    %p69 = scmp.ne.s32.totalorder %s64, %s66
    %p70 = scmp.eq.s32.totalorder %s9, 0
    %p71 = por %p69, %p70
    %p72 = scmp.ne.s32.totalorder %s64, %s66
    %p73 = scmp.eq.s32.totalorder %s14, 1
    %p74 = por %p72, %p73
    %p75 = scmp.ne.s32.totalorder %s66, %s67
    %p76 = scmp.eq.s32.totalorder %s14, 0
    %p77 = por %p75, %p76
    %p78 = scmp.ne.s32.totalorder %s66, %s67
    %p79 = scmp.eq.s32.totalorder %s15, 1
    %p80 = por %p78, %p79
    %p82 = scmp.ne.s32.totalorder %s67, %s81
    %p83 = scmp.eq.s32.totalorder %s15, 0
    %p84 = por %p82, %p83
    %s85 = ssub.s32 %s9, %s16
    %p86 = scmp.eq.s32.totalorder %s85, 0
    %s88 = sadd.s32 %s87, 1
    %s89 = scalar_select %p86, %s87, %s88
    %p92 = pneg %p86
    %p93 = scmp.eq.s32.totalorder %s9, 1
    %p94 = por %p92, %p93
    %p95 = scmp.ne.s32.totalorder %s87, %s90
    %p96 = scmp.eq.s32.totalorder %s9, 0
    %p97 = por %p95, %p96
    %p98 = scmp.ne.s32.totalorder %s87, %s90
    %p99 = scmp.eq.s32.totalorder %s14, 1
    %p100 = por %p98, %p99
    %p101 = scmp.ne.s32.totalorder %s90, %s91
    %p102 = scmp.eq.s32.totalorder %s14, 0
    %p103 = por %p101, %p102
    %p104 = scmp.ne.s32.totalorder %s90, %s91
    %p105 = scmp.eq.s32.totalorder %s15, 1
    %p106 = por %p104, %p105
    %p108 = scmp.ne.s32.totalorder %s91, %s107
    %p109 = scmp.eq.s32.totalorder %s15, 0
    %p110 = por %p108, %p109
    %p111 = scmp.le.s32.totalorder 1, %s9
    %p112 = scmp.lt.s32.totalorder %s9, 3
    %p113 = pnand %p111, %p112
    %p114 = pneg %p113
    // Predicated region
    $region9: #{cifar_net_forward.3} parent=5 // pred_check
      _
    $region10: #{cifar_net_forward.3} parent=5 // pred_check_branch
      %116 = sbr.rel (%p113) target = $region12
    $region11: #{cifar_net_forward.3} parent=5 // pred_region
      %s117 = ssub.s32 %s9, 1
      // Predicated region
      $region13: #{cifar_net_forward.3} parent=11 // pred_check
        %p118 = pneg %p56
      $region14: #{cifar_net_forward.3} parent=11 // pred_check_branch
        %120 = sbr.rel (%p118) target = $region16
      $region15: #{cifar_net_forward.3} parent=11 // pred_region
        _
      $region16: #{cifar_net_forward.3} parent=11 // pred_fallthru
        _
      // Predicated region
      $region17: #{cifar_net_forward.3} parent=11 // pred_check
        %p121 = pneg %p77
      $region18: #{cifar_net_forward.3} parent=11 // pred_check_branch
        %123 = sbr.rel (%p121) target = $region20
      $region19: #{cifar_net_forward.3} parent=11 // pred_region
        _
      $region20: #{cifar_net_forward.3} parent=11 // pred_fallthru
        _
    $region12: #{cifar_net_forward.3} parent=5 // pred_fallthru
      _
    %p124 = scmp.lt.s32.totalorder %s9, 2
    // Predicated region
    $region21: #{cifar_net_forward.3} parent=5 // pred_check
      %p125 = pneg %p124
    $region22: #{cifar_net_forward.3} parent=5 // pred_check_branch
      %127 = sbr.rel (%p125) target = $region24
    $region23: #{cifar_net_forward.3} parent=5 // pred_region
      // Predicated region
      $region25: #{cifar_net_forward.3} parent=23 // pred_check
        %p128 = pneg %p29
      $region26: #{cifar_net_forward.3} parent=23 // pred_check_branch
        %130 = sbr.rel (%p128) target = $region28
      $region27: #{cifar_net_forward.3} parent=23 // pred_region
        %s131 = smul.u32 100, %s9
        %p132 = scmp.lt.s32.totalorder %s131, 199
        %s133 = scalar_select %p132, %s131, 199
        %s134 = smul.addr %s133, 4
        %s135 = scalar_lea.vmem %s0, %s134
        %s136 = smul.u32 100, %s9
      $region28: #{cifar_net_forward.3} parent=23 // pred_fallthru
        _
    $region24: #{cifar_net_forward.3} parent=5 // pred_fallthru
      _
    %p137 = scmp.le.s32.totalorder 1, %s9
    %p138 = scmp.lt.s32.totalorder %s9, 3
    %p139 = pnand %p137, %p138
    %p140 = pneg %p139
    // Predicated region
    $region29: #{cifar_net_forward.3} parent=5 // pred_check
      _
    $region30: #{cifar_net_forward.3} parent=5 // pred_check_branch
      %142 = sbr.rel (%p139) target = $region32
    $region31: #{cifar_net_forward.3} parent=5 // pred_region
      %s143 = ssub.s32 %s9, 1
      %s144 = smul.u32 100, %s14
      %p145 = scmp.lt.s32.totalorder %s144, 199
      %s146 = scalar_select %p145, %s144, 199
      %s147 = smul.addr %s146, 4
      %s148 = scalar_lea.vmem %s0, %s147
      %p149 = pneg %p35
      %p150 = pneg %p32
      %p151 = pneg %p56
      %p152 = pneg %p53
      %p153 = pneg %p77
      %p154 = pneg %p74
      %p155 = pneg %p103
      %p156 = pneg %p100
      %s157 = smul.u32 25, %s14
      %p158 = scmp.lt.s32.totalorder %s157, 49
      %s159 = scalar_select %p158, %s157, 49
      %s160 = smul.addr %s159, 4
      %s161 = scalar_lea.vmem %s3, %s160
      %s162 = smul.u32 100, %s14
      %p163 = scmp.lt.s32.totalorder %s162, 199
      %s164 = scalar_select %p163, %s162, 199
      %s165 = smul.addr %s164, 4
      %s166 = scalar_lea.vmem %s0, %s165
      %s167 = smul.u32 100, %s14
      %s168 = smul.u32 25, %s14
      %p169 = scmp.lt.s32.totalorder %s168, 49
      %s170 = scalar_select %p169, %s168, 49
      %s171 = smul.addr %s170, 4
      %s172 = scalar_lea.vmem %s3, %s171
      %s173 = smul.u32 25, %s14
      %v175 = vld [vmem:[%s166] sm:$0xf]
      %v176 = vld [vmem:[%s166 + $0x4] sm:$0xf]
      %v177 = vld [vmem:[%s166 + $0x8] sm:$0xf]
      %v178 = vld [vmem:[%s166 + $0xc] sm:$0xf]
      %v179 = vld [vmem:[%s166 + $0x10] sm:$0xf]
      %v180 = vld [vmem:[%s166 + $0x14] sm:$0xf]
      %v181 = vld [vmem:[%s166 + $0x18] sm:$0xf]
      %v182 = vld [vmem:[%s166 + $0x1c] sm:$0xf]
      %v183 = vld [vmem:[%s166 + $0x20] sm:$0xf]
      %v184 = vld [vmem:[%s166 + $0x24] sm:$0xf]
      %v185 = vld [vmem:[%s166 + $0x28] sm:$0xf]
      %v186 = vld [vmem:[%s166 + $0x2c] sm:$0xf]
      %v187 = vld [vmem:[%s166 + $0x30] sm:$0xf]
      %v188 = vld [vmem:[%s166 + $0x34] sm:$0xf]
      %v189 = vld [vmem:[%s166 + $0x38] sm:$0xf]
      %v190 = vld [vmem:[%s166 + $0x3c] sm:$0xf]
      %v191 = vld [vmem:[%s166 + $0x40] sm:$0xf]
      %v192 = vld [vmem:[%s166 + $0x44] sm:$0xf]
      %v193 = vld [vmem:[%s166 + $0x48] sm:$0xf]
      %v194 = vld [vmem:[%s166 + $0x4c] sm:$0xf]
      %v195 = vld [vmem:[%s166 + $0x50] sm:$0xf]
      %v196 = vld [vmem:[%s166 + $0x54] sm:$0xf]
      %v197 = vld [vmem:[%s166 + $0x58] sm:$0xf]
      %v198 = vld [vmem:[%s166 + $0x5c] sm:$0xf]
      %v199 = vld [vmem:[%s166 + $0x60] sm:$0xf]
      %v200 = vld [vmem:[%s166 + $0x64] sm:$0xf]
      %v201 = vld [vmem:[%s166 + $0x68] sm:$0xf]
      %v202 = vld [vmem:[%s166 + $0x6c] sm:$0xf]
      %v203 = vld [vmem:[%s166 + $0x70] sm:$0xf]
      %v204 = vld [vmem:[%s166 + $0x74] sm:$0xf]
      %v205 = vld [vmem:[%s166 + $0x78] sm:$0xf]
      %v206 = vld [vmem:[%s166 + $0x7c] sm:$0xf]
      %v207 = vld [vmem:[%s166 + $0x80] sm:$0xf]
      %v208 = vld [vmem:[%s166 + $0x84] sm:$0xf]
      %v209 = vld [vmem:[%s166 + $0x88] sm:$0xf]
      %v210 = vld [vmem:[%s166 + $0x8c] sm:$0xf]
      %v211 = vld [vmem:[%s166 + $0x90] sm:$0xf]
      %v212 = vld [vmem:[%s166 + $0x94] sm:$0xf]
      %v213 = vld [vmem:[%s166 + $0x98] sm:$0xf]
      %v214 = vld [vmem:[%s166 + $0x9c] sm:$0xf]
      %v215 = vld [vmem:[%s166 + $0xa0] sm:$0xf]
      %v216 = vld [vmem:[%s166 + $0xa4] sm:$0xf]
      %v217 = vld [vmem:[%s166 + $0xa8] sm:$0xf]
      %v218 = vld [vmem:[%s166 + $0xac] sm:$0xf]
      %v219 = vld [vmem:[%s166 + $0xb0] sm:$0xf]
      %v220 = vld [vmem:[%s166 + $0xb4] sm:$0xf]
      %v221 = vld [vmem:[%s166 + $0xb8] sm:$0xf]
      %v222 = vld [vmem:[%s166 + $0xbc] sm:$0xf]
      %v223 = vld [vmem:[%s166 + $0xc0] sm:$0xf]
      %v224 = vld [vmem:[%s166 + $0xc4] sm:$0xf]
      %v225 = vld [vmem:[%s166 + $0xc8] sm:$0xf]
      %v226 = vld [vmem:[%s166 + $0xcc] sm:$0xf]
      %v227 = vld [vmem:[%s166 + $0xd0] sm:$0xf]
      %v228 = vld [vmem:[%s166 + $0xd4] sm:$0xf]
      %v229 = vld [vmem:[%s166 + $0xd8] sm:$0xf]
      %v230 = vld [vmem:[%s166 + $0xdc] sm:$0xf]
      %v231 = vld [vmem:[%s166 + $0xe0] sm:$0xf]
      %v232 = vld [vmem:[%s166 + $0xe4] sm:$0xf]
      %v233 = vld [vmem:[%s166 + $0xe8] sm:$0xf]
      %v234 = vld [vmem:[%s166 + $0xec] sm:$0xf]
      %v235 = vld [vmem:[%s166 + $0xf0] sm:$0xf]
      %v236 = vld [vmem:[%s166 + $0xf4] sm:$0xf]
      %v237 = vld [vmem:[%s166 + $0xf8] sm:$0xf]
      %v238 = vld [vmem:[%s166 + $0xfc] sm:$0xf]
      %v239 = vld [vmem:[%s166 + $0x100] sm:$0xf]
      %v240 = vld [vmem:[%s166 + $0x104] sm:$0xf]
      %v241 = vld [vmem:[%s166 + $0x108] sm:$0xf]
      %v242 = vld [vmem:[%s166 + $0x10c] sm:$0xf]
      %v243 = vld [vmem:[%s166 + $0x110] sm:$0xf]
      %v244 = vld [vmem:[%s166 + $0x114] sm:$0xf]
      %v245 = vld [vmem:[%s166 + $0x118] sm:$0xf]
      %v246 = vld [vmem:[%s166 + $0x11c] sm:$0xf]
      %v247 = vld [vmem:[%s166 + $0x120] sm:$0xf]
      %v248 = vld [vmem:[%s166 + $0x124] sm:$0xf]
      %v249 = vld [vmem:[%s166 + $0x128] sm:$0xf]
      %v250 = vld [vmem:[%s166 + $0x12c] sm:$0xf]
      %v251 = vld [vmem:[%s166 + $0x130] sm:$0xf]
      %v252 = vld [vmem:[%s166 + $0x134] sm:$0xf]
      %v253 = vld [vmem:[%s166 + $0x138] sm:$0xf]
      %v254 = vld [vmem:[%s166 + $0x13c] sm:$0xf]
      %v255 = vld [vmem:[%s166 + $0x140] sm:$0xf]
      %v256 = vld [vmem:[%s166 + $0x144] sm:$0xf]
      %v257 = vld [vmem:[%s166 + $0x148] sm:$0xf]
      %v258 = vld [vmem:[%s166 + $0x14c] sm:$0xf]
      %v259 = vld [vmem:[%s166 + $0x150] sm:$0xf]
      %v260 = vld [vmem:[%s166 + $0x154] sm:$0xf]
      %v261 = vld [vmem:[%s166 + $0x158] sm:$0xf]
      %v262 = vld [vmem:[%s166 + $0x15c] sm:$0xf]
      %v263 = vld [vmem:[%s166 + $0x160] sm:$0xf]
      %v264 = vld [vmem:[%s166 + $0x164] sm:$0xf]
      %v265 = vld [vmem:[%s166 + $0x168] sm:$0xf]
      %v266 = vld [vmem:[%s166 + $0x16c] sm:$0xf]
      %v267 = vld [vmem:[%s166 + $0x170] sm:$0xf]
      %v268 = vld [vmem:[%s166 + $0x174] sm:$0xf]
      %v269 = vld [vmem:[%s166 + $0x178] sm:$0xf]
      %v270 = vld [vmem:[%s166 + $0x17c] sm:$0xf]
      %v271 = vld [vmem:[%s166 + $0x180] sm:$0xf]
      %v272 = vld [vmem:[%s166 + $0x184] sm:$0xf]
      %v273 = vld [vmem:[%s166 + $0x188] sm:$0xf]
      %v274 = vld [vmem:[%s166 + $0x18c] sm:$0xf]
      %v275 = vld [vmem:[%s1] sm:$0xf]
      %v276 = vld [vmem:[%s1 + $0x4] sm:$0xf]
      %v277 = vld [vmem:[%s1 + $0x8] sm:$0xf]
      %v278 = vld [vmem:[%s1 + $0xc] sm:$0xf]
      %v279 = vld [vmem:[%s1 + $0x10] sm:$0xf]
      %v280 = vld [vmem:[%s1 + $0x14] sm:$0xf]
      %v281 = vld [vmem:[%s1 + $0x18] sm:$0xf]
      %v282 = vld [vmem:[%s1 + $0x1c] sm:$0xf]
      %v283 = vld [vmem:[%s1 + $0x20] sm:$0xf]
      %v284 = vld [vmem:[%s1 + $0x24] sm:$0xf]
      %v285 = vld [vmem:[%s1 + $0x28] sm:$0xf]
      %v286 = vld [vmem:[%s1 + $0x2c] sm:$0xf]
      %v287 = vld [vmem:[%s1 + $0x30] sm:$0xf]
      %v288 = vld [vmem:[%s1 + $0x34] sm:$0xf]
      %v289 = vld [vmem:[%s1 + $0x38] sm:$0xf]
      %v290 = vld [vmem:[%s1 + $0x3c] sm:$0xf]
      %v291 = vld [vmem:[%s2] sm:$0x1]
      %v293 = vlaneseq
      %v294 = vshrl.u32 %v293, 7
      %v295 = vsub.s32 0, %v294
      %v296 = vrot.slane %v291, %v295
      %v398 = vunpack.c.l.b16 %v175
      %v399 = vunpack.c.l.b16 %v176
      %v400 = vunpack.c.l.b16 %v177
      %v401 = vunpack.c.l.b16 %v178
      %v402 = vunpack.c.l.b16 %v179
      %v403 = vunpack.c.l.b16 %v180
      %v404 = vunpack.c.l.b16 %v181
      %v405 = vunpack.c.l.b16 %v182
      %v406 = vunpack.c.l.b16 %v183
      %v407 = vunpack.c.l.b16 %v184
      %v408 = vunpack.c.l.b16 %v185
      %v409 = vunpack.c.l.b16 %v186
      %v410 = vunpack.c.l.b16 %v187
      %v411 = vunpack.c.l.b16 %v188
      %v412 = vunpack.c.l.b16 %v189
      %v413 = vunpack.c.l.b16 %v190
      %v414 = vunpack.c.l.b16 %v191
      %v415 = vunpack.c.l.b16 %v192
      %v416 = vunpack.c.l.b16 %v193
      %v417 = vunpack.c.l.b16 %v194
      %v418 = vunpack.c.l.b16 %v195
      %v419 = vunpack.c.l.b16 %v196
      %v420 = vunpack.c.l.b16 %v197
      %v421 = vunpack.c.l.b16 %v198
      %v422 = vunpack.c.l.b16 %v199
      %v423 = vunpack.c.l.b16 %v200
      %v424 = vunpack.c.l.b16 %v201
      %v425 = vunpack.c.l.b16 %v202
      %v426 = vunpack.c.l.b16 %v203
      %v427 = vunpack.c.l.b16 %v204
      %v428 = vunpack.c.l.b16 %v205
      %v429 = vunpack.c.l.b16 %v206
      %v430 = vunpack.c.l.b16 %v207
      %v431 = vunpack.c.l.b16 %v208
      %v432 = vunpack.c.l.b16 %v209
      %v433 = vunpack.c.l.b16 %v210
      %v434 = vunpack.c.l.b16 %v211
      %v435 = vunpack.c.l.b16 %v212
      %v436 = vunpack.c.l.b16 %v213
      %v437 = vunpack.c.l.b16 %v214
      %v438 = vunpack.c.l.b16 %v215
      %v439 = vunpack.c.l.b16 %v216
      %v440 = vunpack.c.l.b16 %v217
      %v441 = vunpack.c.l.b16 %v218
      %v442 = vunpack.c.l.b16 %v219
      %v443 = vunpack.c.l.b16 %v220
      %v444 = vunpack.c.l.b16 %v221
      %v445 = vunpack.c.l.b16 %v222
      %v446 = vunpack.c.l.b16 %v223
      %v447 = vunpack.c.l.b16 %v224
      %v448 = vunpack.c.l.b16 %v225
      %v449 = vunpack.c.l.b16 %v226
      %v450 = vunpack.c.l.b16 %v227
      %v451 = vunpack.c.l.b16 %v228
      %v452 = vunpack.c.l.b16 %v229
      %v453 = vunpack.c.l.b16 %v230
      %v454 = vunpack.c.l.b16 %v231
      %v455 = vunpack.c.l.b16 %v232
      %v456 = vunpack.c.l.b16 %v233
      %v457 = vunpack.c.l.b16 %v234
      %v458 = vunpack.c.l.b16 %v235
      %v459 = vunpack.c.l.b16 %v236
      %v460 = vunpack.c.l.b16 %v237
      %v461 = vunpack.c.l.b16 %v238
      %v462 = vunpack.c.l.b16 %v239
      %v463 = vunpack.c.l.b16 %v240
      %v464 = vunpack.c.l.b16 %v241
      %v465 = vunpack.c.l.b16 %v242
      %v466 = vunpack.c.l.b16 %v243
      %v467 = vunpack.c.l.b16 %v244
      %v468 = vunpack.c.l.b16 %v245
      %v469 = vunpack.c.l.b16 %v246
      %v470 = vunpack.c.l.b16 %v247
      %v471 = vunpack.c.l.b16 %v248
      %v472 = vunpack.c.l.b16 %v249
      %v473 = vunpack.c.l.b16 %v250
      %v474 = vunpack.c.l.b16 %v251
      %v475 = vunpack.c.l.b16 %v252
      %v476 = vunpack.c.l.b16 %v253
      %v477 = vunpack.c.l.b16 %v254
      %v478 = vunpack.c.l.b16 %v255
      %v479 = vunpack.c.l.b16 %v256
      %v480 = vunpack.c.l.b16 %v257
      %v481 = vunpack.c.l.b16 %v258
      %v482 = vunpack.c.l.b16 %v259
      %v483 = vunpack.c.l.b16 %v260
      %v484 = vunpack.c.l.b16 %v261
      %v485 = vunpack.c.l.b16 %v262
      %v486 = vunpack.c.l.b16 %v263
      %v487 = vunpack.c.l.b16 %v264
      %v488 = vunpack.c.l.b16 %v265
      %v489 = vunpack.c.l.b16 %v266
      %v490 = vunpack.c.l.b16 %v267
      %v491 = vunpack.c.l.b16 %v268
      %v492 = vunpack.c.l.b16 %v269
      %v493 = vunpack.c.l.b16 %v270
      %v494 = vunpack.c.l.b16 %v271
      %v495 = vunpack.c.l.b16 %v272
      %v496 = vunpack.c.l.b16 %v273
      %v497 = vunpack.c.l.b16 %v274
      %v498 = vpack.c.b16 %v399, %v398
      %v499 = vpack.c.b16 %v401, %v400
      %v500 = vpack.c.b16 %v403, %v402
      %v501 = vpack.c.b16 %v405, %v404
      %v502 = vpack.c.b16 %v407, %v406
      %v503 = vpack.c.b16 %v409, %v408
      %v504 = vpack.c.b16 %v411, %v410
      %v505 = vpack.c.b16 %v413, %v412
      %v506 = vpack.c.b16 %v415, %v414
      %v507 = vpack.c.b16 %v417, %v416
      %v508 = vpack.c.b16 %v419, %v418
      %v509 = vpack.c.b16 %v421, %v420
      %v510 = vpack.c.b16 %v423, %v422
      %v511 = vpack.c.b16 %v425, %v424
      %v512 = vpack.c.b16 %v427, %v426
      %v513 = vpack.c.b16 %v429, %v428
      %v514 = vpack.c.b16 %v431, %v430
      %v515 = vpack.c.b16 %v433, %v432
      %v516 = vpack.c.b16 %v435, %v434
      %v517 = vpack.c.b16 %v437, %v436
      %v518 = vpack.c.b16 %v439, %v438
      %v519 = vpack.c.b16 %v441, %v440
      %v520 = vpack.c.b16 %v443, %v442
      %v521 = vpack.c.b16 %v445, %v444
      %v522 = vpack.c.b16 %v447, %v446
      %v523 = vpack.c.b16 %v449, %v448
      %v524 = vpack.c.b16 %v451, %v450
      %v525 = vpack.c.b16 %v453, %v452
      %v526 = vpack.c.b16 %v455, %v454
      %v527 = vpack.c.b16 %v457, %v456
      %v528 = vpack.c.b16 %v459, %v458
      %v529 = vpack.c.b16 %v461, %v460
      %v530 = vpack.c.b16 %v463, %v462
      %v531 = vpack.c.b16 %v465, %v464
      %v532 = vpack.c.b16 %v467, %v466
      %v533 = vpack.c.b16 %v469, %v468
      %v534 = vpack.c.b16 %v471, %v470
      %v535 = vpack.c.b16 %v473, %v472
      %v536 = vpack.c.b16 %v475, %v474
      %v537 = vpack.c.b16 %v477, %v476
      %v538 = vpack.c.b16 %v479, %v478
      %v539 = vpack.c.b16 %v481, %v480
      %v540 = vpack.c.b16 %v483, %v482
      %v541 = vpack.c.b16 %v485, %v484
      %v542 = vpack.c.b16 %v487, %v486
      %v543 = vpack.c.b16 %v489, %v488
      %v544 = vpack.c.b16 %v491, %v490
      %v545 = vpack.c.b16 %v493, %v492
      %v546 = vpack.c.b16 %v495, %v494
      %v547 = vpack.c.b16 %v497, %v496
      %v614 = vunpack.c.l.b16 %v275
      %v615 = vunpack.c.l.b16 %v276
      %v616 = vunpack.c.l.b16 %v277
      %v617 = vunpack.c.l.b16 %v278
      %v618 = vunpack.c.l.b16 %v279
      %v619 = vunpack.c.l.b16 %v280
      %v620 = vunpack.c.l.b16 %v281
      %v621 = vunpack.c.l.b16 %v282
      %v622 = vunpack.c.l.b16 %v283
      %v623 = vunpack.c.l.b16 %v284
      %v624 = vunpack.c.l.b16 %v285
      %v625 = vunpack.c.l.b16 %v286
      %v626 = vunpack.c.l.b16 %v287
      %v627 = vunpack.c.l.b16 %v288
      %v628 = vunpack.c.l.b16 %v289
      %v629 = vunpack.c.l.b16 %v290
      %v630 = vpack.c.b16 %v615, %v614
      %v631 = vpack.c.b16 %v617, %v616
      %v632 = vpack.c.b16 %v619, %v618
      %v633 = vpack.c.b16 %v621, %v620
      %v634 = vpack.c.b16 %v623, %v622
      %v635 = vpack.c.b16 %v625, %v624
      %v636 = vpack.c.b16 %v627, %v626
      %v637 = vpack.c.b16 %v629, %v628
      %646 = vmatprep.subr.bf16.mxu0 0
      %647 = vmatpush1.bf16.msra.mxu0 %v637
      %648 = vmatprep.subr.bf16.mxu0 0
      %649 = vmatpush1.bf16.msra.mxu0 %v636
      %650 = vmatprep.subr.bf16.mxu0 0
      %651 = vmatpush1.bf16.msra.mxu0 %v635
      %652 = vmatprep.subr.bf16.mxu0 0
      %653 = vmatpush1.bf16.msra.mxu0 %v634
      %654 = vmatprep.subr.bf16.mxu0 0
      %655 = vmatpush1.bf16.msra.mxu0 %v633
      %656 = vmatprep.subr.bf16.mxu0 0
      %657 = vmatpush1.bf16.msra.mxu0 %v632
      %658 = vmatprep.subr.bf16.mxu0 0
      %659 = vmatpush1.bf16.msra.mxu0 %v631
      %660 = vmatprep.subr.bf16.mxu0 0
      %661 = vmatpush1.bf16.msra.mxu0 %v630
      %662 = vmatprep.subr.bf16.mxu0 0
      %663 = vmatpush2.bf16.msra.mxu0 0
      %664 = vmatprep.subr.bf16.mxu0 0
      %665 = vmatpush2.bf16.msra.mxu0 0
      %666 = vmatprep.subr.bf16.mxu0 0
      %667 = vmatpush2.bf16.msra.mxu0 0
      %668 = vmatprep.subr.bf16.mxu0 0
      %669 = vmatpush2.bf16.msra.mxu0 0
      %670 = vmatprep.subr.bf16.mxu0 0
      %671 = vmatpush2.bf16.msra.mxu0 0
      %672 = vmatprep.subr.bf16.mxu0 0
      %673 = vmatpush2.bf16.msra.mxu0 0
      %674 = vmatprep.subr.bf16.mxu0 0
      %675 = vmatpush2.bf16.msra.mxu0 0
      %676 = vmatprep.subr.bf16.mxu0 0
      %677 = vmatpush2.bf16.msra.mxu0 0
      %678 = vmatprep.mubr.bf16.mxu0 0
      %679 = vmatmul.mubr.bf16.gmra.mxu0 %v498
      %v680 = vpop.f32.mrf.mxu0
      %v681 = vadd.f32 %v296, %v680
      %v682 = vpop.f32.mrf.mxu0
      %v683 = vpop.f32.mrf.mxu0
      %v684 = vadd.f32 %v296, %v683
      %v685 = vpop.f32.mrf.mxu0
      %686 = vmatprep.mubr.bf16.mxu0 0
      %687 = vmatmul.mubr.bf16.gmra.mxu0 %v499
      %v688 = vpop.f32.mrf.mxu0
      %v689 = vadd.f32 %v296, %v688
      %v690 = vpop.f32.mrf.mxu0
      %v691 = vpop.f32.mrf.mxu0
      %v692 = vadd.f32 %v296, %v691
      %v693 = vpop.f32.mrf.mxu0
      %694 = vmatprep.mubr.bf16.mxu0 0
      %695 = vmatmul.mubr.bf16.gmra.mxu0 %v500
      %v696 = vpop.f32.mrf.mxu0
      %v697 = vadd.f32 %v296, %v696
      %v698 = vpop.f32.mrf.mxu0
      %v699 = vpop.f32.mrf.mxu0
      %v700 = vadd.f32 %v296, %v699
      %v701 = vpop.f32.mrf.mxu0
      %702 = vmatprep.mubr.bf16.mxu0 0
      %703 = vmatmul.mubr.bf16.gmra.mxu0 %v501
      %v704 = vpop.f32.mrf.mxu0
      %v705 = vadd.f32 %v296, %v704
      %v706 = vpop.f32.mrf.mxu0
      %v707 = vpop.f32.mrf.mxu0
      %v708 = vadd.f32 %v296, %v707
      %v709 = vpop.f32.mrf.mxu0
      %710 = vmatprep.mubr.bf16.mxu0 0
      %711 = vmatmul.mubr.bf16.gmra.mxu0 %v502
      %v712 = vpop.f32.mrf.mxu0
      %v713 = vadd.f32 %v296, %v712
      %v714 = vpop.f32.mrf.mxu0
      %v715 = vpop.f32.mrf.mxu0
      %v716 = vadd.f32 %v296, %v715
      %v717 = vpop.f32.mrf.mxu0
      %718 = vmatprep.mubr.bf16.mxu0 0
      %719 = vmatmul.mubr.bf16.gmra.mxu0 %v503
      %v720 = vpop.f32.mrf.mxu0
      %v721 = vadd.f32 %v296, %v720
      %v722 = vpop.f32.mrf.mxu0
      %v723 = vpop.f32.mrf.mxu0
      %v724 = vadd.f32 %v296, %v723
      %v725 = vpop.f32.mrf.mxu0
      %726 = vmatprep.mubr.bf16.mxu0 0
      %727 = vmatmul.mubr.bf16.gmra.mxu0 %v504
      %v728 = vpop.f32.mrf.mxu0
      %v729 = vadd.f32 %v296, %v728
      %v730 = vpop.f32.mrf.mxu0
      %v731 = vpop.f32.mrf.mxu0
      %v732 = vadd.f32 %v296, %v731
      %v733 = vpop.f32.mrf.mxu0
      %734 = vmatprep.mubr.bf16.mxu0 0
      %735 = vmatmul.mubr.bf16.gmra.mxu0 %v505
      %v736 = vpop.f32.mrf.mxu0
      %v737 = vadd.f32 %v296, %v736
      %v738 = vpop.f32.mrf.mxu0
      %v739 = vpop.f32.mrf.mxu0
      %v740 = vadd.f32 %v296, %v739
      %v741 = vpop.f32.mrf.mxu0
      %742 = vmatprep.mubr.bf16.mxu0 0
      %743 = vmatmul.mubr.bf16.gmra.mxu0 %v506
      %v744 = vpop.f32.mrf.mxu0
      %v745 = vadd.f32 %v296, %v744
      %v746 = vpop.f32.mrf.mxu0
      %v747 = vpop.f32.mrf.mxu0
      %v748 = vadd.f32 %v296, %v747
      %v749 = vpop.f32.mrf.mxu0
      %750 = vmatprep.mubr.bf16.mxu0 0
      %751 = vmatmul.mubr.bf16.gmra.mxu0 %v507
      %v752 = vpop.f32.mrf.mxu0
      %v753 = vadd.f32 %v296, %v752
      %v754 = vpop.f32.mrf.mxu0
      %v755 = vpop.f32.mrf.mxu0
      %v756 = vadd.f32 %v296, %v755
      %v757 = vpop.f32.mrf.mxu0
      %758 = vmatprep.mubr.bf16.mxu0 0
      %759 = vmatmul.mubr.bf16.gmra.mxu0 %v508
      %v760 = vpop.f32.mrf.mxu0
      %v761 = vadd.f32 %v296, %v760
      %v762 = vpop.f32.mrf.mxu0
      %v763 = vpop.f32.mrf.mxu0
      %v764 = vadd.f32 %v296, %v763
      %v765 = vpop.f32.mrf.mxu0
      %766 = vmatprep.mubr.bf16.mxu0 0
      %767 = vmatmul.mubr.bf16.gmra.mxu0 %v509
      %v768 = vpop.f32.mrf.mxu0
      %v769 = vadd.f32 %v296, %v768
      %v770 = vpop.f32.mrf.mxu0
      %v771 = vpop.f32.mrf.mxu0
      %v772 = vadd.f32 %v296, %v771
      %v773 = vpop.f32.mrf.mxu0
      %774 = vmatprep.mubr.bf16.mxu0 0
      %775 = vmatmul.mubr.bf16.gmra.mxu0 %v510
      %v776 = vpop.f32.mrf.mxu0
      %v777 = vadd.f32 %v296, %v776
      %v778 = vpop.f32.mrf.mxu0
      %v779 = vpop.f32.mrf.mxu0
      %v780 = vadd.f32 %v296, %v779
      %v781 = vpop.f32.mrf.mxu0
      %782 = vmatprep.mubr.bf16.mxu0 0
      %783 = vmatmul.mubr.bf16.gmra.mxu0 %v511
      %v784 = vpop.f32.mrf.mxu0
      %v785 = vadd.f32 %v296, %v784
      %v786 = vpop.f32.mrf.mxu0
      %v787 = vpop.f32.mrf.mxu0
      %v788 = vadd.f32 %v296, %v787
      %v789 = vpop.f32.mrf.mxu0
      %790 = vmatprep.mubr.bf16.mxu0 0
      %791 = vmatmul.mubr.bf16.gmra.mxu0 %v512
      %v792 = vpop.f32.mrf.mxu0
      %v793 = vadd.f32 %v296, %v792
      %v794 = vpop.f32.mrf.mxu0
      %v795 = vpop.f32.mrf.mxu0
      %v796 = vadd.f32 %v296, %v795
      %v797 = vpop.f32.mrf.mxu0
      %798 = vmatprep.mubr.bf16.mxu0 0
      %799 = vmatmul.mubr.bf16.gmra.mxu0 %v513
      %v800 = vpop.f32.mrf.mxu0
      %v801 = vadd.f32 %v296, %v800
      %v802 = vpop.f32.mrf.mxu0
      %v803 = vpop.f32.mrf.mxu0
      %v804 = vadd.f32 %v296, %v803
      %v805 = vpop.f32.mrf.mxu0
      %806 = vmatprep.mubr.bf16.mxu0 0
      %807 = vmatmul.mubr.bf16.gmra.mxu0 %v514
      %v808 = vpop.f32.mrf.mxu0
      %v809 = vadd.f32 %v296, %v808
      %v810 = vpop.f32.mrf.mxu0
      %v811 = vpop.f32.mrf.mxu0
      %v812 = vadd.f32 %v296, %v811
      %v813 = vpop.f32.mrf.mxu0
      %814 = vmatprep.mubr.bf16.mxu0 0
      %815 = vmatmul.mubr.bf16.gmra.mxu0 %v515
      %v816 = vpop.f32.mrf.mxu0
      %v817 = vadd.f32 %v296, %v816
      %v818 = vpop.f32.mrf.mxu0
      %v819 = vpop.f32.mrf.mxu0
      %v820 = vadd.f32 %v296, %v819
      %v821 = vpop.f32.mrf.mxu0
      %822 = vmatprep.mubr.bf16.mxu0 0
      %823 = vmatmul.mubr.bf16.gmra.mxu0 %v516
      %v824 = vpop.f32.mrf.mxu0
      %v825 = vadd.f32 %v296, %v824
      %v826 = vpop.f32.mrf.mxu0
      %v827 = vpop.f32.mrf.mxu0
      %v828 = vadd.f32 %v296, %v827
      %v829 = vpop.f32.mrf.mxu0
      %830 = vmatprep.mubr.bf16.mxu0 0
      %831 = vmatmul.mubr.bf16.gmra.mxu0 %v517
      %v832 = vpop.f32.mrf.mxu0
      %v833 = vadd.f32 %v296, %v832
      %v834 = vpop.f32.mrf.mxu0
      %v835 = vpop.f32.mrf.mxu0
      %v836 = vadd.f32 %v296, %v835
      %v837 = vpop.f32.mrf.mxu0
      %838 = vmatprep.mubr.bf16.mxu0 0
      %839 = vmatmul.mubr.bf16.gmra.mxu0 %v518
      %v840 = vpop.f32.mrf.mxu0
      %v841 = vadd.f32 %v296, %v840
      %v842 = vpop.f32.mrf.mxu0
      %v843 = vpop.f32.mrf.mxu0
      %v844 = vadd.f32 %v296, %v843
      %v845 = vpop.f32.mrf.mxu0
      %846 = vmatprep.mubr.bf16.mxu0 0
      %847 = vmatmul.mubr.bf16.gmra.mxu0 %v519
      %v848 = vpop.f32.mrf.mxu0
      %v849 = vadd.f32 %v296, %v848
      %v850 = vpop.f32.mrf.mxu0
      %v851 = vpop.f32.mrf.mxu0
      %v852 = vadd.f32 %v296, %v851
      %v853 = vpop.f32.mrf.mxu0
      %854 = vmatprep.mubr.bf16.mxu0 0
      %855 = vmatmul.mubr.bf16.gmra.mxu0 %v520
      %v856 = vpop.f32.mrf.mxu0
      %v857 = vadd.f32 %v296, %v856
      %v858 = vpop.f32.mrf.mxu0
      %v859 = vpop.f32.mrf.mxu0
      %v860 = vadd.f32 %v296, %v859
      %v861 = vpop.f32.mrf.mxu0
      %862 = vmatprep.mubr.bf16.mxu0 0
      %863 = vmatmul.mubr.bf16.gmra.mxu0 %v521
      %v864 = vpop.f32.mrf.mxu0
      %v865 = vadd.f32 %v296, %v864
      %v866 = vpop.f32.mrf.mxu0
      %v867 = vpop.f32.mrf.mxu0
      %v868 = vadd.f32 %v296, %v867
      %v869 = vpop.f32.mrf.mxu0
      %870 = vmatprep.mubr.bf16.mxu0 0
      %871 = vmatmul.mubr.bf16.gmra.mxu0 %v522
      %v872 = vpop.f32.mrf.mxu0
      %v873 = vadd.f32 %v296, %v872
      %v874 = vpop.f32.mrf.mxu0
      %v875 = vpop.f32.mrf.mxu0
      %v876 = vadd.f32 %v296, %v875
      %v877 = vpop.f32.mrf.mxu0
      %878 = vmatprep.mubr.bf16.mxu0 0
      %879 = vmatmul.mubr.bf16.gmra.mxu0 %v523
      %v880 = vpop.f32.mrf.mxu0
      %v881 = vadd.f32 %v296, %v880
      %v882 = vpop.f32.mrf.mxu0
      %v883 = vpop.f32.mrf.mxu0
      %v884 = vadd.f32 %v296, %v883
      %v885 = vpop.f32.mrf.mxu0
      %886 = vmatprep.mubr.bf16.mxu0 0
      %887 = vmatmul.mubr.bf16.gmra.mxu0 %v524
      %v888 = vpop.f32.mrf.mxu0
      %v889 = vadd.f32 %v296, %v888
      %v890 = vpop.f32.mrf.mxu0
      %v891 = vpop.f32.mrf.mxu0
      %v892 = vadd.f32 %v296, %v891
      %v893 = vpop.f32.mrf.mxu0
      %894 = vmatprep.mubr.bf16.mxu0 0
      %895 = vmatmul.mubr.bf16.gmra.mxu0 %v525
      %v896 = vpop.f32.mrf.mxu0
      %v897 = vadd.f32 %v296, %v896
      %v898 = vpop.f32.mrf.mxu0
      %v899 = vpop.f32.mrf.mxu0
      %v900 = vadd.f32 %v296, %v899
      %v901 = vpop.f32.mrf.mxu0
      %902 = vmatprep.mubr.bf16.mxu0 0
      %903 = vmatmul.mubr.bf16.gmra.mxu0 %v526
      %v904 = vpop.f32.mrf.mxu0
      %v905 = vadd.f32 %v296, %v904
      %v906 = vpop.f32.mrf.mxu0
      %v907 = vpop.f32.mrf.mxu0
      %v908 = vadd.f32 %v296, %v907
      %v909 = vpop.f32.mrf.mxu0
      %910 = vmatprep.mubr.bf16.mxu0 0
      %911 = vmatmul.mubr.bf16.gmra.mxu0 %v527
      %v912 = vpop.f32.mrf.mxu0
      %v913 = vadd.f32 %v296, %v912
      %v914 = vpop.f32.mrf.mxu0
      %v915 = vpop.f32.mrf.mxu0
      %v916 = vadd.f32 %v296, %v915
      %v917 = vpop.f32.mrf.mxu0
      %918 = vmatprep.mubr.bf16.mxu0 0
      %919 = vmatmul.mubr.bf16.gmra.mxu0 %v528
      %v920 = vpop.f32.mrf.mxu0
      %v921 = vadd.f32 %v296, %v920
      %v922 = vpop.f32.mrf.mxu0
      %v923 = vpop.f32.mrf.mxu0
      %v924 = vadd.f32 %v296, %v923
      %v925 = vpop.f32.mrf.mxu0
      %926 = vmatprep.mubr.bf16.mxu0 0
      %927 = vmatmul.mubr.bf16.gmra.mxu0 %v529
      %v928 = vpop.f32.mrf.mxu0
      %v929 = vadd.f32 %v296, %v928
      %v930 = vpop.f32.mrf.mxu0
      %v931 = vpop.f32.mrf.mxu0
      %v932 = vadd.f32 %v296, %v931
      %v933 = vpop.f32.mrf.mxu0
      %934 = vmatprep.mubr.bf16.mxu0 0
      %935 = vmatmul.mubr.bf16.gmra.mxu0 %v530
      %v936 = vpop.f32.mrf.mxu0
      %v937 = vadd.f32 %v296, %v936
      %v938 = vpop.f32.mrf.mxu0
      %v939 = vpop.f32.mrf.mxu0
      %v940 = vadd.f32 %v296, %v939
      %v941 = vpop.f32.mrf.mxu0
      %942 = vmatprep.mubr.bf16.mxu0 0
      %943 = vmatmul.mubr.bf16.gmra.mxu0 %v531
      %v944 = vpop.f32.mrf.mxu0
      %v945 = vadd.f32 %v296, %v944
      %v946 = vpop.f32.mrf.mxu0
      %v947 = vpop.f32.mrf.mxu0
      %v948 = vadd.f32 %v296, %v947
      %v949 = vpop.f32.mrf.mxu0
      %950 = vmatprep.mubr.bf16.mxu0 0
      %951 = vmatmul.mubr.bf16.gmra.mxu0 %v532
      %v952 = vpop.f32.mrf.mxu0
      %v953 = vadd.f32 %v296, %v952
      %v954 = vpop.f32.mrf.mxu0
      %v955 = vpop.f32.mrf.mxu0
      %v956 = vadd.f32 %v296, %v955
      %v957 = vpop.f32.mrf.mxu0
      %958 = vmatprep.mubr.bf16.mxu0 0
      %959 = vmatmul.mubr.bf16.gmra.mxu0 %v533
      %v960 = vpop.f32.mrf.mxu0
      %v961 = vadd.f32 %v296, %v960
      %v962 = vpop.f32.mrf.mxu0
      %v963 = vpop.f32.mrf.mxu0
      %v964 = vadd.f32 %v296, %v963
      %v965 = vpop.f32.mrf.mxu0
      %966 = vmatprep.mubr.bf16.mxu0 0
      %967 = vmatmul.mubr.bf16.gmra.mxu0 %v534
      %v968 = vpop.f32.mrf.mxu0
      %v969 = vadd.f32 %v296, %v968
      %v970 = vpop.f32.mrf.mxu0
      %v971 = vpop.f32.mrf.mxu0
      %v972 = vadd.f32 %v296, %v971
      %v973 = vpop.f32.mrf.mxu0
      %974 = vmatprep.mubr.bf16.mxu0 0
      %975 = vmatmul.mubr.bf16.gmra.mxu0 %v535
      %v976 = vpop.f32.mrf.mxu0
      %v977 = vadd.f32 %v296, %v976
      %v978 = vpop.f32.mrf.mxu0
      %v979 = vpop.f32.mrf.mxu0
      %v980 = vadd.f32 %v296, %v979
      %v981 = vpop.f32.mrf.mxu0
      %982 = vmatprep.mubr.bf16.mxu0 0
      %983 = vmatmul.mubr.bf16.gmra.mxu0 %v536
      %v984 = vpop.f32.mrf.mxu0
      %v985 = vadd.f32 %v296, %v984
      %v986 = vpop.f32.mrf.mxu0
      %v987 = vpop.f32.mrf.mxu0
      %v988 = vadd.f32 %v296, %v987
      %v989 = vpop.f32.mrf.mxu0
      %990 = vmatprep.mubr.bf16.mxu0 0
      %991 = vmatmul.mubr.bf16.gmra.mxu0 %v537
      %v992 = vpop.f32.mrf.mxu0
      %v993 = vadd.f32 %v296, %v992
      %v994 = vpop.f32.mrf.mxu0
      %v995 = vpop.f32.mrf.mxu0
      %v996 = vadd.f32 %v296, %v995
      %v997 = vpop.f32.mrf.mxu0
      %998 = vmatprep.mubr.bf16.mxu0 0
      %999 = vmatmul.mubr.bf16.gmra.mxu0 %v538
      %v1000 = vpop.f32.mrf.mxu0
      %v1001 = vadd.f32 %v296, %v1000
      %v1002 = vpop.f32.mrf.mxu0
      %v1003 = vpop.f32.mrf.mxu0
      %v1004 = vadd.f32 %v296, %v1003
      %v1005 = vpop.f32.mrf.mxu0
      %1006 = vmatprep.mubr.bf16.mxu0 0
      %1007 = vmatmul.mubr.bf16.gmra.mxu0 %v539
      %v1008 = vpop.f32.mrf.mxu0
      %v1009 = vadd.f32 %v296, %v1008
      %v1010 = vpop.f32.mrf.mxu0
      %v1011 = vpop.f32.mrf.mxu0
      %v1012 = vadd.f32 %v296, %v1011
      %v1013 = vpop.f32.mrf.mxu0
      %1014 = vmatprep.mubr.bf16.mxu0 0
      %1015 = vmatmul.mubr.bf16.gmra.mxu0 %v540
      %v1016 = vpop.f32.mrf.mxu0
      %v1017 = vadd.f32 %v296, %v1016
      %v1018 = vpop.f32.mrf.mxu0
      %v1019 = vpop.f32.mrf.mxu0
      %v1020 = vadd.f32 %v296, %v1019
      %v1021 = vpop.f32.mrf.mxu0
      %1022 = vmatprep.mubr.bf16.mxu0 0
      %1023 = vmatmul.mubr.bf16.gmra.mxu0 %v541
      %v1024 = vpop.f32.mrf.mxu0
      %v1025 = vadd.f32 %v296, %v1024
      %v1026 = vpop.f32.mrf.mxu0
      %v1027 = vpop.f32.mrf.mxu0
      %v1028 = vadd.f32 %v296, %v1027
      %v1029 = vpop.f32.mrf.mxu0
      %1030 = vmatprep.mubr.bf16.mxu0 0
      %1031 = vmatmul.mubr.bf16.gmra.mxu0 %v542
      %v1032 = vpop.f32.mrf.mxu0
      %v1033 = vadd.f32 %v296, %v1032
      %v1034 = vpop.f32.mrf.mxu0
      %v1035 = vpop.f32.mrf.mxu0
      %v1036 = vadd.f32 %v296, %v1035
      %v1037 = vpop.f32.mrf.mxu0
      %1038 = vmatprep.mubr.bf16.mxu0 0
      %1039 = vmatmul.mubr.bf16.gmra.mxu0 %v543
      %v1040 = vpop.f32.mrf.mxu0
      %v1041 = vadd.f32 %v296, %v1040
      %v1042 = vpop.f32.mrf.mxu0
      %v1043 = vpop.f32.mrf.mxu0
      %v1044 = vadd.f32 %v296, %v1043
      %v1045 = vpop.f32.mrf.mxu0
      %1046 = vmatprep.mubr.bf16.mxu0 0
      %1047 = vmatmul.mubr.bf16.gmra.mxu0 %v544
      %v1048 = vpop.f32.mrf.mxu0
      %v1049 = vadd.f32 %v296, %v1048
      %v1050 = vpop.f32.mrf.mxu0
      %v1051 = vpop.f32.mrf.mxu0
      %v1052 = vadd.f32 %v296, %v1051
      %v1053 = vpop.f32.mrf.mxu0
      %1054 = vmatprep.mubr.bf16.mxu0 0
      %1055 = vmatmul.mubr.bf16.gmra.mxu0 %v545
      %v1056 = vpop.f32.mrf.mxu0
      %v1057 = vadd.f32 %v296, %v1056
      %v1058 = vpop.f32.mrf.mxu0
      %v1059 = vpop.f32.mrf.mxu0
      %v1060 = vadd.f32 %v296, %v1059
      %v1061 = vpop.f32.mrf.mxu0
      %1062 = vmatprep.mubr.bf16.mxu0 0
      %1063 = vmatmul.mubr.bf16.gmra.mxu0 %v546
      %v1064 = vpop.f32.mrf.mxu0
      %v1065 = vadd.f32 %v296, %v1064
      %v1066 = vpop.f32.mrf.mxu0
      %v1067 = vpop.f32.mrf.mxu0
      %v1068 = vadd.f32 %v296, %v1067
      %v1069 = vpop.f32.mrf.mxu0
      %1070 = vmatprep.mubr.bf16.mxu0 0
      %1071 = vmatmul.mubr.bf16.gmra.mxu0 %v547
      %v1072 = vpop.f32.mrf.mxu0
      %v1073 = vadd.f32 %v296, %v1072
      %v1074 = vpop.f32.mrf.mxu0
      %v1075 = vpop.f32.mrf.mxu0
      %v1076 = vadd.f32 %v296, %v1075
      %v1077 = vpop.f32.mrf.mxu0
      %1078 = vdwg.mxu0
      %v1079 = vmax.f32 %v681, 0.0
      %v1080 = vmax.f32 %v684, 0.0
      %v1081 = vmax.f32 %v689, 0.0
      %v1082 = vmax.f32 %v692, 0.0
      %v1083 = vmax.f32 %v697, 0.0
      %v1084 = vmax.f32 %v700, 0.0
      %v1085 = vmax.f32 %v705, 0.0
      %v1086 = vmax.f32 %v708, 0.0
      %v1087 = vmax.f32 %v713, 0.0
      %v1088 = vmax.f32 %v716, 0.0
      %v1089 = vmax.f32 %v721, 0.0
      %v1090 = vmax.f32 %v724, 0.0
      %v1091 = vmax.f32 %v729, 0.0
      %v1092 = vmax.f32 %v732, 0.0
      %v1093 = vmax.f32 %v737, 0.0
      %v1094 = vmax.f32 %v740, 0.0
      %v1095 = vmax.f32 %v745, 0.0
      %v1096 = vmax.f32 %v748, 0.0
      %v1097 = vmax.f32 %v753, 0.0
      %v1098 = vmax.f32 %v756, 0.0
      %v1099 = vmax.f32 %v761, 0.0
      %v1100 = vmax.f32 %v764, 0.0
      %v1101 = vmax.f32 %v769, 0.0
      %v1102 = vmax.f32 %v772, 0.0
      %v1103 = vmax.f32 %v777, 0.0
      %v1104 = vmax.f32 %v780, 0.0
      %v1105 = vmax.f32 %v785, 0.0
      %v1106 = vmax.f32 %v788, 0.0
      %v1107 = vmax.f32 %v793, 0.0
      %v1108 = vmax.f32 %v796, 0.0
      %v1109 = vmax.f32 %v801, 0.0
      %v1110 = vmax.f32 %v804, 0.0
      %v1111 = vmax.f32 %v809, 0.0
      %v1112 = vmax.f32 %v812, 0.0
      %v1113 = vmax.f32 %v817, 0.0
      %v1114 = vmax.f32 %v820, 0.0
      %v1115 = vmax.f32 %v825, 0.0
      %v1116 = vmax.f32 %v828, 0.0
      %v1117 = vmax.f32 %v833, 0.0
      %v1118 = vmax.f32 %v836, 0.0
      %v1119 = vmax.f32 %v841, 0.0
      %v1120 = vmax.f32 %v844, 0.0
      %v1121 = vmax.f32 %v849, 0.0
      %v1122 = vmax.f32 %v852, 0.0
      %v1123 = vmax.f32 %v857, 0.0
      %v1124 = vmax.f32 %v860, 0.0
      %v1125 = vmax.f32 %v865, 0.0
      %v1126 = vmax.f32 %v868, 0.0
      %v1127 = vmax.f32 %v873, 0.0
      %v1128 = vmax.f32 %v876, 0.0
      %v1129 = vmax.f32 %v881, 0.0
      %v1130 = vmax.f32 %v884, 0.0
      %v1131 = vmax.f32 %v889, 0.0
      %v1132 = vmax.f32 %v892, 0.0
      %v1133 = vmax.f32 %v897, 0.0
      %v1134 = vmax.f32 %v900, 0.0
      %v1135 = vmax.f32 %v905, 0.0
      %v1136 = vmax.f32 %v908, 0.0
      %v1137 = vmax.f32 %v913, 0.0
      %v1138 = vmax.f32 %v916, 0.0
      %v1139 = vmax.f32 %v921, 0.0
      %v1140 = vmax.f32 %v924, 0.0
      %v1141 = vmax.f32 %v929, 0.0
      %v1142 = vmax.f32 %v932, 0.0
      %v1143 = vmax.f32 %v937, 0.0
      %v1144 = vmax.f32 %v940, 0.0
      %v1145 = vmax.f32 %v945, 0.0
      %v1146 = vmax.f32 %v948, 0.0
      %v1147 = vmax.f32 %v953, 0.0
      %v1148 = vmax.f32 %v956, 0.0
      %v1149 = vmax.f32 %v961, 0.0
      %v1150 = vmax.f32 %v964, 0.0
      %v1151 = vmax.f32 %v969, 0.0
      %v1152 = vmax.f32 %v972, 0.0
      %v1153 = vmax.f32 %v977, 0.0
      %v1154 = vmax.f32 %v980, 0.0
      %v1155 = vmax.f32 %v985, 0.0
      %v1156 = vmax.f32 %v988, 0.0
      %v1157 = vmax.f32 %v993, 0.0
      %v1158 = vmax.f32 %v996, 0.0
      %v1159 = vmax.f32 %v1001, 0.0
      %v1160 = vmax.f32 %v1004, 0.0
      %v1161 = vmax.f32 %v1009, 0.0
      %v1162 = vmax.f32 %v1012, 0.0
      %v1163 = vmax.f32 %v1017, 0.0
      %v1164 = vmax.f32 %v1020, 0.0
      %v1165 = vmax.f32 %v1025, 0.0
      %v1166 = vmax.f32 %v1028, 0.0
      %v1167 = vmax.f32 %v1033, 0.0
      %v1168 = vmax.f32 %v1036, 0.0
      %v1169 = vmax.f32 %v1041, 0.0
      %v1170 = vmax.f32 %v1044, 0.0
      %v1171 = vmax.f32 %v1049, 0.0
      %v1172 = vmax.f32 %v1052, 0.0
      %v1173 = vmax.f32 %v1057, 0.0
      %v1174 = vmax.f32 %v1060, 0.0
      %v1175 = vmax.f32 %v1065, 0.0
      %v1176 = vmax.f32 %v1068, 0.0
      %v1177 = vmax.f32 %v1073, 0.0
      %v1178 = vmax.f32 %v1076, 0.0
      %v1179 = vmax.f32 %v1079, %v1104
      %v1180 = vmax.f32 %v1080, %v1105
      %v1181 = vmax.f32 %v1081, %v1106
      %v1182 = vmax.f32 %v1082, %v1107
      %v1183 = vmax.f32 %v1083, %v1108
      %v1184 = vmax.f32 %v1084, %v1109
      %v1185 = vmax.f32 %v1085, %v1110
      %v1186 = vmax.f32 %v1086, %v1111
      %v1187 = vmax.f32 %v1087, %v1112
      %v1188 = vmax.f32 %v1088, %v1113
      %v1189 = vmax.f32 %v1089, %v1114
      %v1190 = vmax.f32 %v1090, %v1115
      %v1191 = vmax.f32 %v1091, %v1116
      %v1192 = vmax.f32 %v1092, %v1117
      %v1193 = vmax.f32 %v1093, %v1118
      %v1194 = vmax.f32 %v1094, %v1119
      %v1195 = vmax.f32 %v1095, %v1120
      %v1196 = vmax.f32 %v1096, %v1121
      %v1197 = vmax.f32 %v1097, %v1122
      %v1198 = vmax.f32 %v1098, %v1123
      %v1199 = vmax.f32 %v1099, %v1124
      %v1200 = vmax.f32 %v1100, %v1125
      %v1201 = vmax.f32 %v1101, %v1126
      %v1202 = vmax.f32 %v1102, %v1127
      %v1203 = vmax.f32 %v1103, %v1128
      %v1204 = vmax.f32 %v1179, %v1129
      %v1205 = vmax.f32 %v1180, %v1130
      %v1206 = vmax.f32 %v1181, %v1131
      %v1207 = vmax.f32 %v1182, %v1132
      %v1208 = vmax.f32 %v1183, %v1133
      %v1209 = vmax.f32 %v1184, %v1134
      %v1210 = vmax.f32 %v1185, %v1135
      %v1211 = vmax.f32 %v1186, %v1136
      %v1212 = vmax.f32 %v1187, %v1137
      %v1213 = vmax.f32 %v1188, %v1138
      %v1214 = vmax.f32 %v1189, %v1139
      %v1215 = vmax.f32 %v1190, %v1140
      %v1216 = vmax.f32 %v1191, %v1141
      %v1217 = vmax.f32 %v1192, %v1142
      %v1218 = vmax.f32 %v1193, %v1143
      %v1219 = vmax.f32 %v1194, %v1144
      %v1220 = vmax.f32 %v1195, %v1145
      %v1221 = vmax.f32 %v1196, %v1146
      %v1222 = vmax.f32 %v1197, %v1147
      %v1223 = vmax.f32 %v1198, %v1148
      %v1224 = vmax.f32 %v1199, %v1149
      %v1225 = vmax.f32 %v1200, %v1150
      %v1226 = vmax.f32 %v1201, %v1151
      %v1227 = vmax.f32 %v1202, %v1152
      %v1228 = vmax.f32 %v1203, %v1153
      %v1229 = vmax.f32 %v1204, %v1154
      %v1230 = vmax.f32 %v1205, %v1155
      %v1231 = vmax.f32 %v1206, %v1156
      %v1232 = vmax.f32 %v1207, %v1157
      %v1233 = vmax.f32 %v1208, %v1158
      %v1234 = vmax.f32 %v1209, %v1159
      %v1235 = vmax.f32 %v1210, %v1160
      %v1236 = vmax.f32 %v1211, %v1161
      %v1237 = vmax.f32 %v1212, %v1162
      %v1238 = vmax.f32 %v1213, %v1163
      %v1239 = vmax.f32 %v1214, %v1164
      %v1240 = vmax.f32 %v1215, %v1165
      %v1241 = vmax.f32 %v1216, %v1166
      %v1242 = vmax.f32 %v1217, %v1167
      %v1243 = vmax.f32 %v1218, %v1168
      %v1244 = vmax.f32 %v1219, %v1169
      %v1245 = vmax.f32 %v1220, %v1170
      %v1246 = vmax.f32 %v1221, %v1171
      %v1247 = vmax.f32 %v1222, %v1172
      %v1248 = vmax.f32 %v1223, %v1173
      %v1249 = vmax.f32 %v1224, %v1174
      %v1250 = vmax.f32 %v1225, %v1175
      %v1251 = vmax.f32 %v1226, %v1176
      %v1252 = vmax.f32 %v1227, %v1177
      %v1253 = vmax.f32 %v1228, %v1178
      %v1254 = vpack.c.bf16 %v1230, %v1229
      %v1255 = vpack.c.bf16 %v1232, %v1231
      %v1256 = vpack.c.bf16 %v1234, %v1233
      %v1257 = vpack.c.bf16 %v1236, %v1235
      %v1258 = vpack.c.bf16 %v1238, %v1237
      %v1259 = vpack.c.bf16 %v1240, %v1239
      %v1260 = vpack.c.bf16 %v1242, %v1241
      %v1261 = vpack.c.bf16 %v1244, %v1243
      %v1262 = vpack.c.bf16 %v1246, %v1245
      %v1263 = vpack.c.bf16 %v1248, %v1247
      %v1264 = vpack.c.bf16 %v1250, %v1249
      %v1265 = vpack.c.bf16 %v1252, %v1251
      %v1266 = vpack.c.bf16 %v1253, %v1253
      %v1280 = vunpack.c.l.b16 %v1254
      %v1281 = vunpack.c.h.b16 %v1254
      %v1282 = vunpack.c.l.b16 %v1255
      %v1283 = vunpack.c.h.b16 %v1255
      %v1284 = vunpack.c.l.b16 %v1256
      %v1285 = vunpack.c.h.b16 %v1256
      %v1286 = vunpack.c.l.b16 %v1257
      %v1287 = vunpack.c.h.b16 %v1257
      %v1288 = vunpack.c.l.b16 %v1258
      %v1289 = vunpack.c.h.b16 %v1258
      %v1290 = vunpack.c.l.b16 %v1259
      %v1291 = vunpack.c.h.b16 %v1259
      %v1292 = vunpack.c.l.b16 %v1260
      %v1293 = vunpack.c.h.b16 %v1260
      %v1294 = vunpack.c.l.b16 %v1261
      %v1295 = vunpack.c.h.b16 %v1261
      %v1296 = vunpack.c.l.b16 %v1262
      %v1297 = vunpack.c.h.b16 %v1262
      %v1298 = vunpack.c.l.b16 %v1263
      %v1299 = vunpack.c.h.b16 %v1263
      %v1300 = vunpack.c.l.b16 %v1264
      %v1301 = vunpack.c.h.b16 %v1264
      %v1302 = vunpack.c.l.b16 %v1265
      %v1303 = vunpack.c.h.b16 %v1265
      %v1304 = vunpack.c.l.b16 %v1266
      %v1305 = vpack.c.b16 %v1280, %v1280
      %v1306 = vpack.c.b16 %v1281, %v1281
      %v1307 = vpack.c.b16 %v1282, %v1282
      %v1308 = vpack.c.b16 %v1283, %v1283
      %v1309 = vpack.c.b16 %v1284, %v1284
      %v1310 = vpack.c.b16 %v1285, %v1285
      %v1311 = vpack.c.b16 %v1286, %v1286
      %v1312 = vpack.c.b16 %v1287, %v1287
      %v1313 = vpack.c.b16 %v1288, %v1288
      %v1314 = vpack.c.b16 %v1289, %v1289
      %v1315 = vpack.c.b16 %v1290, %v1290
      %v1316 = vpack.c.b16 %v1291, %v1291
      %v1317 = vpack.c.b16 %v1292, %v1292
      %v1318 = vpack.c.b16 %v1293, %v1293
      %v1319 = vpack.c.b16 %v1294, %v1294
      %v1320 = vpack.c.b16 %v1295, %v1295
      %v1321 = vpack.c.b16 %v1296, %v1296
      %v1322 = vpack.c.b16 %v1297, %v1297
      %v1323 = vpack.c.b16 %v1298, %v1298
      %v1324 = vpack.c.b16 %v1299, %v1299
      %v1325 = vpack.c.b16 %v1300, %v1300
      %v1326 = vpack.c.b16 %v1301, %v1301
      %v1327 = vpack.c.b16 %v1302, %v1302
      %v1328 = vpack.c.b16 %v1303, %v1303
      %v1329 = vpack.c.b16 %v1304, %v1304
      %1355 = vst [vmem:[%s172] sm:$0xf] %v1305
      %1356 = vst [vmem:[%s172 + $0x4] sm:$0xf] %v1306
      %1357 = vst [vmem:[%s172 + $0x8] sm:$0xf] %v1307
      %1358 = vst [vmem:[%s172 + $0xc] sm:$0xf] %v1308
      %1359 = vst [vmem:[%s172 + $0x10] sm:$0xf] %v1309
      %1360 = vst [vmem:[%s172 + $0x14] sm:$0xf] %v1310
      %1361 = vst [vmem:[%s172 + $0x18] sm:$0xf] %v1311
      %1362 = vst [vmem:[%s172 + $0x1c] sm:$0xf] %v1312
      %1363 = vst [vmem:[%s172 + $0x20] sm:$0xf] %v1313
      %1364 = vst [vmem:[%s172 + $0x24] sm:$0xf] %v1314
      %1365 = vst [vmem:[%s172 + $0x28] sm:$0xf] %v1315
      %1366 = vst [vmem:[%s172 + $0x2c] sm:$0xf] %v1316
      %1367 = vst [vmem:[%s172 + $0x30] sm:$0xf] %v1317
      %1368 = vst [vmem:[%s172 + $0x34] sm:$0xf] %v1318
      %1369 = vst [vmem:[%s172 + $0x38] sm:$0xf] %v1319
      %1370 = vst [vmem:[%s172 + $0x3c] sm:$0xf] %v1320
      %1371 = vst [vmem:[%s172 + $0x40] sm:$0xf] %v1321
      %1372 = vst [vmem:[%s172 + $0x44] sm:$0xf] %v1322
      %1373 = vst [vmem:[%s172 + $0x48] sm:$0xf] %v1323
      %1374 = vst [vmem:[%s172 + $0x4c] sm:$0xf] %v1324
      %1375 = vst [vmem:[%s172 + $0x50] sm:$0xf] %v1325
      %1376 = vst [vmem:[%s172 + $0x54] sm:$0xf] %v1326
      %1377 = vst [vmem:[%s172 + $0x58] sm:$0xf] %v1327
      %1378 = vst [vmem:[%s172 + $0x5c] sm:$0xf] %v1328
      %1379 = vst [vmem:[%s172 + $0x60] sm:$0xf] %v1329
      %s1380 = smul.u32 25, %s14
      %p1381 = scmp.lt.s32.totalorder %s1380, 49
      %s1382 = scalar_select %p1381, %s1380, 49
      %s1383 = smul.addr %s1382, 4
      %s1384 = scalar_lea.vmem %s3, %s1383
      // Predicated region
      $region33: #{cifar_net_forward.3} parent=31 // pred_check
        %p1385 = pneg %p100
      $region34: #{cifar_net_forward.3} parent=31 // pred_check_branch
        %1387 = sbr.rel (%p1385) target = $region36
      $region35: #{cifar_net_forward.3} parent=31 // pred_region
        %s1388 = smul.u32 25, %s14
      $region36: #{cifar_net_forward.3} parent=31 // pred_fallthru
        _
    $region32: #{cifar_net_forward.3} parent=5 // pred_fallthru
      _
    %p1389 = scmp.le.s32.totalorder 2, %s9
    // Predicated region
    $region37: #{cifar_net_forward.3} parent=5 // pred_check
      %p1390 = pneg %p1389
    $region38: #{cifar_net_forward.3} parent=5 // pred_check_branch
      %1392 = sbr.rel (%p1390) target = $region40
    $region39: #{cifar_net_forward.3} parent=5 // pred_region
      %s1393 = ssub.s32 %s9, 2
      // Predicated region
      $region41: #{cifar_net_forward.3} parent=39 // pred_check
        %p1394 = pneg %p106
      $region42: #{cifar_net_forward.3} parent=39 // pred_check_branch
        %1396 = sbr.rel (%p1394) target = $region44
      $region43: #{cifar_net_forward.3} parent=39 // pred_region
        %s1397 = smul.u32 25, %s15
        %p1398 = scmp.lt.s32.totalorder %s1397, 49
        %s1399 = scalar_select %p1398, %s1397, 49
        %s1400 = smul.addr %s1399, 4
        %s1401 = scalar_lea.vmem %s3, %s1400
      $region44: #{cifar_net_forward.3} parent=39 // pred_fallthru
        _
    $region40: #{cifar_net_forward.3} parent=5 // pred_fallthru
      _
  $region6: #{cifar_net_forward.3} parent=0 // loop_footer
    %s13 = sadd.s32 1, %s9
  $region7: #{cifar_net_forward.3} parent=0 // loop_footer_branch
    %8 = sbr.rel target = $region3
  $region8: #{cifar_net_forward.3} parent=0 // loop_exit
    _

// kernel: cifar_net_forward.4
$region0: #{cifar_net_forward.4}
  #allocation0 [shape = 'u32[]', space=smem, size = 0x4, offset = 0x4, fixed_abs, tag = 'smem constant byte address 0x4 - core index']
  #allocation1 [shape = 'u32[144,128]{1,0:T(1,128)}', space=vmem, size = 0x12000, scoped, tag = 'internal scratch']
  %s0 = inlined_call_operand.vmem [shape: bf16[256,512], index: 0, kind: input, shape index: {}]
  %s1 = inlined_call_operand.vmem [shape: bf16[512,256], index: 1, kind: input, shape index: {}]
  %s2 = inlined_call_operand.vmem [shape: f32[1,256], index: 2, kind: input, shape index: {}]
  %s3 = inlined_call_operand.vmem [shape: bf16[64,256], index: 3, kind: output, shape index: {}]
  %s4 = sld [smem:[#allocation0]]
  $region45: #{cifar_net_forward.4} parent=0
    _
  %s6 = ssub.s32 1, %s4
  %s7 = scalar_select 0, %s6, %s4
  loop: start=0, step=1, limit=4
  $region2: #{cifar_net_forward.4} parent=0 // loop_pre_header
    _
  $region3: #{cifar_net_forward.4} parent=0 // loop_header
    %s9 = sphi 0, %s13
    %p10 = scmp.ge.s32.totalorder %s9, 4
    %s19 = sphi 0, %s21
    %s22 = sphi 0, %s19
    %s23 = sphi 0, %s22
    %s39 = sphi 0, %s23
    %s43 = sphi 0, %s43
    %s45 = sphi 0, %s43
    %s46 = sphi 0, %s45
    %s60 = sphi 0, %s46
    %s64 = sphi 0, %s64
    %s66 = sphi 0, %s64
    %s67 = sphi 0, %s66
    %s81 = sphi 0, %s67
    %s87 = sphi 0, %s89
    %s90 = sphi 0, %s87
    %s91 = sphi 0, %s90
    %s107 = sphi 0, %s91
  $region4: #{cifar_net_forward.4} parent=0 // loop_header_branch
    %12 = sbr.rel (%p10) target = $region8
  $region5: #{cifar_net_forward.4} parent=0 // loop_body
    %s14 = ssub.s32 %s9, 1
    %s15 = ssub.s32 %s9, 2
    %s16 = sadd.s32 %s9, 1
    %s17 = ssub.s32 %s9, %s16
    %p18 = scmp.eq.s32.totalorder %s17, 0
    %s20 = sadd.s32 %s19, 1
    %s21 = scalar_select %p18, %s19, %s20
    %p24 = pneg %p18
    %p25 = scmp.eq.s32.totalorder %s9, 1
    %p26 = por %p24, %p25
    %p27 = scmp.ne.s32.totalorder %s19, %s22
    %p28 = scmp.eq.s32.totalorder %s9, 0
    %p29 = por %p27, %p28
    %p30 = scmp.ne.s32.totalorder %s19, %s22
    %p31 = scmp.eq.s32.totalorder %s14, 1
    %p32 = por %p30, %p31
    %p33 = scmp.ne.s32.totalorder %s22, %s23
    %p34 = scmp.eq.s32.totalorder %s14, 0
    %p35 = por %p33, %p34
    %p36 = scmp.ne.s32.totalorder %s22, %s23
    %p37 = scmp.eq.s32.totalorder %s15, 1
    %p38 = por %p36, %p37
    %p40 = scmp.ne.s32.totalorder %s23, %s39
    %p41 = scmp.eq.s32.totalorder %s15, 0
    %p42 = por %p40, %p41
    %s44 = sadd.s32 %s43, 1
    %p47 = scmp.eq.s32.totalorder %s9, 1
    %p48 = scmp.ne.s32.totalorder %s43, %s45
    %p49 = scmp.eq.s32.totalorder %s9, 0
    %p50 = por %p48, %p49
    %p51 = scmp.ne.s32.totalorder %s43, %s45
    %p52 = scmp.eq.s32.totalorder %s14, 1
    %p53 = por %p51, %p52
    %p54 = scmp.ne.s32.totalorder %s45, %s46
    %p55 = scmp.eq.s32.totalorder %s14, 0
    %p56 = por %p54, %p55
    %p57 = scmp.ne.s32.totalorder %s45, %s46
    %p58 = scmp.eq.s32.totalorder %s15, 1
    %p59 = por %p57, %p58
    %p61 = scmp.ne.s32.totalorder %s46, %s60
    %p62 = scmp.eq.s32.totalorder %s15, 0
    %p63 = por %p61, %p62
    %s65 = sadd.s32 %s64, 1
    %p68 = scmp.eq.s32.totalorder %s9, 1
    %p69 = scmp.ne.s32.totalorder %s64, %s66
    %p70 = scmp.eq.s32.totalorder %s9, 0
    %p71 = por %p69, %p70
    %p72 = scmp.ne.s32.totalorder %s64, %s66
    %p73 = scmp.eq.s32.totalorder %s14, 1
    %p74 = por %p72, %p73
    %p75 = scmp.ne.s32.totalorder %s66, %s67
    %p76 = scmp.eq.s32.totalorder %s14, 0
    %p77 = por %p75, %p76
    %p78 = scmp.ne.s32.totalorder %s66, %s67
    %p79 = scmp.eq.s32.totalorder %s15, 1
    %p80 = por %p78, %p79
    %p82 = scmp.ne.s32.totalorder %s67, %s81
    %p83 = scmp.eq.s32.totalorder %s15, 0
    %p84 = por %p82, %p83
    %s85 = ssub.s32 %s9, %s16
    %p86 = scmp.eq.s32.totalorder %s85, 0
    %s88 = sadd.s32 %s87, 1
    %s89 = scalar_select %p86, %s87, %s88
    %p92 = pneg %p86
    %p93 = scmp.eq.s32.totalorder %s9, 1
    %p94 = por %p92, %p93
    %p95 = scmp.ne.s32.totalorder %s87, %s90
    %p96 = scmp.eq.s32.totalorder %s9, 0
    %p97 = por %p95, %p96
    %p98 = scmp.ne.s32.totalorder %s87, %s90
    %p99 = scmp.eq.s32.totalorder %s14, 1
    %p100 = por %p98, %p99
    %p101 = scmp.ne.s32.totalorder %s90, %s91
    %p102 = scmp.eq.s32.totalorder %s14, 0
    %p103 = por %p101, %p102
    %p104 = scmp.ne.s32.totalorder %s90, %s91
    %p105 = scmp.eq.s32.totalorder %s15, 1
    %p106 = por %p104, %p105
    %p108 = scmp.ne.s32.totalorder %s91, %s107
    %p109 = scmp.eq.s32.totalorder %s15, 0
    %p110 = por %p108, %p109
    %p111 = scmp.le.s32.totalorder 1, %s9
    %p112 = scmp.lt.s32.totalorder %s9, 3
    %p113 = pnand %p111, %p112
    %p114 = pneg %p113
    // Predicated region
    $region9: #{cifar_net_forward.4} parent=5 // pred_check
      _
    $region10: #{cifar_net_forward.4} parent=5 // pred_check_branch
      %116 = sbr.rel (%p113) target = $region12
    $region11: #{cifar_net_forward.4} parent=5 // pred_region
      %s117 = ssub.s32 %s9, 1
      // Predicated region
      $region13: #{cifar_net_forward.4} parent=11 // pred_check
        %p118 = pneg %p56
      $region14: #{cifar_net_forward.4} parent=11 // pred_check_branch
        %120 = sbr.rel (%p118) target = $region16
      $region15: #{cifar_net_forward.4} parent=11 // pred_region
        _
      $region16: #{cifar_net_forward.4} parent=11 // pred_fallthru
        _
      // Predicated region
      $region17: #{cifar_net_forward.4} parent=11 // pred_check
        %p121 = pneg %p77
      $region18: #{cifar_net_forward.4} parent=11 // pred_check_branch
        %123 = sbr.rel (%p121) target = $region20
      $region19: #{cifar_net_forward.4} parent=11 // pred_region
        _
      $region20: #{cifar_net_forward.4} parent=11 // pred_fallthru
        _
    $region12: #{cifar_net_forward.4} parent=5 // pred_fallthru
      _
    %p124 = scmp.lt.s32.totalorder %s9, 2
    // Predicated region
    $region21: #{cifar_net_forward.4} parent=5 // pred_check
      %p125 = pneg %p124
    $region22: #{cifar_net_forward.4} parent=5 // pred_check_branch
      %127 = sbr.rel (%p125) target = $region24
    $region23: #{cifar_net_forward.4} parent=5 // pred_region
      // Predicated region
      $region25: #{cifar_net_forward.4} parent=23 // pred_check
        %p128 = pneg %p29
      $region26: #{cifar_net_forward.4} parent=23 // pred_check_branch
        %130 = sbr.rel (%p128) target = $region28
      $region27: #{cifar_net_forward.4} parent=23 // pred_region
        %s131 = smul.u32 16, %s9
        %p132 = scmp.lt.s32.totalorder %s131, 31
        %s133 = scalar_select %p132, %s131, 31
        %s134 = smul.addr %s133, 4
        %s135 = smul.addr %s134, 4
        %s136 = scalar_lea.vmem %s0, %s135
        %s137 = smul.u32 16, %s9
      $region28: #{cifar_net_forward.4} parent=23 // pred_fallthru
        _
    $region24: #{cifar_net_forward.4} parent=5 // pred_fallthru
      _
    %p138 = scmp.le.s32.totalorder 1, %s9
    %p139 = scmp.lt.s32.totalorder %s9, 3
    %p140 = pnand %p138, %p139
    %p141 = pneg %p140
    // Predicated region
    $region29: #{cifar_net_forward.4} parent=5 // pred_check
      _
    $region30: #{cifar_net_forward.4} parent=5 // pred_check_branch
      %143 = sbr.rel (%p140) target = $region32
    $region31: #{cifar_net_forward.4} parent=5 // pred_region
      %s144 = ssub.s32 %s9, 1
      %s145 = smul.u32 16, %s14
      %p146 = scmp.lt.s32.totalorder %s145, 31
      %s147 = scalar_select %p146, %s145, 31
      %s148 = smul.addr %s147, 4
      %s149 = smul.addr %s148, 4
      %s150 = scalar_lea.vmem %s0, %s149
      %p151 = pneg %p35
      %p152 = pneg %p32
      %p153 = pneg %p56
      %p154 = pneg %p53
      %p155 = pneg %p77
      %p156 = pneg %p74
      %p157 = pneg %p103
      %p158 = pneg %p100
      %s159 = smul.u32 4, %s14
      %p160 = scmp.lt.s32.totalorder %s159, 7
      %s161 = scalar_select %p160, %s159, 7
      %s162 = smul.addr %s161, 2
      %s163 = smul.addr %s162, 4
      %s164 = scalar_lea.vmem %s3, %s163
      %s165 = smul.u32 16, %s14
      %p166 = scmp.lt.s32.totalorder %s165, 31
      %s167 = scalar_select %p166, %s165, 31
      %s168 = smul.addr %s167, 4
      %s169 = smul.addr %s168, 4
      %s170 = scalar_lea.vmem %s0, %s169
      %s171 = smul.u32 16, %s14
      %s172 = smul.u32 4, %s14
      %p173 = scmp.lt.s32.totalorder %s172, 7
      %s174 = scalar_select %p173, %s172, 7
      %s175 = smul.addr %s174, 2
      %s176 = smul.addr %s175, 4
      %s177 = scalar_lea.vmem %s3, %s176
      %s178 = smul.u32 4, %s14
      %v179 = vld [vmem:[%s170] sm:$0xff]
      %v180 = vld [vmem:[%s170 + $0x8] sm:$0xff]
      %v181 = vld [vmem:[%s170 + $0x10] sm:$0xff]
      %v182 = vld [vmem:[%s170 + $0x18] sm:$0xff]
      %v183 = vld [vmem:[%s170 + $0x20] sm:$0xff]
      %v184 = vld [vmem:[%s170 + $0x28] sm:$0xff]
      %v185 = vld [vmem:[%s170 + $0x30] sm:$0xff]
      %v186 = vld [vmem:[%s170 + $0x38] sm:$0xff]
      %v187 = vld [vmem:[%s170 + $0x40] sm:$0xff]
      %v188 = vld [vmem:[%s170 + $0x48] sm:$0xff]
      %v189 = vld [vmem:[%s170 + $0x50] sm:$0xff]
      %v190 = vld [vmem:[%s170 + $0x58] sm:$0xff]
      %v191 = vld [vmem:[%s170 + $0x60] sm:$0xff]
      %v192 = vld [vmem:[%s170 + $0x68] sm:$0xff]
      %v193 = vld [vmem:[%s170 + $0x70] sm:$0xff]
      %v194 = vld [vmem:[%s170 + $0x78] sm:$0xff]
      %v195 = vld [vmem:[%s170 + $0x80] sm:$0xff]
      %v196 = vld [vmem:[%s170 + $0x88] sm:$0xff]
      %v197 = vld [vmem:[%s170 + $0x90] sm:$0xff]
      %v198 = vld [vmem:[%s170 + $0x98] sm:$0xff]
      %v199 = vld [vmem:[%s170 + $0xa0] sm:$0xff]
      %v200 = vld [vmem:[%s170 + $0xa8] sm:$0xff]
      %v201 = vld [vmem:[%s170 + $0xb0] sm:$0xff]
      %v202 = vld [vmem:[%s170 + $0xb8] sm:$0xff]
      %v203 = vld [vmem:[%s170 + $0xc0] sm:$0xff]
      %v204 = vld [vmem:[%s170 + $0xc8] sm:$0xff]
      %v205 = vld [vmem:[%s170 + $0xd0] sm:$0xff]
      %v206 = vld [vmem:[%s170 + $0xd8] sm:$0xff]
      %v207 = vld [vmem:[%s170 + $0xe0] sm:$0xff]
      %v208 = vld [vmem:[%s170 + $0xe8] sm:$0xff]
      %v209 = vld [vmem:[%s170 + $0xf0] sm:$0xff]
      %v210 = vld [vmem:[%s170 + $0xf8] sm:$0xff]
      %v211 = vld [vmem:[%s1] sm:$0xff]
      %v212 = vld [vmem:[%s1 + $0x8] sm:$0xff]
      %v213 = vld [vmem:[%s1 + $0x10] sm:$0xff]
      %v214 = vld [vmem:[%s1 + $0x18] sm:$0xff]
      %v215 = vld [vmem:[%s1 + $0x20] sm:$0xff]
      %v216 = vld [vmem:[%s1 + $0x28] sm:$0xff]
      %v217 = vld [vmem:[%s1 + $0x30] sm:$0xff]
      %v218 = vld [vmem:[%s1 + $0x38] sm:$0xff]
      %v219 = vld [vmem:[%s1 + $0x40] sm:$0xff]
      %v220 = vld [vmem:[%s1 + $0x48] sm:$0xff]
      %v221 = vld [vmem:[%s1 + $0x50] sm:$0xff]
      %v222 = vld [vmem:[%s1 + $0x58] sm:$0xff]
      %v223 = vld [vmem:[%s1 + $0x60] sm:$0xff]
      %v224 = vld [vmem:[%s1 + $0x68] sm:$0xff]
      %v225 = vld [vmem:[%s1 + $0x70] sm:$0xff]
      %v226 = vld [vmem:[%s1 + $0x78] sm:$0xff]
      %v227 = vld [vmem:[%s1 + $0x80] sm:$0xff]
      %v228 = vld [vmem:[%s1 + $0x88] sm:$0xff]
      %v229 = vld [vmem:[%s1 + $0x90] sm:$0xff]
      %v230 = vld [vmem:[%s1 + $0x98] sm:$0xff]
      %v231 = vld [vmem:[%s1 + $0xa0] sm:$0xff]
      %v232 = vld [vmem:[%s1 + $0xa8] sm:$0xff]
      %v233 = vld [vmem:[%s1 + $0xb0] sm:$0xff]
      %v234 = vld [vmem:[%s1 + $0xb8] sm:$0xff]
      %v235 = vld [vmem:[%s1 + $0xc0] sm:$0xff]
      %v236 = vld [vmem:[%s1 + $0xc8] sm:$0xff]
      %v237 = vld [vmem:[%s1 + $0xd0] sm:$0xff]
      %v238 = vld [vmem:[%s1 + $0xd8] sm:$0xff]
      %v239 = vld [vmem:[%s1 + $0xe0] sm:$0xff]
      %v240 = vld [vmem:[%s1 + $0xe8] sm:$0xff]
      %v241 = vld [vmem:[%s1 + $0xf0] sm:$0xff]
      %v242 = vld [vmem:[%s1 + $0xf8] sm:$0xff]
      %v243 = vld [vmem:[%s1 + $0x100] sm:$0xff]
      %v244 = vld [vmem:[%s1 + $0x108] sm:$0xff]
      %v245 = vld [vmem:[%s1 + $0x110] sm:$0xff]
      %v246 = vld [vmem:[%s1 + $0x118] sm:$0xff]
      %v247 = vld [vmem:[%s1 + $0x120] sm:$0xff]
      %v248 = vld [vmem:[%s1 + $0x128] sm:$0xff]
      %v249 = vld [vmem:[%s1 + $0x130] sm:$0xff]
      %v250 = vld [vmem:[%s1 + $0x138] sm:$0xff]
      %v251 = vld [vmem:[%s1 + $0x140] sm:$0xff]
      %v252 = vld [vmem:[%s1 + $0x148] sm:$0xff]
      %v253 = vld [vmem:[%s1 + $0x150] sm:$0xff]
      %v254 = vld [vmem:[%s1 + $0x158] sm:$0xff]
      %v255 = vld [vmem:[%s1 + $0x160] sm:$0xff]
      %v256 = vld [vmem:[%s1 + $0x168] sm:$0xff]
      %v257 = vld [vmem:[%s1 + $0x170] sm:$0xff]
      %v258 = vld [vmem:[%s1 + $0x178] sm:$0xff]
      %v259 = vld [vmem:[%s1 + $0x180] sm:$0xff]
      %v260 = vld [vmem:[%s1 + $0x188] sm:$0xff]
      %v261 = vld [vmem:[%s1 + $0x190] sm:$0xff]
      %v262 = vld [vmem:[%s1 + $0x198] sm:$0xff]
      %v263 = vld [vmem:[%s1 + $0x1a0] sm:$0xff]
      %v264 = vld [vmem:[%s1 + $0x1a8] sm:$0xff]
      %v265 = vld [vmem:[%s1 + $0x1b0] sm:$0xff]
      %v266 = vld [vmem:[%s1 + $0x1b8] sm:$0xff]
      %v267 = vld [vmem:[%s1 + $0x1c0] sm:$0xff]
      %v268 = vld [vmem:[%s1 + $0x1c8] sm:$0xff]
      %v269 = vld [vmem:[%s1 + $0x1d0] sm:$0xff]
      %v270 = vld [vmem:[%s1 + $0x1d8] sm:$0xff]
      %v271 = vld [vmem:[%s1 + $0x1e0] sm:$0xff]
      %v272 = vld [vmem:[%s1 + $0x1e8] sm:$0xff]
      %v273 = vld [vmem:[%s1 + $0x1f0] sm:$0xff]
      %v274 = vld [vmem:[%s1 + $0x1f8] sm:$0xff]
      %v275 = vld [vmem:[%s2] sm:$0x3]
      %v277 = vlaneseq
      %v278 = vshrl.u32 %v277, 7
      %v279 = vsub.s32 0, %v278
      %v280 = vrot.slane %v275, %v279
      %v281 = vlaneseq
      %v282 = vshrl.u32 %v281, 7
      %v283 = vsub.s32 1, %v282
      %v284 = vrot.slane %v275, %v283
      %v319 = vunpack.c.l.b16 %v179
      %v320 = vunpack.c.h.b16 %v179
      %v321 = vunpack.c.l.b16 %v180
      %v322 = vunpack.c.h.b16 %v180
      %v323 = vunpack.c.l.b16 %v181
      %v324 = vunpack.c.h.b16 %v181
      %v325 = vunpack.c.l.b16 %v182
      %v326 = vunpack.c.h.b16 %v182
      %v327 = vunpack.c.l.b16 %v183
      %v328 = vunpack.c.h.b16 %v183
      %v329 = vunpack.c.l.b16 %v184
      %v330 = vunpack.c.h.b16 %v184
      %v331 = vunpack.c.l.b16 %v185
      %v332 = vunpack.c.h.b16 %v185
      %v333 = vunpack.c.l.b16 %v186
      %v334 = vunpack.c.h.b16 %v186
      %v335 = vunpack.c.l.b16 %v187
      %v336 = vunpack.c.h.b16 %v187
      %v337 = vunpack.c.l.b16 %v188
      %v338 = vunpack.c.h.b16 %v188
      %v339 = vunpack.c.l.b16 %v189
      %v340 = vunpack.c.h.b16 %v189
      %v341 = vunpack.c.l.b16 %v190
      %v342 = vunpack.c.h.b16 %v190
      %v343 = vunpack.c.l.b16 %v191
      %v344 = vunpack.c.h.b16 %v191
      %v345 = vunpack.c.l.b16 %v192
      %v346 = vunpack.c.h.b16 %v192
      %v347 = vunpack.c.l.b16 %v193
      %v348 = vunpack.c.h.b16 %v193
      %v349 = vunpack.c.l.b16 %v194
      %v350 = vunpack.c.h.b16 %v194
      %v351 = vunpack.c.l.b16 %v195
      %v352 = vunpack.c.h.b16 %v195
      %v353 = vunpack.c.l.b16 %v196
      %v354 = vunpack.c.h.b16 %v196
      %v355 = vunpack.c.l.b16 %v197
      %v356 = vunpack.c.h.b16 %v197
      %v357 = vunpack.c.l.b16 %v198
      %v358 = vunpack.c.h.b16 %v198
      %v359 = vunpack.c.l.b16 %v199
      %v360 = vunpack.c.h.b16 %v199
      %v361 = vunpack.c.l.b16 %v200
      %v362 = vunpack.c.h.b16 %v200
      %v363 = vunpack.c.l.b16 %v201
      %v364 = vunpack.c.h.b16 %v201
      %v365 = vunpack.c.l.b16 %v202
      %v366 = vunpack.c.h.b16 %v202
      %v367 = vunpack.c.l.b16 %v203
      %v368 = vunpack.c.h.b16 %v203
      %v369 = vunpack.c.l.b16 %v204
      %v370 = vunpack.c.h.b16 %v204
      %v371 = vunpack.c.l.b16 %v205
      %v372 = vunpack.c.h.b16 %v205
      %v373 = vunpack.c.l.b16 %v206
      %v374 = vunpack.c.h.b16 %v206
      %v375 = vunpack.c.l.b16 %v207
      %v376 = vunpack.c.h.b16 %v207
      %v377 = vunpack.c.l.b16 %v208
      %v378 = vunpack.c.h.b16 %v208
      %v379 = vunpack.c.l.b16 %v209
      %v380 = vunpack.c.h.b16 %v209
      %v381 = vunpack.c.l.b16 %v210
      %v382 = vunpack.c.h.b16 %v210
      %v383 = vpack.c.b16 %v323, %v319
      %v384 = vpack.c.b16 %v324, %v320
      %v385 = vpack.c.b16 %v325, %v321
      %v386 = vpack.c.b16 %v326, %v322
      %v387 = vpack.c.b16 %v331, %v327
      %v388 = vpack.c.b16 %v332, %v328
      %v389 = vpack.c.b16 %v333, %v329
      %v390 = vpack.c.b16 %v334, %v330
      %v391 = vpack.c.b16 %v339, %v335
      %v392 = vpack.c.b16 %v340, %v336
      %v393 = vpack.c.b16 %v341, %v337
      %v394 = vpack.c.b16 %v342, %v338
      %v395 = vpack.c.b16 %v347, %v343
      %v396 = vpack.c.b16 %v348, %v344
      %v397 = vpack.c.b16 %v349, %v345
      %v398 = vpack.c.b16 %v350, %v346
      %v399 = vpack.c.b16 %v355, %v351
      %v400 = vpack.c.b16 %v356, %v352
      %v401 = vpack.c.b16 %v357, %v353
      %v402 = vpack.c.b16 %v358, %v354
      %v403 = vpack.c.b16 %v363, %v359
      %v404 = vpack.c.b16 %v364, %v360
      %v405 = vpack.c.b16 %v365, %v361
      %v406 = vpack.c.b16 %v366, %v362
      %v407 = vpack.c.b16 %v371, %v367
      %v408 = vpack.c.b16 %v372, %v368
      %v409 = vpack.c.b16 %v373, %v369
      %v410 = vpack.c.b16 %v374, %v370
      %v411 = vpack.c.b16 %v379, %v375
      %v412 = vpack.c.b16 %v380, %v376
      %v413 = vpack.c.b16 %v381, %v377
      %v414 = vpack.c.b16 %v382, %v378
      %v511 = vunpack.c.l.b16 %v211
      %v512 = vunpack.c.h.b16 %v211
      %v513 = vunpack.c.l.b16 %v212
      %v514 = vunpack.c.h.b16 %v212
      %v515 = vunpack.c.l.b16 %v213
      %v516 = vunpack.c.h.b16 %v213
      %v517 = vunpack.c.l.b16 %v214
      %v518 = vunpack.c.h.b16 %v214
      %v519 = vunpack.c.l.b16 %v215
      %v520 = vunpack.c.h.b16 %v215
      %v521 = vunpack.c.l.b16 %v216
      %v522 = vunpack.c.h.b16 %v216
      %v523 = vunpack.c.l.b16 %v217
      %v524 = vunpack.c.h.b16 %v217
      %v525 = vunpack.c.l.b16 %v218
      %v526 = vunpack.c.h.b16 %v218
      %v527 = vunpack.c.l.b16 %v219
      %v528 = vunpack.c.h.b16 %v219
      %v529 = vunpack.c.l.b16 %v220
      %v530 = vunpack.c.h.b16 %v220
      %v531 = vunpack.c.l.b16 %v221
      %v532 = vunpack.c.h.b16 %v221
      %v533 = vunpack.c.l.b16 %v222
      %v534 = vunpack.c.h.b16 %v222
      %v535 = vunpack.c.l.b16 %v223
      %v536 = vunpack.c.h.b16 %v223
      %v537 = vunpack.c.l.b16 %v224
      %v538 = vunpack.c.h.b16 %v224
      %v539 = vunpack.c.l.b16 %v225
      %v540 = vunpack.c.h.b16 %v225
      %v541 = vunpack.c.l.b16 %v226
      %v542 = vunpack.c.h.b16 %v226
      %v543 = vunpack.c.l.b16 %v227
      %v544 = vunpack.c.h.b16 %v227
      %v545 = vunpack.c.l.b16 %v228
      %v546 = vunpack.c.h.b16 %v228
      %v547 = vunpack.c.l.b16 %v229
      %v548 = vunpack.c.h.b16 %v229
      %v549 = vunpack.c.l.b16 %v230
      %v550 = vunpack.c.h.b16 %v230
      %v551 = vunpack.c.l.b16 %v231
      %v552 = vunpack.c.h.b16 %v231
      %v553 = vunpack.c.l.b16 %v232
      %v554 = vunpack.c.h.b16 %v232
      %v555 = vunpack.c.l.b16 %v233
      %v556 = vunpack.c.h.b16 %v233
      %v557 = vunpack.c.l.b16 %v234
      %v558 = vunpack.c.h.b16 %v234
      %v559 = vunpack.c.l.b16 %v235
      %v560 = vunpack.c.h.b16 %v235
      %v561 = vunpack.c.l.b16 %v236
      %v562 = vunpack.c.h.b16 %v236
      %v563 = vunpack.c.l.b16 %v237
      %v564 = vunpack.c.h.b16 %v237
      %v565 = vunpack.c.l.b16 %v238
      %v566 = vunpack.c.h.b16 %v238
      %v567 = vunpack.c.l.b16 %v239
      %v568 = vunpack.c.h.b16 %v239
      %v569 = vunpack.c.l.b16 %v240
      %v570 = vunpack.c.h.b16 %v240
      %v571 = vunpack.c.l.b16 %v241
      %v572 = vunpack.c.h.b16 %v241
      %v573 = vunpack.c.l.b16 %v242
      %v574 = vunpack.c.h.b16 %v242
      %v575 = vunpack.c.l.b16 %v243
      %v576 = vunpack.c.h.b16 %v243
      %v577 = vunpack.c.l.b16 %v244
      %v578 = vunpack.c.h.b16 %v244
      %v579 = vunpack.c.l.b16 %v245
      %v580 = vunpack.c.h.b16 %v245
      %v581 = vunpack.c.l.b16 %v246
      %v582 = vunpack.c.h.b16 %v246
      %v583 = vunpack.c.l.b16 %v247
      %v584 = vunpack.c.h.b16 %v247
      %v585 = vunpack.c.l.b16 %v248
      %v586 = vunpack.c.h.b16 %v248
      %v587 = vunpack.c.l.b16 %v249
      %v588 = vunpack.c.h.b16 %v249
      %v589 = vunpack.c.l.b16 %v250
      %v590 = vunpack.c.h.b16 %v250
      %v591 = vunpack.c.l.b16 %v251
      %v592 = vunpack.c.h.b16 %v251
      %v593 = vunpack.c.l.b16 %v252
      %v594 = vunpack.c.h.b16 %v252
      %v595 = vunpack.c.l.b16 %v253
      %v596 = vunpack.c.h.b16 %v253
      %v597 = vunpack.c.l.b16 %v254
      %v598 = vunpack.c.h.b16 %v254
      %v599 = vunpack.c.l.b16 %v255
      %v600 = vunpack.c.h.b16 %v255
      %v601 = vunpack.c.l.b16 %v256
      %v602 = vunpack.c.h.b16 %v256
      %v603 = vunpack.c.l.b16 %v257
      %v604 = vunpack.c.h.b16 %v257
      %v605 = vunpack.c.l.b16 %v258
      %v606 = vunpack.c.h.b16 %v258
      %v607 = vunpack.c.l.b16 %v259
      %v608 = vunpack.c.h.b16 %v259
      %v609 = vunpack.c.l.b16 %v260
      %v610 = vunpack.c.h.b16 %v260
      %v611 = vunpack.c.l.b16 %v261
      %v612 = vunpack.c.h.b16 %v261
      %v613 = vunpack.c.l.b16 %v262
      %v614 = vunpack.c.h.b16 %v262
      %v615 = vunpack.c.l.b16 %v263
      %v616 = vunpack.c.h.b16 %v263
      %v617 = vunpack.c.l.b16 %v264
      %v618 = vunpack.c.h.b16 %v264
      %v619 = vunpack.c.l.b16 %v265
      %v620 = vunpack.c.h.b16 %v265
      %v621 = vunpack.c.l.b16 %v266
      %v622 = vunpack.c.h.b16 %v266
      %v623 = vunpack.c.l.b16 %v267
      %v624 = vunpack.c.h.b16 %v267
      %v625 = vunpack.c.l.b16 %v268
      %v626 = vunpack.c.h.b16 %v268
      %v627 = vunpack.c.l.b16 %v269
      %v628 = vunpack.c.h.b16 %v269
      %v629 = vunpack.c.l.b16 %v270
      %v630 = vunpack.c.h.b16 %v270
      %v631 = vunpack.c.l.b16 %v271
      %v632 = vunpack.c.h.b16 %v271
      %v633 = vunpack.c.l.b16 %v272
      %v634 = vunpack.c.h.b16 %v272
      %v635 = vunpack.c.l.b16 %v273
      %v636 = vunpack.c.h.b16 %v273
      %v637 = vunpack.c.l.b16 %v274
      %v638 = vunpack.c.h.b16 %v274
      %v639 = vpack.c.b16 %v513, %v511
      %v640 = vpack.c.b16 %v514, %v512
      %v641 = vpack.c.b16 %v517, %v515
      %v642 = vpack.c.b16 %v518, %v516
      %v643 = vpack.c.b16 %v521, %v519
      %v644 = vpack.c.b16 %v522, %v520
      %v645 = vpack.c.b16 %v525, %v523
      %v646 = vpack.c.b16 %v526, %v524
      %v647 = vpack.c.b16 %v529, %v527
      %v648 = vpack.c.b16 %v530, %v528
      %v649 = vpack.c.b16 %v533, %v531
      %v650 = vpack.c.b16 %v534, %v532
      %v651 = vpack.c.b16 %v537, %v535
      %v652 = vpack.c.b16 %v538, %v536
      %v653 = vpack.c.b16 %v541, %v539
      %v654 = vpack.c.b16 %v542, %v540
      %v655 = vpack.c.b16 %v545, %v543
      %v656 = vpack.c.b16 %v546, %v544
      %v657 = vpack.c.b16 %v549, %v547
      %v658 = vpack.c.b16 %v550, %v548
      %v659 = vpack.c.b16 %v553, %v551
      %v660 = vpack.c.b16 %v554, %v552
      %v661 = vpack.c.b16 %v557, %v555
      %v662 = vpack.c.b16 %v558, %v556
      %v663 = vpack.c.b16 %v561, %v559
      %v664 = vpack.c.b16 %v562, %v560
      %v665 = vpack.c.b16 %v565, %v563
      %v666 = vpack.c.b16 %v566, %v564
      %v667 = vpack.c.b16 %v569, %v567
      %v668 = vpack.c.b16 %v570, %v568
      %v669 = vpack.c.b16 %v573, %v571
      %v670 = vpack.c.b16 %v574, %v572
      %v671 = vpack.c.b16 %v577, %v575
      %v672 = vpack.c.b16 %v578, %v576
      %v673 = vpack.c.b16 %v581, %v579
      %v674 = vpack.c.b16 %v582, %v580
      %v675 = vpack.c.b16 %v585, %v583
      %v676 = vpack.c.b16 %v586, %v584
      %v677 = vpack.c.b16 %v589, %v587
      %v678 = vpack.c.b16 %v590, %v588
      %v679 = vpack.c.b16 %v593, %v591
      %v680 = vpack.c.b16 %v594, %v592
      %v681 = vpack.c.b16 %v597, %v595
      %v682 = vpack.c.b16 %v598, %v596
      %v683 = vpack.c.b16 %v601, %v599
      %v684 = vpack.c.b16 %v602, %v600
      %v685 = vpack.c.b16 %v605, %v603
      %v686 = vpack.c.b16 %v606, %v604
      %v687 = vpack.c.b16 %v609, %v607
      %v688 = vpack.c.b16 %v610, %v608
      %v689 = vpack.c.b16 %v613, %v611
      %v690 = vpack.c.b16 %v614, %v612
      %v691 = vpack.c.b16 %v617, %v615
      %v692 = vpack.c.b16 %v618, %v616
      %v693 = vpack.c.b16 %v621, %v619
      %v694 = vpack.c.b16 %v622, %v620
      %v695 = vpack.c.b16 %v625, %v623
      %v696 = vpack.c.b16 %v626, %v624
      %v697 = vpack.c.b16 %v629, %v627
      %v698 = vpack.c.b16 %v630, %v628
      %v699 = vpack.c.b16 %v633, %v631
      %v700 = vpack.c.b16 %v634, %v632
      %v701 = vpack.c.b16 %v637, %v635
      %v702 = vpack.c.b16 %v638, %v636
      %767 = vmatprep.subr.bf16.mxu0 %v654
      %768 = vmatpush1.bf16.msra.mxu0 %v653
      %769 = vmatprep.subr.bf16.mxu0 %v652
      %770 = vmatpush1.bf16.msra.mxu0 %v651
      %771 = vmatprep.subr.bf16.mxu0 %v650
      %772 = vmatpush1.bf16.msra.mxu0 %v649
      %773 = vmatprep.subr.bf16.mxu0 %v648
      %774 = vmatpush1.bf16.msra.mxu0 %v647
      %775 = vmatprep.subr.bf16.mxu0 %v646
      %776 = vmatpush1.bf16.msra.mxu0 %v645
      %777 = vmatprep.subr.bf16.mxu0 %v644
      %778 = vmatpush1.bf16.msra.mxu0 %v643
      %779 = vmatprep.subr.bf16.mxu0 %v642
      %780 = vmatpush1.bf16.msra.mxu0 %v641
      %781 = vmatprep.subr.bf16.mxu0 %v640
      %782 = vmatpush1.bf16.msra.mxu0 %v639
      %783 = vmatprep.subr.bf16.mxu0 %v670
      %784 = vmatpush2.bf16.msra.mxu0 %v669
      %785 = vmatprep.subr.bf16.mxu0 %v668
      %786 = vmatpush2.bf16.msra.mxu0 %v667
      %787 = vmatprep.subr.bf16.mxu0 %v666
      %788 = vmatpush2.bf16.msra.mxu0 %v665
      %789 = vmatprep.subr.bf16.mxu0 %v664
      %790 = vmatpush2.bf16.msra.mxu0 %v663
      %791 = vmatprep.subr.bf16.mxu0 %v662
      %792 = vmatpush2.bf16.msra.mxu0 %v661
      %793 = vmatprep.subr.bf16.mxu0 %v660
      %794 = vmatpush2.bf16.msra.mxu0 %v659
      %795 = vmatprep.subr.bf16.mxu0 %v658
      %796 = vmatpush2.bf16.msra.mxu0 %v657
      %797 = vmatprep.subr.bf16.mxu0 %v656
      %798 = vmatpush2.bf16.msra.mxu0 %v655
      %799 = vmatprep.mubr.bf16.mxu0 %v384
      %800 = vmatmul.mubr.bf16.gmra.mxu0 %v383
      %v801 = vpop.f32.mrf.mxu0
      %v802 = vadd.f32 %v280, %v801
      %v803 = vpop.f32.mrf.mxu0
      %v804 = vadd.f32 %v284, %v803
      %v805 = vpop.f32.mrf.mxu0
      %v806 = vadd.f32 %v280, %v805
      %v807 = vpop.f32.mrf.mxu0
      %v808 = vadd.f32 %v284, %v807
      %809 = vmatprep.mubr.bf16.mxu0 %v388
      %810 = vmatmul.mubr.bf16.gmra.mxu0 %v387
      %v811 = vpop.f32.mrf.mxu0
      %v812 = vadd.f32 %v280, %v811
      %v813 = vpop.f32.mrf.mxu0
      %v814 = vadd.f32 %v284, %v813
      %v815 = vpop.f32.mrf.mxu0
      %v816 = vadd.f32 %v280, %v815
      %v817 = vpop.f32.mrf.mxu0
      %v818 = vadd.f32 %v284, %v817
      %819 = vmatprep.mubr.bf16.mxu0 %v392
      %820 = vmatmul.mubr.bf16.gmra.mxu0 %v391
      %v821 = vpop.f32.mrf.mxu0
      %v822 = vadd.f32 %v280, %v821
      %v823 = vpop.f32.mrf.mxu0
      %v824 = vadd.f32 %v284, %v823
      %v825 = vpop.f32.mrf.mxu0
      %v826 = vadd.f32 %v280, %v825
      %v827 = vpop.f32.mrf.mxu0
      %v828 = vadd.f32 %v284, %v827
      %829 = vmatprep.mubr.bf16.mxu0 %v396
      %830 = vmatmul.mubr.bf16.gmra.mxu0 %v395
      %v831 = vpop.f32.mrf.mxu0
      %v832 = vadd.f32 %v280, %v831
      %v833 = vpop.f32.mrf.mxu0
      %v834 = vadd.f32 %v284, %v833
      %v835 = vpop.f32.mrf.mxu0
      %v836 = vadd.f32 %v280, %v835
      %v837 = vpop.f32.mrf.mxu0
      %v838 = vadd.f32 %v284, %v837
      %839 = vmatprep.mubr.bf16.mxu0 %v400
      %840 = vmatmul.mubr.bf16.gmra.mxu0 %v399
      %v841 = vpop.f32.mrf.mxu0
      %v842 = vadd.f32 %v280, %v841
      %v843 = vpop.f32.mrf.mxu0
      %v844 = vadd.f32 %v284, %v843
      %v845 = vpop.f32.mrf.mxu0
      %v846 = vadd.f32 %v280, %v845
      %v847 = vpop.f32.mrf.mxu0
      %v848 = vadd.f32 %v284, %v847
      %849 = vmatprep.mubr.bf16.mxu0 %v404
      %850 = vmatmul.mubr.bf16.gmra.mxu0 %v403
      %v851 = vpop.f32.mrf.mxu0
      %v852 = vadd.f32 %v280, %v851
      %v853 = vpop.f32.mrf.mxu0
      %v854 = vadd.f32 %v284, %v853
      %v855 = vpop.f32.mrf.mxu0
      %v856 = vadd.f32 %v280, %v855
      %v857 = vpop.f32.mrf.mxu0
      %v858 = vadd.f32 %v284, %v857
      %859 = vmatprep.mubr.bf16.mxu0 %v408
      %860 = vmatmul.mubr.bf16.gmra.mxu0 %v407
      %v861 = vpop.f32.mrf.mxu0
      %v862 = vadd.f32 %v280, %v861
      %v863 = vpop.f32.mrf.mxu0
      %v864 = vadd.f32 %v284, %v863
      %v865 = vpop.f32.mrf.mxu0
      %v866 = vadd.f32 %v280, %v865
      %v867 = vpop.f32.mrf.mxu0
      %v868 = vadd.f32 %v284, %v867
      %869 = vmatprep.mubr.bf16.mxu0 %v412
      %870 = vmatmul.mubr.bf16.gmra.mxu0 %v411
      %v871 = vpop.f32.mrf.mxu0
      %v872 = vadd.f32 %v280, %v871
      %v873 = vpop.f32.mrf.mxu0
      %v874 = vadd.f32 %v284, %v873
      %v875 = vpop.f32.mrf.mxu0
      %v876 = vadd.f32 %v280, %v875
      %v877 = vpop.f32.mrf.mxu0
      %v878 = vadd.f32 %v284, %v877
      %879 = vdwg.mxu0
      %880 = vmatprep.subr.bf16.mxu0 %v686
      %881 = vmatpush1.bf16.msra.mxu0 %v685
      %882 = vmatprep.subr.bf16.mxu0 %v684
      %883 = vmatpush1.bf16.msra.mxu0 %v683
      %884 = vmatprep.subr.bf16.mxu0 %v682
      %885 = vmatpush1.bf16.msra.mxu0 %v681
      %886 = vmatprep.subr.bf16.mxu0 %v680
      %887 = vmatpush1.bf16.msra.mxu0 %v679
      %888 = vmatprep.subr.bf16.mxu0 %v678
      %889 = vmatpush1.bf16.msra.mxu0 %v677
      %890 = vmatprep.subr.bf16.mxu0 %v676
      %891 = vmatpush1.bf16.msra.mxu0 %v675
      %892 = vmatprep.subr.bf16.mxu0 %v674
      %893 = vmatpush1.bf16.msra.mxu0 %v673
      %894 = vmatprep.subr.bf16.mxu0 %v672
      %895 = vmatpush1.bf16.msra.mxu0 %v671
      %896 = vmatprep.subr.bf16.mxu0 %v702
      %897 = vmatpush2.bf16.msra.mxu0 %v701
      %898 = vmatprep.subr.bf16.mxu0 %v700
      %899 = vmatpush2.bf16.msra.mxu0 %v699
      %900 = vmatprep.subr.bf16.mxu0 %v698
      %901 = vmatpush2.bf16.msra.mxu0 %v697
      %902 = vmatprep.subr.bf16.mxu0 %v696
      %903 = vmatpush2.bf16.msra.mxu0 %v695
      %904 = vmatprep.subr.bf16.mxu0 %v694
      %905 = vmatpush2.bf16.msra.mxu0 %v693
      %906 = vmatprep.subr.bf16.mxu0 %v692
      %907 = vmatpush2.bf16.msra.mxu0 %v691
      %908 = vmatprep.subr.bf16.mxu0 %v690
      %909 = vmatpush2.bf16.msra.mxu0 %v689
      %910 = vmatprep.subr.bf16.mxu0 %v688
      %911 = vmatpush2.bf16.msra.mxu0 %v687
      %912 = vmatprep.mubr.bf16.mxu0 %v386
      %913 = vmatmul.mubr.bf16.gmra.mxu0 %v385
      %v914 = vpop.f32.mrf.mxu0
      %v915 = vadd.f32 %v802, %v914
      %v916 = vpop.f32.mrf.mxu0
      %v917 = vadd.f32 %v804, %v916
      %v918 = vpop.f32.mrf.mxu0
      %v919 = vadd.f32 %v806, %v918
      %v920 = vpop.f32.mrf.mxu0
      %v921 = vadd.f32 %v808, %v920
      %922 = vmatprep.mubr.bf16.mxu0 %v390
      %923 = vmatmul.mubr.bf16.gmra.mxu0 %v389
      %v924 = vpop.f32.mrf.mxu0
      %v925 = vadd.f32 %v812, %v924
      %v926 = vpop.f32.mrf.mxu0
      %v927 = vadd.f32 %v814, %v926
      %v928 = vpop.f32.mrf.mxu0
      %v929 = vadd.f32 %v816, %v928
      %v930 = vpop.f32.mrf.mxu0
      %v931 = vadd.f32 %v818, %v930
      %932 = vmatprep.mubr.bf16.mxu0 %v394
      %933 = vmatmul.mubr.bf16.gmra.mxu0 %v393
      %v934 = vpop.f32.mrf.mxu0
      %v935 = vadd.f32 %v822, %v934
      %v936 = vpop.f32.mrf.mxu0
      %v937 = vadd.f32 %v824, %v936
      %v938 = vpop.f32.mrf.mxu0
      %v939 = vadd.f32 %v826, %v938
      %v940 = vpop.f32.mrf.mxu0
      %v941 = vadd.f32 %v828, %v940
      %942 = vmatprep.mubr.bf16.mxu0 %v398
      %943 = vmatmul.mubr.bf16.gmra.mxu0 %v397
      %v944 = vpop.f32.mrf.mxu0
      %v945 = vadd.f32 %v832, %v944
      %v946 = vpop.f32.mrf.mxu0
      %v947 = vadd.f32 %v834, %v946
      %v948 = vpop.f32.mrf.mxu0
      %v949 = vadd.f32 %v836, %v948
      %v950 = vpop.f32.mrf.mxu0
      %v951 = vadd.f32 %v838, %v950
      %952 = vmatprep.mubr.bf16.mxu0 %v402
      %953 = vmatmul.mubr.bf16.gmra.mxu0 %v401
      %v954 = vpop.f32.mrf.mxu0
      %v955 = vadd.f32 %v842, %v954
      %v956 = vpop.f32.mrf.mxu0
      %v957 = vadd.f32 %v844, %v956
      %v958 = vpop.f32.mrf.mxu0
      %v959 = vadd.f32 %v846, %v958
      %v960 = vpop.f32.mrf.mxu0
      %v961 = vadd.f32 %v848, %v960
      %962 = vmatprep.mubr.bf16.mxu0 %v406
      %963 = vmatmul.mubr.bf16.gmra.mxu0 %v405
      %v964 = vpop.f32.mrf.mxu0
      %v965 = vadd.f32 %v852, %v964
      %v966 = vpop.f32.mrf.mxu0
      %v967 = vadd.f32 %v854, %v966
      %v968 = vpop.f32.mrf.mxu0
      %v969 = vadd.f32 %v856, %v968
      %v970 = vpop.f32.mrf.mxu0
      %v971 = vadd.f32 %v858, %v970
      %972 = vmatprep.mubr.bf16.mxu0 %v410
      %973 = vmatmul.mubr.bf16.gmra.mxu0 %v409
      %v974 = vpop.f32.mrf.mxu0
      %v975 = vadd.f32 %v862, %v974
      %v976 = vpop.f32.mrf.mxu0
      %v977 = vadd.f32 %v864, %v976
      %v978 = vpop.f32.mrf.mxu0
      %v979 = vadd.f32 %v866, %v978
      %v980 = vpop.f32.mrf.mxu0
      %v981 = vadd.f32 %v868, %v980
      %982 = vmatprep.mubr.bf16.mxu0 %v414
      %983 = vmatmul.mubr.bf16.gmra.mxu0 %v413
      %v984 = vpop.f32.mrf.mxu0
      %v985 = vadd.f32 %v872, %v984
      %v986 = vpop.f32.mrf.mxu0
      %v987 = vadd.f32 %v874, %v986
      %v988 = vpop.f32.mrf.mxu0
      %v989 = vadd.f32 %v876, %v988
      %v990 = vpop.f32.mrf.mxu0
      %v991 = vadd.f32 %v878, %v990
      %992 = vdwg.mxu0
      %v993 = vmax.f32 %v915, 0.0
      %v994 = vmax.f32 %v917, 0.0
      %v995 = vmax.f32 %v919, 0.0
      %v996 = vmax.f32 %v921, 0.0
      %v997 = vmax.f32 %v925, 0.0
      %v998 = vmax.f32 %v927, 0.0
      %v999 = vmax.f32 %v929, 0.0
      %v1000 = vmax.f32 %v931, 0.0
      %v1001 = vmax.f32 %v935, 0.0
      %v1002 = vmax.f32 %v937, 0.0
      %v1003 = vmax.f32 %v939, 0.0
      %v1004 = vmax.f32 %v941, 0.0
      %v1005 = vmax.f32 %v945, 0.0
      %v1006 = vmax.f32 %v947, 0.0
      %v1007 = vmax.f32 %v949, 0.0
      %v1008 = vmax.f32 %v951, 0.0
      %v1009 = vmax.f32 %v955, 0.0
      %v1010 = vmax.f32 %v957, 0.0
      %v1011 = vmax.f32 %v959, 0.0
      %v1012 = vmax.f32 %v961, 0.0
      %v1013 = vmax.f32 %v965, 0.0
      %v1014 = vmax.f32 %v967, 0.0
      %v1015 = vmax.f32 %v969, 0.0
      %v1016 = vmax.f32 %v971, 0.0
      %v1017 = vmax.f32 %v975, 0.0
      %v1018 = vmax.f32 %v977, 0.0
      %v1019 = vmax.f32 %v979, 0.0
      %v1020 = vmax.f32 %v981, 0.0
      %v1021 = vmax.f32 %v985, 0.0
      %v1022 = vmax.f32 %v987, 0.0
      %v1023 = vmax.f32 %v989, 0.0
      %v1024 = vmax.f32 %v991, 0.0
      %v1025 = vmax.f32 %v993, %v1001
      %v1026 = vmax.f32 %v994, %v1002
      %v1027 = vmax.f32 %v995, %v1003
      %v1028 = vmax.f32 %v996, %v1004
      %v1029 = vmax.f32 %v997, %v1005
      %v1030 = vmax.f32 %v998, %v1006
      %v1031 = vmax.f32 %v999, %v1007
      %v1032 = vmax.f32 %v1000, %v1008
      %v1033 = vmax.f32 %v1025, %v1009
      %v1034 = vmax.f32 %v1026, %v1010
      %v1035 = vmax.f32 %v1027, %v1011
      %v1036 = vmax.f32 %v1028, %v1012
      %v1037 = vmax.f32 %v1029, %v1013
      %v1038 = vmax.f32 %v1030, %v1014
      %v1039 = vmax.f32 %v1031, %v1015
      %v1040 = vmax.f32 %v1032, %v1016
      %v1041 = vmax.f32 %v1033, %v1017
      %v1042 = vmax.f32 %v1034, %v1018
      %v1043 = vmax.f32 %v1035, %v1019
      %v1044 = vmax.f32 %v1036, %v1020
      %v1045 = vmax.f32 %v1037, %v1021
      %v1046 = vmax.f32 %v1038, %v1022
      %v1047 = vmax.f32 %v1039, %v1023
      %v1048 = vmax.f32 %v1040, %v1024
      %v1049 = vpack.c.bf16 %v1043, %v1041
      %v1050 = vpack.c.bf16 %v1044, %v1042
      %v1051 = vpack.c.bf16 %v1047, %v1045
      %v1052 = vpack.c.bf16 %v1048, %v1046
      %v1057 = vunpack.c.l.b16 %v1049
      %v1058 = vunpack.c.l.b16 %v1050
      %v1059 = vunpack.c.h.b16 %v1049
      %v1060 = vunpack.c.h.b16 %v1050
      %v1061 = vunpack.c.l.b16 %v1051
      %v1062 = vunpack.c.l.b16 %v1052
      %v1063 = vunpack.c.h.b16 %v1051
      %v1064 = vunpack.c.h.b16 %v1052
      %v1065 = vpack.c.b16 %v1058, %v1057
      %v1066 = vpack.c.b16 %v1060, %v1059
      %v1067 = vpack.c.b16 %v1062, %v1061
      %v1068 = vpack.c.b16 %v1064, %v1063
      %1073 = vst [vmem:[%s177] sm:$0xff] %v1065
      %1074 = vst [vmem:[%s177 + $0x8] sm:$0xff] %v1066
      %1075 = vst [vmem:[%s177 + $0x10] sm:$0xff] %v1067
      %1076 = vst [vmem:[%s177 + $0x18] sm:$0xff] %v1068
      %s1077 = smul.u32 4, %s14
      %p1078 = scmp.lt.s32.totalorder %s1077, 7
      %s1079 = scalar_select %p1078, %s1077, 7
      %s1080 = smul.addr %s1079, 2
      %s1081 = smul.addr %s1080, 4
      %s1082 = scalar_lea.vmem %s3, %s1081
      // Predicated region
      $region33: #{cifar_net_forward.4} parent=31 // pred_check
        %p1083 = pneg %p100
      $region34: #{cifar_net_forward.4} parent=31 // pred_check_branch
        %1085 = sbr.rel (%p1083) target = $region36
      $region35: #{cifar_net_forward.4} parent=31 // pred_region
        %s1086 = smul.u32 4, %s14
      $region36: #{cifar_net_forward.4} parent=31 // pred_fallthru
        _
    $region32: #{cifar_net_forward.4} parent=5 // pred_fallthru
      _
    %p1087 = scmp.le.s32.totalorder 2, %s9
    // Predicated region
    $region37: #{cifar_net_forward.4} parent=5 // pred_check
      %p1088 = pneg %p1087
    $region38: #{cifar_net_forward.4} parent=5 // pred_check_branch
      %1090 = sbr.rel (%p1088) target = $region40
    $region39: #{cifar_net_forward.4} parent=5 // pred_region
      %s1091 = ssub.s32 %s9, 2
      // Predicated region
      $region41: #{cifar_net_forward.4} parent=39 // pred_check
        %p1092 = pneg %p106
      $region42: #{cifar_net_forward.4} parent=39 // pred_check_branch
        %1094 = sbr.rel (%p1092) target = $region44
      $region43: #{cifar_net_forward.4} parent=39 // pred_region
        %s1095 = smul.u32 4, %s15
        %p1096 = scmp.lt.s32.totalorder %s1095, 7
        %s1097 = scalar_select %p1096, %s1095, 7
        %s1098 = smul.addr %s1097, 2
        %s1099 = smul.addr %s1098, 4
        %s1100 = scalar_lea.vmem %s3, %s1099
      $region44: #{cifar_net_forward.4} parent=39 // pred_fallthru
        _
    $region40: #{cifar_net_forward.4} parent=5 // pred_fallthru
      _
  $region6: #{cifar_net_forward.4} parent=0 // loop_footer
    %s13 = sadd.s32 1, %s9
  $region7: #{cifar_net_forward.4} parent=0 // loop_footer_branch
    %8 = sbr.rel target = $region3
  $region8: #{cifar_net_forward.4} parent=0 // loop_exit
    _

// kernel: cifar_net_forward.5
$region0: #{cifar_net_forward.5}
  #allocation0 [shape = 'u32[]', space=smem, size = 0x4, offset = 0x4, fixed_abs, tag = 'smem constant byte address 0x4 - core index']
  #allocation1 [shape = 'u32[144,128]{1,0:T(1,128)}', space=vmem, size = 0x12000, scoped, tag = 'internal scratch']
  %s0 = inlined_call_operand.vmem [shape: bf16[2,8192], index: 0, kind: input, shape index: {}]
  %s1 = inlined_call_operand.vmem [shape: bf16[8192,128], index: 1, kind: input, shape index: {}]
  %s2 = inlined_call_operand.vmem [shape: f32[1,128], index: 2, kind: input, shape index: {}]
  %s3 = inlined_call_operand.vmem [shape: bf16[128,128], index: 3, kind: input, shape index: {}]
  %s4 = inlined_call_operand.vmem [shape: f32[1,128], index: 4, kind: input, shape index: {}]
  %s5 = inlined_call_operand.vmem [shape: bf16[128,10], index: 5, kind: input, shape index: {}]
  %s6 = inlined_call_operand.vmem [shape: f32[1,10], index: 6, kind: input, shape index: {}]
  %s7 = inlined_call_operand.hbm [shape: f32[2,10], index: 7, kind: output, shape index: {}]
  %s8 = sld [smem:[#allocation0]]
  $region38: #{cifar_net_forward.5} parent=0
    _
  %s10 = ssub.s32 1, %s8
  %s11 = scalar_select 0, %s10, %s8
  $region1: #{cifar_net_forward.5} parent=0
    #allocation2 [shape = 'u8[1024]{0}', space=vmem, size = 0x400, scoped, tag = 'output window, operand 0, single buffered']
    #allocation3 [shape = 's32[1]{0}', space=sflag, size = 0x4, scoped, tag = 'scoped memory for cifar_net_forward.5']
    %12 = vsyncpa [#allocation3], 0
    // Predicated region
    $region2: #{cifar_net_forward.5} parent=1 // pred_check
      _
    $region3: #{cifar_net_forward.5} parent=1 // pred_check_branch
      %14 = sbr.rel (0) target = $region5
    $region4: #{cifar_net_forward.5} parent=1 // pred_region
      _
    $region5: #{cifar_net_forward.5} parent=1 // pred_fallthru
      _
    // Predicated region
    $region6: #{cifar_net_forward.5} parent=1 // pred_check
      _
    $region7: #{cifar_net_forward.5} parent=1 // pred_check_branch
      %16 = sbr.rel (0) target = $region9
    $region8: #{cifar_net_forward.5} parent=1 // pred_region
      _
    $region9: #{cifar_net_forward.5} parent=1 // pred_fallthru
      _
    // Predicated region
    $region10: #{cifar_net_forward.5} parent=1 // pred_check
      _
    $region11: #{cifar_net_forward.5} parent=1 // pred_check_branch
      %18 = sbr.rel (0) target = $region13
    $region12: #{cifar_net_forward.5} parent=1 // pred_region
      _
    $region13: #{cifar_net_forward.5} parent=1 // pred_fallthru
      _
    // Predicated region
    $region14: #{cifar_net_forward.5} parent=1 // pred_check
      _
    $region15: #{cifar_net_forward.5} parent=1 // pred_check_branch
      %20 = sbr.rel (0) target = $region17
    $region16: #{cifar_net_forward.5} parent=1 // pred_region
      _
    $region17: #{cifar_net_forward.5} parent=1 // pred_fallthru
      _
    // Predicated region
    $region18: #{cifar_net_forward.5} parent=1 // pred_check
      _
    $region19: #{cifar_net_forward.5} parent=1 // pred_check_branch
      %22 = sbr.rel (0) target = $region21
    $region20: #{cifar_net_forward.5} parent=1 // pred_region
      _
    $region21: #{cifar_net_forward.5} parent=1 // pred_fallthru
      _
    // Predicated region
    $region22: #{cifar_net_forward.5} parent=1 // pred_check
      _
    $region23: #{cifar_net_forward.5} parent=1 // pred_check_branch
      %24 = sbr.rel (0) target = $region25
    $region24: #{cifar_net_forward.5} parent=1 // pred_region
      _
    $region25: #{cifar_net_forward.5} parent=1 // pred_fallthru
      _
    // Predicated region
    $region26: #{cifar_net_forward.5} parent=1 // pred_check
      _
    $region27: #{cifar_net_forward.5} parent=1 // pred_check_branch
      %26 = sbr.rel (0) target = $region29
    $region28: #{cifar_net_forward.5} parent=1 // pred_region
      _
    $region29: #{cifar_net_forward.5} parent=1 // pred_fallthru
      _
    %v28 = vld [vmem:[%s0] sm:$0xff]
    %v29 = vld [vmem:[%s0 + $0x8] sm:$0xff]
    %v30 = vld [vmem:[%s0 + $0x10] sm:$0xff]
    %v31 = vld [vmem:[%s0 + $0x18] sm:$0xff]
    %v32 = vld [vmem:[%s0 + $0x20] sm:$0xff]
    %v33 = vld [vmem:[%s0 + $0x28] sm:$0xff]
    %v34 = vld [vmem:[%s0 + $0x30] sm:$0xff]
    %v35 = vld [vmem:[%s0 + $0x38] sm:$0xff]
    %v36 = vld [vmem:[%s1] sm:$0xf]
    %v37 = vld [vmem:[%s1 + $0x4] sm:$0xf]
    %v38 = vld [vmem:[%s1 + $0x8] sm:$0xf]
    %v39 = vld [vmem:[%s1 + $0xc] sm:$0xf]
    %v40 = vld [vmem:[%s1 + $0x10] sm:$0xf]
    %v41 = vld [vmem:[%s1 + $0x14] sm:$0xf]
    %v42 = vld [vmem:[%s1 + $0x18] sm:$0xf]
    %v43 = vld [vmem:[%s1 + $0x1c] sm:$0xf]
    %v44 = vld [vmem:[%s1 + $0x20] sm:$0xf]
    %v45 = vld [vmem:[%s1 + $0x24] sm:$0xf]
    %v46 = vld [vmem:[%s1 + $0x28] sm:$0xf]
    %v47 = vld [vmem:[%s1 + $0x2c] sm:$0xf]
    %v48 = vld [vmem:[%s1 + $0x30] sm:$0xf]
    %v49 = vld [vmem:[%s1 + $0x34] sm:$0xf]
    %v50 = vld [vmem:[%s1 + $0x38] sm:$0xf]
    %v51 = vld [vmem:[%s1 + $0x3c] sm:$0xf]
    %v52 = vld [vmem:[%s1 + $0x40] sm:$0xf]
    %v53 = vld [vmem:[%s1 + $0x44] sm:$0xf]
    %v54 = vld [vmem:[%s1 + $0x48] sm:$0xf]
    %v55 = vld [vmem:[%s1 + $0x4c] sm:$0xf]
    %v56 = vld [vmem:[%s1 + $0x50] sm:$0xf]
    %v57 = vld [vmem:[%s1 + $0x54] sm:$0xf]
    %v58 = vld [vmem:[%s1 + $0x58] sm:$0xf]
    %v59 = vld [vmem:[%s1 + $0x5c] sm:$0xf]
    %v60 = vld [vmem:[%s1 + $0x60] sm:$0xf]
    %v61 = vld [vmem:[%s1 + $0x64] sm:$0xf]
    %v62 = vld [vmem:[%s1 + $0x68] sm:$0xf]
    %v63 = vld [vmem:[%s1 + $0x6c] sm:$0xf]
    %v64 = vld [vmem:[%s1 + $0x70] sm:$0xf]
    %v65 = vld [vmem:[%s1 + $0x74] sm:$0xf]
    %v66 = vld [vmem:[%s1 + $0x78] sm:$0xf]
    %v67 = vld [vmem:[%s1 + $0x7c] sm:$0xf]
    %v68 = vld [vmem:[%s1 + $0x80] sm:$0xf]
    %v69 = vld [vmem:[%s1 + $0x84] sm:$0xf]
    %v70 = vld [vmem:[%s1 + $0x88] sm:$0xf]
    %v71 = vld [vmem:[%s1 + $0x8c] sm:$0xf]
    %v72 = vld [vmem:[%s1 + $0x90] sm:$0xf]
    %v73 = vld [vmem:[%s1 + $0x94] sm:$0xf]
    %v74 = vld [vmem:[%s1 + $0x98] sm:$0xf]
    %v75 = vld [vmem:[%s1 + $0x9c] sm:$0xf]
    %v76 = vld [vmem:[%s1 + $0xa0] sm:$0xf]
    %v77 = vld [vmem:[%s1 + $0xa4] sm:$0xf]
    %v78 = vld [vmem:[%s1 + $0xa8] sm:$0xf]
    %v79 = vld [vmem:[%s1 + $0xac] sm:$0xf]
    %v80 = vld [vmem:[%s1 + $0xb0] sm:$0xf]
    %v81 = vld [vmem:[%s1 + $0xb4] sm:$0xf]
    %v82 = vld [vmem:[%s1 + $0xb8] sm:$0xf]
    %v83 = vld [vmem:[%s1 + $0xbc] sm:$0xf]
    %v84 = vld [vmem:[%s1 + $0xc0] sm:$0xf]
    %v85 = vld [vmem:[%s1 + $0xc4] sm:$0xf]
    %v86 = vld [vmem:[%s1 + $0xc8] sm:$0xf]
    %v87 = vld [vmem:[%s1 + $0xcc] sm:$0xf]
    %v88 = vld [vmem:[%s1 + $0xd0] sm:$0xf]
    %v89 = vld [vmem:[%s1 + $0xd4] sm:$0xf]
    %v90 = vld [vmem:[%s1 + $0xd8] sm:$0xf]
    %v91 = vld [vmem:[%s1 + $0xdc] sm:$0xf]
    %v92 = vld [vmem:[%s1 + $0xe0] sm:$0xf]
    %v93 = vld [vmem:[%s1 + $0xe4] sm:$0xf]
    %v94 = vld [vmem:[%s1 + $0xe8] sm:$0xf]
    %v95 = vld [vmem:[%s1 + $0xec] sm:$0xf]
    %v96 = vld [vmem:[%s1 + $0xf0] sm:$0xf]
    %v97 = vld [vmem:[%s1 + $0xf4] sm:$0xf]
    %v98 = vld [vmem:[%s1 + $0xf8] sm:$0xf]
    %v99 = vld [vmem:[%s1 + $0xfc] sm:$0xf]
    %v100 = vld [vmem:[%s1 + $0x100] sm:$0xf]
    %v101 = vld [vmem:[%s1 + $0x104] sm:$0xf]
    %v102 = vld [vmem:[%s1 + $0x108] sm:$0xf]
    %v103 = vld [vmem:[%s1 + $0x10c] sm:$0xf]
    %v104 = vld [vmem:[%s1 + $0x110] sm:$0xf]
    %v105 = vld [vmem:[%s1 + $0x114] sm:$0xf]
    %v106 = vld [vmem:[%s1 + $0x118] sm:$0xf]
    %v107 = vld [vmem:[%s1 + $0x11c] sm:$0xf]
    %v108 = vld [vmem:[%s1 + $0x120] sm:$0xf]
    %v109 = vld [vmem:[%s1 + $0x124] sm:$0xf]
    %v110 = vld [vmem:[%s1 + $0x128] sm:$0xf]
    %v111 = vld [vmem:[%s1 + $0x12c] sm:$0xf]
    %v112 = vld [vmem:[%s1 + $0x130] sm:$0xf]
    %v113 = vld [vmem:[%s1 + $0x134] sm:$0xf]
    %v114 = vld [vmem:[%s1 + $0x138] sm:$0xf]
    %v115 = vld [vmem:[%s1 + $0x13c] sm:$0xf]
    %v116 = vld [vmem:[%s1 + $0x140] sm:$0xf]
    %v117 = vld [vmem:[%s1 + $0x144] sm:$0xf]
    %v118 = vld [vmem:[%s1 + $0x148] sm:$0xf]
    %v119 = vld [vmem:[%s1 + $0x14c] sm:$0xf]
    %v120 = vld [vmem:[%s1 + $0x150] sm:$0xf]
    %v121 = vld [vmem:[%s1 + $0x154] sm:$0xf]
    %v122 = vld [vmem:[%s1 + $0x158] sm:$0xf]
    %v123 = vld [vmem:[%s1 + $0x15c] sm:$0xf]
    %v124 = vld [vmem:[%s1 + $0x160] sm:$0xf]
    %v125 = vld [vmem:[%s1 + $0x164] sm:$0xf]
    %v126 = vld [vmem:[%s1 + $0x168] sm:$0xf]
    %v127 = vld [vmem:[%s1 + $0x16c] sm:$0xf]
    %v128 = vld [vmem:[%s1 + $0x170] sm:$0xf]
    %v129 = vld [vmem:[%s1 + $0x174] sm:$0xf]
    %v130 = vld [vmem:[%s1 + $0x178] sm:$0xf]
    %v131 = vld [vmem:[%s1 + $0x17c] sm:$0xf]
    %v132 = vld [vmem:[%s1 + $0x180] sm:$0xf]
    %v133 = vld [vmem:[%s1 + $0x184] sm:$0xf]
    %v134 = vld [vmem:[%s1 + $0x188] sm:$0xf]
    %v135 = vld [vmem:[%s1 + $0x18c] sm:$0xf]
    %v136 = vld [vmem:[%s1 + $0x190] sm:$0xf]
    %v137 = vld [vmem:[%s1 + $0x194] sm:$0xf]
    %v138 = vld [vmem:[%s1 + $0x198] sm:$0xf]
    %v139 = vld [vmem:[%s1 + $0x19c] sm:$0xf]
    %v140 = vld [vmem:[%s1 + $0x1a0] sm:$0xf]
    %v141 = vld [vmem:[%s1 + $0x1a4] sm:$0xf]
    %v142 = vld [vmem:[%s1 + $0x1a8] sm:$0xf]
    %v143 = vld [vmem:[%s1 + $0x1ac] sm:$0xf]
    %v144 = vld [vmem:[%s1 + $0x1b0] sm:$0xf]
    %v145 = vld [vmem:[%s1 + $0x1b4] sm:$0xf]
    %v146 = vld [vmem:[%s1 + $0x1b8] sm:$0xf]
    %v147 = vld [vmem:[%s1 + $0x1bc] sm:$0xf]
    %v148 = vld [vmem:[%s1 + $0x1c0] sm:$0xf]
    %v149 = vld [vmem:[%s1 + $0x1c4] sm:$0xf]
    %v150 = vld [vmem:[%s1 + $0x1c8] sm:$0xf]
    %v151 = vld [vmem:[%s1 + $0x1cc] sm:$0xf]
    %v152 = vld [vmem:[%s1 + $0x1d0] sm:$0xf]
    %v153 = vld [vmem:[%s1 + $0x1d4] sm:$0xf]
    %v154 = vld [vmem:[%s1 + $0x1d8] sm:$0xf]
    %v155 = vld [vmem:[%s1 + $0x1dc] sm:$0xf]
    %v156 = vld [vmem:[%s1 + $0x1e0] sm:$0xf]
    %v157 = vld [vmem:[%s1 + $0x1e4] sm:$0xf]
    %v158 = vld [vmem:[%s1 + $0x1e8] sm:$0xf]
    %v159 = vld [vmem:[%s1 + $0x1ec] sm:$0xf]
    %v160 = vld [vmem:[%s1 + $0x1f0] sm:$0xf]
    %v161 = vld [vmem:[%s1 + $0x1f4] sm:$0xf]
    %v162 = vld [vmem:[%s1 + $0x1f8] sm:$0xf]
    %v163 = vld [vmem:[%s1 + $0x1fc] sm:$0xf]
    %v164 = vld [vmem:[%s1 + $0x200] sm:$0xf]
    %v165 = vld [vmem:[%s1 + $0x204] sm:$0xf]
    %v166 = vld [vmem:[%s1 + $0x208] sm:$0xf]
    %v167 = vld [vmem:[%s1 + $0x20c] sm:$0xf]
    %v168 = vld [vmem:[%s1 + $0x210] sm:$0xf]
    %v169 = vld [vmem:[%s1 + $0x214] sm:$0xf]
    %v170 = vld [vmem:[%s1 + $0x218] sm:$0xf]
    %v171 = vld [vmem:[%s1 + $0x21c] sm:$0xf]
    %v172 = vld [vmem:[%s1 + $0x220] sm:$0xf]
    %v173 = vld [vmem:[%s1 + $0x224] sm:$0xf]
    %v174 = vld [vmem:[%s1 + $0x228] sm:$0xf]
    %v175 = vld [vmem:[%s1 + $0x22c] sm:$0xf]
    %v176 = vld [vmem:[%s1 + $0x230] sm:$0xf]
    %v177 = vld [vmem:[%s1 + $0x234] sm:$0xf]
    %v178 = vld [vmem:[%s1 + $0x238] sm:$0xf]
    %v179 = vld [vmem:[%s1 + $0x23c] sm:$0xf]
    %v180 = vld [vmem:[%s1 + $0x240] sm:$0xf]
    %v181 = vld [vmem:[%s1 + $0x244] sm:$0xf]
    %v182 = vld [vmem:[%s1 + $0x248] sm:$0xf]
    %v183 = vld [vmem:[%s1 + $0x24c] sm:$0xf]
    %v184 = vld [vmem:[%s1 + $0x250] sm:$0xf]
    %v185 = vld [vmem:[%s1 + $0x254] sm:$0xf]
    %v186 = vld [vmem:[%s1 + $0x258] sm:$0xf]
    %v187 = vld [vmem:[%s1 + $0x25c] sm:$0xf]
    %v188 = vld [vmem:[%s1 + $0x260] sm:$0xf]
    %v189 = vld [vmem:[%s1 + $0x264] sm:$0xf]
    %v190 = vld [vmem:[%s1 + $0x268] sm:$0xf]
    %v191 = vld [vmem:[%s1 + $0x26c] sm:$0xf]
    %v192 = vld [vmem:[%s1 + $0x270] sm:$0xf]
    %v193 = vld [vmem:[%s1 + $0x274] sm:$0xf]
    %v194 = vld [vmem:[%s1 + $0x278] sm:$0xf]
    %v195 = vld [vmem:[%s1 + $0x27c] sm:$0xf]
    %v196 = vld [vmem:[%s1 + $0x280] sm:$0xf]
    %v197 = vld [vmem:[%s1 + $0x284] sm:$0xf]
    %v198 = vld [vmem:[%s1 + $0x288] sm:$0xf]
    %v199 = vld [vmem:[%s1 + $0x28c] sm:$0xf]
    %v200 = vld [vmem:[%s1 + $0x290] sm:$0xf]
    %v201 = vld [vmem:[%s1 + $0x294] sm:$0xf]
    %v202 = vld [vmem:[%s1 + $0x298] sm:$0xf]
    %v203 = vld [vmem:[%s1 + $0x29c] sm:$0xf]
    %v204 = vld [vmem:[%s1 + $0x2a0] sm:$0xf]
    %v205 = vld [vmem:[%s1 + $0x2a4] sm:$0xf]
    %v206 = vld [vmem:[%s1 + $0x2a8] sm:$0xf]
    %v207 = vld [vmem:[%s1 + $0x2ac] sm:$0xf]
    %v208 = vld [vmem:[%s1 + $0x2b0] sm:$0xf]
    %v209 = vld [vmem:[%s1 + $0x2b4] sm:$0xf]
    %v210 = vld [vmem:[%s1 + $0x2b8] sm:$0xf]
    %v211 = vld [vmem:[%s1 + $0x2bc] sm:$0xf]
    %v212 = vld [vmem:[%s1 + $0x2c0] sm:$0xf]
    %v213 = vld [vmem:[%s1 + $0x2c4] sm:$0xf]
    %v214 = vld [vmem:[%s1 + $0x2c8] sm:$0xf]
    %v215 = vld [vmem:[%s1 + $0x2cc] sm:$0xf]
    %v216 = vld [vmem:[%s1 + $0x2d0] sm:$0xf]
    %v217 = vld [vmem:[%s1 + $0x2d4] sm:$0xf]
    %v218 = vld [vmem:[%s1 + $0x2d8] sm:$0xf]
    %v219 = vld [vmem:[%s1 + $0x2dc] sm:$0xf]
    %v220 = vld [vmem:[%s1 + $0x2e0] sm:$0xf]
    %v221 = vld [vmem:[%s1 + $0x2e4] sm:$0xf]
    %v222 = vld [vmem:[%s1 + $0x2e8] sm:$0xf]
    %v223 = vld [vmem:[%s1 + $0x2ec] sm:$0xf]
    %v224 = vld [vmem:[%s1 + $0x2f0] sm:$0xf]
    %v225 = vld [vmem:[%s1 + $0x2f4] sm:$0xf]
    %v226 = vld [vmem:[%s1 + $0x2f8] sm:$0xf]
    %v227 = vld [vmem:[%s1 + $0x2fc] sm:$0xf]
    %v228 = vld [vmem:[%s1 + $0x300] sm:$0xf]
    %v229 = vld [vmem:[%s1 + $0x304] sm:$0xf]
    %v230 = vld [vmem:[%s1 + $0x308] sm:$0xf]
    %v231 = vld [vmem:[%s1 + $0x30c] sm:$0xf]
    %v232 = vld [vmem:[%s1 + $0x310] sm:$0xf]
    %v233 = vld [vmem:[%s1 + $0x314] sm:$0xf]
    %v234 = vld [vmem:[%s1 + $0x318] sm:$0xf]
    %v235 = vld [vmem:[%s1 + $0x31c] sm:$0xf]
    %v236 = vld [vmem:[%s1 + $0x320] sm:$0xf]
    %v237 = vld [vmem:[%s1 + $0x324] sm:$0xf]
    %v238 = vld [vmem:[%s1 + $0x328] sm:$0xf]
    %v239 = vld [vmem:[%s1 + $0x32c] sm:$0xf]
    %v240 = vld [vmem:[%s1 + $0x330] sm:$0xf]
    %v241 = vld [vmem:[%s1 + $0x334] sm:$0xf]
    %v242 = vld [vmem:[%s1 + $0x338] sm:$0xf]
    %v243 = vld [vmem:[%s1 + $0x33c] sm:$0xf]
    %v244 = vld [vmem:[%s1 + $0x340] sm:$0xf]
    %v245 = vld [vmem:[%s1 + $0x344] sm:$0xf]
    %v246 = vld [vmem:[%s1 + $0x348] sm:$0xf]
    %v247 = vld [vmem:[%s1 + $0x34c] sm:$0xf]
    %v248 = vld [vmem:[%s1 + $0x350] sm:$0xf]
    %v249 = vld [vmem:[%s1 + $0x354] sm:$0xf]
    %v250 = vld [vmem:[%s1 + $0x358] sm:$0xf]
    %v251 = vld [vmem:[%s1 + $0x35c] sm:$0xf]
    %v252 = vld [vmem:[%s1 + $0x360] sm:$0xf]
    %v253 = vld [vmem:[%s1 + $0x364] sm:$0xf]
    %v254 = vld [vmem:[%s1 + $0x368] sm:$0xf]
    %v255 = vld [vmem:[%s1 + $0x36c] sm:$0xf]
    %v256 = vld [vmem:[%s1 + $0x370] sm:$0xf]
    %v257 = vld [vmem:[%s1 + $0x374] sm:$0xf]
    %v258 = vld [vmem:[%s1 + $0x378] sm:$0xf]
    %v259 = vld [vmem:[%s1 + $0x37c] sm:$0xf]
    %v260 = vld [vmem:[%s1 + $0x380] sm:$0xf]
    %v261 = vld [vmem:[%s1 + $0x384] sm:$0xf]
    %v262 = vld [vmem:[%s1 + $0x388] sm:$0xf]
    %v263 = vld [vmem:[%s1 + $0x38c] sm:$0xf]
    %v264 = vld [vmem:[%s1 + $0x390] sm:$0xf]
    %v265 = vld [vmem:[%s1 + $0x394] sm:$0xf]
    %v266 = vld [vmem:[%s1 + $0x398] sm:$0xf]
    %v267 = vld [vmem:[%s1 + $0x39c] sm:$0xf]
    %v268 = vld [vmem:[%s1 + $0x3a0] sm:$0xf]
    %v269 = vld [vmem:[%s1 + $0x3a4] sm:$0xf]
    %v270 = vld [vmem:[%s1 + $0x3a8] sm:$0xf]
    %v271 = vld [vmem:[%s1 + $0x3ac] sm:$0xf]
    %v272 = vld [vmem:[%s1 + $0x3b0] sm:$0xf]
    %v273 = vld [vmem:[%s1 + $0x3b4] sm:$0xf]
    %v274 = vld [vmem:[%s1 + $0x3b8] sm:$0xf]
    %v275 = vld [vmem:[%s1 + $0x3bc] sm:$0xf]
    %v276 = vld [vmem:[%s1 + $0x3c0] sm:$0xf]
    %v277 = vld [vmem:[%s1 + $0x3c4] sm:$0xf]
    %v278 = vld [vmem:[%s1 + $0x3c8] sm:$0xf]
    %v279 = vld [vmem:[%s1 + $0x3cc] sm:$0xf]
    %v280 = vld [vmem:[%s1 + $0x3d0] sm:$0xf]
    %v281 = vld [vmem:[%s1 + $0x3d4] sm:$0xf]
    %v282 = vld [vmem:[%s1 + $0x3d8] sm:$0xf]
    %v283 = vld [vmem:[%s1 + $0x3dc] sm:$0xf]
    %v284 = vld [vmem:[%s1 + $0x3e0] sm:$0xf]
    %v285 = vld [vmem:[%s1 + $0x3e4] sm:$0xf]
    %v286 = vld [vmem:[%s1 + $0x3e8] sm:$0xf]
    %v287 = vld [vmem:[%s1 + $0x3ec] sm:$0xf]
    %v288 = vld [vmem:[%s1 + $0x3f0] sm:$0xf]
    %v289 = vld [vmem:[%s1 + $0x3f4] sm:$0xf]
    %v290 = vld [vmem:[%s1 + $0x3f8] sm:$0xf]
    %v291 = vld [vmem:[%s1 + $0x3fc] sm:$0xf]
    %v292 = vld [vmem:[%s1 + $0x400] sm:$0xf]
    %v293 = vld [vmem:[%s1 + $0x404] sm:$0xf]
    %v294 = vld [vmem:[%s1 + $0x408] sm:$0xf]
    %v295 = vld [vmem:[%s1 + $0x40c] sm:$0xf]
    %v296 = vld [vmem:[%s1 + $0x410] sm:$0xf]
    %v297 = vld [vmem:[%s1 + $0x414] sm:$0xf]
    %v298 = vld [vmem:[%s1 + $0x418] sm:$0xf]
    %v299 = vld [vmem:[%s1 + $0x41c] sm:$0xf]
    %v300 = vld [vmem:[%s1 + $0x420] sm:$0xf]
    %v301 = vld [vmem:[%s1 + $0x424] sm:$0xf]
    %v302 = vld [vmem:[%s1 + $0x428] sm:$0xf]
    %v303 = vld [vmem:[%s1 + $0x42c] sm:$0xf]
    %v304 = vld [vmem:[%s1 + $0x430] sm:$0xf]
    %v305 = vld [vmem:[%s1 + $0x434] sm:$0xf]
    %v306 = vld [vmem:[%s1 + $0x438] sm:$0xf]
    %v307 = vld [vmem:[%s1 + $0x43c] sm:$0xf]
    %v308 = vld [vmem:[%s1 + $0x440] sm:$0xf]
    %v309 = vld [vmem:[%s1 + $0x444] sm:$0xf]
    %v310 = vld [vmem:[%s1 + $0x448] sm:$0xf]
    %v311 = vld [vmem:[%s1 + $0x44c] sm:$0xf]
    %v312 = vld [vmem:[%s1 + $0x450] sm:$0xf]
    %v313 = vld [vmem:[%s1 + $0x454] sm:$0xf]
    %v314 = vld [vmem:[%s1 + $0x458] sm:$0xf]
    %v315 = vld [vmem:[%s1 + $0x45c] sm:$0xf]
    %v316 = vld [vmem:[%s1 + $0x460] sm:$0xf]
    %v317 = vld [vmem:[%s1 + $0x464] sm:$0xf]
    %v318 = vld [vmem:[%s1 + $0x468] sm:$0xf]
    %v319 = vld [vmem:[%s1 + $0x46c] sm:$0xf]
    %v320 = vld [vmem:[%s1 + $0x470] sm:$0xf]
    %v321 = vld [vmem:[%s1 + $0x474] sm:$0xf]
    %v322 = vld [vmem:[%s1 + $0x478] sm:$0xf]
    %v323 = vld [vmem:[%s1 + $0x47c] sm:$0xf]
    %v324 = vld [vmem:[%s1 + $0x480] sm:$0xf]
    %v325 = vld [vmem:[%s1 + $0x484] sm:$0xf]
    %v326 = vld [vmem:[%s1 + $0x488] sm:$0xf]
    %v327 = vld [vmem:[%s1 + $0x48c] sm:$0xf]
    %v328 = vld [vmem:[%s1 + $0x490] sm:$0xf]
    %v329 = vld [vmem:[%s1 + $0x494] sm:$0xf]
    %v330 = vld [vmem:[%s1 + $0x498] sm:$0xf]
    %v331 = vld [vmem:[%s1 + $0x49c] sm:$0xf]
    %v332 = vld [vmem:[%s1 + $0x4a0] sm:$0xf]
    %v333 = vld [vmem:[%s1 + $0x4a4] sm:$0xf]
    %v334 = vld [vmem:[%s1 + $0x4a8] sm:$0xf]
    %v335 = vld [vmem:[%s1 + $0x4ac] sm:$0xf]
    %v336 = vld [vmem:[%s1 + $0x4b0] sm:$0xf]
    %v337 = vld [vmem:[%s1 + $0x4b4] sm:$0xf]
    %v338 = vld [vmem:[%s1 + $0x4b8] sm:$0xf]
    %v339 = vld [vmem:[%s1 + $0x4bc] sm:$0xf]
    %v340 = vld [vmem:[%s1 + $0x4c0] sm:$0xf]
    %v341 = vld [vmem:[%s1 + $0x4c4] sm:$0xf]
    %v342 = vld [vmem:[%s1 + $0x4c8] sm:$0xf]
    %v343 = vld [vmem:[%s1 + $0x4cc] sm:$0xf]
    %v344 = vld [vmem:[%s1 + $0x4d0] sm:$0xf]
    %v345 = vld [vmem:[%s1 + $0x4d4] sm:$0xf]
    %v346 = vld [vmem:[%s1 + $0x4d8] sm:$0xf]
    %v347 = vld [vmem:[%s1 + $0x4dc] sm:$0xf]
    %v348 = vld [vmem:[%s1 + $0x4e0] sm:$0xf]
    %v349 = vld [vmem:[%s1 + $0x4e4] sm:$0xf]
    %v350 = vld [vmem:[%s1 + $0x4e8] sm:$0xf]
    %v351 = vld [vmem:[%s1 + $0x4ec] sm:$0xf]
    %v352 = vld [vmem:[%s1 + $0x4f0] sm:$0xf]
    %v353 = vld [vmem:[%s1 + $0x4f4] sm:$0xf]
    %v354 = vld [vmem:[%s1 + $0x4f8] sm:$0xf]
    %v355 = vld [vmem:[%s1 + $0x4fc] sm:$0xf]
    %v356 = vld [vmem:[%s1 + $0x500] sm:$0xf]
    %v357 = vld [vmem:[%s1 + $0x504] sm:$0xf]
    %v358 = vld [vmem:[%s1 + $0x508] sm:$0xf]
    %v359 = vld [vmem:[%s1 + $0x50c] sm:$0xf]
    %v360 = vld [vmem:[%s1 + $0x510] sm:$0xf]
    %v361 = vld [vmem:[%s1 + $0x514] sm:$0xf]
    %v362 = vld [vmem:[%s1 + $0x518] sm:$0xf]
    %v363 = vld [vmem:[%s1 + $0x51c] sm:$0xf]
    %v364 = vld [vmem:[%s1 + $0x520] sm:$0xf]
    %v365 = vld [vmem:[%s1 + $0x524] sm:$0xf]
    %v366 = vld [vmem:[%s1 + $0x528] sm:$0xf]
    %v367 = vld [vmem:[%s1 + $0x52c] sm:$0xf]
    %v368 = vld [vmem:[%s1 + $0x530] sm:$0xf]
    %v369 = vld [vmem:[%s1 + $0x534] sm:$0xf]
    %v370 = vld [vmem:[%s1 + $0x538] sm:$0xf]
    %v371 = vld [vmem:[%s1 + $0x53c] sm:$0xf]
    %v372 = vld [vmem:[%s1 + $0x540] sm:$0xf]
    %v373 = vld [vmem:[%s1 + $0x544] sm:$0xf]
    %v374 = vld [vmem:[%s1 + $0x548] sm:$0xf]
    %v375 = vld [vmem:[%s1 + $0x54c] sm:$0xf]
    %v376 = vld [vmem:[%s1 + $0x550] sm:$0xf]
    %v377 = vld [vmem:[%s1 + $0x554] sm:$0xf]
    %v378 = vld [vmem:[%s1 + $0x558] sm:$0xf]
    %v379 = vld [vmem:[%s1 + $0x55c] sm:$0xf]
    %v380 = vld [vmem:[%s1 + $0x560] sm:$0xf]
    %v381 = vld [vmem:[%s1 + $0x564] sm:$0xf]
    %v382 = vld [vmem:[%s1 + $0x568] sm:$0xf]
    %v383 = vld [vmem:[%s1 + $0x56c] sm:$0xf]
    %v384 = vld [vmem:[%s1 + $0x570] sm:$0xf]
    %v385 = vld [vmem:[%s1 + $0x574] sm:$0xf]
    %v386 = vld [vmem:[%s1 + $0x578] sm:$0xf]
    %v387 = vld [vmem:[%s1 + $0x57c] sm:$0xf]
    %v388 = vld [vmem:[%s1 + $0x580] sm:$0xf]
    %v389 = vld [vmem:[%s1 + $0x584] sm:$0xf]
    %v390 = vld [vmem:[%s1 + $0x588] sm:$0xf]
    %v391 = vld [vmem:[%s1 + $0x58c] sm:$0xf]
    %v392 = vld [vmem:[%s1 + $0x590] sm:$0xf]
    %v393 = vld [vmem:[%s1 + $0x594] sm:$0xf]
    %v394 = vld [vmem:[%s1 + $0x598] sm:$0xf]
    %v395 = vld [vmem:[%s1 + $0x59c] sm:$0xf]
    %v396 = vld [vmem:[%s1 + $0x5a0] sm:$0xf]
    %v397 = vld [vmem:[%s1 + $0x5a4] sm:$0xf]
    %v398 = vld [vmem:[%s1 + $0x5a8] sm:$0xf]
    %v399 = vld [vmem:[%s1 + $0x5ac] sm:$0xf]
    %v400 = vld [vmem:[%s1 + $0x5b0] sm:$0xf]
    %v401 = vld [vmem:[%s1 + $0x5b4] sm:$0xf]
    %v402 = vld [vmem:[%s1 + $0x5b8] sm:$0xf]
    %v403 = vld [vmem:[%s1 + $0x5bc] sm:$0xf]
    %v404 = vld [vmem:[%s1 + $0x5c0] sm:$0xf]
    %v405 = vld [vmem:[%s1 + $0x5c4] sm:$0xf]
    %v406 = vld [vmem:[%s1 + $0x5c8] sm:$0xf]
    %v407 = vld [vmem:[%s1 + $0x5cc] sm:$0xf]
    %v408 = vld [vmem:[%s1 + $0x5d0] sm:$0xf]
    %v409 = vld [vmem:[%s1 + $0x5d4] sm:$0xf]
    %v410 = vld [vmem:[%s1 + $0x5d8] sm:$0xf]
    %v411 = vld [vmem:[%s1 + $0x5dc] sm:$0xf]
    %v412 = vld [vmem:[%s1 + $0x5e0] sm:$0xf]
    %v413 = vld [vmem:[%s1 + $0x5e4] sm:$0xf]
    %v414 = vld [vmem:[%s1 + $0x5e8] sm:$0xf]
    %v415 = vld [vmem:[%s1 + $0x5ec] sm:$0xf]
    %v416 = vld [vmem:[%s1 + $0x5f0] sm:$0xf]
    %v417 = vld [vmem:[%s1 + $0x5f4] sm:$0xf]
    %v418 = vld [vmem:[%s1 + $0x5f8] sm:$0xf]
    %v419 = vld [vmem:[%s1 + $0x5fc] sm:$0xf]
    %v420 = vld [vmem:[%s1 + $0x600] sm:$0xf]
    %v421 = vld [vmem:[%s1 + $0x604] sm:$0xf]
    %v422 = vld [vmem:[%s1 + $0x608] sm:$0xf]
    %v423 = vld [vmem:[%s1 + $0x60c] sm:$0xf]
    %v424 = vld [vmem:[%s1 + $0x610] sm:$0xf]
    %v425 = vld [vmem:[%s1 + $0x614] sm:$0xf]
    %v426 = vld [vmem:[%s1 + $0x618] sm:$0xf]
    %v427 = vld [vmem:[%s1 + $0x61c] sm:$0xf]
    %v428 = vld [vmem:[%s1 + $0x620] sm:$0xf]
    %v429 = vld [vmem:[%s1 + $0x624] sm:$0xf]
    %v430 = vld [vmem:[%s1 + $0x628] sm:$0xf]
    %v431 = vld [vmem:[%s1 + $0x62c] sm:$0xf]
    %v432 = vld [vmem:[%s1 + $0x630] sm:$0xf]
    %v433 = vld [vmem:[%s1 + $0x634] sm:$0xf]
    %v434 = vld [vmem:[%s1 + $0x638] sm:$0xf]
    %v435 = vld [vmem:[%s1 + $0x63c] sm:$0xf]
    %v436 = vld [vmem:[%s1 + $0x640] sm:$0xf]
    %v437 = vld [vmem:[%s1 + $0x644] sm:$0xf]
    %v438 = vld [vmem:[%s1 + $0x648] sm:$0xf]
    %v439 = vld [vmem:[%s1 + $0x64c] sm:$0xf]
    %v440 = vld [vmem:[%s1 + $0x650] sm:$0xf]
    %v441 = vld [vmem:[%s1 + $0x654] sm:$0xf]
    %v442 = vld [vmem:[%s1 + $0x658] sm:$0xf]
    %v443 = vld [vmem:[%s1 + $0x65c] sm:$0xf]
    %v444 = vld [vmem:[%s1 + $0x660] sm:$0xf]
    %v445 = vld [vmem:[%s1 + $0x664] sm:$0xf]
    %v446 = vld [vmem:[%s1 + $0x668] sm:$0xf]
    %v447 = vld [vmem:[%s1 + $0x66c] sm:$0xf]
    %v448 = vld [vmem:[%s1 + $0x670] sm:$0xf]
    %v449 = vld [vmem:[%s1 + $0x674] sm:$0xf]
    %v450 = vld [vmem:[%s1 + $0x678] sm:$0xf]
    %v451 = vld [vmem:[%s1 + $0x67c] sm:$0xf]
    %v452 = vld [vmem:[%s1 + $0x680] sm:$0xf]
    %v453 = vld [vmem:[%s1 + $0x684] sm:$0xf]
    %v454 = vld [vmem:[%s1 + $0x688] sm:$0xf]
    %v455 = vld [vmem:[%s1 + $0x68c] sm:$0xf]
    %v456 = vld [vmem:[%s1 + $0x690] sm:$0xf]
    %v457 = vld [vmem:[%s1 + $0x694] sm:$0xf]
    %v458 = vld [vmem:[%s1 + $0x698] sm:$0xf]
    %v459 = vld [vmem:[%s1 + $0x69c] sm:$0xf]
    %v460 = vld [vmem:[%s1 + $0x6a0] sm:$0xf]
    %v461 = vld [vmem:[%s1 + $0x6a4] sm:$0xf]
    %v462 = vld [vmem:[%s1 + $0x6a8] sm:$0xf]
    %v463 = vld [vmem:[%s1 + $0x6ac] sm:$0xf]
    %v464 = vld [vmem:[%s1 + $0x6b0] sm:$0xf]
    %v465 = vld [vmem:[%s1 + $0x6b4] sm:$0xf]
    %v466 = vld [vmem:[%s1 + $0x6b8] sm:$0xf]
    %v467 = vld [vmem:[%s1 + $0x6bc] sm:$0xf]
    %v468 = vld [vmem:[%s1 + $0x6c0] sm:$0xf]
    %v469 = vld [vmem:[%s1 + $0x6c4] sm:$0xf]
    %v470 = vld [vmem:[%s1 + $0x6c8] sm:$0xf]
    %v471 = vld [vmem:[%s1 + $0x6cc] sm:$0xf]
    %v472 = vld [vmem:[%s1 + $0x6d0] sm:$0xf]
    %v473 = vld [vmem:[%s1 + $0x6d4] sm:$0xf]
    %v474 = vld [vmem:[%s1 + $0x6d8] sm:$0xf]
    %v475 = vld [vmem:[%s1 + $0x6dc] sm:$0xf]
    %v476 = vld [vmem:[%s1 + $0x6e0] sm:$0xf]
    %v477 = vld [vmem:[%s1 + $0x6e4] sm:$0xf]
    %v478 = vld [vmem:[%s1 + $0x6e8] sm:$0xf]
    %v479 = vld [vmem:[%s1 + $0x6ec] sm:$0xf]
    %v480 = vld [vmem:[%s1 + $0x6f0] sm:$0xf]
    %v481 = vld [vmem:[%s1 + $0x6f4] sm:$0xf]
    %v482 = vld [vmem:[%s1 + $0x6f8] sm:$0xf]
    %v483 = vld [vmem:[%s1 + $0x6fc] sm:$0xf]
    %v484 = vld [vmem:[%s1 + $0x700] sm:$0xf]
    %v485 = vld [vmem:[%s1 + $0x704] sm:$0xf]
    %v486 = vld [vmem:[%s1 + $0x708] sm:$0xf]
    %v487 = vld [vmem:[%s1 + $0x70c] sm:$0xf]
    %v488 = vld [vmem:[%s1 + $0x710] sm:$0xf]
    %v489 = vld [vmem:[%s1 + $0x714] sm:$0xf]
    %v490 = vld [vmem:[%s1 + $0x718] sm:$0xf]
    %v491 = vld [vmem:[%s1 + $0x71c] sm:$0xf]
    %v492 = vld [vmem:[%s1 + $0x720] sm:$0xf]
    %v493 = vld [vmem:[%s1 + $0x724] sm:$0xf]
    %v494 = vld [vmem:[%s1 + $0x728] sm:$0xf]
    %v495 = vld [vmem:[%s1 + $0x72c] sm:$0xf]
    %v496 = vld [vmem:[%s1 + $0x730] sm:$0xf]
    %v497 = vld [vmem:[%s1 + $0x734] sm:$0xf]
    %v498 = vld [vmem:[%s1 + $0x738] sm:$0xf]
    %v499 = vld [vmem:[%s1 + $0x73c] sm:$0xf]
    %v500 = vld [vmem:[%s1 + $0x740] sm:$0xf]
    %v501 = vld [vmem:[%s1 + $0x744] sm:$0xf]
    %v502 = vld [vmem:[%s1 + $0x748] sm:$0xf]
    %v503 = vld [vmem:[%s1 + $0x74c] sm:$0xf]
    %v504 = vld [vmem:[%s1 + $0x750] sm:$0xf]
    %v505 = vld [vmem:[%s1 + $0x754] sm:$0xf]
    %v506 = vld [vmem:[%s1 + $0x758] sm:$0xf]
    %v507 = vld [vmem:[%s1 + $0x75c] sm:$0xf]
    %v508 = vld [vmem:[%s1 + $0x760] sm:$0xf]
    %v509 = vld [vmem:[%s1 + $0x764] sm:$0xf]
    %v510 = vld [vmem:[%s1 + $0x768] sm:$0xf]
    %v511 = vld [vmem:[%s1 + $0x76c] sm:$0xf]
    %v512 = vld [vmem:[%s1 + $0x770] sm:$0xf]
    %v513 = vld [vmem:[%s1 + $0x774] sm:$0xf]
    %v514 = vld [vmem:[%s1 + $0x778] sm:$0xf]
    %v515 = vld [vmem:[%s1 + $0x77c] sm:$0xf]
    %v516 = vld [vmem:[%s1 + $0x780] sm:$0xf]
    %v517 = vld [vmem:[%s1 + $0x784] sm:$0xf]
    %v518 = vld [vmem:[%s1 + $0x788] sm:$0xf]
    %v519 = vld [vmem:[%s1 + $0x78c] sm:$0xf]
    %v520 = vld [vmem:[%s1 + $0x790] sm:$0xf]
    %v521 = vld [vmem:[%s1 + $0x794] sm:$0xf]
    %v522 = vld [vmem:[%s1 + $0x798] sm:$0xf]
    %v523 = vld [vmem:[%s1 + $0x79c] sm:$0xf]
    %v524 = vld [vmem:[%s1 + $0x7a0] sm:$0xf]
    %v525 = vld [vmem:[%s1 + $0x7a4] sm:$0xf]
    %v526 = vld [vmem:[%s1 + $0x7a8] sm:$0xf]
    %v527 = vld [vmem:[%s1 + $0x7ac] sm:$0xf]
    %v528 = vld [vmem:[%s1 + $0x7b0] sm:$0xf]
    %v529 = vld [vmem:[%s1 + $0x7b4] sm:$0xf]
    %v530 = vld [vmem:[%s1 + $0x7b8] sm:$0xf]
    %v531 = vld [vmem:[%s1 + $0x7bc] sm:$0xf]
    %v532 = vld [vmem:[%s1 + $0x7c0] sm:$0xf]
    %v533 = vld [vmem:[%s1 + $0x7c4] sm:$0xf]
    %v534 = vld [vmem:[%s1 + $0x7c8] sm:$0xf]
    %v535 = vld [vmem:[%s1 + $0x7cc] sm:$0xf]
    %v536 = vld [vmem:[%s1 + $0x7d0] sm:$0xf]
    %v537 = vld [vmem:[%s1 + $0x7d4] sm:$0xf]
    %v538 = vld [vmem:[%s1 + $0x7d8] sm:$0xf]
    %v539 = vld [vmem:[%s1 + $0x7dc] sm:$0xf]
    %v540 = vld [vmem:[%s1 + $0x7e0] sm:$0xf]
    %v541 = vld [vmem:[%s1 + $0x7e4] sm:$0xf]
    %v542 = vld [vmem:[%s1 + $0x7e8] sm:$0xf]
    %v543 = vld [vmem:[%s1 + $0x7ec] sm:$0xf]
    %v544 = vld [vmem:[%s1 + $0x7f0] sm:$0xf]
    %v545 = vld [vmem:[%s1 + $0x7f4] sm:$0xf]
    %v546 = vld [vmem:[%s1 + $0x7f8] sm:$0xf]
    %v547 = vld [vmem:[%s1 + $0x7fc] sm:$0xf]
    %v548 = vld [vmem:[%s1 + $0x800] sm:$0xf]
    %v549 = vld [vmem:[%s1 + $0x804] sm:$0xf]
    %v550 = vld [vmem:[%s1 + $0x808] sm:$0xf]
    %v551 = vld [vmem:[%s1 + $0x80c] sm:$0xf]
    %v552 = vld [vmem:[%s1 + $0x810] sm:$0xf]
    %v553 = vld [vmem:[%s1 + $0x814] sm:$0xf]
    %v554 = vld [vmem:[%s1 + $0x818] sm:$0xf]
    %v555 = vld [vmem:[%s1 + $0x81c] sm:$0xf]
    %v556 = vld [vmem:[%s1 + $0x820] sm:$0xf]
    %v557 = vld [vmem:[%s1 + $0x824] sm:$0xf]
    %v558 = vld [vmem:[%s1 + $0x828] sm:$0xf]
    %v559 = vld [vmem:[%s1 + $0x82c] sm:$0xf]
    %v560 = vld [vmem:[%s1 + $0x830] sm:$0xf]
    %v561 = vld [vmem:[%s1 + $0x834] sm:$0xf]
    %v562 = vld [vmem:[%s1 + $0x838] sm:$0xf]
    %v563 = vld [vmem:[%s1 + $0x83c] sm:$0xf]
    %v564 = vld [vmem:[%s1 + $0x840] sm:$0xf]
    %v565 = vld [vmem:[%s1 + $0x844] sm:$0xf]
    %v566 = vld [vmem:[%s1 + $0x848] sm:$0xf]
    %v567 = vld [vmem:[%s1 + $0x84c] sm:$0xf]
    %v568 = vld [vmem:[%s1 + $0x850] sm:$0xf]
    %v569 = vld [vmem:[%s1 + $0x854] sm:$0xf]
    %v570 = vld [vmem:[%s1 + $0x858] sm:$0xf]
    %v571 = vld [vmem:[%s1 + $0x85c] sm:$0xf]
    %v572 = vld [vmem:[%s1 + $0x860] sm:$0xf]
    %v573 = vld [vmem:[%s1 + $0x864] sm:$0xf]
    %v574 = vld [vmem:[%s1 + $0x868] sm:$0xf]
    %v575 = vld [vmem:[%s1 + $0x86c] sm:$0xf]
    %v576 = vld [vmem:[%s1 + $0x870] sm:$0xf]
    %v577 = vld [vmem:[%s1 + $0x874] sm:$0xf]
    %v578 = vld [vmem:[%s1 + $0x878] sm:$0xf]
    %v579 = vld [vmem:[%s1 + $0x87c] sm:$0xf]
    %v580 = vld [vmem:[%s1 + $0x880] sm:$0xf]
    %v581 = vld [vmem:[%s1 + $0x884] sm:$0xf]
    %v582 = vld [vmem:[%s1 + $0x888] sm:$0xf]
    %v583 = vld [vmem:[%s1 + $0x88c] sm:$0xf]
    %v584 = vld [vmem:[%s1 + $0x890] sm:$0xf]
    %v585 = vld [vmem:[%s1 + $0x894] sm:$0xf]
    %v586 = vld [vmem:[%s1 + $0x898] sm:$0xf]
    %v587 = vld [vmem:[%s1 + $0x89c] sm:$0xf]
    %v588 = vld [vmem:[%s1 + $0x8a0] sm:$0xf]
    %v589 = vld [vmem:[%s1 + $0x8a4] sm:$0xf]
    %v590 = vld [vmem:[%s1 + $0x8a8] sm:$0xf]
    %v591 = vld [vmem:[%s1 + $0x8ac] sm:$0xf]
    %v592 = vld [vmem:[%s1 + $0x8b0] sm:$0xf]
    %v593 = vld [vmem:[%s1 + $0x8b4] sm:$0xf]
    %v594 = vld [vmem:[%s1 + $0x8b8] sm:$0xf]
    %v595 = vld [vmem:[%s1 + $0x8bc] sm:$0xf]
    %v596 = vld [vmem:[%s1 + $0x8c0] sm:$0xf]
    %v597 = vld [vmem:[%s1 + $0x8c4] sm:$0xf]
    %v598 = vld [vmem:[%s1 + $0x8c8] sm:$0xf]
    %v599 = vld [vmem:[%s1 + $0x8cc] sm:$0xf]
    %v600 = vld [vmem:[%s1 + $0x8d0] sm:$0xf]
    %v601 = vld [vmem:[%s1 + $0x8d4] sm:$0xf]
    %v602 = vld [vmem:[%s1 + $0x8d8] sm:$0xf]
    %v603 = vld [vmem:[%s1 + $0x8dc] sm:$0xf]
    %v604 = vld [vmem:[%s1 + $0x8e0] sm:$0xf]
    %v605 = vld [vmem:[%s1 + $0x8e4] sm:$0xf]
    %v606 = vld [vmem:[%s1 + $0x8e8] sm:$0xf]
    %v607 = vld [vmem:[%s1 + $0x8ec] sm:$0xf]
    %v608 = vld [vmem:[%s1 + $0x8f0] sm:$0xf]
    %v609 = vld [vmem:[%s1 + $0x8f4] sm:$0xf]
    %v610 = vld [vmem:[%s1 + $0x8f8] sm:$0xf]
    %v611 = vld [vmem:[%s1 + $0x8fc] sm:$0xf]
    %v612 = vld [vmem:[%s1 + $0x900] sm:$0xf]
    %v613 = vld [vmem:[%s1 + $0x904] sm:$0xf]
    %v614 = vld [vmem:[%s1 + $0x908] sm:$0xf]
    %v615 = vld [vmem:[%s1 + $0x90c] sm:$0xf]
    %v616 = vld [vmem:[%s1 + $0x910] sm:$0xf]
    %v617 = vld [vmem:[%s1 + $0x914] sm:$0xf]
    %v618 = vld [vmem:[%s1 + $0x918] sm:$0xf]
    %v619 = vld [vmem:[%s1 + $0x91c] sm:$0xf]
    %v620 = vld [vmem:[%s1 + $0x920] sm:$0xf]
    %v621 = vld [vmem:[%s1 + $0x924] sm:$0xf]
    %v622 = vld [vmem:[%s1 + $0x928] sm:$0xf]
    %v623 = vld [vmem:[%s1 + $0x92c] sm:$0xf]
    %v624 = vld [vmem:[%s1 + $0x930] sm:$0xf]
    %v625 = vld [vmem:[%s1 + $0x934] sm:$0xf]
    %v626 = vld [vmem:[%s1 + $0x938] sm:$0xf]
    %v627 = vld [vmem:[%s1 + $0x93c] sm:$0xf]
    %v628 = vld [vmem:[%s1 + $0x940] sm:$0xf]
    %v629 = vld [vmem:[%s1 + $0x944] sm:$0xf]
    %v630 = vld [vmem:[%s1 + $0x948] sm:$0xf]
    %v631 = vld [vmem:[%s1 + $0x94c] sm:$0xf]
    %v632 = vld [vmem:[%s1 + $0x950] sm:$0xf]
    %v633 = vld [vmem:[%s1 + $0x954] sm:$0xf]
    %v634 = vld [vmem:[%s1 + $0x958] sm:$0xf]
    %v635 = vld [vmem:[%s1 + $0x95c] sm:$0xf]
    %v636 = vld [vmem:[%s1 + $0x960] sm:$0xf]
    %v637 = vld [vmem:[%s1 + $0x964] sm:$0xf]
    %v638 = vld [vmem:[%s1 + $0x968] sm:$0xf]
    %v639 = vld [vmem:[%s1 + $0x96c] sm:$0xf]
    %v640 = vld [vmem:[%s1 + $0x970] sm:$0xf]
    %v641 = vld [vmem:[%s1 + $0x974] sm:$0xf]
    %v642 = vld [vmem:[%s1 + $0x978] sm:$0xf]
    %v643 = vld [vmem:[%s1 + $0x97c] sm:$0xf]
    %v644 = vld [vmem:[%s1 + $0x980] sm:$0xf]
    %v645 = vld [vmem:[%s1 + $0x984] sm:$0xf]
    %v646 = vld [vmem:[%s1 + $0x988] sm:$0xf]
    %v647 = vld [vmem:[%s1 + $0x98c] sm:$0xf]
    %v648 = vld [vmem:[%s1 + $0x990] sm:$0xf]
    %v649 = vld [vmem:[%s1 + $0x994] sm:$0xf]
    %v650 = vld [vmem:[%s1 + $0x998] sm:$0xf]
    %v651 = vld [vmem:[%s1 + $0x99c] sm:$0xf]
    %v652 = vld [vmem:[%s1 + $0x9a0] sm:$0xf]
    %v653 = vld [vmem:[%s1 + $0x9a4] sm:$0xf]
    %v654 = vld [vmem:[%s1 + $0x9a8] sm:$0xf]
    %v655 = vld [vmem:[%s1 + $0x9ac] sm:$0xf]
    %v656 = vld [vmem:[%s1 + $0x9b0] sm:$0xf]
    %v657 = vld [vmem:[%s1 + $0x9b4] sm:$0xf]
    %v658 = vld [vmem:[%s1 + $0x9b8] sm:$0xf]
    %v659 = vld [vmem:[%s1 + $0x9bc] sm:$0xf]
    %v660 = vld [vmem:[%s1 + $0x9c0] sm:$0xf]
    %v661 = vld [vmem:[%s1 + $0x9c4] sm:$0xf]
    %v662 = vld [vmem:[%s1 + $0x9c8] sm:$0xf]
    %v663 = vld [vmem:[%s1 + $0x9cc] sm:$0xf]
    %v664 = vld [vmem:[%s1 + $0x9d0] sm:$0xf]
    %v665 = vld [vmem:[%s1 + $0x9d4] sm:$0xf]
    %v666 = vld [vmem:[%s1 + $0x9d8] sm:$0xf]
    %v667 = vld [vmem:[%s1 + $0x9dc] sm:$0xf]
    %v668 = vld [vmem:[%s1 + $0x9e0] sm:$0xf]
    %v669 = vld [vmem:[%s1 + $0x9e4] sm:$0xf]
    %v670 = vld [vmem:[%s1 + $0x9e8] sm:$0xf]
    %v671 = vld [vmem:[%s1 + $0x9ec] sm:$0xf]
    %v672 = vld [vmem:[%s1 + $0x9f0] sm:$0xf]
    %v673 = vld [vmem:[%s1 + $0x9f4] sm:$0xf]
    %v674 = vld [vmem:[%s1 + $0x9f8] sm:$0xf]
    %v675 = vld [vmem:[%s1 + $0x9fc] sm:$0xf]
    %v676 = vld [vmem:[%s1 + $0xa00] sm:$0xf]
    %v677 = vld [vmem:[%s1 + $0xa04] sm:$0xf]
    %v678 = vld [vmem:[%s1 + $0xa08] sm:$0xf]
    %v679 = vld [vmem:[%s1 + $0xa0c] sm:$0xf]
    %v680 = vld [vmem:[%s1 + $0xa10] sm:$0xf]
    %v681 = vld [vmem:[%s1 + $0xa14] sm:$0xf]
    %v682 = vld [vmem:[%s1 + $0xa18] sm:$0xf]
    %v683 = vld [vmem:[%s1 + $0xa1c] sm:$0xf]
    %v684 = vld [vmem:[%s1 + $0xa20] sm:$0xf]
    %v685 = vld [vmem:[%s1 + $0xa24] sm:$0xf]
    %v686 = vld [vmem:[%s1 + $0xa28] sm:$0xf]
    %v687 = vld [vmem:[%s1 + $0xa2c] sm:$0xf]
    %v688 = vld [vmem:[%s1 + $0xa30] sm:$0xf]
    %v689 = vld [vmem:[%s1 + $0xa34] sm:$0xf]
    %v690 = vld [vmem:[%s1 + $0xa38] sm:$0xf]
    %v691 = vld [vmem:[%s1 + $0xa3c] sm:$0xf]
    %v692 = vld [vmem:[%s1 + $0xa40] sm:$0xf]
    %v693 = vld [vmem:[%s1 + $0xa44] sm:$0xf]
    %v694 = vld [vmem:[%s1 + $0xa48] sm:$0xf]
    %v695 = vld [vmem:[%s1 + $0xa4c] sm:$0xf]
    %v696 = vld [vmem:[%s1 + $0xa50] sm:$0xf]
    %v697 = vld [vmem:[%s1 + $0xa54] sm:$0xf]
    %v698 = vld [vmem:[%s1 + $0xa58] sm:$0xf]
    %v699 = vld [vmem:[%s1 + $0xa5c] sm:$0xf]
    %v700 = vld [vmem:[%s1 + $0xa60] sm:$0xf]
    %v701 = vld [vmem:[%s1 + $0xa64] sm:$0xf]
    %v702 = vld [vmem:[%s1 + $0xa68] sm:$0xf]
    %v703 = vld [vmem:[%s1 + $0xa6c] sm:$0xf]
    %v704 = vld [vmem:[%s1 + $0xa70] sm:$0xf]
    %v705 = vld [vmem:[%s1 + $0xa74] sm:$0xf]
    %v706 = vld [vmem:[%s1 + $0xa78] sm:$0xf]
    %v707 = vld [vmem:[%s1 + $0xa7c] sm:$0xf]
    %v708 = vld [vmem:[%s1 + $0xa80] sm:$0xf]
    %v709 = vld [vmem:[%s1 + $0xa84] sm:$0xf]
    %v710 = vld [vmem:[%s1 + $0xa88] sm:$0xf]
    %v711 = vld [vmem:[%s1 + $0xa8c] sm:$0xf]
    %v712 = vld [vmem:[%s1 + $0xa90] sm:$0xf]
    %v713 = vld [vmem:[%s1 + $0xa94] sm:$0xf]
    %v714 = vld [vmem:[%s1 + $0xa98] sm:$0xf]
    %v715 = vld [vmem:[%s1 + $0xa9c] sm:$0xf]
    %v716 = vld [vmem:[%s1 + $0xaa0] sm:$0xf]
    %v717 = vld [vmem:[%s1 + $0xaa4] sm:$0xf]
    %v718 = vld [vmem:[%s1 + $0xaa8] sm:$0xf]
    %v719 = vld [vmem:[%s1 + $0xaac] sm:$0xf]
    %v720 = vld [vmem:[%s1 + $0xab0] sm:$0xf]
    %v721 = vld [vmem:[%s1 + $0xab4] sm:$0xf]
    %v722 = vld [vmem:[%s1 + $0xab8] sm:$0xf]
    %v723 = vld [vmem:[%s1 + $0xabc] sm:$0xf]
    %v724 = vld [vmem:[%s1 + $0xac0] sm:$0xf]
    %v725 = vld [vmem:[%s1 + $0xac4] sm:$0xf]
    %v726 = vld [vmem:[%s1 + $0xac8] sm:$0xf]
    %v727 = vld [vmem:[%s1 + $0xacc] sm:$0xf]
    %v728 = vld [vmem:[%s1 + $0xad0] sm:$0xf]
    %v729 = vld [vmem:[%s1 + $0xad4] sm:$0xf]
    %v730 = vld [vmem:[%s1 + $0xad8] sm:$0xf]
    %v731 = vld [vmem:[%s1 + $0xadc] sm:$0xf]
    %v732 = vld [vmem:[%s1 + $0xae0] sm:$0xf]
    %v733 = vld [vmem:[%s1 + $0xae4] sm:$0xf]
    %v734 = vld [vmem:[%s1 + $0xae8] sm:$0xf]
    %v735 = vld [vmem:[%s1 + $0xaec] sm:$0xf]
    %v736 = vld [vmem:[%s1 + $0xaf0] sm:$0xf]
    %v737 = vld [vmem:[%s1 + $0xaf4] sm:$0xf]
    %v738 = vld [vmem:[%s1 + $0xaf8] sm:$0xf]
    %v739 = vld [vmem:[%s1 + $0xafc] sm:$0xf]
    %v740 = vld [vmem:[%s1 + $0xb00] sm:$0xf]
    %v741 = vld [vmem:[%s1 + $0xb04] sm:$0xf]
    %v742 = vld [vmem:[%s1 + $0xb08] sm:$0xf]
    %v743 = vld [vmem:[%s1 + $0xb0c] sm:$0xf]
    %v744 = vld [vmem:[%s1 + $0xb10] sm:$0xf]
    %v745 = vld [vmem:[%s1 + $0xb14] sm:$0xf]
    %v746 = vld [vmem:[%s1 + $0xb18] sm:$0xf]
    %v747 = vld [vmem:[%s1 + $0xb1c] sm:$0xf]
    %v748 = vld [vmem:[%s1 + $0xb20] sm:$0xf]
    %v749 = vld [vmem:[%s1 + $0xb24] sm:$0xf]
    %v750 = vld [vmem:[%s1 + $0xb28] sm:$0xf]
    %v751 = vld [vmem:[%s1 + $0xb2c] sm:$0xf]
    %v752 = vld [vmem:[%s1 + $0xb30] sm:$0xf]
    %v753 = vld [vmem:[%s1 + $0xb34] sm:$0xf]
    %v754 = vld [vmem:[%s1 + $0xb38] sm:$0xf]
    %v755 = vld [vmem:[%s1 + $0xb3c] sm:$0xf]
    %v756 = vld [vmem:[%s1 + $0xb40] sm:$0xf]
    %v757 = vld [vmem:[%s1 + $0xb44] sm:$0xf]
    %v758 = vld [vmem:[%s1 + $0xb48] sm:$0xf]
    %v759 = vld [vmem:[%s1 + $0xb4c] sm:$0xf]
    %v760 = vld [vmem:[%s1 + $0xb50] sm:$0xf]
    %v761 = vld [vmem:[%s1 + $0xb54] sm:$0xf]
    %v762 = vld [vmem:[%s1 + $0xb58] sm:$0xf]
    %v763 = vld [vmem:[%s1 + $0xb5c] sm:$0xf]
    %v764 = vld [vmem:[%s1 + $0xb60] sm:$0xf]
    %v765 = vld [vmem:[%s1 + $0xb64] sm:$0xf]
    %v766 = vld [vmem:[%s1 + $0xb68] sm:$0xf]
    %v767 = vld [vmem:[%s1 + $0xb6c] sm:$0xf]
    %v768 = vld [vmem:[%s1 + $0xb70] sm:$0xf]
    %v769 = vld [vmem:[%s1 + $0xb74] sm:$0xf]
    %v770 = vld [vmem:[%s1 + $0xb78] sm:$0xf]
    %v771 = vld [vmem:[%s1 + $0xb7c] sm:$0xf]
    %v772 = vld [vmem:[%s1 + $0xb80] sm:$0xf]
    %v773 = vld [vmem:[%s1 + $0xb84] sm:$0xf]
    %v774 = vld [vmem:[%s1 + $0xb88] sm:$0xf]
    %v775 = vld [vmem:[%s1 + $0xb8c] sm:$0xf]
    %v776 = vld [vmem:[%s1 + $0xb90] sm:$0xf]
    %v777 = vld [vmem:[%s1 + $0xb94] sm:$0xf]
    %v778 = vld [vmem:[%s1 + $0xb98] sm:$0xf]
    %v779 = vld [vmem:[%s1 + $0xb9c] sm:$0xf]
    %v780 = vld [vmem:[%s1 + $0xba0] sm:$0xf]
    %v781 = vld [vmem:[%s1 + $0xba4] sm:$0xf]
    %v782 = vld [vmem:[%s1 + $0xba8] sm:$0xf]
    %v783 = vld [vmem:[%s1 + $0xbac] sm:$0xf]
    %v784 = vld [vmem:[%s1 + $0xbb0] sm:$0xf]
    %v785 = vld [vmem:[%s1 + $0xbb4] sm:$0xf]
    %v786 = vld [vmem:[%s1 + $0xbb8] sm:$0xf]
    %v787 = vld [vmem:[%s1 + $0xbbc] sm:$0xf]
    %v788 = vld [vmem:[%s1 + $0xbc0] sm:$0xf]
    %v789 = vld [vmem:[%s1 + $0xbc4] sm:$0xf]
    %v790 = vld [vmem:[%s1 + $0xbc8] sm:$0xf]
    %v791 = vld [vmem:[%s1 + $0xbcc] sm:$0xf]
    %v792 = vld [vmem:[%s1 + $0xbd0] sm:$0xf]
    %v793 = vld [vmem:[%s1 + $0xbd4] sm:$0xf]
    %v794 = vld [vmem:[%s1 + $0xbd8] sm:$0xf]
    %v795 = vld [vmem:[%s1 + $0xbdc] sm:$0xf]
    %v796 = vld [vmem:[%s1 + $0xbe0] sm:$0xf]
    %v797 = vld [vmem:[%s1 + $0xbe4] sm:$0xf]
    %v798 = vld [vmem:[%s1 + $0xbe8] sm:$0xf]
    %v799 = vld [vmem:[%s1 + $0xbec] sm:$0xf]
    %v800 = vld [vmem:[%s1 + $0xbf0] sm:$0xf]
    %v801 = vld [vmem:[%s1 + $0xbf4] sm:$0xf]
    %v802 = vld [vmem:[%s1 + $0xbf8] sm:$0xf]
    %v803 = vld [vmem:[%s1 + $0xbfc] sm:$0xf]
    %v804 = vld [vmem:[%s1 + $0xc00] sm:$0xf]
    %v805 = vld [vmem:[%s1 + $0xc04] sm:$0xf]
    %v806 = vld [vmem:[%s1 + $0xc08] sm:$0xf]
    %v807 = vld [vmem:[%s1 + $0xc0c] sm:$0xf]
    %v808 = vld [vmem:[%s1 + $0xc10] sm:$0xf]
    %v809 = vld [vmem:[%s1 + $0xc14] sm:$0xf]
    %v810 = vld [vmem:[%s1 + $0xc18] sm:$0xf]
    %v811 = vld [vmem:[%s1 + $0xc1c] sm:$0xf]
    %v812 = vld [vmem:[%s1 + $0xc20] sm:$0xf]
    %v813 = vld [vmem:[%s1 + $0xc24] sm:$0xf]
    %v814 = vld [vmem:[%s1 + $0xc28] sm:$0xf]
    %v815 = vld [vmem:[%s1 + $0xc2c] sm:$0xf]
    %v816 = vld [vmem:[%s1 + $0xc30] sm:$0xf]
    %v817 = vld [vmem:[%s1 + $0xc34] sm:$0xf]
    %v818 = vld [vmem:[%s1 + $0xc38] sm:$0xf]
    %v819 = vld [vmem:[%s1 + $0xc3c] sm:$0xf]
    %v820 = vld [vmem:[%s1 + $0xc40] sm:$0xf]
    %v821 = vld [vmem:[%s1 + $0xc44] sm:$0xf]
    %v822 = vld [vmem:[%s1 + $0xc48] sm:$0xf]
    %v823 = vld [vmem:[%s1 + $0xc4c] sm:$0xf]
    %v824 = vld [vmem:[%s1 + $0xc50] sm:$0xf]
    %v825 = vld [vmem:[%s1 + $0xc54] sm:$0xf]
    %v826 = vld [vmem:[%s1 + $0xc58] sm:$0xf]
    %v827 = vld [vmem:[%s1 + $0xc5c] sm:$0xf]
    %v828 = vld [vmem:[%s1 + $0xc60] sm:$0xf]
    %v829 = vld [vmem:[%s1 + $0xc64] sm:$0xf]
    %v830 = vld [vmem:[%s1 + $0xc68] sm:$0xf]
    %v831 = vld [vmem:[%s1 + $0xc6c] sm:$0xf]
    %v832 = vld [vmem:[%s1 + $0xc70] sm:$0xf]
    %v833 = vld [vmem:[%s1 + $0xc74] sm:$0xf]
    %v834 = vld [vmem:[%s1 + $0xc78] sm:$0xf]
    %v835 = vld [vmem:[%s1 + $0xc7c] sm:$0xf]
    %v836 = vld [vmem:[%s1 + $0xc80] sm:$0xf]
    %v837 = vld [vmem:[%s1 + $0xc84] sm:$0xf]
    %v838 = vld [vmem:[%s1 + $0xc88] sm:$0xf]
    %v839 = vld [vmem:[%s1 + $0xc8c] sm:$0xf]
    %v840 = vld [vmem:[%s1 + $0xc90] sm:$0xf]
    %v841 = vld [vmem:[%s1 + $0xc94] sm:$0xf]
    %v842 = vld [vmem:[%s1 + $0xc98] sm:$0xf]
    %v843 = vld [vmem:[%s1 + $0xc9c] sm:$0xf]
    %v844 = vld [vmem:[%s1 + $0xca0] sm:$0xf]
    %v845 = vld [vmem:[%s1 + $0xca4] sm:$0xf]
    %v846 = vld [vmem:[%s1 + $0xca8] sm:$0xf]
    %v847 = vld [vmem:[%s1 + $0xcac] sm:$0xf]
    %v848 = vld [vmem:[%s1 + $0xcb0] sm:$0xf]
    %v849 = vld [vmem:[%s1 + $0xcb4] sm:$0xf]
    %v850 = vld [vmem:[%s1 + $0xcb8] sm:$0xf]
    %v851 = vld [vmem:[%s1 + $0xcbc] sm:$0xf]
    %v852 = vld [vmem:[%s1 + $0xcc0] sm:$0xf]
    %v853 = vld [vmem:[%s1 + $0xcc4] sm:$0xf]
    %v854 = vld [vmem:[%s1 + $0xcc8] sm:$0xf]
    %v855 = vld [vmem:[%s1 + $0xccc] sm:$0xf]
    %v856 = vld [vmem:[%s1 + $0xcd0] sm:$0xf]
    %v857 = vld [vmem:[%s1 + $0xcd4] sm:$0xf]
    %v858 = vld [vmem:[%s1 + $0xcd8] sm:$0xf]
    %v859 = vld [vmem:[%s1 + $0xcdc] sm:$0xf]
    %v860 = vld [vmem:[%s1 + $0xce0] sm:$0xf]
    %v861 = vld [vmem:[%s1 + $0xce4] sm:$0xf]
    %v862 = vld [vmem:[%s1 + $0xce8] sm:$0xf]
    %v863 = vld [vmem:[%s1 + $0xcec] sm:$0xf]
    %v864 = vld [vmem:[%s1 + $0xcf0] sm:$0xf]
    %v865 = vld [vmem:[%s1 + $0xcf4] sm:$0xf]
    %v866 = vld [vmem:[%s1 + $0xcf8] sm:$0xf]
    %v867 = vld [vmem:[%s1 + $0xcfc] sm:$0xf]
    %v868 = vld [vmem:[%s1 + $0xd00] sm:$0xf]
    %v869 = vld [vmem:[%s1 + $0xd04] sm:$0xf]
    %v870 = vld [vmem:[%s1 + $0xd08] sm:$0xf]
    %v871 = vld [vmem:[%s1 + $0xd0c] sm:$0xf]
    %v872 = vld [vmem:[%s1 + $0xd10] sm:$0xf]
    %v873 = vld [vmem:[%s1 + $0xd14] sm:$0xf]
    %v874 = vld [vmem:[%s1 + $0xd18] sm:$0xf]
    %v875 = vld [vmem:[%s1 + $0xd1c] sm:$0xf]
    %v876 = vld [vmem:[%s1 + $0xd20] sm:$0xf]
    %v877 = vld [vmem:[%s1 + $0xd24] sm:$0xf]
    %v878 = vld [vmem:[%s1 + $0xd28] sm:$0xf]
    %v879 = vld [vmem:[%s1 + $0xd2c] sm:$0xf]
    %v880 = vld [vmem:[%s1 + $0xd30] sm:$0xf]
    %v881 = vld [vmem:[%s1 + $0xd34] sm:$0xf]
    %v882 = vld [vmem:[%s1 + $0xd38] sm:$0xf]
    %v883 = vld [vmem:[%s1 + $0xd3c] sm:$0xf]
    %v884 = vld [vmem:[%s1 + $0xd40] sm:$0xf]
    %v885 = vld [vmem:[%s1 + $0xd44] sm:$0xf]
    %v886 = vld [vmem:[%s1 + $0xd48] sm:$0xf]
    %v887 = vld [vmem:[%s1 + $0xd4c] sm:$0xf]
    %v888 = vld [vmem:[%s1 + $0xd50] sm:$0xf]
    %v889 = vld [vmem:[%s1 + $0xd54] sm:$0xf]
    %v890 = vld [vmem:[%s1 + $0xd58] sm:$0xf]
    %v891 = vld [vmem:[%s1 + $0xd5c] sm:$0xf]
    %v892 = vld [vmem:[%s1 + $0xd60] sm:$0xf]
    %v893 = vld [vmem:[%s1 + $0xd64] sm:$0xf]
    %v894 = vld [vmem:[%s1 + $0xd68] sm:$0xf]
    %v895 = vld [vmem:[%s1 + $0xd6c] sm:$0xf]
    %v896 = vld [vmem:[%s1 + $0xd70] sm:$0xf]
    %v897 = vld [vmem:[%s1 + $0xd74] sm:$0xf]
    %v898 = vld [vmem:[%s1 + $0xd78] sm:$0xf]
    %v899 = vld [vmem:[%s1 + $0xd7c] sm:$0xf]
    %v900 = vld [vmem:[%s1 + $0xd80] sm:$0xf]
    %v901 = vld [vmem:[%s1 + $0xd84] sm:$0xf]
    %v902 = vld [vmem:[%s1 + $0xd88] sm:$0xf]
    %v903 = vld [vmem:[%s1 + $0xd8c] sm:$0xf]
    %v904 = vld [vmem:[%s1 + $0xd90] sm:$0xf]
    %v905 = vld [vmem:[%s1 + $0xd94] sm:$0xf]
    %v906 = vld [vmem:[%s1 + $0xd98] sm:$0xf]
    %v907 = vld [vmem:[%s1 + $0xd9c] sm:$0xf]
    %v908 = vld [vmem:[%s1 + $0xda0] sm:$0xf]
    %v909 = vld [vmem:[%s1 + $0xda4] sm:$0xf]
    %v910 = vld [vmem:[%s1 + $0xda8] sm:$0xf]
    %v911 = vld [vmem:[%s1 + $0xdac] sm:$0xf]
    %v912 = vld [vmem:[%s1 + $0xdb0] sm:$0xf]
    %v913 = vld [vmem:[%s1 + $0xdb4] sm:$0xf]
    %v914 = vld [vmem:[%s1 + $0xdb8] sm:$0xf]
    %v915 = vld [vmem:[%s1 + $0xdbc] sm:$0xf]
    %v916 = vld [vmem:[%s1 + $0xdc0] sm:$0xf]
    %v917 = vld [vmem:[%s1 + $0xdc4] sm:$0xf]
    %v918 = vld [vmem:[%s1 + $0xdc8] sm:$0xf]
    %v919 = vld [vmem:[%s1 + $0xdcc] sm:$0xf]
    %v920 = vld [vmem:[%s1 + $0xdd0] sm:$0xf]
    %v921 = vld [vmem:[%s1 + $0xdd4] sm:$0xf]
    %v922 = vld [vmem:[%s1 + $0xdd8] sm:$0xf]
    %v923 = vld [vmem:[%s1 + $0xddc] sm:$0xf]
    %v924 = vld [vmem:[%s1 + $0xde0] sm:$0xf]
    %v925 = vld [vmem:[%s1 + $0xde4] sm:$0xf]
    %v926 = vld [vmem:[%s1 + $0xde8] sm:$0xf]
    %v927 = vld [vmem:[%s1 + $0xdec] sm:$0xf]
    %v928 = vld [vmem:[%s1 + $0xdf0] sm:$0xf]
    %v929 = vld [vmem:[%s1 + $0xdf4] sm:$0xf]
    %v930 = vld [vmem:[%s1 + $0xdf8] sm:$0xf]
    %v931 = vld [vmem:[%s1 + $0xdfc] sm:$0xf]
    %v932 = vld [vmem:[%s1 + $0xe00] sm:$0xf]
    %v933 = vld [vmem:[%s1 + $0xe04] sm:$0xf]
    %v934 = vld [vmem:[%s1 + $0xe08] sm:$0xf]
    %v935 = vld [vmem:[%s1 + $0xe0c] sm:$0xf]
    %v936 = vld [vmem:[%s1 + $0xe10] sm:$0xf]
    %v937 = vld [vmem:[%s1 + $0xe14] sm:$0xf]
    %v938 = vld [vmem:[%s1 + $0xe18] sm:$0xf]
    %v939 = vld [vmem:[%s1 + $0xe1c] sm:$0xf]
    %v940 = vld [vmem:[%s1 + $0xe20] sm:$0xf]
    %v941 = vld [vmem:[%s1 + $0xe24] sm:$0xf]
    %v942 = vld [vmem:[%s1 + $0xe28] sm:$0xf]
    %v943 = vld [vmem:[%s1 + $0xe2c] sm:$0xf]
    %v944 = vld [vmem:[%s1 + $0xe30] sm:$0xf]
    %v945 = vld [vmem:[%s1 + $0xe34] sm:$0xf]
    %v946 = vld [vmem:[%s1 + $0xe38] sm:$0xf]
    %v947 = vld [vmem:[%s1 + $0xe3c] sm:$0xf]
    %v948 = vld [vmem:[%s1 + $0xe40] sm:$0xf]
    %v949 = vld [vmem:[%s1 + $0xe44] sm:$0xf]
    %v950 = vld [vmem:[%s1 + $0xe48] sm:$0xf]
    %v951 = vld [vmem:[%s1 + $0xe4c] sm:$0xf]
    %v952 = vld [vmem:[%s1 + $0xe50] sm:$0xf]
    %v953 = vld [vmem:[%s1 + $0xe54] sm:$0xf]
    %v954 = vld [vmem:[%s1 + $0xe58] sm:$0xf]
    %v955 = vld [vmem:[%s1 + $0xe5c] sm:$0xf]
    %v956 = vld [vmem:[%s1 + $0xe60] sm:$0xf]
    %v957 = vld [vmem:[%s1 + $0xe64] sm:$0xf]
    %v958 = vld [vmem:[%s1 + $0xe68] sm:$0xf]
    %v959 = vld [vmem:[%s1 + $0xe6c] sm:$0xf]
    %v960 = vld [vmem:[%s1 + $0xe70] sm:$0xf]
    %v961 = vld [vmem:[%s1 + $0xe74] sm:$0xf]
    %v962 = vld [vmem:[%s1 + $0xe78] sm:$0xf]
    %v963 = vld [vmem:[%s1 + $0xe7c] sm:$0xf]
    %v964 = vld [vmem:[%s1 + $0xe80] sm:$0xf]
    %v965 = vld [vmem:[%s1 + $0xe84] sm:$0xf]
    %v966 = vld [vmem:[%s1 + $0xe88] sm:$0xf]
    %v967 = vld [vmem:[%s1 + $0xe8c] sm:$0xf]
    %v968 = vld [vmem:[%s1 + $0xe90] sm:$0xf]
    %v969 = vld [vmem:[%s1 + $0xe94] sm:$0xf]
    %v970 = vld [vmem:[%s1 + $0xe98] sm:$0xf]
    %v971 = vld [vmem:[%s1 + $0xe9c] sm:$0xf]
    %v972 = vld [vmem:[%s1 + $0xea0] sm:$0xf]
    %v973 = vld [vmem:[%s1 + $0xea4] sm:$0xf]
    %v974 = vld [vmem:[%s1 + $0xea8] sm:$0xf]
    %v975 = vld [vmem:[%s1 + $0xeac] sm:$0xf]
    %v976 = vld [vmem:[%s1 + $0xeb0] sm:$0xf]
    %v977 = vld [vmem:[%s1 + $0xeb4] sm:$0xf]
    %v978 = vld [vmem:[%s1 + $0xeb8] sm:$0xf]
    %v979 = vld [vmem:[%s1 + $0xebc] sm:$0xf]
    %v980 = vld [vmem:[%s1 + $0xec0] sm:$0xf]
    %v981 = vld [vmem:[%s1 + $0xec4] sm:$0xf]
    %v982 = vld [vmem:[%s1 + $0xec8] sm:$0xf]
    %v983 = vld [vmem:[%s1 + $0xecc] sm:$0xf]
    %v984 = vld [vmem:[%s1 + $0xed0] sm:$0xf]
    %v985 = vld [vmem:[%s1 + $0xed4] sm:$0xf]
    %v986 = vld [vmem:[%s1 + $0xed8] sm:$0xf]
    %v987 = vld [vmem:[%s1 + $0xedc] sm:$0xf]
    %v988 = vld [vmem:[%s1 + $0xee0] sm:$0xf]
    %v989 = vld [vmem:[%s1 + $0xee4] sm:$0xf]
    %v990 = vld [vmem:[%s1 + $0xee8] sm:$0xf]
    %v991 = vld [vmem:[%s1 + $0xeec] sm:$0xf]
    %v992 = vld [vmem:[%s1 + $0xef0] sm:$0xf]
    %v993 = vld [vmem:[%s1 + $0xef4] sm:$0xf]
    %v994 = vld [vmem:[%s1 + $0xef8] sm:$0xf]
    %v995 = vld [vmem:[%s1 + $0xefc] sm:$0xf]
    %v996 = vld [vmem:[%s1 + $0xf00] sm:$0xf]
    %v997 = vld [vmem:[%s1 + $0xf04] sm:$0xf]
    %v998 = vld [vmem:[%s1 + $0xf08] sm:$0xf]
    %v999 = vld [vmem:[%s1 + $0xf0c] sm:$0xf]
    %v1000 = vld [vmem:[%s1 + $0xf10] sm:$0xf]
    %v1001 = vld [vmem:[%s1 + $0xf14] sm:$0xf]
    %v1002 = vld [vmem:[%s1 + $0xf18] sm:$0xf]
    %v1003 = vld [vmem:[%s1 + $0xf1c] sm:$0xf]
    %v1004 = vld [vmem:[%s1 + $0xf20] sm:$0xf]
    %v1005 = vld [vmem:[%s1 + $0xf24] sm:$0xf]
    %v1006 = vld [vmem:[%s1 + $0xf28] sm:$0xf]
    %v1007 = vld [vmem:[%s1 + $0xf2c] sm:$0xf]
    %v1008 = vld [vmem:[%s1 + $0xf30] sm:$0xf]
    %v1009 = vld [vmem:[%s1 + $0xf34] sm:$0xf]
    %v1010 = vld [vmem:[%s1 + $0xf38] sm:$0xf]
    %v1011 = vld [vmem:[%s1 + $0xf3c] sm:$0xf]
    %v1012 = vld [vmem:[%s1 + $0xf40] sm:$0xf]
    %v1013 = vld [vmem:[%s1 + $0xf44] sm:$0xf]
    %v1014 = vld [vmem:[%s1 + $0xf48] sm:$0xf]
    %v1015 = vld [vmem:[%s1 + $0xf4c] sm:$0xf]
    %v1016 = vld [vmem:[%s1 + $0xf50] sm:$0xf]
    %v1017 = vld [vmem:[%s1 + $0xf54] sm:$0xf]
    %v1018 = vld [vmem:[%s1 + $0xf58] sm:$0xf]
    %v1019 = vld [vmem:[%s1 + $0xf5c] sm:$0xf]
    %v1020 = vld [vmem:[%s1 + $0xf60] sm:$0xf]
    %v1021 = vld [vmem:[%s1 + $0xf64] sm:$0xf]
    %v1022 = vld [vmem:[%s1 + $0xf68] sm:$0xf]
    %v1023 = vld [vmem:[%s1 + $0xf6c] sm:$0xf]
    %v1024 = vld [vmem:[%s1 + $0xf70] sm:$0xf]
    %v1025 = vld [vmem:[%s1 + $0xf74] sm:$0xf]
    %v1026 = vld [vmem:[%s1 + $0xf78] sm:$0xf]
    %v1027 = vld [vmem:[%s1 + $0xf7c] sm:$0xf]
    %v1028 = vld [vmem:[%s1 + $0xf80] sm:$0xf]
    %v1029 = vld [vmem:[%s1 + $0xf84] sm:$0xf]
    %v1030 = vld [vmem:[%s1 + $0xf88] sm:$0xf]
    %v1031 = vld [vmem:[%s1 + $0xf8c] sm:$0xf]
    %v1032 = vld [vmem:[%s1 + $0xf90] sm:$0xf]
    %v1033 = vld [vmem:[%s1 + $0xf94] sm:$0xf]
    %v1034 = vld [vmem:[%s1 + $0xf98] sm:$0xf]
    %v1035 = vld [vmem:[%s1 + $0xf9c] sm:$0xf]
    %v1036 = vld [vmem:[%s1 + $0xfa0] sm:$0xf]
    %v1037 = vld [vmem:[%s1 + $0xfa4] sm:$0xf]
    %v1038 = vld [vmem:[%s1 + $0xfa8] sm:$0xf]
    %v1039 = vld [vmem:[%s1 + $0xfac] sm:$0xf]
    %v1040 = vld [vmem:[%s1 + $0xfb0] sm:$0xf]
    %v1041 = vld [vmem:[%s1 + $0xfb4] sm:$0xf]
    %v1042 = vld [vmem:[%s1 + $0xfb8] sm:$0xf]
    %v1043 = vld [vmem:[%s1 + $0xfbc] sm:$0xf]
    %v1044 = vld [vmem:[%s1 + $0xfc0] sm:$0xf]
    %v1045 = vld [vmem:[%s1 + $0xfc4] sm:$0xf]
    %v1046 = vld [vmem:[%s1 + $0xfc8] sm:$0xf]
    %v1047 = vld [vmem:[%s1 + $0xfcc] sm:$0xf]
    %v1048 = vld [vmem:[%s1 + $0xfd0] sm:$0xf]
    %v1049 = vld [vmem:[%s1 + $0xfd4] sm:$0xf]
    %v1050 = vld [vmem:[%s1 + $0xfd8] sm:$0xf]
    %v1051 = vld [vmem:[%s1 + $0xfdc] sm:$0xf]
    %v1052 = vld [vmem:[%s1 + $0xfe0] sm:$0xf]
    %v1053 = vld [vmem:[%s1 + $0xfe4] sm:$0xf]
    %v1054 = vld [vmem:[%s1 + $0xfe8] sm:$0xf]
    %v1055 = vld [vmem:[%s1 + $0xfec] sm:$0xf]
    %v1056 = vld [vmem:[%s1 + $0xff0] sm:$0xf]
    %v1057 = vld [vmem:[%s1 + $0xff4] sm:$0xf]
    %v1058 = vld [vmem:[%s1 + $0xff8] sm:$0xf]
    %v1059 = vld [vmem:[%s1 + $0xffc] sm:$0xf]
    %v1060 = vld [vmem:[%s2] sm:$0x1]
    %v1062 = vlaneseq
    %v1063 = vshrl.u32 %v1062, 7
    %v1064 = vsub.s32 0, %v1063
    %v1065 = vrot.slane %v1060, %v1064
    %v1075 = vcombine.high %v28, %v28
    %v1077 = vunpack.c.l.s4 1966171168
    %v1078 = vunpack.c.0.s8 %v1077
    %v1079 = vlaneseq
    %v1080 = vshrl.u32 %v1079, 7
    %v1081 = vsub.s32 %v1078, %v1080
    %v1082 = vrot.slane %v28, %v1081
    %v1084 = vunpack.c.l.s4 1966171168
    %v1085 = vunpack.c.0.s8 %v1084
    %v1086 = vlaneseq
    %v1087 = vshrl.u32 %v1086, 7
    %v1088 = vsub.s32 %v1085, %v1087
    %v1089 = vrot.slane %v1075, %v1088
    %v1090 = vcombine.high %v1082, %v1082
    %v1091 = vcombine.high %v1089, %v1089
    %v1093 = vunpack.c.l.s4 1966171168
    %v1094 = vunpack.c.0.s8 %v1093
    %v1095 = vlaneseq
    %v1096 = vshrl.u32 %v1095, 7
    %v1097 = vsub.s32 %v1094, %v1096
    %v1098 = vrot.slane %v1082, %v1097
    %v1100 = vunpack.c.l.s4 1966171168
    %v1101 = vunpack.c.0.s8 %v1100
    %v1102 = vlaneseq
    %v1103 = vshrl.u32 %v1102, 7
    %v1104 = vsub.s32 %v1101, %v1103
    %v1105 = vrot.slane %v1089, %v1104
    %v1107 = vunpack.c.l.s4 1966171168
    %v1108 = vunpack.c.0.s8 %v1107
    %v1109 = vlaneseq
    %v1110 = vshrl.u32 %v1109, 7
    %v1111 = vsub.s32 %v1108, %v1110
    %v1112 = vrot.slane %v1090, %v1111
    %v1114 = vunpack.c.l.s4 1966171168
    %v1115 = vunpack.c.0.s8 %v1114
    %v1116 = vlaneseq
    %v1117 = vshrl.u32 %v1116, 7
    %v1118 = vsub.s32 %v1115, %v1117
    %v1119 = vrot.slane %v1091, %v1118
    %v1120 = vcombine.high %v1098, %v1098
    %v1121 = vcombine.high %v1105, %v1105
    %v1122 = vcombine.high %v1112, %v1112
    %v1123 = vcombine.high %v1119, %v1119
    %v1124 = vcombine.high %v29, %v29
    %v1126 = vunpack.c.l.s4 1966171168
    %v1127 = vunpack.c.0.s8 %v1126
    %v1128 = vlaneseq
    %v1129 = vshrl.u32 %v1128, 7
    %v1130 = vsub.s32 %v1127, %v1129
    %v1131 = vrot.slane %v29, %v1130
    %v1133 = vunpack.c.l.s4 1966171168
    %v1134 = vunpack.c.0.s8 %v1133
    %v1135 = vlaneseq
    %v1136 = vshrl.u32 %v1135, 7
    %v1137 = vsub.s32 %v1134, %v1136
    %v1138 = vrot.slane %v1124, %v1137
    %v1139 = vcombine.high %v1131, %v1131
    %v1140 = vcombine.high %v1138, %v1138
    %v1142 = vunpack.c.l.s4 1966171168
    %v1143 = vunpack.c.0.s8 %v1142
    %v1144 = vlaneseq
    %v1145 = vshrl.u32 %v1144, 7
    %v1146 = vsub.s32 %v1143, %v1145
    %v1147 = vrot.slane %v1131, %v1146
    %v1149 = vunpack.c.l.s4 1966171168
    %v1150 = vunpack.c.0.s8 %v1149
    %v1151 = vlaneseq
    %v1152 = vshrl.u32 %v1151, 7
    %v1153 = vsub.s32 %v1150, %v1152
    %v1154 = vrot.slane %v1138, %v1153
    %v1156 = vunpack.c.l.s4 1966171168
    %v1157 = vunpack.c.0.s8 %v1156
    %v1158 = vlaneseq
    %v1159 = vshrl.u32 %v1158, 7
    %v1160 = vsub.s32 %v1157, %v1159
    %v1161 = vrot.slane %v1139, %v1160
    %v1163 = vunpack.c.l.s4 1966171168
    %v1164 = vunpack.c.0.s8 %v1163
    %v1165 = vlaneseq
    %v1166 = vshrl.u32 %v1165, 7
    %v1167 = vsub.s32 %v1164, %v1166
    %v1168 = vrot.slane %v1140, %v1167
    %v1169 = vcombine.high %v1147, %v1147
    %v1170 = vcombine.high %v1154, %v1154
    %v1171 = vcombine.high %v1161, %v1161
    %v1172 = vcombine.high %v1168, %v1168
    %v1173 = vcombine.high %v30, %v30
    %v1175 = vunpack.c.l.s4 1966171168
    %v1176 = vunpack.c.0.s8 %v1175
    %v1177 = vlaneseq
    %v1178 = vshrl.u32 %v1177, 7
    %v1179 = vsub.s32 %v1176, %v1178
    %v1180 = vrot.slane %v30, %v1179
    %v1182 = vunpack.c.l.s4 1966171168
    %v1183 = vunpack.c.0.s8 %v1182
    %v1184 = vlaneseq
    %v1185 = vshrl.u32 %v1184, 7
    %v1186 = vsub.s32 %v1183, %v1185
    %v1187 = vrot.slane %v1173, %v1186
    %v1188 = vcombine.high %v1180, %v1180
    %v1189 = vcombine.high %v1187, %v1187
    %v1191 = vunpack.c.l.s4 1966171168
    %v1192 = vunpack.c.0.s8 %v1191
    %v1193 = vlaneseq
    %v1194 = vshrl.u32 %v1193, 7
    %v1195 = vsub.s32 %v1192, %v1194
    %v1196 = vrot.slane %v1180, %v1195
    %v1198 = vunpack.c.l.s4 1966171168
    %v1199 = vunpack.c.0.s8 %v1198
    %v1200 = vlaneseq
    %v1201 = vshrl.u32 %v1200, 7
    %v1202 = vsub.s32 %v1199, %v1201
    %v1203 = vrot.slane %v1187, %v1202
    %v1205 = vunpack.c.l.s4 1966171168
    %v1206 = vunpack.c.0.s8 %v1205
    %v1207 = vlaneseq
    %v1208 = vshrl.u32 %v1207, 7
    %v1209 = vsub.s32 %v1206, %v1208
    %v1210 = vrot.slane %v1188, %v1209
    %v1212 = vunpack.c.l.s4 1966171168
    %v1213 = vunpack.c.0.s8 %v1212
    %v1214 = vlaneseq
    %v1215 = vshrl.u32 %v1214, 7
    %v1216 = vsub.s32 %v1213, %v1215
    %v1217 = vrot.slane %v1189, %v1216
    %v1218 = vcombine.high %v1196, %v1196
    %v1219 = vcombine.high %v1203, %v1203
    %v1220 = vcombine.high %v1210, %v1210
    %v1221 = vcombine.high %v1217, %v1217
    %v1222 = vcombine.high %v31, %v31
    %v1224 = vunpack.c.l.s4 1966171168
    %v1225 = vunpack.c.0.s8 %v1224
    %v1226 = vlaneseq
    %v1227 = vshrl.u32 %v1226, 7
    %v1228 = vsub.s32 %v1225, %v1227
    %v1229 = vrot.slane %v31, %v1228
    %v1231 = vunpack.c.l.s4 1966171168
    %v1232 = vunpack.c.0.s8 %v1231
    %v1233 = vlaneseq
    %v1234 = vshrl.u32 %v1233, 7
    %v1235 = vsub.s32 %v1232, %v1234
    %v1236 = vrot.slane %v1222, %v1235
    %v1237 = vcombine.high %v1229, %v1229
    %v1238 = vcombine.high %v1236, %v1236
    %v1240 = vunpack.c.l.s4 1966171168
    %v1241 = vunpack.c.0.s8 %v1240
    %v1242 = vlaneseq
    %v1243 = vshrl.u32 %v1242, 7
    %v1244 = vsub.s32 %v1241, %v1243
    %v1245 = vrot.slane %v1229, %v1244
    %v1247 = vunpack.c.l.s4 1966171168
    %v1248 = vunpack.c.0.s8 %v1247
    %v1249 = vlaneseq
    %v1250 = vshrl.u32 %v1249, 7
    %v1251 = vsub.s32 %v1248, %v1250
    %v1252 = vrot.slane %v1236, %v1251
    %v1254 = vunpack.c.l.s4 1966171168
    %v1255 = vunpack.c.0.s8 %v1254
    %v1256 = vlaneseq
    %v1257 = vshrl.u32 %v1256, 7
    %v1258 = vsub.s32 %v1255, %v1257
    %v1259 = vrot.slane %v1237, %v1258
    %v1261 = vunpack.c.l.s4 1966171168
    %v1262 = vunpack.c.0.s8 %v1261
    %v1263 = vlaneseq
    %v1264 = vshrl.u32 %v1263, 7
    %v1265 = vsub.s32 %v1262, %v1264
    %v1266 = vrot.slane %v1238, %v1265
    %v1267 = vcombine.high %v1245, %v1245
    %v1268 = vcombine.high %v1252, %v1252
    %v1269 = vcombine.high %v1259, %v1259
    %v1270 = vcombine.high %v1266, %v1266
    %v1271 = vcombine.high %v32, %v32
    %v1273 = vunpack.c.l.s4 1966171168
    %v1274 = vunpack.c.0.s8 %v1273
    %v1275 = vlaneseq
    %v1276 = vshrl.u32 %v1275, 7
    %v1277 = vsub.s32 %v1274, %v1276
    %v1278 = vrot.slane %v32, %v1277
    %v1280 = vunpack.c.l.s4 1966171168
    %v1281 = vunpack.c.0.s8 %v1280
    %v1282 = vlaneseq
    %v1283 = vshrl.u32 %v1282, 7
    %v1284 = vsub.s32 %v1281, %v1283
    %v1285 = vrot.slane %v1271, %v1284
    %v1286 = vcombine.high %v1278, %v1278
    %v1287 = vcombine.high %v1285, %v1285
    %v1289 = vunpack.c.l.s4 1966171168
    %v1290 = vunpack.c.0.s8 %v1289
    %v1291 = vlaneseq
    %v1292 = vshrl.u32 %v1291, 7
    %v1293 = vsub.s32 %v1290, %v1292
    %v1294 = vrot.slane %v1278, %v1293
    %v1296 = vunpack.c.l.s4 1966171168
    %v1297 = vunpack.c.0.s8 %v1296
    %v1298 = vlaneseq
    %v1299 = vshrl.u32 %v1298, 7
    %v1300 = vsub.s32 %v1297, %v1299
    %v1301 = vrot.slane %v1285, %v1300
    %v1303 = vunpack.c.l.s4 1966171168
    %v1304 = vunpack.c.0.s8 %v1303
    %v1305 = vlaneseq
    %v1306 = vshrl.u32 %v1305, 7
    %v1307 = vsub.s32 %v1304, %v1306
    %v1308 = vrot.slane %v1286, %v1307
    %v1310 = vunpack.c.l.s4 1966171168
    %v1311 = vunpack.c.0.s8 %v1310
    %v1312 = vlaneseq
    %v1313 = vshrl.u32 %v1312, 7
    %v1314 = vsub.s32 %v1311, %v1313
    %v1315 = vrot.slane %v1287, %v1314
    %v1316 = vcombine.high %v1294, %v1294
    %v1317 = vcombine.high %v1301, %v1301
    %v1318 = vcombine.high %v1308, %v1308
    %v1319 = vcombine.high %v1315, %v1315
    %v1320 = vcombine.high %v33, %v33
    %v1322 = vunpack.c.l.s4 1966171168
    %v1323 = vunpack.c.0.s8 %v1322
    %v1324 = vlaneseq
    %v1325 = vshrl.u32 %v1324, 7
    %v1326 = vsub.s32 %v1323, %v1325
    %v1327 = vrot.slane %v33, %v1326
    %v1329 = vunpack.c.l.s4 1966171168
    %v1330 = vunpack.c.0.s8 %v1329
    %v1331 = vlaneseq
    %v1332 = vshrl.u32 %v1331, 7
    %v1333 = vsub.s32 %v1330, %v1332
    %v1334 = vrot.slane %v1320, %v1333
    %v1335 = vcombine.high %v1327, %v1327
    %v1336 = vcombine.high %v1334, %v1334
    %v1338 = vunpack.c.l.s4 1966171168
    %v1339 = vunpack.c.0.s8 %v1338
    %v1340 = vlaneseq
    %v1341 = vshrl.u32 %v1340, 7
    %v1342 = vsub.s32 %v1339, %v1341
    %v1343 = vrot.slane %v1327, %v1342
    %v1345 = vunpack.c.l.s4 1966171168
    %v1346 = vunpack.c.0.s8 %v1345
    %v1347 = vlaneseq
    %v1348 = vshrl.u32 %v1347, 7
    %v1349 = vsub.s32 %v1346, %v1348
    %v1350 = vrot.slane %v1334, %v1349
    %v1352 = vunpack.c.l.s4 1966171168
    %v1353 = vunpack.c.0.s8 %v1352
    %v1354 = vlaneseq
    %v1355 = vshrl.u32 %v1354, 7
    %v1356 = vsub.s32 %v1353, %v1355
    %v1357 = vrot.slane %v1335, %v1356
    %v1359 = vunpack.c.l.s4 1966171168
    %v1360 = vunpack.c.0.s8 %v1359
    %v1361 = vlaneseq
    %v1362 = vshrl.u32 %v1361, 7
    %v1363 = vsub.s32 %v1360, %v1362
    %v1364 = vrot.slane %v1336, %v1363
    %v1365 = vcombine.high %v1343, %v1343
    %v1366 = vcombine.high %v1350, %v1350
    %v1367 = vcombine.high %v1357, %v1357
    %v1368 = vcombine.high %v1364, %v1364
    %v1369 = vcombine.high %v34, %v34
    %v1371 = vunpack.c.l.s4 1966171168
    %v1372 = vunpack.c.0.s8 %v1371
    %v1373 = vlaneseq
    %v1374 = vshrl.u32 %v1373, 7
    %v1375 = vsub.s32 %v1372, %v1374
    %v1376 = vrot.slane %v34, %v1375
    %v1378 = vunpack.c.l.s4 1966171168
    %v1379 = vunpack.c.0.s8 %v1378
    %v1380 = vlaneseq
    %v1381 = vshrl.u32 %v1380, 7
    %v1382 = vsub.s32 %v1379, %v1381
    %v1383 = vrot.slane %v1369, %v1382
    %v1384 = vcombine.high %v1376, %v1376
    %v1385 = vcombine.high %v1383, %v1383
    %v1387 = vunpack.c.l.s4 1966171168
    %v1388 = vunpack.c.0.s8 %v1387
    %v1389 = vlaneseq
    %v1390 = vshrl.u32 %v1389, 7
    %v1391 = vsub.s32 %v1388, %v1390
    %v1392 = vrot.slane %v1376, %v1391
    %v1394 = vunpack.c.l.s4 1966171168
    %v1395 = vunpack.c.0.s8 %v1394
    %v1396 = vlaneseq
    %v1397 = vshrl.u32 %v1396, 7
    %v1398 = vsub.s32 %v1395, %v1397
    %v1399 = vrot.slane %v1383, %v1398
    %v1401 = vunpack.c.l.s4 1966171168
    %v1402 = vunpack.c.0.s8 %v1401
    %v1403 = vlaneseq
    %v1404 = vshrl.u32 %v1403, 7
    %v1405 = vsub.s32 %v1402, %v1404
    %v1406 = vrot.slane %v1384, %v1405
    %v1408 = vunpack.c.l.s4 1966171168
    %v1409 = vunpack.c.0.s8 %v1408
    %v1410 = vlaneseq
    %v1411 = vshrl.u32 %v1410, 7
    %v1412 = vsub.s32 %v1409, %v1411
    %v1413 = vrot.slane %v1385, %v1412
    %v1414 = vcombine.high %v1392, %v1392
    %v1415 = vcombine.high %v1399, %v1399
    %v1416 = vcombine.high %v1406, %v1406
    %v1417 = vcombine.high %v1413, %v1413
    %v1418 = vcombine.high %v35, %v35
    %v1420 = vunpack.c.l.s4 1966171168
    %v1421 = vunpack.c.0.s8 %v1420
    %v1422 = vlaneseq
    %v1423 = vshrl.u32 %v1422, 7
    %v1424 = vsub.s32 %v1421, %v1423
    %v1425 = vrot.slane %v35, %v1424
    %v1427 = vunpack.c.l.s4 1966171168
    %v1428 = vunpack.c.0.s8 %v1427
    %v1429 = vlaneseq
    %v1430 = vshrl.u32 %v1429, 7
    %v1431 = vsub.s32 %v1428, %v1430
    %v1432 = vrot.slane %v1418, %v1431
    %v1433 = vcombine.high %v1425, %v1425
    %v1434 = vcombine.high %v1432, %v1432
    %v1436 = vunpack.c.l.s4 1966171168
    %v1437 = vunpack.c.0.s8 %v1436
    %v1438 = vlaneseq
    %v1439 = vshrl.u32 %v1438, 7
    %v1440 = vsub.s32 %v1437, %v1439
    %v1441 = vrot.slane %v1425, %v1440
    %v1443 = vunpack.c.l.s4 1966171168
    %v1444 = vunpack.c.0.s8 %v1443
    %v1445 = vlaneseq
    %v1446 = vshrl.u32 %v1445, 7
    %v1447 = vsub.s32 %v1444, %v1446
    %v1448 = vrot.slane %v1432, %v1447
    %v1450 = vunpack.c.l.s4 1966171168
    %v1451 = vunpack.c.0.s8 %v1450
    %v1452 = vlaneseq
    %v1453 = vshrl.u32 %v1452, 7
    %v1454 = vsub.s32 %v1451, %v1453
    %v1455 = vrot.slane %v1433, %v1454
    %v1457 = vunpack.c.l.s4 1966171168
    %v1458 = vunpack.c.0.s8 %v1457
    %v1459 = vlaneseq
    %v1460 = vshrl.u32 %v1459, 7
    %v1461 = vsub.s32 %v1458, %v1460
    %v1462 = vrot.slane %v1434, %v1461
    %v1463 = vcombine.high %v1441, %v1441
    %v1464 = vcombine.high %v1448, %v1448
    %v1465 = vcombine.high %v1455, %v1455
    %v1466 = vcombine.high %v1462, %v1462
    %v2555 = vunpack.c.l.b16 %v36
    %v2556 = vunpack.c.l.b16 %v37
    %v2557 = vunpack.c.l.b16 %v38
    %v2558 = vunpack.c.l.b16 %v39
    %v2559 = vunpack.c.l.b16 %v40
    %v2560 = vunpack.c.l.b16 %v41
    %v2561 = vunpack.c.l.b16 %v42
    %v2562 = vunpack.c.l.b16 %v43
    %v2563 = vunpack.c.l.b16 %v44
    %v2564 = vunpack.c.l.b16 %v45
    %v2565 = vunpack.c.l.b16 %v46
    %v2566 = vunpack.c.l.b16 %v47
    %v2567 = vunpack.c.l.b16 %v48
    %v2568 = vunpack.c.l.b16 %v49
    %v2569 = vunpack.c.l.b16 %v50
    %v2570 = vunpack.c.l.b16 %v51
    %v2571 = vunpack.c.l.b16 %v52
    %v2572 = vunpack.c.l.b16 %v53
    %v2573 = vunpack.c.l.b16 %v54
    %v2574 = vunpack.c.l.b16 %v55
    %v2575 = vunpack.c.l.b16 %v56
    %v2576 = vunpack.c.l.b16 %v57
    %v2577 = vunpack.c.l.b16 %v58
    %v2578 = vunpack.c.l.b16 %v59
    %v2579 = vunpack.c.l.b16 %v60
    %v2580 = vunpack.c.l.b16 %v61
    %v2581 = vunpack.c.l.b16 %v62
    %v2582 = vunpack.c.l.b16 %v63
    %v2583 = vunpack.c.l.b16 %v64
    %v2584 = vunpack.c.l.b16 %v65
    %v2585 = vunpack.c.l.b16 %v66
    %v2586 = vunpack.c.l.b16 %v67
    %v2587 = vunpack.c.l.b16 %v68
    %v2588 = vunpack.c.l.b16 %v69
    %v2589 = vunpack.c.l.b16 %v70
    %v2590 = vunpack.c.l.b16 %v71
    %v2591 = vunpack.c.l.b16 %v72
    %v2592 = vunpack.c.l.b16 %v73
    %v2593 = vunpack.c.l.b16 %v74
    %v2594 = vunpack.c.l.b16 %v75
    %v2595 = vunpack.c.l.b16 %v76
    %v2596 = vunpack.c.l.b16 %v77
    %v2597 = vunpack.c.l.b16 %v78
    %v2598 = vunpack.c.l.b16 %v79
    %v2599 = vunpack.c.l.b16 %v80
    %v2600 = vunpack.c.l.b16 %v81
    %v2601 = vunpack.c.l.b16 %v82
    %v2602 = vunpack.c.l.b16 %v83
    %v2603 = vunpack.c.l.b16 %v84
    %v2604 = vunpack.c.l.b16 %v85
    %v2605 = vunpack.c.l.b16 %v86
    %v2606 = vunpack.c.l.b16 %v87
    %v2607 = vunpack.c.l.b16 %v88
    %v2608 = vunpack.c.l.b16 %v89
    %v2609 = vunpack.c.l.b16 %v90
    %v2610 = vunpack.c.l.b16 %v91
    %v2611 = vunpack.c.l.b16 %v92
    %v2612 = vunpack.c.l.b16 %v93
    %v2613 = vunpack.c.l.b16 %v94
    %v2614 = vunpack.c.l.b16 %v95
    %v2615 = vunpack.c.l.b16 %v96
    %v2616 = vunpack.c.l.b16 %v97
    %v2617 = vunpack.c.l.b16 %v98
    %v2618 = vunpack.c.l.b16 %v99
    %v2619 = vunpack.c.l.b16 %v100
    %v2620 = vunpack.c.l.b16 %v101
    %v2621 = vunpack.c.l.b16 %v102
    %v2622 = vunpack.c.l.b16 %v103
    %v2623 = vunpack.c.l.b16 %v104
    %v2624 = vunpack.c.l.b16 %v105
    %v2625 = vunpack.c.l.b16 %v106
    %v2626 = vunpack.c.l.b16 %v107
    %v2627 = vunpack.c.l.b16 %v108
    %v2628 = vunpack.c.l.b16 %v109
    %v2629 = vunpack.c.l.b16 %v110
    %v2630 = vunpack.c.l.b16 %v111
    %v2631 = vunpack.c.l.b16 %v112
    %v2632 = vunpack.c.l.b16 %v113
    %v2633 = vunpack.c.l.b16 %v114
    %v2634 = vunpack.c.l.b16 %v115
    %v2635 = vunpack.c.l.b16 %v116
    %v2636 = vunpack.c.l.b16 %v117
    %v2637 = vunpack.c.l.b16 %v118
    %v2638 = vunpack.c.l.b16 %v119
    %v2639 = vunpack.c.l.b16 %v120
    %v2640 = vunpack.c.l.b16 %v121
    %v2641 = vunpack.c.l.b16 %v122
    %v2642 = vunpack.c.l.b16 %v123
    %v2643 = vunpack.c.l.b16 %v124
    %v2644 = vunpack.c.l.b16 %v125
    %v2645 = vunpack.c.l.b16 %v126
    %v2646 = vunpack.c.l.b16 %v127
    %v2647 = vunpack.c.l.b16 %v128
    %v2648 = vunpack.c.l.b16 %v129
    %v2649 = vunpack.c.l.b16 %v130
    %v2650 = vunpack.c.l.b16 %v131
    %v2651 = vunpack.c.l.b16 %v132
    %v2652 = vunpack.c.l.b16 %v133
    %v2653 = vunpack.c.l.b16 %v134
    %v2654 = vunpack.c.l.b16 %v135
    %v2655 = vunpack.c.l.b16 %v136
    %v2656 = vunpack.c.l.b16 %v137
    %v2657 = vunpack.c.l.b16 %v138
    %v2658 = vunpack.c.l.b16 %v139
    %v2659 = vunpack.c.l.b16 %v140
    %v2660 = vunpack.c.l.b16 %v141
    %v2661 = vunpack.c.l.b16 %v142
    %v2662 = vunpack.c.l.b16 %v143
    %v2663 = vunpack.c.l.b16 %v144
    %v2664 = vunpack.c.l.b16 %v145
    %v2665 = vunpack.c.l.b16 %v146
    %v2666 = vunpack.c.l.b16 %v147
    %v2667 = vunpack.c.l.b16 %v148
    %v2668 = vunpack.c.l.b16 %v149
    %v2669 = vunpack.c.l.b16 %v150
    %v2670 = vunpack.c.l.b16 %v151
    %v2671 = vunpack.c.l.b16 %v152
    %v2672 = vunpack.c.l.b16 %v153
    %v2673 = vunpack.c.l.b16 %v154
    %v2674 = vunpack.c.l.b16 %v155
    %v2675 = vunpack.c.l.b16 %v156
    %v2676 = vunpack.c.l.b16 %v157
    %v2677 = vunpack.c.l.b16 %v158
    %v2678 = vunpack.c.l.b16 %v159
    %v2679 = vunpack.c.l.b16 %v160
    %v2680 = vunpack.c.l.b16 %v161
    %v2681 = vunpack.c.l.b16 %v162
    %v2682 = vunpack.c.l.b16 %v163
    %v2683 = vunpack.c.l.b16 %v164
    %v2684 = vunpack.c.l.b16 %v165
    %v2685 = vunpack.c.l.b16 %v166
    %v2686 = vunpack.c.l.b16 %v167
    %v2687 = vunpack.c.l.b16 %v168
    %v2688 = vunpack.c.l.b16 %v169
    %v2689 = vunpack.c.l.b16 %v170
    %v2690 = vunpack.c.l.b16 %v171
    %v2691 = vunpack.c.l.b16 %v172
    %v2692 = vunpack.c.l.b16 %v173
    %v2693 = vunpack.c.l.b16 %v174
    %v2694 = vunpack.c.l.b16 %v175
    %v2695 = vunpack.c.l.b16 %v176
    %v2696 = vunpack.c.l.b16 %v177
    %v2697 = vunpack.c.l.b16 %v178
    %v2698 = vunpack.c.l.b16 %v179
    %v2699 = vunpack.c.l.b16 %v180
    %v2700 = vunpack.c.l.b16 %v181
    %v2701 = vunpack.c.l.b16 %v182
    %v2702 = vunpack.c.l.b16 %v183
    %v2703 = vunpack.c.l.b16 %v184
    %v2704 = vunpack.c.l.b16 %v185
    %v2705 = vunpack.c.l.b16 %v186
    %v2706 = vunpack.c.l.b16 %v187
    %v2707 = vunpack.c.l.b16 %v188
    %v2708 = vunpack.c.l.b16 %v189
    %v2709 = vunpack.c.l.b16 %v190
    %v2710 = vunpack.c.l.b16 %v191
    %v2711 = vunpack.c.l.b16 %v192
    %v2712 = vunpack.c.l.b16 %v193
    %v2713 = vunpack.c.l.b16 %v194
    %v2714 = vunpack.c.l.b16 %v195
    %v2715 = vunpack.c.l.b16 %v196
    %v2716 = vunpack.c.l.b16 %v197
    %v2717 = vunpack.c.l.b16 %v198
    %v2718 = vunpack.c.l.b16 %v199
    %v2719 = vunpack.c.l.b16 %v200
    %v2720 = vunpack.c.l.b16 %v201
    %v2721 = vunpack.c.l.b16 %v202
    %v2722 = vunpack.c.l.b16 %v203
    %v2723 = vunpack.c.l.b16 %v204
    %v2724 = vunpack.c.l.b16 %v205
    %v2725 = vunpack.c.l.b16 %v206
    %v2726 = vunpack.c.l.b16 %v207
    %v2727 = vunpack.c.l.b16 %v208
    %v2728 = vunpack.c.l.b16 %v209
    %v2729 = vunpack.c.l.b16 %v210
    %v2730 = vunpack.c.l.b16 %v211
    %v2731 = vunpack.c.l.b16 %v212
    %v2732 = vunpack.c.l.b16 %v213
    %v2733 = vunpack.c.l.b16 %v214
    %v2734 = vunpack.c.l.b16 %v215
    %v2735 = vunpack.c.l.b16 %v216
    %v2736 = vunpack.c.l.b16 %v217
    %v2737 = vunpack.c.l.b16 %v218
    %v2738 = vunpack.c.l.b16 %v219
    %v2739 = vunpack.c.l.b16 %v220
    %v2740 = vunpack.c.l.b16 %v221
    %v2741 = vunpack.c.l.b16 %v222
    %v2742 = vunpack.c.l.b16 %v223
    %v2743 = vunpack.c.l.b16 %v224
    %v2744 = vunpack.c.l.b16 %v225
    %v2745 = vunpack.c.l.b16 %v226
    %v2746 = vunpack.c.l.b16 %v227
    %v2747 = vunpack.c.l.b16 %v228
    %v2748 = vunpack.c.l.b16 %v229
    %v2749 = vunpack.c.l.b16 %v230
    %v2750 = vunpack.c.l.b16 %v231
    %v2751 = vunpack.c.l.b16 %v232
    %v2752 = vunpack.c.l.b16 %v233
    %v2753 = vunpack.c.l.b16 %v234
    %v2754 = vunpack.c.l.b16 %v235
    %v2755 = vunpack.c.l.b16 %v236
    %v2756 = vunpack.c.l.b16 %v237
    %v2757 = vunpack.c.l.b16 %v238
    %v2758 = vunpack.c.l.b16 %v239
    %v2759 = vunpack.c.l.b16 %v240
    %v2760 = vunpack.c.l.b16 %v241
    %v2761 = vunpack.c.l.b16 %v242
    %v2762 = vunpack.c.l.b16 %v243
    %v2763 = vunpack.c.l.b16 %v244
    %v2764 = vunpack.c.l.b16 %v245
    %v2765 = vunpack.c.l.b16 %v246
    %v2766 = vunpack.c.l.b16 %v247
    %v2767 = vunpack.c.l.b16 %v248
    %v2768 = vunpack.c.l.b16 %v249
    %v2769 = vunpack.c.l.b16 %v250
    %v2770 = vunpack.c.l.b16 %v251
    %v2771 = vunpack.c.l.b16 %v252
    %v2772 = vunpack.c.l.b16 %v253
    %v2773 = vunpack.c.l.b16 %v254
    %v2774 = vunpack.c.l.b16 %v255
    %v2775 = vunpack.c.l.b16 %v256
    %v2776 = vunpack.c.l.b16 %v257
    %v2777 = vunpack.c.l.b16 %v258
    %v2778 = vunpack.c.l.b16 %v259
    %v2779 = vunpack.c.l.b16 %v260
    %v2780 = vunpack.c.l.b16 %v261
    %v2781 = vunpack.c.l.b16 %v262
    %v2782 = vunpack.c.l.b16 %v263
    %v2783 = vunpack.c.l.b16 %v264
    %v2784 = vunpack.c.l.b16 %v265
    %v2785 = vunpack.c.l.b16 %v266
    %v2786 = vunpack.c.l.b16 %v267
    %v2787 = vunpack.c.l.b16 %v268
    %v2788 = vunpack.c.l.b16 %v269
    %v2789 = vunpack.c.l.b16 %v270
    %v2790 = vunpack.c.l.b16 %v271
    %v2791 = vunpack.c.l.b16 %v272
    %v2792 = vunpack.c.l.b16 %v273
    %v2793 = vunpack.c.l.b16 %v274
    %v2794 = vunpack.c.l.b16 %v275
    %v2795 = vunpack.c.l.b16 %v276
    %v2796 = vunpack.c.l.b16 %v277
    %v2797 = vunpack.c.l.b16 %v278
    %v2798 = vunpack.c.l.b16 %v279
    %v2799 = vunpack.c.l.b16 %v280
    %v2800 = vunpack.c.l.b16 %v281
    %v2801 = vunpack.c.l.b16 %v282
    %v2802 = vunpack.c.l.b16 %v283
    %v2803 = vunpack.c.l.b16 %v284
    %v2804 = vunpack.c.l.b16 %v285
    %v2805 = vunpack.c.l.b16 %v286
    %v2806 = vunpack.c.l.b16 %v287
    %v2807 = vunpack.c.l.b16 %v288
    %v2808 = vunpack.c.l.b16 %v289
    %v2809 = vunpack.c.l.b16 %v290
    %v2810 = vunpack.c.l.b16 %v291
    %v2811 = vunpack.c.l.b16 %v292
    %v2812 = vunpack.c.l.b16 %v293
    %v2813 = vunpack.c.l.b16 %v294
    %v2814 = vunpack.c.l.b16 %v295
    %v2815 = vunpack.c.l.b16 %v296
    %v2816 = vunpack.c.l.b16 %v297
    %v2817 = vunpack.c.l.b16 %v298
    %v2818 = vunpack.c.l.b16 %v299
    %v2819 = vunpack.c.l.b16 %v300
    %v2820 = vunpack.c.l.b16 %v301
    %v2821 = vunpack.c.l.b16 %v302
    %v2822 = vunpack.c.l.b16 %v303
    %v2823 = vunpack.c.l.b16 %v304
    %v2824 = vunpack.c.l.b16 %v305
    %v2825 = vunpack.c.l.b16 %v306
    %v2826 = vunpack.c.l.b16 %v307
    %v2827 = vunpack.c.l.b16 %v308
    %v2828 = vunpack.c.l.b16 %v309
    %v2829 = vunpack.c.l.b16 %v310
    %v2830 = vunpack.c.l.b16 %v311
    %v2831 = vunpack.c.l.b16 %v312
    %v2832 = vunpack.c.l.b16 %v313
    %v2833 = vunpack.c.l.b16 %v314
    %v2834 = vunpack.c.l.b16 %v315
    %v2835 = vunpack.c.l.b16 %v316
    %v2836 = vunpack.c.l.b16 %v317
    %v2837 = vunpack.c.l.b16 %v318
    %v2838 = vunpack.c.l.b16 %v319
    %v2839 = vunpack.c.l.b16 %v320
    %v2840 = vunpack.c.l.b16 %v321
    %v2841 = vunpack.c.l.b16 %v322
    %v2842 = vunpack.c.l.b16 %v323
    %v2843 = vunpack.c.l.b16 %v324
    %v2844 = vunpack.c.l.b16 %v325
    %v2845 = vunpack.c.l.b16 %v326
    %v2846 = vunpack.c.l.b16 %v327
    %v2847 = vunpack.c.l.b16 %v328
    %v2848 = vunpack.c.l.b16 %v329
    %v2849 = vunpack.c.l.b16 %v330
    %v2850 = vunpack.c.l.b16 %v331
    %v2851 = vunpack.c.l.b16 %v332
    %v2852 = vunpack.c.l.b16 %v333
    %v2853 = vunpack.c.l.b16 %v334
    %v2854 = vunpack.c.l.b16 %v335
    %v2855 = vunpack.c.l.b16 %v336
    %v2856 = vunpack.c.l.b16 %v337
    %v2857 = vunpack.c.l.b16 %v338
    %v2858 = vunpack.c.l.b16 %v339
    %v2859 = vunpack.c.l.b16 %v340
    %v2860 = vunpack.c.l.b16 %v341
    %v2861 = vunpack.c.l.b16 %v342
    %v2862 = vunpack.c.l.b16 %v343
    %v2863 = vunpack.c.l.b16 %v344
    %v2864 = vunpack.c.l.b16 %v345
    %v2865 = vunpack.c.l.b16 %v346
    %v2866 = vunpack.c.l.b16 %v347
    %v2867 = vunpack.c.l.b16 %v348
    %v2868 = vunpack.c.l.b16 %v349
    %v2869 = vunpack.c.l.b16 %v350
    %v2870 = vunpack.c.l.b16 %v351
    %v2871 = vunpack.c.l.b16 %v352
    %v2872 = vunpack.c.l.b16 %v353
    %v2873 = vunpack.c.l.b16 %v354
    %v2874 = vunpack.c.l.b16 %v355
    %v2875 = vunpack.c.l.b16 %v356
    %v2876 = vunpack.c.l.b16 %v357
    %v2877 = vunpack.c.l.b16 %v358
    %v2878 = vunpack.c.l.b16 %v359
    %v2879 = vunpack.c.l.b16 %v360
    %v2880 = vunpack.c.l.b16 %v361
    %v2881 = vunpack.c.l.b16 %v362
    %v2882 = vunpack.c.l.b16 %v363
    %v2883 = vunpack.c.l.b16 %v364
    %v2884 = vunpack.c.l.b16 %v365
    %v2885 = vunpack.c.l.b16 %v366
    %v2886 = vunpack.c.l.b16 %v367
    %v2887 = vunpack.c.l.b16 %v368
    %v2888 = vunpack.c.l.b16 %v369
    %v2889 = vunpack.c.l.b16 %v370
    %v2890 = vunpack.c.l.b16 %v371
    %v2891 = vunpack.c.l.b16 %v372
    %v2892 = vunpack.c.l.b16 %v373
    %v2893 = vunpack.c.l.b16 %v374
    %v2894 = vunpack.c.l.b16 %v375
    %v2895 = vunpack.c.l.b16 %v376
    %v2896 = vunpack.c.l.b16 %v377
    %v2897 = vunpack.c.l.b16 %v378
    %v2898 = vunpack.c.l.b16 %v379
    %v2899 = vunpack.c.l.b16 %v380
    %v2900 = vunpack.c.l.b16 %v381
    %v2901 = vunpack.c.l.b16 %v382
    %v2902 = vunpack.c.l.b16 %v383
    %v2903 = vunpack.c.l.b16 %v384
    %v2904 = vunpack.c.l.b16 %v385
    %v2905 = vunpack.c.l.b16 %v386
    %v2906 = vunpack.c.l.b16 %v387
    %v2907 = vunpack.c.l.b16 %v388
    %v2908 = vunpack.c.l.b16 %v389
    %v2909 = vunpack.c.l.b16 %v390
    %v2910 = vunpack.c.l.b16 %v391
    %v2911 = vunpack.c.l.b16 %v392
    %v2912 = vunpack.c.l.b16 %v393
    %v2913 = vunpack.c.l.b16 %v394
    %v2914 = vunpack.c.l.b16 %v395
    %v2915 = vunpack.c.l.b16 %v396
    %v2916 = vunpack.c.l.b16 %v397
    %v2917 = vunpack.c.l.b16 %v398
    %v2918 = vunpack.c.l.b16 %v399
    %v2919 = vunpack.c.l.b16 %v400
    %v2920 = vunpack.c.l.b16 %v401
    %v2921 = vunpack.c.l.b16 %v402
    %v2922 = vunpack.c.l.b16 %v403
    %v2923 = vunpack.c.l.b16 %v404
    %v2924 = vunpack.c.l.b16 %v405
    %v2925 = vunpack.c.l.b16 %v406
    %v2926 = vunpack.c.l.b16 %v407
    %v2927 = vunpack.c.l.b16 %v408
    %v2928 = vunpack.c.l.b16 %v409
    %v2929 = vunpack.c.l.b16 %v410
    %v2930 = vunpack.c.l.b16 %v411
    %v2931 = vunpack.c.l.b16 %v412
    %v2932 = vunpack.c.l.b16 %v413
    %v2933 = vunpack.c.l.b16 %v414
    %v2934 = vunpack.c.l.b16 %v415
    %v2935 = vunpack.c.l.b16 %v416
    %v2936 = vunpack.c.l.b16 %v417
    %v2937 = vunpack.c.l.b16 %v418
    %v2938 = vunpack.c.l.b16 %v419
    %v2939 = vunpack.c.l.b16 %v420
    %v2940 = vunpack.c.l.b16 %v421
    %v2941 = vunpack.c.l.b16 %v422
    %v2942 = vunpack.c.l.b16 %v423
    %v2943 = vunpack.c.l.b16 %v424
    %v2944 = vunpack.c.l.b16 %v425
    %v2945 = vunpack.c.l.b16 %v426
    %v2946 = vunpack.c.l.b16 %v427
    %v2947 = vunpack.c.l.b16 %v428
    %v2948 = vunpack.c.l.b16 %v429
    %v2949 = vunpack.c.l.b16 %v430
    %v2950 = vunpack.c.l.b16 %v431
    %v2951 = vunpack.c.l.b16 %v432
    %v2952 = vunpack.c.l.b16 %v433
    %v2953 = vunpack.c.l.b16 %v434
    %v2954 = vunpack.c.l.b16 %v435
    %v2955 = vunpack.c.l.b16 %v436
    %v2956 = vunpack.c.l.b16 %v437
    %v2957 = vunpack.c.l.b16 %v438
    %v2958 = vunpack.c.l.b16 %v439
    %v2959 = vunpack.c.l.b16 %v440
    %v2960 = vunpack.c.l.b16 %v441
    %v2961 = vunpack.c.l.b16 %v442
    %v2962 = vunpack.c.l.b16 %v443
    %v2963 = vunpack.c.l.b16 %v444
    %v2964 = vunpack.c.l.b16 %v445
    %v2965 = vunpack.c.l.b16 %v446
    %v2966 = vunpack.c.l.b16 %v447
    %v2967 = vunpack.c.l.b16 %v448
    %v2968 = vunpack.c.l.b16 %v449
    %v2969 = vunpack.c.l.b16 %v450
    %v2970 = vunpack.c.l.b16 %v451
    %v2971 = vunpack.c.l.b16 %v452
    %v2972 = vunpack.c.l.b16 %v453
    %v2973 = vunpack.c.l.b16 %v454
    %v2974 = vunpack.c.l.b16 %v455
    %v2975 = vunpack.c.l.b16 %v456
    %v2976 = vunpack.c.l.b16 %v457
    %v2977 = vunpack.c.l.b16 %v458
    %v2978 = vunpack.c.l.b16 %v459
    %v2979 = vunpack.c.l.b16 %v460
    %v2980 = vunpack.c.l.b16 %v461
    %v2981 = vunpack.c.l.b16 %v462
    %v2982 = vunpack.c.l.b16 %v463
    %v2983 = vunpack.c.l.b16 %v464
    %v2984 = vunpack.c.l.b16 %v465
    %v2985 = vunpack.c.l.b16 %v466
    %v2986 = vunpack.c.l.b16 %v467
    %v2987 = vunpack.c.l.b16 %v468
    %v2988 = vunpack.c.l.b16 %v469
    %v2989 = vunpack.c.l.b16 %v470
    %v2990 = vunpack.c.l.b16 %v471
    %v2991 = vunpack.c.l.b16 %v472
    %v2992 = vunpack.c.l.b16 %v473
    %v2993 = vunpack.c.l.b16 %v474
    %v2994 = vunpack.c.l.b16 %v475
    %v2995 = vunpack.c.l.b16 %v476
    %v2996 = vunpack.c.l.b16 %v477
    %v2997 = vunpack.c.l.b16 %v478
    %v2998 = vunpack.c.l.b16 %v479
    %v2999 = vunpack.c.l.b16 %v480
    %v3000 = vunpack.c.l.b16 %v481
    %v3001 = vunpack.c.l.b16 %v482
    %v3002 = vunpack.c.l.b16 %v483
    %v3003 = vunpack.c.l.b16 %v484
    %v3004 = vunpack.c.l.b16 %v485
    %v3005 = vunpack.c.l.b16 %v486
    %v3006 = vunpack.c.l.b16 %v487
    %v3007 = vunpack.c.l.b16 %v488
    %v3008 = vunpack.c.l.b16 %v489
    %v3009 = vunpack.c.l.b16 %v490
    %v3010 = vunpack.c.l.b16 %v491
    %v3011 = vunpack.c.l.b16 %v492
    %v3012 = vunpack.c.l.b16 %v493
    %v3013 = vunpack.c.l.b16 %v494
    %v3014 = vunpack.c.l.b16 %v495
    %v3015 = vunpack.c.l.b16 %v496
    %v3016 = vunpack.c.l.b16 %v497
    %v3017 = vunpack.c.l.b16 %v498
    %v3018 = vunpack.c.l.b16 %v499
    %v3019 = vunpack.c.l.b16 %v500
    %v3020 = vunpack.c.l.b16 %v501
    %v3021 = vunpack.c.l.b16 %v502
    %v3022 = vunpack.c.l.b16 %v503
    %v3023 = vunpack.c.l.b16 %v504
    %v3024 = vunpack.c.l.b16 %v505
    %v3025 = vunpack.c.l.b16 %v506
    %v3026 = vunpack.c.l.b16 %v507
    %v3027 = vunpack.c.l.b16 %v508
    %v3028 = vunpack.c.l.b16 %v509
    %v3029 = vunpack.c.l.b16 %v510
    %v3030 = vunpack.c.l.b16 %v511
    %v3031 = vunpack.c.l.b16 %v512
    %v3032 = vunpack.c.l.b16 %v513
    %v3033 = vunpack.c.l.b16 %v514
    %v3034 = vunpack.c.l.b16 %v515
    %v3035 = vunpack.c.l.b16 %v516
    %v3036 = vunpack.c.l.b16 %v517
    %v3037 = vunpack.c.l.b16 %v518
    %v3038 = vunpack.c.l.b16 %v519
    %v3039 = vunpack.c.l.b16 %v520
    %v3040 = vunpack.c.l.b16 %v521
    %v3041 = vunpack.c.l.b16 %v522
    %v3042 = vunpack.c.l.b16 %v523
    %v3043 = vunpack.c.l.b16 %v524
    %v3044 = vunpack.c.l.b16 %v525
    %v3045 = vunpack.c.l.b16 %v526
    %v3046 = vunpack.c.l.b16 %v527
    %v3047 = vunpack.c.l.b16 %v528
    %v3048 = vunpack.c.l.b16 %v529
    %v3049 = vunpack.c.l.b16 %v530
    %v3050 = vunpack.c.l.b16 %v531
    %v3051 = vunpack.c.l.b16 %v532
    %v3052 = vunpack.c.l.b16 %v533
    %v3053 = vunpack.c.l.b16 %v534
    %v3054 = vunpack.c.l.b16 %v535
    %v3055 = vunpack.c.l.b16 %v536
    %v3056 = vunpack.c.l.b16 %v537
    %v3057 = vunpack.c.l.b16 %v538
    %v3058 = vunpack.c.l.b16 %v539
    %v3059 = vunpack.c.l.b16 %v540
    %v3060 = vunpack.c.l.b16 %v541
    %v3061 = vunpack.c.l.b16 %v542
    %v3062 = vunpack.c.l.b16 %v543
    %v3063 = vunpack.c.l.b16 %v544
    %v3064 = vunpack.c.l.b16 %v545
    %v3065 = vunpack.c.l.b16 %v546
    %v3066 = vunpack.c.l.b16 %v547
    %v3067 = vunpack.c.l.b16 %v548
    %v3068 = vunpack.c.l.b16 %v549
    %v3069 = vunpack.c.l.b16 %v550
    %v3070 = vunpack.c.l.b16 %v551
    %v3071 = vunpack.c.l.b16 %v552
    %v3072 = vunpack.c.l.b16 %v553
    %v3073 = vunpack.c.l.b16 %v554
    %v3074 = vunpack.c.l.b16 %v555
    %v3075 = vunpack.c.l.b16 %v556
    %v3076 = vunpack.c.l.b16 %v557
    %v3077 = vunpack.c.l.b16 %v558
    %v3078 = vunpack.c.l.b16 %v559
    %v3079 = vunpack.c.l.b16 %v560
    %v3080 = vunpack.c.l.b16 %v561
    %v3081 = vunpack.c.l.b16 %v562
    %v3082 = vunpack.c.l.b16 %v563
    %v3083 = vunpack.c.l.b16 %v564
    %v3084 = vunpack.c.l.b16 %v565
    %v3085 = vunpack.c.l.b16 %v566
    %v3086 = vunpack.c.l.b16 %v567
    %v3087 = vunpack.c.l.b16 %v568
    %v3088 = vunpack.c.l.b16 %v569
    %v3089 = vunpack.c.l.b16 %v570
    %v3090 = vunpack.c.l.b16 %v571
    %v3091 = vunpack.c.l.b16 %v572
    %v3092 = vunpack.c.l.b16 %v573
    %v3093 = vunpack.c.l.b16 %v574
    %v3094 = vunpack.c.l.b16 %v575
    %v3095 = vunpack.c.l.b16 %v576
    %v3096 = vunpack.c.l.b16 %v577
    %v3097 = vunpack.c.l.b16 %v578
    %v3098 = vunpack.c.l.b16 %v579
    %v3099 = vunpack.c.l.b16 %v580
    %v3100 = vunpack.c.l.b16 %v581
    %v3101 = vunpack.c.l.b16 %v582
    %v3102 = vunpack.c.l.b16 %v583
    %v3103 = vunpack.c.l.b16 %v584
    %v3104 = vunpack.c.l.b16 %v585
    %v3105 = vunpack.c.l.b16 %v586
    %v3106 = vunpack.c.l.b16 %v587
    %v3107 = vunpack.c.l.b16 %v588
    %v3108 = vunpack.c.l.b16 %v589
    %v3109 = vunpack.c.l.b16 %v590
    %v3110 = vunpack.c.l.b16 %v591
    %v3111 = vunpack.c.l.b16 %v592
    %v3112 = vunpack.c.l.b16 %v593
    %v3113 = vunpack.c.l.b16 %v594
    %v3114 = vunpack.c.l.b16 %v595
    %v3115 = vunpack.c.l.b16 %v596
    %v3116 = vunpack.c.l.b16 %v597
    %v3117 = vunpack.c.l.b16 %v598
    %v3118 = vunpack.c.l.b16 %v599
    %v3119 = vunpack.c.l.b16 %v600
    %v3120 = vunpack.c.l.b16 %v601
    %v3121 = vunpack.c.l.b16 %v602
    %v3122 = vunpack.c.l.b16 %v603
    %v3123 = vunpack.c.l.b16 %v604
    %v3124 = vunpack.c.l.b16 %v605
    %v3125 = vunpack.c.l.b16 %v606
    %v3126 = vunpack.c.l.b16 %v607
    %v3127 = vunpack.c.l.b16 %v608
    %v3128 = vunpack.c.l.b16 %v609
    %v3129 = vunpack.c.l.b16 %v610
    %v3130 = vunpack.c.l.b16 %v611
    %v3131 = vunpack.c.l.b16 %v612
    %v3132 = vunpack.c.l.b16 %v613
    %v3133 = vunpack.c.l.b16 %v614
    %v3134 = vunpack.c.l.b16 %v615
    %v3135 = vunpack.c.l.b16 %v616
    %v3136 = vunpack.c.l.b16 %v617
    %v3137 = vunpack.c.l.b16 %v618
    %v3138 = vunpack.c.l.b16 %v619
    %v3139 = vunpack.c.l.b16 %v620
    %v3140 = vunpack.c.l.b16 %v621
    %v3141 = vunpack.c.l.b16 %v622
    %v3142 = vunpack.c.l.b16 %v623
    %v3143 = vunpack.c.l.b16 %v624
    %v3144 = vunpack.c.l.b16 %v625
    %v3145 = vunpack.c.l.b16 %v626
    %v3146 = vunpack.c.l.b16 %v627
    %v3147 = vunpack.c.l.b16 %v628
    %v3148 = vunpack.c.l.b16 %v629
    %v3149 = vunpack.c.l.b16 %v630
    %v3150 = vunpack.c.l.b16 %v631
    %v3151 = vunpack.c.l.b16 %v632
    %v3152 = vunpack.c.l.b16 %v633
    %v3153 = vunpack.c.l.b16 %v634
    %v3154 = vunpack.c.l.b16 %v635
    %v3155 = vunpack.c.l.b16 %v636
    %v3156 = vunpack.c.l.b16 %v637
    %v3157 = vunpack.c.l.b16 %v638
    %v3158 = vunpack.c.l.b16 %v639
    %v3159 = vunpack.c.l.b16 %v640
    %v3160 = vunpack.c.l.b16 %v641
    %v3161 = vunpack.c.l.b16 %v642
    %v3162 = vunpack.c.l.b16 %v643
    %v3163 = vunpack.c.l.b16 %v644
    %v3164 = vunpack.c.l.b16 %v645
    %v3165 = vunpack.c.l.b16 %v646
    %v3166 = vunpack.c.l.b16 %v647
    %v3167 = vunpack.c.l.b16 %v648
    %v3168 = vunpack.c.l.b16 %v649
    %v3169 = vunpack.c.l.b16 %v650
    %v3170 = vunpack.c.l.b16 %v651
    %v3171 = vunpack.c.l.b16 %v652
    %v3172 = vunpack.c.l.b16 %v653
    %v3173 = vunpack.c.l.b16 %v654
    %v3174 = vunpack.c.l.b16 %v655
    %v3175 = vunpack.c.l.b16 %v656
    %v3176 = vunpack.c.l.b16 %v657
    %v3177 = vunpack.c.l.b16 %v658
    %v3178 = vunpack.c.l.b16 %v659
    %v3179 = vunpack.c.l.b16 %v660
    %v3180 = vunpack.c.l.b16 %v661
    %v3181 = vunpack.c.l.b16 %v662
    %v3182 = vunpack.c.l.b16 %v663
    %v3183 = vunpack.c.l.b16 %v664
    %v3184 = vunpack.c.l.b16 %v665
    %v3185 = vunpack.c.l.b16 %v666
    %v3186 = vunpack.c.l.b16 %v667
    %v3187 = vunpack.c.l.b16 %v668
    %v3188 = vunpack.c.l.b16 %v669
    %v3189 = vunpack.c.l.b16 %v670
    %v3190 = vunpack.c.l.b16 %v671
    %v3191 = vunpack.c.l.b16 %v672
    %v3192 = vunpack.c.l.b16 %v673
    %v3193 = vunpack.c.l.b16 %v674
    %v3194 = vunpack.c.l.b16 %v675
    %v3195 = vunpack.c.l.b16 %v676
    %v3196 = vunpack.c.l.b16 %v677
    %v3197 = vunpack.c.l.b16 %v678
    %v3198 = vunpack.c.l.b16 %v679
    %v3199 = vunpack.c.l.b16 %v680
    %v3200 = vunpack.c.l.b16 %v681
    %v3201 = vunpack.c.l.b16 %v682
    %v3202 = vunpack.c.l.b16 %v683
    %v3203 = vunpack.c.l.b16 %v684
    %v3204 = vunpack.c.l.b16 %v685
    %v3205 = vunpack.c.l.b16 %v686
    %v3206 = vunpack.c.l.b16 %v687
    %v3207 = vunpack.c.l.b16 %v688
    %v3208 = vunpack.c.l.b16 %v689
    %v3209 = vunpack.c.l.b16 %v690
    %v3210 = vunpack.c.l.b16 %v691
    %v3211 = vunpack.c.l.b16 %v692
    %v3212 = vunpack.c.l.b16 %v693
    %v3213 = vunpack.c.l.b16 %v694
    %v3214 = vunpack.c.l.b16 %v695
    %v3215 = vunpack.c.l.b16 %v696
    %v3216 = vunpack.c.l.b16 %v697
    %v3217 = vunpack.c.l.b16 %v698
    %v3218 = vunpack.c.l.b16 %v699
    %v3219 = vunpack.c.l.b16 %v700
    %v3220 = vunpack.c.l.b16 %v701
    %v3221 = vunpack.c.l.b16 %v702
    %v3222 = vunpack.c.l.b16 %v703
    %v3223 = vunpack.c.l.b16 %v704
    %v3224 = vunpack.c.l.b16 %v705
    %v3225 = vunpack.c.l.b16 %v706
    %v3226 = vunpack.c.l.b16 %v707
    %v3227 = vunpack.c.l.b16 %v708
    %v3228 = vunpack.c.l.b16 %v709
    %v3229 = vunpack.c.l.b16 %v710
    %v3230 = vunpack.c.l.b16 %v711
    %v3231 = vunpack.c.l.b16 %v712
    %v3232 = vunpack.c.l.b16 %v713
    %v3233 = vunpack.c.l.b16 %v714
    %v3234 = vunpack.c.l.b16 %v715
    %v3235 = vunpack.c.l.b16 %v716
    %v3236 = vunpack.c.l.b16 %v717
    %v3237 = vunpack.c.l.b16 %v718
    %v3238 = vunpack.c.l.b16 %v719
    %v3239 = vunpack.c.l.b16 %v720
    %v3240 = vunpack.c.l.b16 %v721
    %v3241 = vunpack.c.l.b16 %v722
    %v3242 = vunpack.c.l.b16 %v723
    %v3243 = vunpack.c.l.b16 %v724
    %v3244 = vunpack.c.l.b16 %v725
    %v3245 = vunpack.c.l.b16 %v726
    %v3246 = vunpack.c.l.b16 %v727
    %v3247 = vunpack.c.l.b16 %v728
    %v3248 = vunpack.c.l.b16 %v729
    %v3249 = vunpack.c.l.b16 %v730
    %v3250 = vunpack.c.l.b16 %v731
    %v3251 = vunpack.c.l.b16 %v732
    %v3252 = vunpack.c.l.b16 %v733
    %v3253 = vunpack.c.l.b16 %v734
    %v3254 = vunpack.c.l.b16 %v735
    %v3255 = vunpack.c.l.b16 %v736
    %v3256 = vunpack.c.l.b16 %v737
    %v3257 = vunpack.c.l.b16 %v738
    %v3258 = vunpack.c.l.b16 %v739
    %v3259 = vunpack.c.l.b16 %v740
    %v3260 = vunpack.c.l.b16 %v741
    %v3261 = vunpack.c.l.b16 %v742
    %v3262 = vunpack.c.l.b16 %v743
    %v3263 = vunpack.c.l.b16 %v744
    %v3264 = vunpack.c.l.b16 %v745
    %v3265 = vunpack.c.l.b16 %v746
    %v3266 = vunpack.c.l.b16 %v747
    %v3267 = vunpack.c.l.b16 %v748
    %v3268 = vunpack.c.l.b16 %v749
    %v3269 = vunpack.c.l.b16 %v750
    %v3270 = vunpack.c.l.b16 %v751
    %v3271 = vunpack.c.l.b16 %v752
    %v3272 = vunpack.c.l.b16 %v753
    %v3273 = vunpack.c.l.b16 %v754
    %v3274 = vunpack.c.l.b16 %v755
    %v3275 = vunpack.c.l.b16 %v756
    %v3276 = vunpack.c.l.b16 %v757
    %v3277 = vunpack.c.l.b16 %v758
    %v3278 = vunpack.c.l.b16 %v759
    %v3279 = vunpack.c.l.b16 %v760
    %v3280 = vunpack.c.l.b16 %v761
    %v3281 = vunpack.c.l.b16 %v762
    %v3282 = vunpack.c.l.b16 %v763
    %v3283 = vunpack.c.l.b16 %v764
    %v3284 = vunpack.c.l.b16 %v765
    %v3285 = vunpack.c.l.b16 %v766
    %v3286 = vunpack.c.l.b16 %v767
    %v3287 = vunpack.c.l.b16 %v768
    %v3288 = vunpack.c.l.b16 %v769
    %v3289 = vunpack.c.l.b16 %v770
    %v3290 = vunpack.c.l.b16 %v771
    %v3291 = vunpack.c.l.b16 %v772
    %v3292 = vunpack.c.l.b16 %v773
    %v3293 = vunpack.c.l.b16 %v774
    %v3294 = vunpack.c.l.b16 %v775
    %v3295 = vunpack.c.l.b16 %v776
    %v3296 = vunpack.c.l.b16 %v777
    %v3297 = vunpack.c.l.b16 %v778
    %v3298 = vunpack.c.l.b16 %v779
    %v3299 = vunpack.c.l.b16 %v780
    %v3300 = vunpack.c.l.b16 %v781
    %v3301 = vunpack.c.l.b16 %v782
    %v3302 = vunpack.c.l.b16 %v783
    %v3303 = vunpack.c.l.b16 %v784
    %v3304 = vunpack.c.l.b16 %v785
    %v3305 = vunpack.c.l.b16 %v786
    %v3306 = vunpack.c.l.b16 %v787
    %v3307 = vunpack.c.l.b16 %v788
    %v3308 = vunpack.c.l.b16 %v789
    %v3309 = vunpack.c.l.b16 %v790
    %v3310 = vunpack.c.l.b16 %v791
    %v3311 = vunpack.c.l.b16 %v792
    %v3312 = vunpack.c.l.b16 %v793
    %v3313 = vunpack.c.l.b16 %v794
    %v3314 = vunpack.c.l.b16 %v795
    %v3315 = vunpack.c.l.b16 %v796
    %v3316 = vunpack.c.l.b16 %v797
    %v3317 = vunpack.c.l.b16 %v798
    %v3318 = vunpack.c.l.b16 %v799
    %v3319 = vunpack.c.l.b16 %v800
    %v3320 = vunpack.c.l.b16 %v801
    %v3321 = vunpack.c.l.b16 %v802
    %v3322 = vunpack.c.l.b16 %v803
    %v3323 = vunpack.c.l.b16 %v804
    %v3324 = vunpack.c.l.b16 %v805
    %v3325 = vunpack.c.l.b16 %v806
    %v3326 = vunpack.c.l.b16 %v807
    %v3327 = vunpack.c.l.b16 %v808
    %v3328 = vunpack.c.l.b16 %v809
    %v3329 = vunpack.c.l.b16 %v810
    %v3330 = vunpack.c.l.b16 %v811
    %v3331 = vunpack.c.l.b16 %v812
    %v3332 = vunpack.c.l.b16 %v813
    %v3333 = vunpack.c.l.b16 %v814
    %v3334 = vunpack.c.l.b16 %v815
    %v3335 = vunpack.c.l.b16 %v816
    %v3336 = vunpack.c.l.b16 %v817
    %v3337 = vunpack.c.l.b16 %v818
    %v3338 = vunpack.c.l.b16 %v819
    %v3339 = vunpack.c.l.b16 %v820
    %v3340 = vunpack.c.l.b16 %v821
    %v3341 = vunpack.c.l.b16 %v822
    %v3342 = vunpack.c.l.b16 %v823
    %v3343 = vunpack.c.l.b16 %v824
    %v3344 = vunpack.c.l.b16 %v825
    %v3345 = vunpack.c.l.b16 %v826
    %v3346 = vunpack.c.l.b16 %v827
    %v3347 = vunpack.c.l.b16 %v828
    %v3348 = vunpack.c.l.b16 %v829
    %v3349 = vunpack.c.l.b16 %v830
    %v3350 = vunpack.c.l.b16 %v831
    %v3351 = vunpack.c.l.b16 %v832
    %v3352 = vunpack.c.l.b16 %v833
    %v3353 = vunpack.c.l.b16 %v834
    %v3354 = vunpack.c.l.b16 %v835
    %v3355 = vunpack.c.l.b16 %v836
    %v3356 = vunpack.c.l.b16 %v837
    %v3357 = vunpack.c.l.b16 %v838
    %v3358 = vunpack.c.l.b16 %v839
    %v3359 = vunpack.c.l.b16 %v840
    %v3360 = vunpack.c.l.b16 %v841
    %v3361 = vunpack.c.l.b16 %v842
    %v3362 = vunpack.c.l.b16 %v843
    %v3363 = vunpack.c.l.b16 %v844
    %v3364 = vunpack.c.l.b16 %v845
    %v3365 = vunpack.c.l.b16 %v846
    %v3366 = vunpack.c.l.b16 %v847
    %v3367 = vunpack.c.l.b16 %v848
    %v3368 = vunpack.c.l.b16 %v849
    %v3369 = vunpack.c.l.b16 %v850
    %v3370 = vunpack.c.l.b16 %v851
    %v3371 = vunpack.c.l.b16 %v852
    %v3372 = vunpack.c.l.b16 %v853
    %v3373 = vunpack.c.l.b16 %v854
    %v3374 = vunpack.c.l.b16 %v855
    %v3375 = vunpack.c.l.b16 %v856
    %v3376 = vunpack.c.l.b16 %v857
    %v3377 = vunpack.c.l.b16 %v858
    %v3378 = vunpack.c.l.b16 %v859
    %v3379 = vunpack.c.l.b16 %v860
    %v3380 = vunpack.c.l.b16 %v861
    %v3381 = vunpack.c.l.b16 %v862
    %v3382 = vunpack.c.l.b16 %v863
    %v3383 = vunpack.c.l.b16 %v864
    %v3384 = vunpack.c.l.b16 %v865
    %v3385 = vunpack.c.l.b16 %v866
    %v3386 = vunpack.c.l.b16 %v867
    %v3387 = vunpack.c.l.b16 %v868
    %v3388 = vunpack.c.l.b16 %v869
    %v3389 = vunpack.c.l.b16 %v870
    %v3390 = vunpack.c.l.b16 %v871
    %v3391 = vunpack.c.l.b16 %v872
    %v3392 = vunpack.c.l.b16 %v873
    %v3393 = vunpack.c.l.b16 %v874
    %v3394 = vunpack.c.l.b16 %v875
    %v3395 = vunpack.c.l.b16 %v876
    %v3396 = vunpack.c.l.b16 %v877
    %v3397 = vunpack.c.l.b16 %v878
    %v3398 = vunpack.c.l.b16 %v879
    %v3399 = vunpack.c.l.b16 %v880
    %v3400 = vunpack.c.l.b16 %v881
    %v3401 = vunpack.c.l.b16 %v882
    %v3402 = vunpack.c.l.b16 %v883
    %v3403 = vunpack.c.l.b16 %v884
    %v3404 = vunpack.c.l.b16 %v885
    %v3405 = vunpack.c.l.b16 %v886
    %v3406 = vunpack.c.l.b16 %v887
    %v3407 = vunpack.c.l.b16 %v888
    %v3408 = vunpack.c.l.b16 %v889
    %v3409 = vunpack.c.l.b16 %v890
    %v3410 = vunpack.c.l.b16 %v891
    %v3411 = vunpack.c.l.b16 %v892
    %v3412 = vunpack.c.l.b16 %v893
    %v3413 = vunpack.c.l.b16 %v894
    %v3414 = vunpack.c.l.b16 %v895
    %v3415 = vunpack.c.l.b16 %v896
    %v3416 = vunpack.c.l.b16 %v897
    %v3417 = vunpack.c.l.b16 %v898
    %v3418 = vunpack.c.l.b16 %v899
    %v3419 = vunpack.c.l.b16 %v900
    %v3420 = vunpack.c.l.b16 %v901
    %v3421 = vunpack.c.l.b16 %v902
    %v3422 = vunpack.c.l.b16 %v903
    %v3423 = vunpack.c.l.b16 %v904
    %v3424 = vunpack.c.l.b16 %v905
    %v3425 = vunpack.c.l.b16 %v906
    %v3426 = vunpack.c.l.b16 %v907
    %v3427 = vunpack.c.l.b16 %v908
    %v3428 = vunpack.c.l.b16 %v909
    %v3429 = vunpack.c.l.b16 %v910
    %v3430 = vunpack.c.l.b16 %v911
    %v3431 = vunpack.c.l.b16 %v912
    %v3432 = vunpack.c.l.b16 %v913
    %v3433 = vunpack.c.l.b16 %v914
    %v3434 = vunpack.c.l.b16 %v915
    %v3435 = vunpack.c.l.b16 %v916
    %v3436 = vunpack.c.l.b16 %v917
    %v3437 = vunpack.c.l.b16 %v918
    %v3438 = vunpack.c.l.b16 %v919
    %v3439 = vunpack.c.l.b16 %v920
    %v3440 = vunpack.c.l.b16 %v921
    %v3441 = vunpack.c.l.b16 %v922
    %v3442 = vunpack.c.l.b16 %v923
    %v3443 = vunpack.c.l.b16 %v924
    %v3444 = vunpack.c.l.b16 %v925
    %v3445 = vunpack.c.l.b16 %v926
    %v3446 = vunpack.c.l.b16 %v927
    %v3447 = vunpack.c.l.b16 %v928
    %v3448 = vunpack.c.l.b16 %v929
    %v3449 = vunpack.c.l.b16 %v930
    %v3450 = vunpack.c.l.b16 %v931
    %v3451 = vunpack.c.l.b16 %v932
    %v3452 = vunpack.c.l.b16 %v933
    %v3453 = vunpack.c.l.b16 %v934
    %v3454 = vunpack.c.l.b16 %v935
    %v3455 = vunpack.c.l.b16 %v936
    %v3456 = vunpack.c.l.b16 %v937
    %v3457 = vunpack.c.l.b16 %v938
    %v3458 = vunpack.c.l.b16 %v939
    %v3459 = vunpack.c.l.b16 %v940
    %v3460 = vunpack.c.l.b16 %v941
    %v3461 = vunpack.c.l.b16 %v942
    %v3462 = vunpack.c.l.b16 %v943
    %v3463 = vunpack.c.l.b16 %v944
    %v3464 = vunpack.c.l.b16 %v945
    %v3465 = vunpack.c.l.b16 %v946
    %v3466 = vunpack.c.l.b16 %v947
    %v3467 = vunpack.c.l.b16 %v948
    %v3468 = vunpack.c.l.b16 %v949
    %v3469 = vunpack.c.l.b16 %v950
    %v3470 = vunpack.c.l.b16 %v951
    %v3471 = vunpack.c.l.b16 %v952
    %v3472 = vunpack.c.l.b16 %v953
    %v3473 = vunpack.c.l.b16 %v954
    %v3474 = vunpack.c.l.b16 %v955
    %v3475 = vunpack.c.l.b16 %v956
    %v3476 = vunpack.c.l.b16 %v957
    %v3477 = vunpack.c.l.b16 %v958
    %v3478 = vunpack.c.l.b16 %v959
    %v3479 = vunpack.c.l.b16 %v960
    %v3480 = vunpack.c.l.b16 %v961
    %v3481 = vunpack.c.l.b16 %v962
    %v3482 = vunpack.c.l.b16 %v963
    %v3483 = vunpack.c.l.b16 %v964
    %v3484 = vunpack.c.l.b16 %v965
    %v3485 = vunpack.c.l.b16 %v966
    %v3486 = vunpack.c.l.b16 %v967
    %v3487 = vunpack.c.l.b16 %v968
    %v3488 = vunpack.c.l.b16 %v969
    %v3489 = vunpack.c.l.b16 %v970
    %v3490 = vunpack.c.l.b16 %v971
    %v3491 = vunpack.c.l.b16 %v972
    %v3492 = vunpack.c.l.b16 %v973
    %v3493 = vunpack.c.l.b16 %v974
    %v3494 = vunpack.c.l.b16 %v975
    %v3495 = vunpack.c.l.b16 %v976
    %v3496 = vunpack.c.l.b16 %v977
    %v3497 = vunpack.c.l.b16 %v978
    %v3498 = vunpack.c.l.b16 %v979
    %v3499 = vunpack.c.l.b16 %v980
    %v3500 = vunpack.c.l.b16 %v981
    %v3501 = vunpack.c.l.b16 %v982
    %v3502 = vunpack.c.l.b16 %v983
    %v3503 = vunpack.c.l.b16 %v984
    %v3504 = vunpack.c.l.b16 %v985
    %v3505 = vunpack.c.l.b16 %v986
    %v3506 = vunpack.c.l.b16 %v987
    %v3507 = vunpack.c.l.b16 %v988
    %v3508 = vunpack.c.l.b16 %v989
    %v3509 = vunpack.c.l.b16 %v990
    %v3510 = vunpack.c.l.b16 %v991
    %v3511 = vunpack.c.l.b16 %v992
    %v3512 = vunpack.c.l.b16 %v993
    %v3513 = vunpack.c.l.b16 %v994
    %v3514 = vunpack.c.l.b16 %v995
    %v3515 = vunpack.c.l.b16 %v996
    %v3516 = vunpack.c.l.b16 %v997
    %v3517 = vunpack.c.l.b16 %v998
    %v3518 = vunpack.c.l.b16 %v999
    %v3519 = vunpack.c.l.b16 %v1000
    %v3520 = vunpack.c.l.b16 %v1001
    %v3521 = vunpack.c.l.b16 %v1002
    %v3522 = vunpack.c.l.b16 %v1003
    %v3523 = vunpack.c.l.b16 %v1004
    %v3524 = vunpack.c.l.b16 %v1005
    %v3525 = vunpack.c.l.b16 %v1006
    %v3526 = vunpack.c.l.b16 %v1007
    %v3527 = vunpack.c.l.b16 %v1008
    %v3528 = vunpack.c.l.b16 %v1009
    %v3529 = vunpack.c.l.b16 %v1010
    %v3530 = vunpack.c.l.b16 %v1011
    %v3531 = vunpack.c.l.b16 %v1012
    %v3532 = vunpack.c.l.b16 %v1013
    %v3533 = vunpack.c.l.b16 %v1014
    %v3534 = vunpack.c.l.b16 %v1015
    %v3535 = vunpack.c.l.b16 %v1016
    %v3536 = vunpack.c.l.b16 %v1017
    %v3537 = vunpack.c.l.b16 %v1018
    %v3538 = vunpack.c.l.b16 %v1019
    %v3539 = vunpack.c.l.b16 %v1020
    %v3540 = vunpack.c.l.b16 %v1021
    %v3541 = vunpack.c.l.b16 %v1022
    %v3542 = vunpack.c.l.b16 %v1023
    %v3543 = vunpack.c.l.b16 %v1024
    %v3544 = vunpack.c.l.b16 %v1025
    %v3545 = vunpack.c.l.b16 %v1026
    %v3546 = vunpack.c.l.b16 %v1027
    %v3547 = vunpack.c.l.b16 %v1028
    %v3548 = vunpack.c.l.b16 %v1029
    %v3549 = vunpack.c.l.b16 %v1030
    %v3550 = vunpack.c.l.b16 %v1031
    %v3551 = vunpack.c.l.b16 %v1032
    %v3552 = vunpack.c.l.b16 %v1033
    %v3553 = vunpack.c.l.b16 %v1034
    %v3554 = vunpack.c.l.b16 %v1035
    %v3555 = vunpack.c.l.b16 %v1036
    %v3556 = vunpack.c.l.b16 %v1037
    %v3557 = vunpack.c.l.b16 %v1038
    %v3558 = vunpack.c.l.b16 %v1039
    %v3559 = vunpack.c.l.b16 %v1040
    %v3560 = vunpack.c.l.b16 %v1041
    %v3561 = vunpack.c.l.b16 %v1042
    %v3562 = vunpack.c.l.b16 %v1043
    %v3563 = vunpack.c.l.b16 %v1044
    %v3564 = vunpack.c.l.b16 %v1045
    %v3565 = vunpack.c.l.b16 %v1046
    %v3566 = vunpack.c.l.b16 %v1047
    %v3567 = vunpack.c.l.b16 %v1048
    %v3568 = vunpack.c.l.b16 %v1049
    %v3569 = vunpack.c.l.b16 %v1050
    %v3570 = vunpack.c.l.b16 %v1051
    %v3571 = vunpack.c.l.b16 %v1052
    %v3572 = vunpack.c.l.b16 %v1053
    %v3573 = vunpack.c.l.b16 %v1054
    %v3574 = vunpack.c.l.b16 %v1055
    %v3575 = vunpack.c.l.b16 %v1056
    %v3576 = vunpack.c.l.b16 %v1057
    %v3577 = vunpack.c.l.b16 %v1058
    %v3578 = vunpack.c.l.b16 %v1059
    %v3579 = vpack.c.b16 %v2556, %v2555
    %v3580 = vpack.c.b16 %v2558, %v2557
    %v3581 = vpack.c.b16 %v2560, %v2559
    %v3582 = vpack.c.b16 %v2562, %v2561
    %v3583 = vpack.c.b16 %v2564, %v2563
    %v3584 = vpack.c.b16 %v2566, %v2565
    %v3585 = vpack.c.b16 %v2568, %v2567
    %v3586 = vpack.c.b16 %v2570, %v2569
    %v3587 = vpack.c.b16 %v2572, %v2571
    %v3588 = vpack.c.b16 %v2574, %v2573
    %v3589 = vpack.c.b16 %v2576, %v2575
    %v3590 = vpack.c.b16 %v2578, %v2577
    %v3591 = vpack.c.b16 %v2580, %v2579
    %v3592 = vpack.c.b16 %v2582, %v2581
    %v3593 = vpack.c.b16 %v2584, %v2583
    %v3594 = vpack.c.b16 %v2586, %v2585
    %v3595 = vpack.c.b16 %v2588, %v2587
    %v3596 = vpack.c.b16 %v2590, %v2589
    %v3597 = vpack.c.b16 %v2592, %v2591
    %v3598 = vpack.c.b16 %v2594, %v2593
    %v3599 = vpack.c.b16 %v2596, %v2595
    %v3600 = vpack.c.b16 %v2598, %v2597
    %v3601 = vpack.c.b16 %v2600, %v2599
    %v3602 = vpack.c.b16 %v2602, %v2601
    %v3603 = vpack.c.b16 %v2604, %v2603
    %v3604 = vpack.c.b16 %v2606, %v2605
    %v3605 = vpack.c.b16 %v2608, %v2607
    %v3606 = vpack.c.b16 %v2610, %v2609
    %v3607 = vpack.c.b16 %v2612, %v2611
    %v3608 = vpack.c.b16 %v2614, %v2613
    %v3609 = vpack.c.b16 %v2616, %v2615
    %v3610 = vpack.c.b16 %v2618, %v2617
    %v3611 = vpack.c.b16 %v2620, %v2619
    %v3612 = vpack.c.b16 %v2622, %v2621
    %v3613 = vpack.c.b16 %v2624, %v2623
    %v3614 = vpack.c.b16 %v2626, %v2625
    %v3615 = vpack.c.b16 %v2628, %v2627
    %v3616 = vpack.c.b16 %v2630, %v2629
    %v3617 = vpack.c.b16 %v2632, %v2631
    %v3618 = vpack.c.b16 %v2634, %v2633
    %v3619 = vpack.c.b16 %v2636, %v2635
    %v3620 = vpack.c.b16 %v2638, %v2637
    %v3621 = vpack.c.b16 %v2640, %v2639
    %v3622 = vpack.c.b16 %v2642, %v2641
    %v3623 = vpack.c.b16 %v2644, %v2643
    %v3624 = vpack.c.b16 %v2646, %v2645
    %v3625 = vpack.c.b16 %v2648, %v2647
    %v3626 = vpack.c.b16 %v2650, %v2649
    %v3627 = vpack.c.b16 %v2652, %v2651
    %v3628 = vpack.c.b16 %v2654, %v2653
    %v3629 = vpack.c.b16 %v2656, %v2655
    %v3630 = vpack.c.b16 %v2658, %v2657
    %v3631 = vpack.c.b16 %v2660, %v2659
    %v3632 = vpack.c.b16 %v2662, %v2661
    %v3633 = vpack.c.b16 %v2664, %v2663
    %v3634 = vpack.c.b16 %v2666, %v2665
    %v3635 = vpack.c.b16 %v2668, %v2667
    %v3636 = vpack.c.b16 %v2670, %v2669
    %v3637 = vpack.c.b16 %v2672, %v2671
    %v3638 = vpack.c.b16 %v2674, %v2673
    %v3639 = vpack.c.b16 %v2676, %v2675
    %v3640 = vpack.c.b16 %v2678, %v2677
    %v3641 = vpack.c.b16 %v2680, %v2679
    %v3642 = vpack.c.b16 %v2682, %v2681
    %v3643 = vpack.c.b16 %v2684, %v2683
    %v3644 = vpack.c.b16 %v2686, %v2685
    %v3645 = vpack.c.b16 %v2688, %v2687
    %v3646 = vpack.c.b16 %v2690, %v2689
    %v3647 = vpack.c.b16 %v2692, %v2691
    %v3648 = vpack.c.b16 %v2694, %v2693
    %v3649 = vpack.c.b16 %v2696, %v2695
    %v3650 = vpack.c.b16 %v2698, %v2697
    %v3651 = vpack.c.b16 %v2700, %v2699
    %v3652 = vpack.c.b16 %v2702, %v2701
    %v3653 = vpack.c.b16 %v2704, %v2703
    %v3654 = vpack.c.b16 %v2706, %v2705
    %v3655 = vpack.c.b16 %v2708, %v2707
    %v3656 = vpack.c.b16 %v2710, %v2709
    %v3657 = vpack.c.b16 %v2712, %v2711
    %v3658 = vpack.c.b16 %v2714, %v2713
    %v3659 = vpack.c.b16 %v2716, %v2715
    %v3660 = vpack.c.b16 %v2718, %v2717
    %v3661 = vpack.c.b16 %v2720, %v2719
    %v3662 = vpack.c.b16 %v2722, %v2721
    %v3663 = vpack.c.b16 %v2724, %v2723
    %v3664 = vpack.c.b16 %v2726, %v2725
    %v3665 = vpack.c.b16 %v2728, %v2727
    %v3666 = vpack.c.b16 %v2730, %v2729
    %v3667 = vpack.c.b16 %v2732, %v2731
    %v3668 = vpack.c.b16 %v2734, %v2733
    %v3669 = vpack.c.b16 %v2736, %v2735
    %v3670 = vpack.c.b16 %v2738, %v2737
    %v3671 = vpack.c.b16 %v2740, %v2739
    %v3672 = vpack.c.b16 %v2742, %v2741
    %v3673 = vpack.c.b16 %v2744, %v2743
    %v3674 = vpack.c.b16 %v2746, %v2745
    %v3675 = vpack.c.b16 %v2748, %v2747
    %v3676 = vpack.c.b16 %v2750, %v2749
    %v3677 = vpack.c.b16 %v2752, %v2751
    %v3678 = vpack.c.b16 %v2754, %v2753
    %v3679 = vpack.c.b16 %v2756, %v2755
    %v3680 = vpack.c.b16 %v2758, %v2757
    %v3681 = vpack.c.b16 %v2760, %v2759
    %v3682 = vpack.c.b16 %v2762, %v2761
    %v3683 = vpack.c.b16 %v2764, %v2763
    %v3684 = vpack.c.b16 %v2766, %v2765
    %v3685 = vpack.c.b16 %v2768, %v2767
    %v3686 = vpack.c.b16 %v2770, %v2769
    %v3687 = vpack.c.b16 %v2772, %v2771
    %v3688 = vpack.c.b16 %v2774, %v2773
    %v3689 = vpack.c.b16 %v2776, %v2775
    %v3690 = vpack.c.b16 %v2778, %v2777
    %v3691 = vpack.c.b16 %v2780, %v2779
    %v3692 = vpack.c.b16 %v2782, %v2781
    %v3693 = vpack.c.b16 %v2784, %v2783
    %v3694 = vpack.c.b16 %v2786, %v2785
    %v3695 = vpack.c.b16 %v2788, %v2787
    %v3696 = vpack.c.b16 %v2790, %v2789
    %v3697 = vpack.c.b16 %v2792, %v2791
    %v3698 = vpack.c.b16 %v2794, %v2793
    %v3699 = vpack.c.b16 %v2796, %v2795
    %v3700 = vpack.c.b16 %v2798, %v2797
    %v3701 = vpack.c.b16 %v2800, %v2799
    %v3702 = vpack.c.b16 %v2802, %v2801
    %v3703 = vpack.c.b16 %v2804, %v2803
    %v3704 = vpack.c.b16 %v2806, %v2805
    %v3705 = vpack.c.b16 %v2808, %v2807
    %v3706 = vpack.c.b16 %v2810, %v2809
    %v3707 = vpack.c.b16 %v2812, %v2811
    %v3708 = vpack.c.b16 %v2814, %v2813
    %v3709 = vpack.c.b16 %v2816, %v2815
    %v3710 = vpack.c.b16 %v2818, %v2817
    %v3711 = vpack.c.b16 %v2820, %v2819
    %v3712 = vpack.c.b16 %v2822, %v2821
    %v3713 = vpack.c.b16 %v2824, %v2823
    %v3714 = vpack.c.b16 %v2826, %v2825
    %v3715 = vpack.c.b16 %v2828, %v2827
    %v3716 = vpack.c.b16 %v2830, %v2829
    %v3717 = vpack.c.b16 %v2832, %v2831
    %v3718 = vpack.c.b16 %v2834, %v2833
    %v3719 = vpack.c.b16 %v2836, %v2835
    %v3720 = vpack.c.b16 %v2838, %v2837
    %v3721 = vpack.c.b16 %v2840, %v2839
    %v3722 = vpack.c.b16 %v2842, %v2841
    %v3723 = vpack.c.b16 %v2844, %v2843
    %v3724 = vpack.c.b16 %v2846, %v2845
    %v3725 = vpack.c.b16 %v2848, %v2847
    %v3726 = vpack.c.b16 %v2850, %v2849
    %v3727 = vpack.c.b16 %v2852, %v2851
    %v3728 = vpack.c.b16 %v2854, %v2853
    %v3729 = vpack.c.b16 %v2856, %v2855
    %v3730 = vpack.c.b16 %v2858, %v2857
    %v3731 = vpack.c.b16 %v2860, %v2859
    %v3732 = vpack.c.b16 %v2862, %v2861
    %v3733 = vpack.c.b16 %v2864, %v2863
    %v3734 = vpack.c.b16 %v2866, %v2865
    %v3735 = vpack.c.b16 %v2868, %v2867
    %v3736 = vpack.c.b16 %v2870, %v2869
    %v3737 = vpack.c.b16 %v2872, %v2871
    %v3738 = vpack.c.b16 %v2874, %v2873
    %v3739 = vpack.c.b16 %v2876, %v2875
    %v3740 = vpack.c.b16 %v2878, %v2877
    %v3741 = vpack.c.b16 %v2880, %v2879
    %v3742 = vpack.c.b16 %v2882, %v2881
    %v3743 = vpack.c.b16 %v2884, %v2883
    %v3744 = vpack.c.b16 %v2886, %v2885
    %v3745 = vpack.c.b16 %v2888, %v2887
    %v3746 = vpack.c.b16 %v2890, %v2889
    %v3747 = vpack.c.b16 %v2892, %v2891
    %v3748 = vpack.c.b16 %v2894, %v2893
    %v3749 = vpack.c.b16 %v2896, %v2895
    %v3750 = vpack.c.b16 %v2898, %v2897
    %v3751 = vpack.c.b16 %v2900, %v2899
    %v3752 = vpack.c.b16 %v2902, %v2901
    %v3753 = vpack.c.b16 %v2904, %v2903
    %v3754 = vpack.c.b16 %v2906, %v2905
    %v3755 = vpack.c.b16 %v2908, %v2907
    %v3756 = vpack.c.b16 %v2910, %v2909
    %v3757 = vpack.c.b16 %v2912, %v2911
    %v3758 = vpack.c.b16 %v2914, %v2913
    %v3759 = vpack.c.b16 %v2916, %v2915
    %v3760 = vpack.c.b16 %v2918, %v2917
    %v3761 = vpack.c.b16 %v2920, %v2919
    %v3762 = vpack.c.b16 %v2922, %v2921
    %v3763 = vpack.c.b16 %v2924, %v2923
    %v3764 = vpack.c.b16 %v2926, %v2925
    %v3765 = vpack.c.b16 %v2928, %v2927
    %v3766 = vpack.c.b16 %v2930, %v2929
    %v3767 = vpack.c.b16 %v2932, %v2931
    %v3768 = vpack.c.b16 %v2934, %v2933
    %v3769 = vpack.c.b16 %v2936, %v2935
    %v3770 = vpack.c.b16 %v2938, %v2937
    %v3771 = vpack.c.b16 %v2940, %v2939
    %v3772 = vpack.c.b16 %v2942, %v2941
    %v3773 = vpack.c.b16 %v2944, %v2943
    %v3774 = vpack.c.b16 %v2946, %v2945
    %v3775 = vpack.c.b16 %v2948, %v2947
    %v3776 = vpack.c.b16 %v2950, %v2949
    %v3777 = vpack.c.b16 %v2952, %v2951
    %v3778 = vpack.c.b16 %v2954, %v2953
    %v3779 = vpack.c.b16 %v2956, %v2955
    %v3780 = vpack.c.b16 %v2958, %v2957
    %v3781 = vpack.c.b16 %v2960, %v2959
    %v3782 = vpack.c.b16 %v2962, %v2961
    %v3783 = vpack.c.b16 %v2964, %v2963
    %v3784 = vpack.c.b16 %v2966, %v2965
    %v3785 = vpack.c.b16 %v2968, %v2967
    %v3786 = vpack.c.b16 %v2970, %v2969
    %v3787 = vpack.c.b16 %v2972, %v2971
    %v3788 = vpack.c.b16 %v2974, %v2973
    %v3789 = vpack.c.b16 %v2976, %v2975
    %v3790 = vpack.c.b16 %v2978, %v2977
    %v3791 = vpack.c.b16 %v2980, %v2979
    %v3792 = vpack.c.b16 %v2982, %v2981
    %v3793 = vpack.c.b16 %v2984, %v2983
    %v3794 = vpack.c.b16 %v2986, %v2985
    %v3795 = vpack.c.b16 %v2988, %v2987
    %v3796 = vpack.c.b16 %v2990, %v2989
    %v3797 = vpack.c.b16 %v2992, %v2991
    %v3798 = vpack.c.b16 %v2994, %v2993
    %v3799 = vpack.c.b16 %v2996, %v2995
    %v3800 = vpack.c.b16 %v2998, %v2997
    %v3801 = vpack.c.b16 %v3000, %v2999
    %v3802 = vpack.c.b16 %v3002, %v3001
    %v3803 = vpack.c.b16 %v3004, %v3003
    %v3804 = vpack.c.b16 %v3006, %v3005
    %v3805 = vpack.c.b16 %v3008, %v3007
    %v3806 = vpack.c.b16 %v3010, %v3009
    %v3807 = vpack.c.b16 %v3012, %v3011
    %v3808 = vpack.c.b16 %v3014, %v3013
    %v3809 = vpack.c.b16 %v3016, %v3015
    %v3810 = vpack.c.b16 %v3018, %v3017
    %v3811 = vpack.c.b16 %v3020, %v3019
    %v3812 = vpack.c.b16 %v3022, %v3021
    %v3813 = vpack.c.b16 %v3024, %v3023
    %v3814 = vpack.c.b16 %v3026, %v3025
    %v3815 = vpack.c.b16 %v3028, %v3027
    %v3816 = vpack.c.b16 %v3030, %v3029
    %v3817 = vpack.c.b16 %v3032, %v3031
    %v3818 = vpack.c.b16 %v3034, %v3033
    %v3819 = vpack.c.b16 %v3036, %v3035
    %v3820 = vpack.c.b16 %v3038, %v3037
    %v3821 = vpack.c.b16 %v3040, %v3039
    %v3822 = vpack.c.b16 %v3042, %v3041
    %v3823 = vpack.c.b16 %v3044, %v3043
    %v3824 = vpack.c.b16 %v3046, %v3045
    %v3825 = vpack.c.b16 %v3048, %v3047
    %v3826 = vpack.c.b16 %v3050, %v3049
    %v3827 = vpack.c.b16 %v3052, %v3051
    %v3828 = vpack.c.b16 %v3054, %v3053
    %v3829 = vpack.c.b16 %v3056, %v3055
    %v3830 = vpack.c.b16 %v3058, %v3057
    %v3831 = vpack.c.b16 %v3060, %v3059
    %v3832 = vpack.c.b16 %v3062, %v3061
    %v3833 = vpack.c.b16 %v3064, %v3063
    %v3834 = vpack.c.b16 %v3066, %v3065
    %v3835 = vpack.c.b16 %v3068, %v3067
    %v3836 = vpack.c.b16 %v3070, %v3069
    %v3837 = vpack.c.b16 %v3072, %v3071
    %v3838 = vpack.c.b16 %v3074, %v3073
    %v3839 = vpack.c.b16 %v3076, %v3075
    %v3840 = vpack.c.b16 %v3078, %v3077
    %v3841 = vpack.c.b16 %v3080, %v3079
    %v3842 = vpack.c.b16 %v3082, %v3081
    %v3843 = vpack.c.b16 %v3084, %v3083
    %v3844 = vpack.c.b16 %v3086, %v3085
    %v3845 = vpack.c.b16 %v3088, %v3087
    %v3846 = vpack.c.b16 %v3090, %v3089
    %v3847 = vpack.c.b16 %v3092, %v3091
    %v3848 = vpack.c.b16 %v3094, %v3093
    %v3849 = vpack.c.b16 %v3096, %v3095
    %v3850 = vpack.c.b16 %v3098, %v3097
    %v3851 = vpack.c.b16 %v3100, %v3099
    %v3852 = vpack.c.b16 %v3102, %v3101
    %v3853 = vpack.c.b16 %v3104, %v3103
    %v3854 = vpack.c.b16 %v3106, %v3105
    %v3855 = vpack.c.b16 %v3108, %v3107
    %v3856 = vpack.c.b16 %v3110, %v3109
    %v3857 = vpack.c.b16 %v3112, %v3111
    %v3858 = vpack.c.b16 %v3114, %v3113
    %v3859 = vpack.c.b16 %v3116, %v3115
    %v3860 = vpack.c.b16 %v3118, %v3117
    %v3861 = vpack.c.b16 %v3120, %v3119
    %v3862 = vpack.c.b16 %v3122, %v3121
    %v3863 = vpack.c.b16 %v3124, %v3123
    %v3864 = vpack.c.b16 %v3126, %v3125
    %v3865 = vpack.c.b16 %v3128, %v3127
    %v3866 = vpack.c.b16 %v3130, %v3129
    %v3867 = vpack.c.b16 %v3132, %v3131
    %v3868 = vpack.c.b16 %v3134, %v3133
    %v3869 = vpack.c.b16 %v3136, %v3135
    %v3870 = vpack.c.b16 %v3138, %v3137
    %v3871 = vpack.c.b16 %v3140, %v3139
    %v3872 = vpack.c.b16 %v3142, %v3141
    %v3873 = vpack.c.b16 %v3144, %v3143
    %v3874 = vpack.c.b16 %v3146, %v3145
    %v3875 = vpack.c.b16 %v3148, %v3147
    %v3876 = vpack.c.b16 %v3150, %v3149
    %v3877 = vpack.c.b16 %v3152, %v3151
    %v3878 = vpack.c.b16 %v3154, %v3153
    %v3879 = vpack.c.b16 %v3156, %v3155
    %v3880 = vpack.c.b16 %v3158, %v3157
    %v3881 = vpack.c.b16 %v3160, %v3159
    %v3882 = vpack.c.b16 %v3162, %v3161
    %v3883 = vpack.c.b16 %v3164, %v3163
    %v3884 = vpack.c.b16 %v3166, %v3165
    %v3885 = vpack.c.b16 %v3168, %v3167
    %v3886 = vpack.c.b16 %v3170, %v3169
    %v3887 = vpack.c.b16 %v3172, %v3171
    %v3888 = vpack.c.b16 %v3174, %v3173
    %v3889 = vpack.c.b16 %v3176, %v3175
    %v3890 = vpack.c.b16 %v3178, %v3177
    %v3891 = vpack.c.b16 %v3180, %v3179
    %v3892 = vpack.c.b16 %v3182, %v3181
    %v3893 = vpack.c.b16 %v3184, %v3183
    %v3894 = vpack.c.b16 %v3186, %v3185
    %v3895 = vpack.c.b16 %v3188, %v3187
    %v3896 = vpack.c.b16 %v3190, %v3189
    %v3897 = vpack.c.b16 %v3192, %v3191
    %v3898 = vpack.c.b16 %v3194, %v3193
    %v3899 = vpack.c.b16 %v3196, %v3195
    %v3900 = vpack.c.b16 %v3198, %v3197
    %v3901 = vpack.c.b16 %v3200, %v3199
    %v3902 = vpack.c.b16 %v3202, %v3201
    %v3903 = vpack.c.b16 %v3204, %v3203
    %v3904 = vpack.c.b16 %v3206, %v3205
    %v3905 = vpack.c.b16 %v3208, %v3207
    %v3906 = vpack.c.b16 %v3210, %v3209
    %v3907 = vpack.c.b16 %v3212, %v3211
    %v3908 = vpack.c.b16 %v3214, %v3213
    %v3909 = vpack.c.b16 %v3216, %v3215
    %v3910 = vpack.c.b16 %v3218, %v3217
    %v3911 = vpack.c.b16 %v3220, %v3219
    %v3912 = vpack.c.b16 %v3222, %v3221
    %v3913 = vpack.c.b16 %v3224, %v3223
    %v3914 = vpack.c.b16 %v3226, %v3225
    %v3915 = vpack.c.b16 %v3228, %v3227
    %v3916 = vpack.c.b16 %v3230, %v3229
    %v3917 = vpack.c.b16 %v3232, %v3231
    %v3918 = vpack.c.b16 %v3234, %v3233
    %v3919 = vpack.c.b16 %v3236, %v3235
    %v3920 = vpack.c.b16 %v3238, %v3237
    %v3921 = vpack.c.b16 %v3240, %v3239
    %v3922 = vpack.c.b16 %v3242, %v3241
    %v3923 = vpack.c.b16 %v3244, %v3243
    %v3924 = vpack.c.b16 %v3246, %v3245
    %v3925 = vpack.c.b16 %v3248, %v3247
    %v3926 = vpack.c.b16 %v3250, %v3249
    %v3927 = vpack.c.b16 %v3252, %v3251
    %v3928 = vpack.c.b16 %v3254, %v3253
    %v3929 = vpack.c.b16 %v3256, %v3255
    %v3930 = vpack.c.b16 %v3258, %v3257
    %v3931 = vpack.c.b16 %v3260, %v3259
    %v3932 = vpack.c.b16 %v3262, %v3261
    %v3933 = vpack.c.b16 %v3264, %v3263
    %v3934 = vpack.c.b16 %v3266, %v3265
    %v3935 = vpack.c.b16 %v3268, %v3267
    %v3936 = vpack.c.b16 %v3270, %v3269
    %v3937 = vpack.c.b16 %v3272, %v3271
    %v3938 = vpack.c.b16 %v3274, %v3273
    %v3939 = vpack.c.b16 %v3276, %v3275
    %v3940 = vpack.c.b16 %v3278, %v3277
    %v3941 = vpack.c.b16 %v3280, %v3279
    %v3942 = vpack.c.b16 %v3282, %v3281
    %v3943 = vpack.c.b16 %v3284, %v3283
    %v3944 = vpack.c.b16 %v3286, %v3285
    %v3945 = vpack.c.b16 %v3288, %v3287
    %v3946 = vpack.c.b16 %v3290, %v3289
    %v3947 = vpack.c.b16 %v3292, %v3291
    %v3948 = vpack.c.b16 %v3294, %v3293
    %v3949 = vpack.c.b16 %v3296, %v3295
    %v3950 = vpack.c.b16 %v3298, %v3297
    %v3951 = vpack.c.b16 %v3300, %v3299
    %v3952 = vpack.c.b16 %v3302, %v3301
    %v3953 = vpack.c.b16 %v3304, %v3303
    %v3954 = vpack.c.b16 %v3306, %v3305
    %v3955 = vpack.c.b16 %v3308, %v3307
    %v3956 = vpack.c.b16 %v3310, %v3309
    %v3957 = vpack.c.b16 %v3312, %v3311
    %v3958 = vpack.c.b16 %v3314, %v3313
    %v3959 = vpack.c.b16 %v3316, %v3315
    %v3960 = vpack.c.b16 %v3318, %v3317
    %v3961 = vpack.c.b16 %v3320, %v3319
    %v3962 = vpack.c.b16 %v3322, %v3321
    %v3963 = vpack.c.b16 %v3324, %v3323
    %v3964 = vpack.c.b16 %v3326, %v3325
    %v3965 = vpack.c.b16 %v3328, %v3327
    %v3966 = vpack.c.b16 %v3330, %v3329
    %v3967 = vpack.c.b16 %v3332, %v3331
    %v3968 = vpack.c.b16 %v3334, %v3333
    %v3969 = vpack.c.b16 %v3336, %v3335
    %v3970 = vpack.c.b16 %v3338, %v3337
    %v3971 = vpack.c.b16 %v3340, %v3339
    %v3972 = vpack.c.b16 %v3342, %v3341
    %v3973 = vpack.c.b16 %v3344, %v3343
    %v3974 = vpack.c.b16 %v3346, %v3345
    %v3975 = vpack.c.b16 %v3348, %v3347
    %v3976 = vpack.c.b16 %v3350, %v3349
    %v3977 = vpack.c.b16 %v3352, %v3351
    %v3978 = vpack.c.b16 %v3354, %v3353
    %v3979 = vpack.c.b16 %v3356, %v3355
    %v3980 = vpack.c.b16 %v3358, %v3357
    %v3981 = vpack.c.b16 %v3360, %v3359
    %v3982 = vpack.c.b16 %v3362, %v3361
    %v3983 = vpack.c.b16 %v3364, %v3363
    %v3984 = vpack.c.b16 %v3366, %v3365
    %v3985 = vpack.c.b16 %v3368, %v3367
    %v3986 = vpack.c.b16 %v3370, %v3369
    %v3987 = vpack.c.b16 %v3372, %v3371
    %v3988 = vpack.c.b16 %v3374, %v3373
    %v3989 = vpack.c.b16 %v3376, %v3375
    %v3990 = vpack.c.b16 %v3378, %v3377
    %v3991 = vpack.c.b16 %v3380, %v3379
    %v3992 = vpack.c.b16 %v3382, %v3381
    %v3993 = vpack.c.b16 %v3384, %v3383
    %v3994 = vpack.c.b16 %v3386, %v3385
    %v3995 = vpack.c.b16 %v3388, %v3387
    %v3996 = vpack.c.b16 %v3390, %v3389
    %v3997 = vpack.c.b16 %v3392, %v3391
    %v3998 = vpack.c.b16 %v3394, %v3393
    %v3999 = vpack.c.b16 %v3396, %v3395
    %v4000 = vpack.c.b16 %v3398, %v3397
    %v4001 = vpack.c.b16 %v3400, %v3399
    %v4002 = vpack.c.b16 %v3402, %v3401
    %v4003 = vpack.c.b16 %v3404, %v3403
    %v4004 = vpack.c.b16 %v3406, %v3405
    %v4005 = vpack.c.b16 %v3408, %v3407
    %v4006 = vpack.c.b16 %v3410, %v3409
    %v4007 = vpack.c.b16 %v3412, %v3411
    %v4008 = vpack.c.b16 %v3414, %v3413
    %v4009 = vpack.c.b16 %v3416, %v3415
    %v4010 = vpack.c.b16 %v3418, %v3417
    %v4011 = vpack.c.b16 %v3420, %v3419
    %v4012 = vpack.c.b16 %v3422, %v3421
    %v4013 = vpack.c.b16 %v3424, %v3423
    %v4014 = vpack.c.b16 %v3426, %v3425
    %v4015 = vpack.c.b16 %v3428, %v3427
    %v4016 = vpack.c.b16 %v3430, %v3429
    %v4017 = vpack.c.b16 %v3432, %v3431
    %v4018 = vpack.c.b16 %v3434, %v3433
    %v4019 = vpack.c.b16 %v3436, %v3435
    %v4020 = vpack.c.b16 %v3438, %v3437
    %v4021 = vpack.c.b16 %v3440, %v3439
    %v4022 = vpack.c.b16 %v3442, %v3441
    %v4023 = vpack.c.b16 %v3444, %v3443
    %v4024 = vpack.c.b16 %v3446, %v3445
    %v4025 = vpack.c.b16 %v3448, %v3447
    %v4026 = vpack.c.b16 %v3450, %v3449
    %v4027 = vpack.c.b16 %v3452, %v3451
    %v4028 = vpack.c.b16 %v3454, %v3453
    %v4029 = vpack.c.b16 %v3456, %v3455
    %v4030 = vpack.c.b16 %v3458, %v3457
    %v4031 = vpack.c.b16 %v3460, %v3459
    %v4032 = vpack.c.b16 %v3462, %v3461
    %v4033 = vpack.c.b16 %v3464, %v3463
    %v4034 = vpack.c.b16 %v3466, %v3465
    %v4035 = vpack.c.b16 %v3468, %v3467
    %v4036 = vpack.c.b16 %v3470, %v3469
    %v4037 = vpack.c.b16 %v3472, %v3471
    %v4038 = vpack.c.b16 %v3474, %v3473
    %v4039 = vpack.c.b16 %v3476, %v3475
    %v4040 = vpack.c.b16 %v3478, %v3477
    %v4041 = vpack.c.b16 %v3480, %v3479
    %v4042 = vpack.c.b16 %v3482, %v3481
    %v4043 = vpack.c.b16 %v3484, %v3483
    %v4044 = vpack.c.b16 %v3486, %v3485
    %v4045 = vpack.c.b16 %v3488, %v3487
    %v4046 = vpack.c.b16 %v3490, %v3489
    %v4047 = vpack.c.b16 %v3492, %v3491
    %v4048 = vpack.c.b16 %v3494, %v3493
    %v4049 = vpack.c.b16 %v3496, %v3495
    %v4050 = vpack.c.b16 %v3498, %v3497
    %v4051 = vpack.c.b16 %v3500, %v3499
    %v4052 = vpack.c.b16 %v3502, %v3501
    %v4053 = vpack.c.b16 %v3504, %v3503
    %v4054 = vpack.c.b16 %v3506, %v3505
    %v4055 = vpack.c.b16 %v3508, %v3507
    %v4056 = vpack.c.b16 %v3510, %v3509
    %v4057 = vpack.c.b16 %v3512, %v3511
    %v4058 = vpack.c.b16 %v3514, %v3513
    %v4059 = vpack.c.b16 %v3516, %v3515
    %v4060 = vpack.c.b16 %v3518, %v3517
    %v4061 = vpack.c.b16 %v3520, %v3519
    %v4062 = vpack.c.b16 %v3522, %v3521
    %v4063 = vpack.c.b16 %v3524, %v3523
    %v4064 = vpack.c.b16 %v3526, %v3525
    %v4065 = vpack.c.b16 %v3528, %v3527
    %v4066 = vpack.c.b16 %v3530, %v3529
    %v4067 = vpack.c.b16 %v3532, %v3531
    %v4068 = vpack.c.b16 %v3534, %v3533
    %v4069 = vpack.c.b16 %v3536, %v3535
    %v4070 = vpack.c.b16 %v3538, %v3537
    %v4071 = vpack.c.b16 %v3540, %v3539
    %v4072 = vpack.c.b16 %v3542, %v3541
    %v4073 = vpack.c.b16 %v3544, %v3543
    %v4074 = vpack.c.b16 %v3546, %v3545
    %v4075 = vpack.c.b16 %v3548, %v3547
    %v4076 = vpack.c.b16 %v3550, %v3549
    %v4077 = vpack.c.b16 %v3552, %v3551
    %v4078 = vpack.c.b16 %v3554, %v3553
    %v4079 = vpack.c.b16 %v3556, %v3555
    %v4080 = vpack.c.b16 %v3558, %v3557
    %v4081 = vpack.c.b16 %v3560, %v3559
    %v4082 = vpack.c.b16 %v3562, %v3561
    %v4083 = vpack.c.b16 %v3564, %v3563
    %v4084 = vpack.c.b16 %v3566, %v3565
    %v4085 = vpack.c.b16 %v3568, %v3567
    %v4086 = vpack.c.b16 %v3570, %v3569
    %v4087 = vpack.c.b16 %v3572, %v3571
    %v4088 = vpack.c.b16 %v3574, %v3573
    %v4089 = vpack.c.b16 %v3576, %v3575
    %v4090 = vpack.c.b16 %v3578, %v3577
    %4603 = vmatprep.subr.bf16.mxu0 0
    %4604 = vmatpush1.bf16.msra.mxu0 %v3586
    %4605 = vmatprep.subr.bf16.mxu0 0
    %4606 = vmatpush1.bf16.msra.mxu0 %v3585
    %4607 = vmatprep.subr.bf16.mxu0 0
    %4608 = vmatpush1.bf16.msra.mxu0 %v3584
    %4609 = vmatprep.subr.bf16.mxu0 0
    %4610 = vmatpush1.bf16.msra.mxu0 %v3583
    %4611 = vmatprep.subr.bf16.mxu0 0
    %4612 = vmatpush1.bf16.msra.mxu0 %v3582
    %4613 = vmatprep.subr.bf16.mxu0 0
    %4614 = vmatpush1.bf16.msra.mxu0 %v3581
    %4615 = vmatprep.subr.bf16.mxu0 0
    %4616 = vmatpush1.bf16.msra.mxu0 %v3580
    %4617 = vmatprep.subr.bf16.mxu0 0
    %4618 = vmatpush1.bf16.msra.mxu0 %v3579
    %4619 = vmatprep.subr.bf16.mxu0 0
    %4620 = vmatpush2.bf16.msra.mxu0 %v3594
    %4621 = vmatprep.subr.bf16.mxu0 0
    %4622 = vmatpush2.bf16.msra.mxu0 %v3593
    %4623 = vmatprep.subr.bf16.mxu0 0
    %4624 = vmatpush2.bf16.msra.mxu0 %v3592
    %4625 = vmatprep.subr.bf16.mxu0 0
    %4626 = vmatpush2.bf16.msra.mxu0 %v3591
    %4627 = vmatprep.subr.bf16.mxu0 0
    %4628 = vmatpush2.bf16.msra.mxu0 %v3590
    %4629 = vmatprep.subr.bf16.mxu0 0
    %4630 = vmatpush2.bf16.msra.mxu0 %v3589
    %4631 = vmatprep.subr.bf16.mxu0 0
    %4632 = vmatpush2.bf16.msra.mxu0 %v3588
    %4633 = vmatprep.subr.bf16.mxu0 0
    %4634 = vmatpush2.bf16.msra.mxu0 %v3587
    %4635 = vmatprep.mubr.bf16.mxu0 %v1112
    %4636 = vmatmul.mubr.bf16.gmra.mxu0 %v1098
    %v4637 = vpop.f32.mrf.mxu0
    %v4638 = vadd.f32 %v1065, %v4637
    %v4639 = vpop.f32.mrf.mxu0
    %v4640 = vpop.f32.mrf.mxu0
    %v4641 = vpop.f32.mrf.mxu0
    %4642 = vdwg.mxu0
    %4643 = vmatprep.subr.bf16.mxu0 0
    %4644 = vmatpush1.bf16.msra.mxu0 %v3602
    %4645 = vmatprep.subr.bf16.mxu0 0
    %4646 = vmatpush1.bf16.msra.mxu0 %v3601
    %4647 = vmatprep.subr.bf16.mxu0 0
    %4648 = vmatpush1.bf16.msra.mxu0 %v3600
    %4649 = vmatprep.subr.bf16.mxu0 0
    %4650 = vmatpush1.bf16.msra.mxu0 %v3599
    %4651 = vmatprep.subr.bf16.mxu0 0
    %4652 = vmatpush1.bf16.msra.mxu0 %v3598
    %4653 = vmatprep.subr.bf16.mxu0 0
    %4654 = vmatpush1.bf16.msra.mxu0 %v3597
    %4655 = vmatprep.subr.bf16.mxu0 0
    %4656 = vmatpush1.bf16.msra.mxu0 %v3596
    %4657 = vmatprep.subr.bf16.mxu0 0
    %4658 = vmatpush1.bf16.msra.mxu0 %v3595
    %4659 = vmatprep.subr.bf16.mxu0 0
    %4660 = vmatpush2.bf16.msra.mxu0 %v3610
    %4661 = vmatprep.subr.bf16.mxu0 0
    %4662 = vmatpush2.bf16.msra.mxu0 %v3609
    %4663 = vmatprep.subr.bf16.mxu0 0
    %4664 = vmatpush2.bf16.msra.mxu0 %v3608
    %4665 = vmatprep.subr.bf16.mxu0 0
    %4666 = vmatpush2.bf16.msra.mxu0 %v3607
    %4667 = vmatprep.subr.bf16.mxu0 0
    %4668 = vmatpush2.bf16.msra.mxu0 %v3606
    %4669 = vmatprep.subr.bf16.mxu0 0
    %4670 = vmatpush2.bf16.msra.mxu0 %v3605
    %4671 = vmatprep.subr.bf16.mxu0 0
    %4672 = vmatpush2.bf16.msra.mxu0 %v3604
    %4673 = vmatprep.subr.bf16.mxu0 0
    %4674 = vmatpush2.bf16.msra.mxu0 %v3603
    %4675 = vmatprep.mubr.bf16.mxu0 %v1122
    %4676 = vmatmul.mubr.bf16.gmra.mxu0 %v1120
    %v4677 = vpop.f32.mrf.mxu0
    %v4678 = vadd.f32 %v4638, %v4677
    %v4679 = vpop.f32.mrf.mxu0
    %v4680 = vpop.f32.mrf.mxu0
    %v4681 = vpop.f32.mrf.mxu0
    %4682 = vdwg.mxu0
    %4683 = vmatprep.subr.bf16.mxu0 0
    %4684 = vmatpush1.bf16.msra.mxu0 %v3618
    %4685 = vmatprep.subr.bf16.mxu0 0
    %4686 = vmatpush1.bf16.msra.mxu0 %v3617
    %4687 = vmatprep.subr.bf16.mxu0 0
    %4688 = vmatpush1.bf16.msra.mxu0 %v3616
    %4689 = vmatprep.subr.bf16.mxu0 0
    %4690 = vmatpush1.bf16.msra.mxu0 %v3615
    %4691 = vmatprep.subr.bf16.mxu0 0
    %4692 = vmatpush1.bf16.msra.mxu0 %v3614
    %4693 = vmatprep.subr.bf16.mxu0 0
    %4694 = vmatpush1.bf16.msra.mxu0 %v3613
    %4695 = vmatprep.subr.bf16.mxu0 0
    %4696 = vmatpush1.bf16.msra.mxu0 %v3612
    %4697 = vmatprep.subr.bf16.mxu0 0
    %4698 = vmatpush1.bf16.msra.mxu0 %v3611
    %4699 = vmatprep.subr.bf16.mxu0 0
    %4700 = vmatpush2.bf16.msra.mxu0 %v3626
    %4701 = vmatprep.subr.bf16.mxu0 0
    %4702 = vmatpush2.bf16.msra.mxu0 %v3625
    %4703 = vmatprep.subr.bf16.mxu0 0
    %4704 = vmatpush2.bf16.msra.mxu0 %v3624
    %4705 = vmatprep.subr.bf16.mxu0 0
    %4706 = vmatpush2.bf16.msra.mxu0 %v3623
    %4707 = vmatprep.subr.bf16.mxu0 0
    %4708 = vmatpush2.bf16.msra.mxu0 %v3622
    %4709 = vmatprep.subr.bf16.mxu0 0
    %4710 = vmatpush2.bf16.msra.mxu0 %v3621
    %4711 = vmatprep.subr.bf16.mxu0 0
    %4712 = vmatpush2.bf16.msra.mxu0 %v3620
    %4713 = vmatprep.subr.bf16.mxu0 0
    %4714 = vmatpush2.bf16.msra.mxu0 %v3619
    %4715 = vmatprep.mubr.bf16.mxu0 %v1119
    %4716 = vmatmul.mubr.bf16.gmra.mxu0 %v1105
    %v4717 = vpop.f32.mrf.mxu0
    %v4718 = vadd.f32 %v4678, %v4717
    %v4719 = vpop.f32.mrf.mxu0
    %v4720 = vpop.f32.mrf.mxu0
    %v4721 = vpop.f32.mrf.mxu0
    %4722 = vdwg.mxu0
    %4723 = vmatprep.subr.bf16.mxu0 0
    %4724 = vmatpush1.bf16.msra.mxu0 %v3634
    %4725 = vmatprep.subr.bf16.mxu0 0
    %4726 = vmatpush1.bf16.msra.mxu0 %v3633
    %4727 = vmatprep.subr.bf16.mxu0 0
    %4728 = vmatpush1.bf16.msra.mxu0 %v3632
    %4729 = vmatprep.subr.bf16.mxu0 0
    %4730 = vmatpush1.bf16.msra.mxu0 %v3631
    %4731 = vmatprep.subr.bf16.mxu0 0
    %4732 = vmatpush1.bf16.msra.mxu0 %v3630
    %4733 = vmatprep.subr.bf16.mxu0 0
    %4734 = vmatpush1.bf16.msra.mxu0 %v3629
    %4735 = vmatprep.subr.bf16.mxu0 0
    %4736 = vmatpush1.bf16.msra.mxu0 %v3628
    %4737 = vmatprep.subr.bf16.mxu0 0
    %4738 = vmatpush1.bf16.msra.mxu0 %v3627
    %4739 = vmatprep.subr.bf16.mxu0 0
    %4740 = vmatpush2.bf16.msra.mxu0 %v3642
    %4741 = vmatprep.subr.bf16.mxu0 0
    %4742 = vmatpush2.bf16.msra.mxu0 %v3641
    %4743 = vmatprep.subr.bf16.mxu0 0
    %4744 = vmatpush2.bf16.msra.mxu0 %v3640
    %4745 = vmatprep.subr.bf16.mxu0 0
    %4746 = vmatpush2.bf16.msra.mxu0 %v3639
    %4747 = vmatprep.subr.bf16.mxu0 0
    %4748 = vmatpush2.bf16.msra.mxu0 %v3638
    %4749 = vmatprep.subr.bf16.mxu0 0
    %4750 = vmatpush2.bf16.msra.mxu0 %v3637
    %4751 = vmatprep.subr.bf16.mxu0 0
    %4752 = vmatpush2.bf16.msra.mxu0 %v3636
    %4753 = vmatprep.subr.bf16.mxu0 0
    %4754 = vmatpush2.bf16.msra.mxu0 %v3635
    %4755 = vmatprep.mubr.bf16.mxu0 %v1123
    %4756 = vmatmul.mubr.bf16.gmra.mxu0 %v1121
    %v4757 = vpop.f32.mrf.mxu0
    %v4758 = vadd.f32 %v4718, %v4757
    %v4759 = vpop.f32.mrf.mxu0
    %v4760 = vpop.f32.mrf.mxu0
    %v4761 = vpop.f32.mrf.mxu0
    %4762 = vdwg.mxu0
    %4763 = vmatprep.subr.bf16.mxu0 0
    %4764 = vmatpush1.bf16.msra.mxu0 %v3650
    %4765 = vmatprep.subr.bf16.mxu0 0
    %4766 = vmatpush1.bf16.msra.mxu0 %v3649
    %4767 = vmatprep.subr.bf16.mxu0 0
    %4768 = vmatpush1.bf16.msra.mxu0 %v3648
    %4769 = vmatprep.subr.bf16.mxu0 0
    %4770 = vmatpush1.bf16.msra.mxu0 %v3647
    %4771 = vmatprep.subr.bf16.mxu0 0
    %4772 = vmatpush1.bf16.msra.mxu0 %v3646
    %4773 = vmatprep.subr.bf16.mxu0 0
    %4774 = vmatpush1.bf16.msra.mxu0 %v3645
    %4775 = vmatprep.subr.bf16.mxu0 0
    %4776 = vmatpush1.bf16.msra.mxu0 %v3644
    %4777 = vmatprep.subr.bf16.mxu0 0
    %4778 = vmatpush1.bf16.msra.mxu0 %v3643
    %4779 = vmatprep.subr.bf16.mxu0 0
    %4780 = vmatpush2.bf16.msra.mxu0 %v3658
    %4781 = vmatprep.subr.bf16.mxu0 0
    %4782 = vmatpush2.bf16.msra.mxu0 %v3657
    %4783 = vmatprep.subr.bf16.mxu0 0
    %4784 = vmatpush2.bf16.msra.mxu0 %v3656
    %4785 = vmatprep.subr.bf16.mxu0 0
    %4786 = vmatpush2.bf16.msra.mxu0 %v3655
    %4787 = vmatprep.subr.bf16.mxu0 0
    %4788 = vmatpush2.bf16.msra.mxu0 %v3654
    %4789 = vmatprep.subr.bf16.mxu0 0
    %4790 = vmatpush2.bf16.msra.mxu0 %v3653
    %4791 = vmatprep.subr.bf16.mxu0 0
    %4792 = vmatpush2.bf16.msra.mxu0 %v3652
    %4793 = vmatprep.subr.bf16.mxu0 0
    %4794 = vmatpush2.bf16.msra.mxu0 %v3651
    %4795 = vmatprep.mubr.bf16.mxu0 %v1161
    %4796 = vmatmul.mubr.bf16.gmra.mxu0 %v1147
    %v4797 = vpop.f32.mrf.mxu0
    %v4798 = vadd.f32 %v4758, %v4797
    %v4799 = vpop.f32.mrf.mxu0
    %v4800 = vpop.f32.mrf.mxu0
    %v4801 = vpop.f32.mrf.mxu0
    %4802 = vdwg.mxu0
    %4803 = vmatprep.subr.bf16.mxu0 0
    %4804 = vmatpush1.bf16.msra.mxu0 %v3666
    %4805 = vmatprep.subr.bf16.mxu0 0
    %4806 = vmatpush1.bf16.msra.mxu0 %v3665
    %4807 = vmatprep.subr.bf16.mxu0 0
    %4808 = vmatpush1.bf16.msra.mxu0 %v3664
    %4809 = vmatprep.subr.bf16.mxu0 0
    %4810 = vmatpush1.bf16.msra.mxu0 %v3663
    %4811 = vmatprep.subr.bf16.mxu0 0
    %4812 = vmatpush1.bf16.msra.mxu0 %v3662
    %4813 = vmatprep.subr.bf16.mxu0 0
    %4814 = vmatpush1.bf16.msra.mxu0 %v3661
    %4815 = vmatprep.subr.bf16.mxu0 0
    %4816 = vmatpush1.bf16.msra.mxu0 %v3660
    %4817 = vmatprep.subr.bf16.mxu0 0
    %4818 = vmatpush1.bf16.msra.mxu0 %v3659
    %4819 = vmatprep.subr.bf16.mxu0 0
    %4820 = vmatpush2.bf16.msra.mxu0 %v3674
    %4821 = vmatprep.subr.bf16.mxu0 0
    %4822 = vmatpush2.bf16.msra.mxu0 %v3673
    %4823 = vmatprep.subr.bf16.mxu0 0
    %4824 = vmatpush2.bf16.msra.mxu0 %v3672
    %4825 = vmatprep.subr.bf16.mxu0 0
    %4826 = vmatpush2.bf16.msra.mxu0 %v3671
    %4827 = vmatprep.subr.bf16.mxu0 0
    %4828 = vmatpush2.bf16.msra.mxu0 %v3670
    %4829 = vmatprep.subr.bf16.mxu0 0
    %4830 = vmatpush2.bf16.msra.mxu0 %v3669
    %4831 = vmatprep.subr.bf16.mxu0 0
    %4832 = vmatpush2.bf16.msra.mxu0 %v3668
    %4833 = vmatprep.subr.bf16.mxu0 0
    %4834 = vmatpush2.bf16.msra.mxu0 %v3667
    %4835 = vmatprep.mubr.bf16.mxu0 %v1171
    %4836 = vmatmul.mubr.bf16.gmra.mxu0 %v1169
    %v4837 = vpop.f32.mrf.mxu0
    %v4838 = vadd.f32 %v4798, %v4837
    %v4839 = vpop.f32.mrf.mxu0
    %v4840 = vpop.f32.mrf.mxu0
    %v4841 = vpop.f32.mrf.mxu0
    %4842 = vdwg.mxu0
    %4843 = vmatprep.subr.bf16.mxu0 0
    %4844 = vmatpush1.bf16.msra.mxu0 %v3682
    %4845 = vmatprep.subr.bf16.mxu0 0
    %4846 = vmatpush1.bf16.msra.mxu0 %v3681
    %4847 = vmatprep.subr.bf16.mxu0 0
    %4848 = vmatpush1.bf16.msra.mxu0 %v3680
    %4849 = vmatprep.subr.bf16.mxu0 0
    %4850 = vmatpush1.bf16.msra.mxu0 %v3679
    %4851 = vmatprep.subr.bf16.mxu0 0
    %4852 = vmatpush1.bf16.msra.mxu0 %v3678
    %4853 = vmatprep.subr.bf16.mxu0 0
    %4854 = vmatpush1.bf16.msra.mxu0 %v3677
    %4855 = vmatprep.subr.bf16.mxu0 0
    %4856 = vmatpush1.bf16.msra.mxu0 %v3676
    %4857 = vmatprep.subr.bf16.mxu0 0
    %4858 = vmatpush1.bf16.msra.mxu0 %v3675
    %4859 = vmatprep.subr.bf16.mxu0 0
    %4860 = vmatpush2.bf16.msra.mxu0 %v3690
    %4861 = vmatprep.subr.bf16.mxu0 0
    %4862 = vmatpush2.bf16.msra.mxu0 %v3689
    %4863 = vmatprep.subr.bf16.mxu0 0
    %4864 = vmatpush2.bf16.msra.mxu0 %v3688
    %4865 = vmatprep.subr.bf16.mxu0 0
    %4866 = vmatpush2.bf16.msra.mxu0 %v3687
    %4867 = vmatprep.subr.bf16.mxu0 0
    %4868 = vmatpush2.bf16.msra.mxu0 %v3686
    %4869 = vmatprep.subr.bf16.mxu0 0
    %4870 = vmatpush2.bf16.msra.mxu0 %v3685
    %4871 = vmatprep.subr.bf16.mxu0 0
    %4872 = vmatpush2.bf16.msra.mxu0 %v3684
    %4873 = vmatprep.subr.bf16.mxu0 0
    %4874 = vmatpush2.bf16.msra.mxu0 %v3683
    %4875 = vmatprep.mubr.bf16.mxu0 %v1168
    %4876 = vmatmul.mubr.bf16.gmra.mxu0 %v1154
    %v4877 = vpop.f32.mrf.mxu0
    %v4878 = vadd.f32 %v4838, %v4877
    %v4879 = vpop.f32.mrf.mxu0
    %v4880 = vpop.f32.mrf.mxu0
    %v4881 = vpop.f32.mrf.mxu0
    %4882 = vdwg.mxu0
    %4883 = vmatprep.subr.bf16.mxu0 0
    %4884 = vmatpush1.bf16.msra.mxu0 %v3698
    %4885 = vmatprep.subr.bf16.mxu0 0
    %4886 = vmatpush1.bf16.msra.mxu0 %v3697
    %4887 = vmatprep.subr.bf16.mxu0 0
    %4888 = vmatpush1.bf16.msra.mxu0 %v3696
    %4889 = vmatprep.subr.bf16.mxu0 0
    %4890 = vmatpush1.bf16.msra.mxu0 %v3695
    %4891 = vmatprep.subr.bf16.mxu0 0
    %4892 = vmatpush1.bf16.msra.mxu0 %v3694
    %4893 = vmatprep.subr.bf16.mxu0 0
    %4894 = vmatpush1.bf16.msra.mxu0 %v3693
    %4895 = vmatprep.subr.bf16.mxu0 0
    %4896 = vmatpush1.bf16.msra.mxu0 %v3692
    %4897 = vmatprep.subr.bf16.mxu0 0
    %4898 = vmatpush1.bf16.msra.mxu0 %v3691
    %4899 = vmatprep.subr.bf16.mxu0 0
    %4900 = vmatpush2.bf16.msra.mxu0 %v3706
    %4901 = vmatprep.subr.bf16.mxu0 0
    %4902 = vmatpush2.bf16.msra.mxu0 %v3705
    %4903 = vmatprep.subr.bf16.mxu0 0
    %4904 = vmatpush2.bf16.msra.mxu0 %v3704
    %4905 = vmatprep.subr.bf16.mxu0 0
    %4906 = vmatpush2.bf16.msra.mxu0 %v3703
    %4907 = vmatprep.subr.bf16.mxu0 0
    %4908 = vmatpush2.bf16.msra.mxu0 %v3702
    %4909 = vmatprep.subr.bf16.mxu0 0
    %4910 = vmatpush2.bf16.msra.mxu0 %v3701
    %4911 = vmatprep.subr.bf16.mxu0 0
    %4912 = vmatpush2.bf16.msra.mxu0 %v3700
    %4913 = vmatprep.subr.bf16.mxu0 0
    %4914 = vmatpush2.bf16.msra.mxu0 %v3699
    %4915 = vmatprep.mubr.bf16.mxu0 %v1172
    %4916 = vmatmul.mubr.bf16.gmra.mxu0 %v1170
    %v4917 = vpop.f32.mrf.mxu0
    %v4918 = vadd.f32 %v4878, %v4917
    %v4919 = vpop.f32.mrf.mxu0
    %v4920 = vpop.f32.mrf.mxu0
    %v4921 = vpop.f32.mrf.mxu0
    %4922 = vdwg.mxu0
    %4923 = vmatprep.subr.bf16.mxu0 0
    %4924 = vmatpush1.bf16.msra.mxu0 %v3714
    %4925 = vmatprep.subr.bf16.mxu0 0
    %4926 = vmatpush1.bf16.msra.mxu0 %v3713
    %4927 = vmatprep.subr.bf16.mxu0 0
    %4928 = vmatpush1.bf16.msra.mxu0 %v3712
    %4929 = vmatprep.subr.bf16.mxu0 0
    %4930 = vmatpush1.bf16.msra.mxu0 %v3711
    %4931 = vmatprep.subr.bf16.mxu0 0
    %4932 = vmatpush1.bf16.msra.mxu0 %v3710
    %4933 = vmatprep.subr.bf16.mxu0 0
    %4934 = vmatpush1.bf16.msra.mxu0 %v3709
    %4935 = vmatprep.subr.bf16.mxu0 0
    %4936 = vmatpush1.bf16.msra.mxu0 %v3708
    %4937 = vmatprep.subr.bf16.mxu0 0
    %4938 = vmatpush1.bf16.msra.mxu0 %v3707
    %4939 = vmatprep.subr.bf16.mxu0 0
    %4940 = vmatpush2.bf16.msra.mxu0 %v3722
    %4941 = vmatprep.subr.bf16.mxu0 0
    %4942 = vmatpush2.bf16.msra.mxu0 %v3721
    %4943 = vmatprep.subr.bf16.mxu0 0
    %4944 = vmatpush2.bf16.msra.mxu0 %v3720
    %4945 = vmatprep.subr.bf16.mxu0 0
    %4946 = vmatpush2.bf16.msra.mxu0 %v3719
    %4947 = vmatprep.subr.bf16.mxu0 0
    %4948 = vmatpush2.bf16.msra.mxu0 %v3718
    %4949 = vmatprep.subr.bf16.mxu0 0
    %4950 = vmatpush2.bf16.msra.mxu0 %v3717
    %4951 = vmatprep.subr.bf16.mxu0 0
    %4952 = vmatpush2.bf16.msra.mxu0 %v3716
    %4953 = vmatprep.subr.bf16.mxu0 0
    %4954 = vmatpush2.bf16.msra.mxu0 %v3715
    %4955 = vmatprep.mubr.bf16.mxu0 %v1210
    %4956 = vmatmul.mubr.bf16.gmra.mxu0 %v1196
    %v4957 = vpop.f32.mrf.mxu0
    %v4958 = vadd.f32 %v4918, %v4957
    %v4959 = vpop.f32.mrf.mxu0
    %v4960 = vpop.f32.mrf.mxu0
    %v4961 = vpop.f32.mrf.mxu0
    %4962 = vdwg.mxu0
    %4963 = vmatprep.subr.bf16.mxu0 0
    %4964 = vmatpush1.bf16.msra.mxu0 %v3730
    %4965 = vmatprep.subr.bf16.mxu0 0
    %4966 = vmatpush1.bf16.msra.mxu0 %v3729
    %4967 = vmatprep.subr.bf16.mxu0 0
    %4968 = vmatpush1.bf16.msra.mxu0 %v3728
    %4969 = vmatprep.subr.bf16.mxu0 0
    %4970 = vmatpush1.bf16.msra.mxu0 %v3727
    %4971 = vmatprep.subr.bf16.mxu0 0
    %4972 = vmatpush1.bf16.msra.mxu0 %v3726
    %4973 = vmatprep.subr.bf16.mxu0 0
    %4974 = vmatpush1.bf16.msra.mxu0 %v3725
    %4975 = vmatprep.subr.bf16.mxu0 0
    %4976 = vmatpush1.bf16.msra.mxu0 %v3724
    %4977 = vmatprep.subr.bf16.mxu0 0
    %4978 = vmatpush1.bf16.msra.mxu0 %v3723
    %4979 = vmatprep.subr.bf16.mxu0 0
    %4980 = vmatpush2.bf16.msra.mxu0 %v3738
    %4981 = vmatprep.subr.bf16.mxu0 0
    %4982 = vmatpush2.bf16.msra.mxu0 %v3737
    %4983 = vmatprep.subr.bf16.mxu0 0
    %4984 = vmatpush2.bf16.msra.mxu0 %v3736
    %4985 = vmatprep.subr.bf16.mxu0 0
    %4986 = vmatpush2.bf16.msra.mxu0 %v3735
    %4987 = vmatprep.subr.bf16.mxu0 0
    %4988 = vmatpush2.bf16.msra.mxu0 %v3734
    %4989 = vmatprep.subr.bf16.mxu0 0
    %4990 = vmatpush2.bf16.msra.mxu0 %v3733
    %4991 = vmatprep.subr.bf16.mxu0 0
    %4992 = vmatpush2.bf16.msra.mxu0 %v3732
    %4993 = vmatprep.subr.bf16.mxu0 0
    %4994 = vmatpush2.bf16.msra.mxu0 %v3731
    %4995 = vmatprep.mubr.bf16.mxu0 %v1220
    %4996 = vmatmul.mubr.bf16.gmra.mxu0 %v1218
    %v4997 = vpop.f32.mrf.mxu0
    %v4998 = vadd.f32 %v4958, %v4997
    %v4999 = vpop.f32.mrf.mxu0
    %v5000 = vpop.f32.mrf.mxu0
    %v5001 = vpop.f32.mrf.mxu0
    %5002 = vdwg.mxu0
    %5003 = vmatprep.subr.bf16.mxu0 0
    %5004 = vmatpush1.bf16.msra.mxu0 %v3746
    %5005 = vmatprep.subr.bf16.mxu0 0
    %5006 = vmatpush1.bf16.msra.mxu0 %v3745
    %5007 = vmatprep.subr.bf16.mxu0 0
    %5008 = vmatpush1.bf16.msra.mxu0 %v3744
    %5009 = vmatprep.subr.bf16.mxu0 0
    %5010 = vmatpush1.bf16.msra.mxu0 %v3743
    %5011 = vmatprep.subr.bf16.mxu0 0
    %5012 = vmatpush1.bf16.msra.mxu0 %v3742
    %5013 = vmatprep.subr.bf16.mxu0 0
    %5014 = vmatpush1.bf16.msra.mxu0 %v3741
    %5015 = vmatprep.subr.bf16.mxu0 0
    %5016 = vmatpush1.bf16.msra.mxu0 %v3740
    %5017 = vmatprep.subr.bf16.mxu0 0
    %5018 = vmatpush1.bf16.msra.mxu0 %v3739
    %5019 = vmatprep.subr.bf16.mxu0 0
    %5020 = vmatpush2.bf16.msra.mxu0 %v3754
    %5021 = vmatprep.subr.bf16.mxu0 0
    %5022 = vmatpush2.bf16.msra.mxu0 %v3753
    %5023 = vmatprep.subr.bf16.mxu0 0
    %5024 = vmatpush2.bf16.msra.mxu0 %v3752
    %5025 = vmatprep.subr.bf16.mxu0 0
    %5026 = vmatpush2.bf16.msra.mxu0 %v3751
    %5027 = vmatprep.subr.bf16.mxu0 0
    %5028 = vmatpush2.bf16.msra.mxu0 %v3750
    %5029 = vmatprep.subr.bf16.mxu0 0
    %5030 = vmatpush2.bf16.msra.mxu0 %v3749
    %5031 = vmatprep.subr.bf16.mxu0 0
    %5032 = vmatpush2.bf16.msra.mxu0 %v3748
    %5033 = vmatprep.subr.bf16.mxu0 0
    %5034 = vmatpush2.bf16.msra.mxu0 %v3747
    %5035 = vmatprep.mubr.bf16.mxu0 %v1217
    %5036 = vmatmul.mubr.bf16.gmra.mxu0 %v1203
    %v5037 = vpop.f32.mrf.mxu0
    %v5038 = vadd.f32 %v4998, %v5037
    %v5039 = vpop.f32.mrf.mxu0
    %v5040 = vpop.f32.mrf.mxu0
    %v5041 = vpop.f32.mrf.mxu0
    %5042 = vdwg.mxu0
    %5043 = vmatprep.subr.bf16.mxu0 0
    %5044 = vmatpush1.bf16.msra.mxu0 %v3762
    %5045 = vmatprep.subr.bf16.mxu0 0
    %5046 = vmatpush1.bf16.msra.mxu0 %v3761
    %5047 = vmatprep.subr.bf16.mxu0 0
    %5048 = vmatpush1.bf16.msra.mxu0 %v3760
    %5049 = vmatprep.subr.bf16.mxu0 0
    %5050 = vmatpush1.bf16.msra.mxu0 %v3759
    %5051 = vmatprep.subr.bf16.mxu0 0
    %5052 = vmatpush1.bf16.msra.mxu0 %v3758
    %5053 = vmatprep.subr.bf16.mxu0 0
    %5054 = vmatpush1.bf16.msra.mxu0 %v3757
    %5055 = vmatprep.subr.bf16.mxu0 0
    %5056 = vmatpush1.bf16.msra.mxu0 %v3756
    %5057 = vmatprep.subr.bf16.mxu0 0
    %5058 = vmatpush1.bf16.msra.mxu0 %v3755
    %5059 = vmatprep.subr.bf16.mxu0 0
    %5060 = vmatpush2.bf16.msra.mxu0 %v3770
    %5061 = vmatprep.subr.bf16.mxu0 0
    %5062 = vmatpush2.bf16.msra.mxu0 %v3769
    %5063 = vmatprep.subr.bf16.mxu0 0
    %5064 = vmatpush2.bf16.msra.mxu0 %v3768
    %5065 = vmatprep.subr.bf16.mxu0 0
    %5066 = vmatpush2.bf16.msra.mxu0 %v3767
    %5067 = vmatprep.subr.bf16.mxu0 0
    %5068 = vmatpush2.bf16.msra.mxu0 %v3766
    %5069 = vmatprep.subr.bf16.mxu0 0
    %5070 = vmatpush2.bf16.msra.mxu0 %v3765
    %5071 = vmatprep.subr.bf16.mxu0 0
    %5072 = vmatpush2.bf16.msra.mxu0 %v3764
    %5073 = vmatprep.subr.bf16.mxu0 0
    %5074 = vmatpush2.bf16.msra.mxu0 %v3763
    %5075 = vmatprep.mubr.bf16.mxu0 %v1221
    %5076 = vmatmul.mubr.bf16.gmra.mxu0 %v1219
    %v5077 = vpop.f32.mrf.mxu0
    %v5078 = vadd.f32 %v5038, %v5077
    %v5079 = vpop.f32.mrf.mxu0
    %v5080 = vpop.f32.mrf.mxu0
    %v5081 = vpop.f32.mrf.mxu0
    %5082 = vdwg.mxu0
    %5083 = vmatprep.subr.bf16.mxu0 0
    %5084 = vmatpush1.bf16.msra.mxu0 %v3778
    %5085 = vmatprep.subr.bf16.mxu0 0
    %5086 = vmatpush1.bf16.msra.mxu0 %v3777
    %5087 = vmatprep.subr.bf16.mxu0 0
    %5088 = vmatpush1.bf16.msra.mxu0 %v3776
    %5089 = vmatprep.subr.bf16.mxu0 0
    %5090 = vmatpush1.bf16.msra.mxu0 %v3775
    %5091 = vmatprep.subr.bf16.mxu0 0
    %5092 = vmatpush1.bf16.msra.mxu0 %v3774
    %5093 = vmatprep.subr.bf16.mxu0 0
    %5094 = vmatpush1.bf16.msra.mxu0 %v3773
    %5095 = vmatprep.subr.bf16.mxu0 0
    %5096 = vmatpush1.bf16.msra.mxu0 %v3772
    %5097 = vmatprep.subr.bf16.mxu0 0
    %5098 = vmatpush1.bf16.msra.mxu0 %v3771
    %5099 = vmatprep.subr.bf16.mxu0 0
    %5100 = vmatpush2.bf16.msra.mxu0 %v3786
    %5101 = vmatprep.subr.bf16.mxu0 0
    %5102 = vmatpush2.bf16.msra.mxu0 %v3785
    %5103 = vmatprep.subr.bf16.mxu0 0
    %5104 = vmatpush2.bf16.msra.mxu0 %v3784
    %5105 = vmatprep.subr.bf16.mxu0 0
    %5106 = vmatpush2.bf16.msra.mxu0 %v3783
    %5107 = vmatprep.subr.bf16.mxu0 0
    %5108 = vmatpush2.bf16.msra.mxu0 %v3782
    %5109 = vmatprep.subr.bf16.mxu0 0
    %5110 = vmatpush2.bf16.msra.mxu0 %v3781
    %5111 = vmatprep.subr.bf16.mxu0 0
    %5112 = vmatpush2.bf16.msra.mxu0 %v3780
    %5113 = vmatprep.subr.bf16.mxu0 0
    %5114 = vmatpush2.bf16.msra.mxu0 %v3779
    %5115 = vmatprep.mubr.bf16.mxu0 %v1259
    %5116 = vmatmul.mubr.bf16.gmra.mxu0 %v1245
    %v5117 = vpop.f32.mrf.mxu0
    %v5118 = vadd.f32 %v5078, %v5117
    %v5119 = vpop.f32.mrf.mxu0
    %v5120 = vpop.f32.mrf.mxu0
    %v5121 = vpop.f32.mrf.mxu0
    %5122 = vdwg.mxu0
    %5123 = vmatprep.subr.bf16.mxu0 0
    %5124 = vmatpush1.bf16.msra.mxu0 %v3794
    %5125 = vmatprep.subr.bf16.mxu0 0
    %5126 = vmatpush1.bf16.msra.mxu0 %v3793
    %5127 = vmatprep.subr.bf16.mxu0 0
    %5128 = vmatpush1.bf16.msra.mxu0 %v3792
    %5129 = vmatprep.subr.bf16.mxu0 0
    %5130 = vmatpush1.bf16.msra.mxu0 %v3791
    %5131 = vmatprep.subr.bf16.mxu0 0
    %5132 = vmatpush1.bf16.msra.mxu0 %v3790
    %5133 = vmatprep.subr.bf16.mxu0 0
    %5134 = vmatpush1.bf16.msra.mxu0 %v3789
    %5135 = vmatprep.subr.bf16.mxu0 0
    %5136 = vmatpush1.bf16.msra.mxu0 %v3788
    %5137 = vmatprep.subr.bf16.mxu0 0
    %5138 = vmatpush1.bf16.msra.mxu0 %v3787
    %5139 = vmatprep.subr.bf16.mxu0 0
    %5140 = vmatpush2.bf16.msra.mxu0 %v3802
    %5141 = vmatprep.subr.bf16.mxu0 0
    %5142 = vmatpush2.bf16.msra.mxu0 %v3801
    %5143 = vmatprep.subr.bf16.mxu0 0
    %5144 = vmatpush2.bf16.msra.mxu0 %v3800
    %5145 = vmatprep.subr.bf16.mxu0 0
    %5146 = vmatpush2.bf16.msra.mxu0 %v3799
    %5147 = vmatprep.subr.bf16.mxu0 0
    %5148 = vmatpush2.bf16.msra.mxu0 %v3798
    %5149 = vmatprep.subr.bf16.mxu0 0
    %5150 = vmatpush2.bf16.msra.mxu0 %v3797
    %5151 = vmatprep.subr.bf16.mxu0 0
    %5152 = vmatpush2.bf16.msra.mxu0 %v3796
    %5153 = vmatprep.subr.bf16.mxu0 0
    %5154 = vmatpush2.bf16.msra.mxu0 %v3795
    %5155 = vmatprep.mubr.bf16.mxu0 %v1269
    %5156 = vmatmul.mubr.bf16.gmra.mxu0 %v1267
    %v5157 = vpop.f32.mrf.mxu0
    %v5158 = vadd.f32 %v5118, %v5157
    %v5159 = vpop.f32.mrf.mxu0
    %v5160 = vpop.f32.mrf.mxu0
    %v5161 = vpop.f32.mrf.mxu0
    %5162 = vdwg.mxu0
    %5163 = vmatprep.subr.bf16.mxu0 0
    %5164 = vmatpush1.bf16.msra.mxu0 %v3810
    %5165 = vmatprep.subr.bf16.mxu0 0
    %5166 = vmatpush1.bf16.msra.mxu0 %v3809
    %5167 = vmatprep.subr.bf16.mxu0 0
    %5168 = vmatpush1.bf16.msra.mxu0 %v3808
    %5169 = vmatprep.subr.bf16.mxu0 0
    %5170 = vmatpush1.bf16.msra.mxu0 %v3807
    %5171 = vmatprep.subr.bf16.mxu0 0
    %5172 = vmatpush1.bf16.msra.mxu0 %v3806
    %5173 = vmatprep.subr.bf16.mxu0 0
    %5174 = vmatpush1.bf16.msra.mxu0 %v3805
    %5175 = vmatprep.subr.bf16.mxu0 0
    %5176 = vmatpush1.bf16.msra.mxu0 %v3804
    %5177 = vmatprep.subr.bf16.mxu0 0
    %5178 = vmatpush1.bf16.msra.mxu0 %v3803
    %5179 = vmatprep.subr.bf16.mxu0 0
    %5180 = vmatpush2.bf16.msra.mxu0 %v3818
    %5181 = vmatprep.subr.bf16.mxu0 0
    %5182 = vmatpush2.bf16.msra.mxu0 %v3817
    %5183 = vmatprep.subr.bf16.mxu0 0
    %5184 = vmatpush2.bf16.msra.mxu0 %v3816
    %5185 = vmatprep.subr.bf16.mxu0 0
    %5186 = vmatpush2.bf16.msra.mxu0 %v3815
    %5187 = vmatprep.subr.bf16.mxu0 0
    %5188 = vmatpush2.bf16.msra.mxu0 %v3814
    %5189 = vmatprep.subr.bf16.mxu0 0
    %5190 = vmatpush2.bf16.msra.mxu0 %v3813
    %5191 = vmatprep.subr.bf16.mxu0 0
    %5192 = vmatpush2.bf16.msra.mxu0 %v3812
    %5193 = vmatprep.subr.bf16.mxu0 0
    %5194 = vmatpush2.bf16.msra.mxu0 %v3811
    %5195 = vmatprep.mubr.bf16.mxu0 %v1266
    %5196 = vmatmul.mubr.bf16.gmra.mxu0 %v1252
    %v5197 = vpop.f32.mrf.mxu0
    %v5198 = vadd.f32 %v5158, %v5197
    %v5199 = vpop.f32.mrf.mxu0
    %v5200 = vpop.f32.mrf.mxu0
    %v5201 = vpop.f32.mrf.mxu0
    %5202 = vdwg.mxu0
    %5203 = vmatprep.subr.bf16.mxu0 0
    %5204 = vmatpush1.bf16.msra.mxu0 %v3826
    %5205 = vmatprep.subr.bf16.mxu0 0
    %5206 = vmatpush1.bf16.msra.mxu0 %v3825
    %5207 = vmatprep.subr.bf16.mxu0 0
    %5208 = vmatpush1.bf16.msra.mxu0 %v3824
    %5209 = vmatprep.subr.bf16.mxu0 0
    %5210 = vmatpush1.bf16.msra.mxu0 %v3823
    %5211 = vmatprep.subr.bf16.mxu0 0
    %5212 = vmatpush1.bf16.msra.mxu0 %v3822
    %5213 = vmatprep.subr.bf16.mxu0 0
    %5214 = vmatpush1.bf16.msra.mxu0 %v3821
    %5215 = vmatprep.subr.bf16.mxu0 0
    %5216 = vmatpush1.bf16.msra.mxu0 %v3820
    %5217 = vmatprep.subr.bf16.mxu0 0
    %5218 = vmatpush1.bf16.msra.mxu0 %v3819
    %5219 = vmatprep.subr.bf16.mxu0 0
    %5220 = vmatpush2.bf16.msra.mxu0 %v3834
    %5221 = vmatprep.subr.bf16.mxu0 0
    %5222 = vmatpush2.bf16.msra.mxu0 %v3833
    %5223 = vmatprep.subr.bf16.mxu0 0
    %5224 = vmatpush2.bf16.msra.mxu0 %v3832
    %5225 = vmatprep.subr.bf16.mxu0 0
    %5226 = vmatpush2.bf16.msra.mxu0 %v3831
    %5227 = vmatprep.subr.bf16.mxu0 0
    %5228 = vmatpush2.bf16.msra.mxu0 %v3830
    %5229 = vmatprep.subr.bf16.mxu0 0
    %5230 = vmatpush2.bf16.msra.mxu0 %v3829
    %5231 = vmatprep.subr.bf16.mxu0 0
    %5232 = vmatpush2.bf16.msra.mxu0 %v3828
    %5233 = vmatprep.subr.bf16.mxu0 0
    %5234 = vmatpush2.bf16.msra.mxu0 %v3827
    %5235 = vmatprep.mubr.bf16.mxu0 %v1270
    %5236 = vmatmul.mubr.bf16.gmra.mxu0 %v1268
    %v5237 = vpop.f32.mrf.mxu0
    %v5238 = vadd.f32 %v5198, %v5237
    %v5239 = vpop.f32.mrf.mxu0
    %v5240 = vpop.f32.mrf.mxu0
    %v5241 = vpop.f32.mrf.mxu0
    %5242 = vdwg.mxu0
    %5243 = vmatprep.subr.bf16.mxu0 0
    %5244 = vmatpush1.bf16.msra.mxu0 %v3842
    %5245 = vmatprep.subr.bf16.mxu0 0
    %5246 = vmatpush1.bf16.msra.mxu0 %v3841
    %5247 = vmatprep.subr.bf16.mxu0 0
    %5248 = vmatpush1.bf16.msra.mxu0 %v3840
    %5249 = vmatprep.subr.bf16.mxu0 0
    %5250 = vmatpush1.bf16.msra.mxu0 %v3839
    %5251 = vmatprep.subr.bf16.mxu0 0
    %5252 = vmatpush1.bf16.msra.mxu0 %v3838
    %5253 = vmatprep.subr.bf16.mxu0 0
    %5254 = vmatpush1.bf16.msra.mxu0 %v3837
    %5255 = vmatprep.subr.bf16.mxu0 0
    %5256 = vmatpush1.bf16.msra.mxu0 %v3836
    %5257 = vmatprep.subr.bf16.mxu0 0
    %5258 = vmatpush1.bf16.msra.mxu0 %v3835
    %5259 = vmatprep.subr.bf16.mxu0 0
    %5260 = vmatpush2.bf16.msra.mxu0 %v3850
    %5261 = vmatprep.subr.bf16.mxu0 0
    %5262 = vmatpush2.bf16.msra.mxu0 %v3849
    %5263 = vmatprep.subr.bf16.mxu0 0
    %5264 = vmatpush2.bf16.msra.mxu0 %v3848
    %5265 = vmatprep.subr.bf16.mxu0 0
    %5266 = vmatpush2.bf16.msra.mxu0 %v3847
    %5267 = vmatprep.subr.bf16.mxu0 0
    %5268 = vmatpush2.bf16.msra.mxu0 %v3846
    %5269 = vmatprep.subr.bf16.mxu0 0
    %5270 = vmatpush2.bf16.msra.mxu0 %v3845
    %5271 = vmatprep.subr.bf16.mxu0 0
    %5272 = vmatpush2.bf16.msra.mxu0 %v3844
    %5273 = vmatprep.subr.bf16.mxu0 0
    %5274 = vmatpush2.bf16.msra.mxu0 %v3843
    %5275 = vmatprep.mubr.bf16.mxu0 %v1308
    %5276 = vmatmul.mubr.bf16.gmra.mxu0 %v1294
    %v5277 = vpop.f32.mrf.mxu0
    %v5278 = vadd.f32 %v5238, %v5277
    %v5279 = vpop.f32.mrf.mxu0
    %v5280 = vpop.f32.mrf.mxu0
    %v5281 = vpop.f32.mrf.mxu0
    %5282 = vdwg.mxu0
    %5283 = vmatprep.subr.bf16.mxu0 0
    %5284 = vmatpush1.bf16.msra.mxu0 %v3858
    %5285 = vmatprep.subr.bf16.mxu0 0
    %5286 = vmatpush1.bf16.msra.mxu0 %v3857
    %5287 = vmatprep.subr.bf16.mxu0 0
    %5288 = vmatpush1.bf16.msra.mxu0 %v3856
    %5289 = vmatprep.subr.bf16.mxu0 0
    %5290 = vmatpush1.bf16.msra.mxu0 %v3855
    %5291 = vmatprep.subr.bf16.mxu0 0
    %5292 = vmatpush1.bf16.msra.mxu0 %v3854
    %5293 = vmatprep.subr.bf16.mxu0 0
    %5294 = vmatpush1.bf16.msra.mxu0 %v3853
    %5295 = vmatprep.subr.bf16.mxu0 0
    %5296 = vmatpush1.bf16.msra.mxu0 %v3852
    %5297 = vmatprep.subr.bf16.mxu0 0
    %5298 = vmatpush1.bf16.msra.mxu0 %v3851
    %5299 = vmatprep.subr.bf16.mxu0 0
    %5300 = vmatpush2.bf16.msra.mxu0 %v3866
    %5301 = vmatprep.subr.bf16.mxu0 0
    %5302 = vmatpush2.bf16.msra.mxu0 %v3865
    %5303 = vmatprep.subr.bf16.mxu0 0
    %5304 = vmatpush2.bf16.msra.mxu0 %v3864
    %5305 = vmatprep.subr.bf16.mxu0 0
    %5306 = vmatpush2.bf16.msra.mxu0 %v3863
    %5307 = vmatprep.subr.bf16.mxu0 0
    %5308 = vmatpush2.bf16.msra.mxu0 %v3862
    %5309 = vmatprep.subr.bf16.mxu0 0
    %5310 = vmatpush2.bf16.msra.mxu0 %v3861
    %5311 = vmatprep.subr.bf16.mxu0 0
    %5312 = vmatpush2.bf16.msra.mxu0 %v3860
    %5313 = vmatprep.subr.bf16.mxu0 0
    %5314 = vmatpush2.bf16.msra.mxu0 %v3859
    %5315 = vmatprep.mubr.bf16.mxu0 %v1318
    %5316 = vmatmul.mubr.bf16.gmra.mxu0 %v1316
    %v5317 = vpop.f32.mrf.mxu0
    %v5318 = vadd.f32 %v5278, %v5317
    %v5319 = vpop.f32.mrf.mxu0
    %v5320 = vpop.f32.mrf.mxu0
    %v5321 = vpop.f32.mrf.mxu0
    %5322 = vdwg.mxu0
    %5323 = vmatprep.subr.bf16.mxu0 0
    %5324 = vmatpush1.bf16.msra.mxu0 %v3874
    %5325 = vmatprep.subr.bf16.mxu0 0
    %5326 = vmatpush1.bf16.msra.mxu0 %v3873
    %5327 = vmatprep.subr.bf16.mxu0 0
    %5328 = vmatpush1.bf16.msra.mxu0 %v3872
    %5329 = vmatprep.subr.bf16.mxu0 0
    %5330 = vmatpush1.bf16.msra.mxu0 %v3871
    %5331 = vmatprep.subr.bf16.mxu0 0
    %5332 = vmatpush1.bf16.msra.mxu0 %v3870
    %5333 = vmatprep.subr.bf16.mxu0 0
    %5334 = vmatpush1.bf16.msra.mxu0 %v3869
    %5335 = vmatprep.subr.bf16.mxu0 0
    %5336 = vmatpush1.bf16.msra.mxu0 %v3868
    %5337 = vmatprep.subr.bf16.mxu0 0
    %5338 = vmatpush1.bf16.msra.mxu0 %v3867
    %5339 = vmatprep.subr.bf16.mxu0 0
    %5340 = vmatpush2.bf16.msra.mxu0 %v3882
    %5341 = vmatprep.subr.bf16.mxu0 0
    %5342 = vmatpush2.bf16.msra.mxu0 %v3881
    %5343 = vmatprep.subr.bf16.mxu0 0
    %5344 = vmatpush2.bf16.msra.mxu0 %v3880
    %5345 = vmatprep.subr.bf16.mxu0 0
    %5346 = vmatpush2.bf16.msra.mxu0 %v3879
    %5347 = vmatprep.subr.bf16.mxu0 0
    %5348 = vmatpush2.bf16.msra.mxu0 %v3878
    %5349 = vmatprep.subr.bf16.mxu0 0
    %5350 = vmatpush2.bf16.msra.mxu0 %v3877
    %5351 = vmatprep.subr.bf16.mxu0 0
    %5352 = vmatpush2.bf16.msra.mxu0 %v3876
    %5353 = vmatprep.subr.bf16.mxu0 0
    %5354 = vmatpush2.bf16.msra.mxu0 %v3875
    %5355 = vmatprep.mubr.bf16.mxu0 %v1315
    %5356 = vmatmul.mubr.bf16.gmra.mxu0 %v1301
    %v5357 = vpop.f32.mrf.mxu0
    %v5358 = vadd.f32 %v5318, %v5357
    %v5359 = vpop.f32.mrf.mxu0
    %v5360 = vpop.f32.mrf.mxu0
    %v5361 = vpop.f32.mrf.mxu0
    %5362 = vdwg.mxu0
    %5363 = vmatprep.subr.bf16.mxu0 0
    %5364 = vmatpush1.bf16.msra.mxu0 %v3890
    %5365 = vmatprep.subr.bf16.mxu0 0
    %5366 = vmatpush1.bf16.msra.mxu0 %v3889
    %5367 = vmatprep.subr.bf16.mxu0 0
    %5368 = vmatpush1.bf16.msra.mxu0 %v3888
    %5369 = vmatprep.subr.bf16.mxu0 0
    %5370 = vmatpush1.bf16.msra.mxu0 %v3887
    %5371 = vmatprep.subr.bf16.mxu0 0
    %5372 = vmatpush1.bf16.msra.mxu0 %v3886
    %5373 = vmatprep.subr.bf16.mxu0 0
    %5374 = vmatpush1.bf16.msra.mxu0 %v3885
    %5375 = vmatprep.subr.bf16.mxu0 0
    %5376 = vmatpush1.bf16.msra.mxu0 %v3884
    %5377 = vmatprep.subr.bf16.mxu0 0
    %5378 = vmatpush1.bf16.msra.mxu0 %v3883
    %5379 = vmatprep.subr.bf16.mxu0 0
    %5380 = vmatpush2.bf16.msra.mxu0 %v3898
    %5381 = vmatprep.subr.bf16.mxu0 0
    %5382 = vmatpush2.bf16.msra.mxu0 %v3897
    %5383 = vmatprep.subr.bf16.mxu0 0
    %5384 = vmatpush2.bf16.msra.mxu0 %v3896
    %5385 = vmatprep.subr.bf16.mxu0 0
    %5386 = vmatpush2.bf16.msra.mxu0 %v3895
    %5387 = vmatprep.subr.bf16.mxu0 0
    %5388 = vmatpush2.bf16.msra.mxu0 %v3894
    %5389 = vmatprep.subr.bf16.mxu0 0
    %5390 = vmatpush2.bf16.msra.mxu0 %v3893
    %5391 = vmatprep.subr.bf16.mxu0 0
    %5392 = vmatpush2.bf16.msra.mxu0 %v3892
    %5393 = vmatprep.subr.bf16.mxu0 0
    %5394 = vmatpush2.bf16.msra.mxu0 %v3891
    %5395 = vmatprep.mubr.bf16.mxu0 %v1319
    %5396 = vmatmul.mubr.bf16.gmra.mxu0 %v1317
    %v5397 = vpop.f32.mrf.mxu0
    %v5398 = vadd.f32 %v5358, %v5397
    %v5399 = vpop.f32.mrf.mxu0
    %v5400 = vpop.f32.mrf.mxu0
    %v5401 = vpop.f32.mrf.mxu0
    %5402 = vdwg.mxu0
    %5403 = vmatprep.subr.bf16.mxu0 0
    %5404 = vmatpush1.bf16.msra.mxu0 %v3906
    %5405 = vmatprep.subr.bf16.mxu0 0
    %5406 = vmatpush1.bf16.msra.mxu0 %v3905
    %5407 = vmatprep.subr.bf16.mxu0 0
    %5408 = vmatpush1.bf16.msra.mxu0 %v3904
    %5409 = vmatprep.subr.bf16.mxu0 0
    %5410 = vmatpush1.bf16.msra.mxu0 %v3903
    %5411 = vmatprep.subr.bf16.mxu0 0
    %5412 = vmatpush1.bf16.msra.mxu0 %v3902
    %5413 = vmatprep.subr.bf16.mxu0 0
    %5414 = vmatpush1.bf16.msra.mxu0 %v3901
    %5415 = vmatprep.subr.bf16.mxu0 0
    %5416 = vmatpush1.bf16.msra.mxu0 %v3900
    %5417 = vmatprep.subr.bf16.mxu0 0
    %5418 = vmatpush1.bf16.msra.mxu0 %v3899
    %5419 = vmatprep.subr.bf16.mxu0 0
    %5420 = vmatpush2.bf16.msra.mxu0 %v3914
    %5421 = vmatprep.subr.bf16.mxu0 0
    %5422 = vmatpush2.bf16.msra.mxu0 %v3913
    %5423 = vmatprep.subr.bf16.mxu0 0
    %5424 = vmatpush2.bf16.msra.mxu0 %v3912
    %5425 = vmatprep.subr.bf16.mxu0 0
    %5426 = vmatpush2.bf16.msra.mxu0 %v3911
    %5427 = vmatprep.subr.bf16.mxu0 0
    %5428 = vmatpush2.bf16.msra.mxu0 %v3910
    %5429 = vmatprep.subr.bf16.mxu0 0
    %5430 = vmatpush2.bf16.msra.mxu0 %v3909
    %5431 = vmatprep.subr.bf16.mxu0 0
    %5432 = vmatpush2.bf16.msra.mxu0 %v3908
    %5433 = vmatprep.subr.bf16.mxu0 0
    %5434 = vmatpush2.bf16.msra.mxu0 %v3907
    %5435 = vmatprep.mubr.bf16.mxu0 %v1357
    %5436 = vmatmul.mubr.bf16.gmra.mxu0 %v1343
    %v5437 = vpop.f32.mrf.mxu0
    %v5438 = vadd.f32 %v5398, %v5437
    %v5439 = vpop.f32.mrf.mxu0
    %v5440 = vpop.f32.mrf.mxu0
    %v5441 = vpop.f32.mrf.mxu0
    %5442 = vdwg.mxu0
    %5443 = vmatprep.subr.bf16.mxu0 0
    %5444 = vmatpush1.bf16.msra.mxu0 %v3922
    %5445 = vmatprep.subr.bf16.mxu0 0
    %5446 = vmatpush1.bf16.msra.mxu0 %v3921
    %5447 = vmatprep.subr.bf16.mxu0 0
    %5448 = vmatpush1.bf16.msra.mxu0 %v3920
    %5449 = vmatprep.subr.bf16.mxu0 0
    %5450 = vmatpush1.bf16.msra.mxu0 %v3919
    %5451 = vmatprep.subr.bf16.mxu0 0
    %5452 = vmatpush1.bf16.msra.mxu0 %v3918
    %5453 = vmatprep.subr.bf16.mxu0 0
    %5454 = vmatpush1.bf16.msra.mxu0 %v3917
    %5455 = vmatprep.subr.bf16.mxu0 0
    %5456 = vmatpush1.bf16.msra.mxu0 %v3916
    %5457 = vmatprep.subr.bf16.mxu0 0
    %5458 = vmatpush1.bf16.msra.mxu0 %v3915
    %5459 = vmatprep.subr.bf16.mxu0 0
    %5460 = vmatpush2.bf16.msra.mxu0 %v3930
    %5461 = vmatprep.subr.bf16.mxu0 0
    %5462 = vmatpush2.bf16.msra.mxu0 %v3929
    %5463 = vmatprep.subr.bf16.mxu0 0
    %5464 = vmatpush2.bf16.msra.mxu0 %v3928
    %5465 = vmatprep.subr.bf16.mxu0 0
    %5466 = vmatpush2.bf16.msra.mxu0 %v3927
    %5467 = vmatprep.subr.bf16.mxu0 0
    %5468 = vmatpush2.bf16.msra.mxu0 %v3926
    %5469 = vmatprep.subr.bf16.mxu0 0
    %5470 = vmatpush2.bf16.msra.mxu0 %v3925
    %5471 = vmatprep.subr.bf16.mxu0 0
    %5472 = vmatpush2.bf16.msra.mxu0 %v3924
    %5473 = vmatprep.subr.bf16.mxu0 0
    %5474 = vmatpush2.bf16.msra.mxu0 %v3923
    %5475 = vmatprep.mubr.bf16.mxu0 %v1367
    %5476 = vmatmul.mubr.bf16.gmra.mxu0 %v1365
    %v5477 = vpop.f32.mrf.mxu0
    %v5478 = vadd.f32 %v5438, %v5477
    %v5479 = vpop.f32.mrf.mxu0
    %v5480 = vpop.f32.mrf.mxu0
    %v5481 = vpop.f32.mrf.mxu0
    %5482 = vdwg.mxu0
    %5483 = vmatprep.subr.bf16.mxu0 0
    %5484 = vmatpush1.bf16.msra.mxu0 %v3938
    %5485 = vmatprep.subr.bf16.mxu0 0
    %5486 = vmatpush1.bf16.msra.mxu0 %v3937
    %5487 = vmatprep.subr.bf16.mxu0 0
    %5488 = vmatpush1.bf16.msra.mxu0 %v3936
    %5489 = vmatprep.subr.bf16.mxu0 0
    %5490 = vmatpush1.bf16.msra.mxu0 %v3935
    %5491 = vmatprep.subr.bf16.mxu0 0
    %5492 = vmatpush1.bf16.msra.mxu0 %v3934
    %5493 = vmatprep.subr.bf16.mxu0 0
    %5494 = vmatpush1.bf16.msra.mxu0 %v3933
    %5495 = vmatprep.subr.bf16.mxu0 0
    %5496 = vmatpush1.bf16.msra.mxu0 %v3932
    %5497 = vmatprep.subr.bf16.mxu0 0
    %5498 = vmatpush1.bf16.msra.mxu0 %v3931
    %5499 = vmatprep.subr.bf16.mxu0 0
    %5500 = vmatpush2.bf16.msra.mxu0 %v3946
    %5501 = vmatprep.subr.bf16.mxu0 0
    %5502 = vmatpush2.bf16.msra.mxu0 %v3945
    %5503 = vmatprep.subr.bf16.mxu0 0
    %5504 = vmatpush2.bf16.msra.mxu0 %v3944
    %5505 = vmatprep.subr.bf16.mxu0 0
    %5506 = vmatpush2.bf16.msra.mxu0 %v3943
    %5507 = vmatprep.subr.bf16.mxu0 0
    %5508 = vmatpush2.bf16.msra.mxu0 %v3942
    %5509 = vmatprep.subr.bf16.mxu0 0
    %5510 = vmatpush2.bf16.msra.mxu0 %v3941
    %5511 = vmatprep.subr.bf16.mxu0 0
    %5512 = vmatpush2.bf16.msra.mxu0 %v3940
    %5513 = vmatprep.subr.bf16.mxu0 0
    %5514 = vmatpush2.bf16.msra.mxu0 %v3939
    %5515 = vmatprep.mubr.bf16.mxu0 %v1364
    %5516 = vmatmul.mubr.bf16.gmra.mxu0 %v1350
    %v5517 = vpop.f32.mrf.mxu0
    %v5518 = vadd.f32 %v5478, %v5517
    %v5519 = vpop.f32.mrf.mxu0
    %v5520 = vpop.f32.mrf.mxu0
    %v5521 = vpop.f32.mrf.mxu0
    %5522 = vdwg.mxu0
    %5523 = vmatprep.subr.bf16.mxu0 0
    %5524 = vmatpush1.bf16.msra.mxu0 %v3954
    %5525 = vmatprep.subr.bf16.mxu0 0
    %5526 = vmatpush1.bf16.msra.mxu0 %v3953
    %5527 = vmatprep.subr.bf16.mxu0 0
    %5528 = vmatpush1.bf16.msra.mxu0 %v3952
    %5529 = vmatprep.subr.bf16.mxu0 0
    %5530 = vmatpush1.bf16.msra.mxu0 %v3951
    %5531 = vmatprep.subr.bf16.mxu0 0
    %5532 = vmatpush1.bf16.msra.mxu0 %v3950
    %5533 = vmatprep.subr.bf16.mxu0 0
    %5534 = vmatpush1.bf16.msra.mxu0 %v3949
    %5535 = vmatprep.subr.bf16.mxu0 0
    %5536 = vmatpush1.bf16.msra.mxu0 %v3948
    %5537 = vmatprep.subr.bf16.mxu0 0
    %5538 = vmatpush1.bf16.msra.mxu0 %v3947
    %5539 = vmatprep.subr.bf16.mxu0 0
    %5540 = vmatpush2.bf16.msra.mxu0 %v3962
    %5541 = vmatprep.subr.bf16.mxu0 0
    %5542 = vmatpush2.bf16.msra.mxu0 %v3961
    %5543 = vmatprep.subr.bf16.mxu0 0
    %5544 = vmatpush2.bf16.msra.mxu0 %v3960
    %5545 = vmatprep.subr.bf16.mxu0 0
    %5546 = vmatpush2.bf16.msra.mxu0 %v3959
    %5547 = vmatprep.subr.bf16.mxu0 0
    %5548 = vmatpush2.bf16.msra.mxu0 %v3958
    %5549 = vmatprep.subr.bf16.mxu0 0
    %5550 = vmatpush2.bf16.msra.mxu0 %v3957
    %5551 = vmatprep.subr.bf16.mxu0 0
    %5552 = vmatpush2.bf16.msra.mxu0 %v3956
    %5553 = vmatprep.subr.bf16.mxu0 0
    %5554 = vmatpush2.bf16.msra.mxu0 %v3955
    %5555 = vmatprep.mubr.bf16.mxu0 %v1368
    %5556 = vmatmul.mubr.bf16.gmra.mxu0 %v1366
    %v5557 = vpop.f32.mrf.mxu0
    %v5558 = vadd.f32 %v5518, %v5557
    %v5559 = vpop.f32.mrf.mxu0
    %v5560 = vpop.f32.mrf.mxu0
    %v5561 = vpop.f32.mrf.mxu0
    %5562 = vdwg.mxu0
    %5563 = vmatprep.subr.bf16.mxu0 0
    %5564 = vmatpush1.bf16.msra.mxu0 %v3970
    %5565 = vmatprep.subr.bf16.mxu0 0
    %5566 = vmatpush1.bf16.msra.mxu0 %v3969
    %5567 = vmatprep.subr.bf16.mxu0 0
    %5568 = vmatpush1.bf16.msra.mxu0 %v3968
    %5569 = vmatprep.subr.bf16.mxu0 0
    %5570 = vmatpush1.bf16.msra.mxu0 %v3967
    %5571 = vmatprep.subr.bf16.mxu0 0
    %5572 = vmatpush1.bf16.msra.mxu0 %v3966
    %5573 = vmatprep.subr.bf16.mxu0 0
    %5574 = vmatpush1.bf16.msra.mxu0 %v3965
    %5575 = vmatprep.subr.bf16.mxu0 0
    %5576 = vmatpush1.bf16.msra.mxu0 %v3964
    %5577 = vmatprep.subr.bf16.mxu0 0
    %5578 = vmatpush1.bf16.msra.mxu0 %v3963
    %5579 = vmatprep.subr.bf16.mxu0 0
    %5580 = vmatpush2.bf16.msra.mxu0 %v3978
    %5581 = vmatprep.subr.bf16.mxu0 0
    %5582 = vmatpush2.bf16.msra.mxu0 %v3977
    %5583 = vmatprep.subr.bf16.mxu0 0
    %5584 = vmatpush2.bf16.msra.mxu0 %v3976
    %5585 = vmatprep.subr.bf16.mxu0 0
    %5586 = vmatpush2.bf16.msra.mxu0 %v3975
    %5587 = vmatprep.subr.bf16.mxu0 0
    %5588 = vmatpush2.bf16.msra.mxu0 %v3974
    %5589 = vmatprep.subr.bf16.mxu0 0
    %5590 = vmatpush2.bf16.msra.mxu0 %v3973
    %5591 = vmatprep.subr.bf16.mxu0 0
    %5592 = vmatpush2.bf16.msra.mxu0 %v3972
    %5593 = vmatprep.subr.bf16.mxu0 0
    %5594 = vmatpush2.bf16.msra.mxu0 %v3971
    %5595 = vmatprep.mubr.bf16.mxu0 %v1406
    %5596 = vmatmul.mubr.bf16.gmra.mxu0 %v1392
    %v5597 = vpop.f32.mrf.mxu0
    %v5598 = vadd.f32 %v5558, %v5597
    %v5599 = vpop.f32.mrf.mxu0
    %v5600 = vpop.f32.mrf.mxu0
    %v5601 = vpop.f32.mrf.mxu0
    %5602 = vdwg.mxu0
    %5603 = vmatprep.subr.bf16.mxu0 0
    %5604 = vmatpush1.bf16.msra.mxu0 %v3986
    %5605 = vmatprep.subr.bf16.mxu0 0
    %5606 = vmatpush1.bf16.msra.mxu0 %v3985
    %5607 = vmatprep.subr.bf16.mxu0 0
    %5608 = vmatpush1.bf16.msra.mxu0 %v3984
    %5609 = vmatprep.subr.bf16.mxu0 0
    %5610 = vmatpush1.bf16.msra.mxu0 %v3983
    %5611 = vmatprep.subr.bf16.mxu0 0
    %5612 = vmatpush1.bf16.msra.mxu0 %v3982
    %5613 = vmatprep.subr.bf16.mxu0 0
    %5614 = vmatpush1.bf16.msra.mxu0 %v3981
    %5615 = vmatprep.subr.bf16.mxu0 0
    %5616 = vmatpush1.bf16.msra.mxu0 %v3980
    %5617 = vmatprep.subr.bf16.mxu0 0
    %5618 = vmatpush1.bf16.msra.mxu0 %v3979
    %5619 = vmatprep.subr.bf16.mxu0 0
    %5620 = vmatpush2.bf16.msra.mxu0 %v3994
    %5621 = vmatprep.subr.bf16.mxu0 0
    %5622 = vmatpush2.bf16.msra.mxu0 %v3993
    %5623 = vmatprep.subr.bf16.mxu0 0
    %5624 = vmatpush2.bf16.msra.mxu0 %v3992
    %5625 = vmatprep.subr.bf16.mxu0 0
    %5626 = vmatpush2.bf16.msra.mxu0 %v3991
    %5627 = vmatprep.subr.bf16.mxu0 0
    %5628 = vmatpush2.bf16.msra.mxu0 %v3990
    %5629 = vmatprep.subr.bf16.mxu0 0
    %5630 = vmatpush2.bf16.msra.mxu0 %v3989
    %5631 = vmatprep.subr.bf16.mxu0 0
    %5632 = vmatpush2.bf16.msra.mxu0 %v3988
    %5633 = vmatprep.subr.bf16.mxu0 0
    %5634 = vmatpush2.bf16.msra.mxu0 %v3987
    %5635 = vmatprep.mubr.bf16.mxu0 %v1416
    %5636 = vmatmul.mubr.bf16.gmra.mxu0 %v1414
    %v5637 = vpop.f32.mrf.mxu0
    %v5638 = vadd.f32 %v5598, %v5637
    %v5639 = vpop.f32.mrf.mxu0
    %v5640 = vpop.f32.mrf.mxu0
    %v5641 = vpop.f32.mrf.mxu0
    %5642 = vdwg.mxu0
    %5643 = vmatprep.subr.bf16.mxu0 0
    %5644 = vmatpush1.bf16.msra.mxu0 %v4002
    %5645 = vmatprep.subr.bf16.mxu0 0
    %5646 = vmatpush1.bf16.msra.mxu0 %v4001
    %5647 = vmatprep.subr.bf16.mxu0 0
    %5648 = vmatpush1.bf16.msra.mxu0 %v4000
    %5649 = vmatprep.subr.bf16.mxu0 0
    %5650 = vmatpush1.bf16.msra.mxu0 %v3999
    %5651 = vmatprep.subr.bf16.mxu0 0
    %5652 = vmatpush1.bf16.msra.mxu0 %v3998
    %5653 = vmatprep.subr.bf16.mxu0 0
    %5654 = vmatpush1.bf16.msra.mxu0 %v3997
    %5655 = vmatprep.subr.bf16.mxu0 0
    %5656 = vmatpush1.bf16.msra.mxu0 %v3996
    %5657 = vmatprep.subr.bf16.mxu0 0
    %5658 = vmatpush1.bf16.msra.mxu0 %v3995
    %5659 = vmatprep.subr.bf16.mxu0 0
    %5660 = vmatpush2.bf16.msra.mxu0 %v4010
    %5661 = vmatprep.subr.bf16.mxu0 0
    %5662 = vmatpush2.bf16.msra.mxu0 %v4009
    %5663 = vmatprep.subr.bf16.mxu0 0
    %5664 = vmatpush2.bf16.msra.mxu0 %v4008
    %5665 = vmatprep.subr.bf16.mxu0 0
    %5666 = vmatpush2.bf16.msra.mxu0 %v4007
    %5667 = vmatprep.subr.bf16.mxu0 0
    %5668 = vmatpush2.bf16.msra.mxu0 %v4006
    %5669 = vmatprep.subr.bf16.mxu0 0
    %5670 = vmatpush2.bf16.msra.mxu0 %v4005
    %5671 = vmatprep.subr.bf16.mxu0 0
    %5672 = vmatpush2.bf16.msra.mxu0 %v4004
    %5673 = vmatprep.subr.bf16.mxu0 0
    %5674 = vmatpush2.bf16.msra.mxu0 %v4003
    %5675 = vmatprep.mubr.bf16.mxu0 %v1413
    %5676 = vmatmul.mubr.bf16.gmra.mxu0 %v1399
    %v5677 = vpop.f32.mrf.mxu0
    %v5678 = vadd.f32 %v5638, %v5677
    %v5679 = vpop.f32.mrf.mxu0
    %v5680 = vpop.f32.mrf.mxu0
    %v5681 = vpop.f32.mrf.mxu0
    %5682 = vdwg.mxu0
    %5683 = vmatprep.subr.bf16.mxu0 0
    %5684 = vmatpush1.bf16.msra.mxu0 %v4018
    %5685 = vmatprep.subr.bf16.mxu0 0
    %5686 = vmatpush1.bf16.msra.mxu0 %v4017
    %5687 = vmatprep.subr.bf16.mxu0 0
    %5688 = vmatpush1.bf16.msra.mxu0 %v4016
    %5689 = vmatprep.subr.bf16.mxu0 0
    %5690 = vmatpush1.bf16.msra.mxu0 %v4015
    %5691 = vmatprep.subr.bf16.mxu0 0
    %5692 = vmatpush1.bf16.msra.mxu0 %v4014
    %5693 = vmatprep.subr.bf16.mxu0 0
    %5694 = vmatpush1.bf16.msra.mxu0 %v4013
    %5695 = vmatprep.subr.bf16.mxu0 0
    %5696 = vmatpush1.bf16.msra.mxu0 %v4012
    %5697 = vmatprep.subr.bf16.mxu0 0
    %5698 = vmatpush1.bf16.msra.mxu0 %v4011
    %5699 = vmatprep.subr.bf16.mxu0 0
    %5700 = vmatpush2.bf16.msra.mxu0 %v4026
    %5701 = vmatprep.subr.bf16.mxu0 0
    %5702 = vmatpush2.bf16.msra.mxu0 %v4025
    %5703 = vmatprep.subr.bf16.mxu0 0
    %5704 = vmatpush2.bf16.msra.mxu0 %v4024
    %5705 = vmatprep.subr.bf16.mxu0 0
    %5706 = vmatpush2.bf16.msra.mxu0 %v4023
    %5707 = vmatprep.subr.bf16.mxu0 0
    %5708 = vmatpush2.bf16.msra.mxu0 %v4022
    %5709 = vmatprep.subr.bf16.mxu0 0
    %5710 = vmatpush2.bf16.msra.mxu0 %v4021
    %5711 = vmatprep.subr.bf16.mxu0 0
    %5712 = vmatpush2.bf16.msra.mxu0 %v4020
    %5713 = vmatprep.subr.bf16.mxu0 0
    %5714 = vmatpush2.bf16.msra.mxu0 %v4019
    %5715 = vmatprep.mubr.bf16.mxu0 %v1417
    %5716 = vmatmul.mubr.bf16.gmra.mxu0 %v1415
    %v5717 = vpop.f32.mrf.mxu0
    %v5718 = vadd.f32 %v5678, %v5717
    %v5719 = vpop.f32.mrf.mxu0
    %v5720 = vpop.f32.mrf.mxu0
    %v5721 = vpop.f32.mrf.mxu0
    %5722 = vdwg.mxu0
    %5723 = vmatprep.subr.bf16.mxu0 0
    %5724 = vmatpush1.bf16.msra.mxu0 %v4034
    %5725 = vmatprep.subr.bf16.mxu0 0
    %5726 = vmatpush1.bf16.msra.mxu0 %v4033
    %5727 = vmatprep.subr.bf16.mxu0 0
    %5728 = vmatpush1.bf16.msra.mxu0 %v4032
    %5729 = vmatprep.subr.bf16.mxu0 0
    %5730 = vmatpush1.bf16.msra.mxu0 %v4031
    %5731 = vmatprep.subr.bf16.mxu0 0
    %5732 = vmatpush1.bf16.msra.mxu0 %v4030
    %5733 = vmatprep.subr.bf16.mxu0 0
    %5734 = vmatpush1.bf16.msra.mxu0 %v4029
    %5735 = vmatprep.subr.bf16.mxu0 0
    %5736 = vmatpush1.bf16.msra.mxu0 %v4028
    %5737 = vmatprep.subr.bf16.mxu0 0
    %5738 = vmatpush1.bf16.msra.mxu0 %v4027
    %5739 = vmatprep.subr.bf16.mxu0 0
    %5740 = vmatpush2.bf16.msra.mxu0 %v4042
    %5741 = vmatprep.subr.bf16.mxu0 0
    %5742 = vmatpush2.bf16.msra.mxu0 %v4041
    %5743 = vmatprep.subr.bf16.mxu0 0
    %5744 = vmatpush2.bf16.msra.mxu0 %v4040
    %5745 = vmatprep.subr.bf16.mxu0 0
    %5746 = vmatpush2.bf16.msra.mxu0 %v4039
    %5747 = vmatprep.subr.bf16.mxu0 0
    %5748 = vmatpush2.bf16.msra.mxu0 %v4038
    %5749 = vmatprep.subr.bf16.mxu0 0
    %5750 = vmatpush2.bf16.msra.mxu0 %v4037
    %5751 = vmatprep.subr.bf16.mxu0 0
    %5752 = vmatpush2.bf16.msra.mxu0 %v4036
    %5753 = vmatprep.subr.bf16.mxu0 0
    %5754 = vmatpush2.bf16.msra.mxu0 %v4035
    %5755 = vmatprep.mubr.bf16.mxu0 %v1455
    %5756 = vmatmul.mubr.bf16.gmra.mxu0 %v1441
    %v5757 = vpop.f32.mrf.mxu0
    %v5758 = vadd.f32 %v5718, %v5757
    %v5759 = vpop.f32.mrf.mxu0
    %v5760 = vpop.f32.mrf.mxu0
    %v5761 = vpop.f32.mrf.mxu0
    %5762 = vdwg.mxu0
    %5763 = vmatprep.subr.bf16.mxu0 0
    %5764 = vmatpush1.bf16.msra.mxu0 %v4050
    %5765 = vmatprep.subr.bf16.mxu0 0
    %5766 = vmatpush1.bf16.msra.mxu0 %v4049
    %5767 = vmatprep.subr.bf16.mxu0 0
    %5768 = vmatpush1.bf16.msra.mxu0 %v4048
    %5769 = vmatprep.subr.bf16.mxu0 0
    %5770 = vmatpush1.bf16.msra.mxu0 %v4047
    %5771 = vmatprep.subr.bf16.mxu0 0
    %5772 = vmatpush1.bf16.msra.mxu0 %v4046
    %5773 = vmatprep.subr.bf16.mxu0 0
    %5774 = vmatpush1.bf16.msra.mxu0 %v4045
    %5775 = vmatprep.subr.bf16.mxu0 0
    %5776 = vmatpush1.bf16.msra.mxu0 %v4044
    %5777 = vmatprep.subr.bf16.mxu0 0
    %5778 = vmatpush1.bf16.msra.mxu0 %v4043
    %5779 = vmatprep.subr.bf16.mxu0 0
    %5780 = vmatpush2.bf16.msra.mxu0 %v4058
    %5781 = vmatprep.subr.bf16.mxu0 0
    %5782 = vmatpush2.bf16.msra.mxu0 %v4057
    %5783 = vmatprep.subr.bf16.mxu0 0
    %5784 = vmatpush2.bf16.msra.mxu0 %v4056
    %5785 = vmatprep.subr.bf16.mxu0 0
    %5786 = vmatpush2.bf16.msra.mxu0 %v4055
    %5787 = vmatprep.subr.bf16.mxu0 0
    %5788 = vmatpush2.bf16.msra.mxu0 %v4054
    %5789 = vmatprep.subr.bf16.mxu0 0
    %5790 = vmatpush2.bf16.msra.mxu0 %v4053
    %5791 = vmatprep.subr.bf16.mxu0 0
    %5792 = vmatpush2.bf16.msra.mxu0 %v4052
    %5793 = vmatprep.subr.bf16.mxu0 0
    %5794 = vmatpush2.bf16.msra.mxu0 %v4051
    %5795 = vmatprep.mubr.bf16.mxu0 %v1465
    %5796 = vmatmul.mubr.bf16.gmra.mxu0 %v1463
    %v5797 = vpop.f32.mrf.mxu0
    %v5798 = vadd.f32 %v5758, %v5797
    %v5799 = vpop.f32.mrf.mxu0
    %v5800 = vpop.f32.mrf.mxu0
    %v5801 = vpop.f32.mrf.mxu0
    %5802 = vdwg.mxu0
    %5803 = vmatprep.subr.bf16.mxu0 0
    %5804 = vmatpush1.bf16.msra.mxu0 %v4066
    %5805 = vmatprep.subr.bf16.mxu0 0
    %5806 = vmatpush1.bf16.msra.mxu0 %v4065
    %5807 = vmatprep.subr.bf16.mxu0 0
    %5808 = vmatpush1.bf16.msra.mxu0 %v4064
    %5809 = vmatprep.subr.bf16.mxu0 0
    %5810 = vmatpush1.bf16.msra.mxu0 %v4063
    %5811 = vmatprep.subr.bf16.mxu0 0
    %5812 = vmatpush1.bf16.msra.mxu0 %v4062
    %5813 = vmatprep.subr.bf16.mxu0 0
    %5814 = vmatpush1.bf16.msra.mxu0 %v4061
    %5815 = vmatprep.subr.bf16.mxu0 0
    %5816 = vmatpush1.bf16.msra.mxu0 %v4060
    %5817 = vmatprep.subr.bf16.mxu0 0
    %5818 = vmatpush1.bf16.msra.mxu0 %v4059
    %5819 = vmatprep.subr.bf16.mxu0 0
    %5820 = vmatpush2.bf16.msra.mxu0 %v4074
    %5821 = vmatprep.subr.bf16.mxu0 0
    %5822 = vmatpush2.bf16.msra.mxu0 %v4073
    %5823 = vmatprep.subr.bf16.mxu0 0
    %5824 = vmatpush2.bf16.msra.mxu0 %v4072
    %5825 = vmatprep.subr.bf16.mxu0 0
    %5826 = vmatpush2.bf16.msra.mxu0 %v4071
    %5827 = vmatprep.subr.bf16.mxu0 0
    %5828 = vmatpush2.bf16.msra.mxu0 %v4070
    %5829 = vmatprep.subr.bf16.mxu0 0
    %5830 = vmatpush2.bf16.msra.mxu0 %v4069
    %5831 = vmatprep.subr.bf16.mxu0 0
    %5832 = vmatpush2.bf16.msra.mxu0 %v4068
    %5833 = vmatprep.subr.bf16.mxu0 0
    %5834 = vmatpush2.bf16.msra.mxu0 %v4067
    %5835 = vmatprep.mubr.bf16.mxu0 %v1462
    %5836 = vmatmul.mubr.bf16.gmra.mxu0 %v1448
    %v5837 = vpop.f32.mrf.mxu0
    %v5838 = vadd.f32 %v5798, %v5837
    %v5839 = vpop.f32.mrf.mxu0
    %v5840 = vpop.f32.mrf.mxu0
    %v5841 = vpop.f32.mrf.mxu0
    %5842 = vdwg.mxu0
    %5843 = vmatprep.subr.bf16.mxu0 0
    %5844 = vmatpush1.bf16.msra.mxu0 %v4082
    %5845 = vmatprep.subr.bf16.mxu0 0
    %5846 = vmatpush1.bf16.msra.mxu0 %v4081
    %5847 = vmatprep.subr.bf16.mxu0 0
    %5848 = vmatpush1.bf16.msra.mxu0 %v4080
    %5849 = vmatprep.subr.bf16.mxu0 0
    %5850 = vmatpush1.bf16.msra.mxu0 %v4079
    %5851 = vmatprep.subr.bf16.mxu0 0
    %5852 = vmatpush1.bf16.msra.mxu0 %v4078
    %5853 = vmatprep.subr.bf16.mxu0 0
    %5854 = vmatpush1.bf16.msra.mxu0 %v4077
    %5855 = vmatprep.subr.bf16.mxu0 0
    %5856 = vmatpush1.bf16.msra.mxu0 %v4076
    %5857 = vmatprep.subr.bf16.mxu0 0
    %5858 = vmatpush1.bf16.msra.mxu0 %v4075
    %5859 = vmatprep.subr.bf16.mxu0 0
    %5860 = vmatpush2.bf16.msra.mxu0 %v4090
    %5861 = vmatprep.subr.bf16.mxu0 0
    %5862 = vmatpush2.bf16.msra.mxu0 %v4089
    %5863 = vmatprep.subr.bf16.mxu0 0
    %5864 = vmatpush2.bf16.msra.mxu0 %v4088
    %5865 = vmatprep.subr.bf16.mxu0 0
    %5866 = vmatpush2.bf16.msra.mxu0 %v4087
    %5867 = vmatprep.subr.bf16.mxu0 0
    %5868 = vmatpush2.bf16.msra.mxu0 %v4086
    %5869 = vmatprep.subr.bf16.mxu0 0
    %5870 = vmatpush2.bf16.msra.mxu0 %v4085
    %5871 = vmatprep.subr.bf16.mxu0 0
    %5872 = vmatpush2.bf16.msra.mxu0 %v4084
    %5873 = vmatprep.subr.bf16.mxu0 0
    %5874 = vmatpush2.bf16.msra.mxu0 %v4083
    %5875 = vmatprep.mubr.bf16.mxu0 %v1466
    %5876 = vmatmul.mubr.bf16.gmra.mxu0 %v1464
    %v5877 = vpop.f32.mrf.mxu0
    %v5878 = vadd.f32 %v5838, %v5877
    %v5879 = vpop.f32.mrf.mxu0
    %v5880 = vpop.f32.mrf.mxu0
    %v5881 = vpop.f32.mrf.mxu0
    %5882 = vdwg.mxu0
    %v5883 = vmax.f32 %v5878, 0.0
    %v5884 = vpack.c.bf16 %v5883, %v5883
    %v5885 = vld [vmem:[%s3] sm:$0xf]
    %v5886 = vld [vmem:[%s3 + $0x4] sm:$0xf]
    %v5887 = vld [vmem:[%s3 + $0x8] sm:$0xf]
    %v5888 = vld [vmem:[%s3 + $0xc] sm:$0xf]
    %v5889 = vld [vmem:[%s3 + $0x10] sm:$0xf]
    %v5890 = vld [vmem:[%s3 + $0x14] sm:$0xf]
    %v5891 = vld [vmem:[%s3 + $0x18] sm:$0xf]
    %v5892 = vld [vmem:[%s3 + $0x1c] sm:$0xf]
    %v5893 = vld [vmem:[%s3 + $0x20] sm:$0xf]
    %v5894 = vld [vmem:[%s3 + $0x24] sm:$0xf]
    %v5895 = vld [vmem:[%s3 + $0x28] sm:$0xf]
    %v5896 = vld [vmem:[%s3 + $0x2c] sm:$0xf]
    %v5897 = vld [vmem:[%s3 + $0x30] sm:$0xf]
    %v5898 = vld [vmem:[%s3 + $0x34] sm:$0xf]
    %v5899 = vld [vmem:[%s3 + $0x38] sm:$0xf]
    %v5900 = vld [vmem:[%s3 + $0x3c] sm:$0xf]
    %v5901 = vld [vmem:[%s4] sm:$0x1]
    %v5903 = vlaneseq
    %v5904 = vshrl.u32 %v5903, 7
    %v5905 = vsub.s32 0, %v5904
    %v5906 = vrot.slane %v5901, %v5905
    %v5924 = vunpack.c.l.b16 %v5885
    %v5925 = vunpack.c.l.b16 %v5886
    %v5926 = vunpack.c.l.b16 %v5887
    %v5927 = vunpack.c.l.b16 %v5888
    %v5928 = vunpack.c.l.b16 %v5889
    %v5929 = vunpack.c.l.b16 %v5890
    %v5930 = vunpack.c.l.b16 %v5891
    %v5931 = vunpack.c.l.b16 %v5892
    %v5932 = vunpack.c.l.b16 %v5893
    %v5933 = vunpack.c.l.b16 %v5894
    %v5934 = vunpack.c.l.b16 %v5895
    %v5935 = vunpack.c.l.b16 %v5896
    %v5936 = vunpack.c.l.b16 %v5897
    %v5937 = vunpack.c.l.b16 %v5898
    %v5938 = vunpack.c.l.b16 %v5899
    %v5939 = vunpack.c.l.b16 %v5900
    %v5940 = vpack.c.b16 %v5925, %v5924
    %v5941 = vpack.c.b16 %v5927, %v5926
    %v5942 = vpack.c.b16 %v5929, %v5928
    %v5943 = vpack.c.b16 %v5931, %v5930
    %v5944 = vpack.c.b16 %v5933, %v5932
    %v5945 = vpack.c.b16 %v5935, %v5934
    %v5946 = vpack.c.b16 %v5937, %v5936
    %v5947 = vpack.c.b16 %v5939, %v5938
    %5956 = vmatprep.subr.bf16.mxu0 0
    %5957 = vmatpush1.bf16.msra.mxu0 %v5947
    %5958 = vmatprep.subr.bf16.mxu0 0
    %5959 = vmatpush1.bf16.msra.mxu0 %v5946
    %5960 = vmatprep.subr.bf16.mxu0 0
    %5961 = vmatpush1.bf16.msra.mxu0 %v5945
    %5962 = vmatprep.subr.bf16.mxu0 0
    %5963 = vmatpush1.bf16.msra.mxu0 %v5944
    %5964 = vmatprep.subr.bf16.mxu0 0
    %5965 = vmatpush1.bf16.msra.mxu0 %v5943
    %5966 = vmatprep.subr.bf16.mxu0 0
    %5967 = vmatpush1.bf16.msra.mxu0 %v5942
    %5968 = vmatprep.subr.bf16.mxu0 0
    %5969 = vmatpush1.bf16.msra.mxu0 %v5941
    %5970 = vmatprep.subr.bf16.mxu0 0
    %5971 = vmatpush1.bf16.msra.mxu0 %v5940
    %5972 = vmatprep.subr.bf16.mxu0 0
    %5973 = vmatpush2.bf16.msra.mxu0 0
    %5974 = vmatprep.subr.bf16.mxu0 0
    %5975 = vmatpush2.bf16.msra.mxu0 0
    %5976 = vmatprep.subr.bf16.mxu0 0
    %5977 = vmatpush2.bf16.msra.mxu0 0
    %5978 = vmatprep.subr.bf16.mxu0 0
    %5979 = vmatpush2.bf16.msra.mxu0 0
    %5980 = vmatprep.subr.bf16.mxu0 0
    %5981 = vmatpush2.bf16.msra.mxu0 0
    %5982 = vmatprep.subr.bf16.mxu0 0
    %5983 = vmatpush2.bf16.msra.mxu0 0
    %5984 = vmatprep.subr.bf16.mxu0 0
    %5985 = vmatpush2.bf16.msra.mxu0 0
    %5986 = vmatprep.subr.bf16.mxu0 0
    %5987 = vmatpush2.bf16.msra.mxu0 0
    %5988 = vmatprep.mubr.bf16.mxu0 0
    %5989 = vmatmul.mubr.bf16.gmra.mxu0 %v5884
    %v5990 = vpop.f32.mrf.mxu0
    %v5991 = vadd.f32 %v5906, %v5990
    %v5992 = vpop.f32.mrf.mxu0
    %v5993 = vpop.f32.mrf.mxu0
    %v5994 = vpop.f32.mrf.mxu0
    %5995 = vdwg.mxu0
    %v5996 = vmax.f32 %v5991, 0.0
    %v5997 = vpack.c.bf16 %v5996, %v5996
    %v5998 = vld [vmem:[%s5] sm:$0xf]
    %v5999 = vld [vmem:[%s5 + $0x4] sm:$0xf]
    %v6000 = vld [vmem:[%s5 + $0x8] sm:$0xf]
    %v6001 = vld [vmem:[%s5 + $0xc] sm:$0xf]
    %v6002 = vld [vmem:[%s5 + $0x10] sm:$0xf]
    %v6003 = vld [vmem:[%s5 + $0x14] sm:$0xf]
    %v6004 = vld [vmem:[%s5 + $0x18] sm:$0xf]
    %v6005 = vld [vmem:[%s5 + $0x1c] sm:$0xf]
    %v6006 = vld [vmem:[%s5 + $0x20] sm:$0xf]
    %v6007 = vld [vmem:[%s5 + $0x24] sm:$0xf]
    %v6008 = vld [vmem:[%s5 + $0x28] sm:$0xf]
    %v6009 = vld [vmem:[%s5 + $0x2c] sm:$0xf]
    %v6010 = vld [vmem:[%s5 + $0x30] sm:$0xf]
    %v6011 = vld [vmem:[%s5 + $0x34] sm:$0xf]
    %v6012 = vld [vmem:[%s5 + $0x38] sm:$0xf]
    %v6013 = vld [vmem:[%s5 + $0x3c] sm:$0xf]
    %v6014 = vld [vmem:[%s6] sm:$0x1]
    %v6016 = vlaneseq
    %v6017 = vshrl.u32 %v6016, 7
    %v6018 = vsub.s32 0, %v6017
    %v6019 = vrot.slane %v6014, %v6018
    %v6037 = vunpack.c.l.b16 %v5998
    %v6038 = vunpack.c.l.b16 %v5999
    %v6039 = vunpack.c.l.b16 %v6000
    %v6040 = vunpack.c.l.b16 %v6001
    %v6041 = vunpack.c.l.b16 %v6002
    %v6042 = vunpack.c.l.b16 %v6003
    %v6043 = vunpack.c.l.b16 %v6004
    %v6044 = vunpack.c.l.b16 %v6005
    %v6045 = vunpack.c.l.b16 %v6006
    %v6046 = vunpack.c.l.b16 %v6007
    %v6047 = vunpack.c.l.b16 %v6008
    %v6048 = vunpack.c.l.b16 %v6009
    %v6049 = vunpack.c.l.b16 %v6010
    %v6050 = vunpack.c.l.b16 %v6011
    %v6051 = vunpack.c.l.b16 %v6012
    %v6052 = vunpack.c.l.b16 %v6013
    %v6053 = vpack.c.b16 %v6038, %v6037
    %v6054 = vpack.c.b16 %v6040, %v6039
    %v6055 = vpack.c.b16 %v6042, %v6041
    %v6056 = vpack.c.b16 %v6044, %v6043
    %v6057 = vpack.c.b16 %v6046, %v6045
    %v6058 = vpack.c.b16 %v6048, %v6047
    %v6059 = vpack.c.b16 %v6050, %v6049
    %v6060 = vpack.c.b16 %v6052, %v6051
    %6069 = vmatprep.subr.bf16.mxu0 0
    %6070 = vmatpush1.bf16.msra.mxu0 %v6060
    %6071 = vmatprep.subr.bf16.mxu0 0
    %6072 = vmatpush1.bf16.msra.mxu0 %v6059
    %6073 = vmatprep.subr.bf16.mxu0 0
    %6074 = vmatpush1.bf16.msra.mxu0 %v6058
    %6075 = vmatprep.subr.bf16.mxu0 0
    %6076 = vmatpush1.bf16.msra.mxu0 %v6057
    %6077 = vmatprep.subr.bf16.mxu0 0
    %6078 = vmatpush1.bf16.msra.mxu0 %v6056
    %6079 = vmatprep.subr.bf16.mxu0 0
    %6080 = vmatpush1.bf16.msra.mxu0 %v6055
    %6081 = vmatprep.subr.bf16.mxu0 0
    %6082 = vmatpush1.bf16.msra.mxu0 %v6054
    %6083 = vmatprep.subr.bf16.mxu0 0
    %6084 = vmatpush1.bf16.msra.mxu0 %v6053
    %6085 = vmatprep.subr.bf16.mxu0 0
    %6086 = vmatpush2.bf16.msra.mxu0 0
    %6087 = vmatprep.subr.bf16.mxu0 0
    %6088 = vmatpush2.bf16.msra.mxu0 0
    %6089 = vmatprep.subr.bf16.mxu0 0
    %6090 = vmatpush2.bf16.msra.mxu0 0
    %6091 = vmatprep.subr.bf16.mxu0 0
    %6092 = vmatpush2.bf16.msra.mxu0 0
    %6093 = vmatprep.subr.bf16.mxu0 0
    %6094 = vmatpush2.bf16.msra.mxu0 0
    %6095 = vmatprep.subr.bf16.mxu0 0
    %6096 = vmatpush2.bf16.msra.mxu0 0
    %6097 = vmatprep.subr.bf16.mxu0 0
    %6098 = vmatpush2.bf16.msra.mxu0 0
    %6099 = vmatprep.subr.bf16.mxu0 0
    %6100 = vmatpush2.bf16.msra.mxu0 0
    %6101 = vmatprep.mubr.bf16.mxu0 0
    %6102 = vmatmul.mubr.bf16.gmra.mxu0 %v5997
    %v6103 = vpop.f32.mrf.mxu0
    %v6104 = vadd.f32 %v6019, %v6103
    %v6105 = vpop.f32.mrf.mxu0
    %v6106 = vpop.f32.mrf.mxu0
    %v6107 = vpop.f32.mrf.mxu0
    %6108 = vdwg.mxu0
    %vm6109 = vcmask 74752
    %6110 = vst.msk [vmem:[#allocation2] sm:$0x3] %vm6109, %v6104
    // Predicated region
    $region30: #{cifar_net_forward.5} parent=1 // pred_check
      _
    $region31: #{cifar_net_forward.5} parent=1 // pred_check_branch
      %6112 = sbr.rel (0) target = $region33
    $region32: #{cifar_net_forward.5} parent=1 // pred_region
      %s6114 = ssub.s32 32, 32
      %6115 = vsyncadd [#allocation3], %s6114
      %s6117 = sshll.u32 [#allocation2], 4
      %s6118 = int_to_ptr.vmem [resolvable:$true] %s6117
      %6120 = dma.vmem_to_hbm [thread:$0]  %s6118, 32, %s7, [#allocation3]
    $region33: #{cifar_net_forward.5} parent=1 // pred_fallthru
      _
    // Predicated region
    $region34: #{cifar_net_forward.5} parent=1 // pred_check
      _
    $region35: #{cifar_net_forward.5} parent=1 // pred_check_branch
      %6122 = sbr.rel (0) target = $region37
    $region36: #{cifar_net_forward.5} parent=1 // pred_region
      %6123 = dma.done [#allocation3], 32
    $region37: #{cifar_net_forward.5} parent=1 // pred_fallthru
      _
    %6124 = vsyncpa [#allocation3], 1

</llo_original>
